<compile_context>
chip_gen: v7x
topology: tpu7x:2x2x1
jax: 0.10.0
libtpu: 0.0.40
codegen_flags: <defaults>
</compile_context>

<pallas_src>
import functools

import jax
import jax.numpy as jnp
from jax import lax
from jax.experimental import pallas as pl
from jax.experimental.pallas import tpu as pltpu

LANE = 128  # padded channel width of every intermediate activation

CONV_CFG = [  # (out_c, in_c, kernel, stride, pad)  -- matches the nn.Module
    (32, 3, 8, 4, 2),
    (64, 32, 4, 2, 1),
    (128, 64, 3, 2, 1),
    (256, 128, 3, 2, 1),
]


def _out_hw(h, w, k, s, p):
    return (h + 2 * p - k) // s + 1, (w + 2 * p - k) // s + 1


# ----------------------------------------------------------------------------
# Parameter construction (raw, PyTorch-layout params) + one-time kernel prep
# ----------------------------------------------------------------------------
def init_params(key, input_shape=(3, 32, 32), hidden_dim=64, output_dim=2):
    params = {}
    keys = jax.random.split(key, 14)
    ki = 0
    for idx, (oc, ic, k, s, p) in enumerate(CONV_CFG, 1):
        bound = 1.0 / (ic * k * k) ** 0.5
        w = jax.random.uniform(keys[ki], (oc, ic, k, k), jnp.float32, -bound, bound); ki += 1
        b = jax.random.uniform(keys[ki], (oc,), jnp.float32, -bound, bound); ki += 1
        params[f"conv{idx}"] = (w, b)

    # feature_size exactly as _get_conv_output_size would compute it
    _, H, W = input_shape
    for (_, _, k, s, p) in CONV_CFG:
        H, W = _out_hw(H, W, k, s, p)
    feature_size = CONV_CFG[-1][0] * H * W

    fcs = [(feature_size, hidden_dim),
           (hidden_dim, hidden_dim // 2),
           (hidden_dim // 2, output_dim)]
    for idx, (fin, fout) in enumerate(fcs, 1):
        bound = 1.0 / fin ** 0.5
        w = jax.random.uniform(keys[ki], (fin, fout), jnp.float32, -bound, bound); ki += 1
        b = jax.random.uniform(keys[ki], (fout,), jnp.float32, -bound, bound); ki += 1
        params[f"fc{idx}"] = (w, b)
    return params


def prepare_params(params):
    """One-time weight prep (hoisted out of the forward hot path).

    conv1 -> plain im2col weight [C*k*k, 128]   (out channels zero padded)
    conv2-4 -> block-row weights [k*k*128, OCpad]: row index is
               (ki,kj)-block-major, in-channel minor -- matching the in-kernel
               im2col layout (one 128-lane block per kernel tap).
    """
    prep = {}
    w1, b1 = params["conv1"]
    oc1, ic1, k1, _ = w1.shape
    w1m = w1.reshape(oc1, ic1 * k1 * k1).T                       # [(c,ki,kj), oc]
    prep["w1"] = jnp.pad(w1m, ((0, 0), (0, LANE - oc1))).astype(jnp.float32)
    prep["b1"] = jnp.pad(b1, (0, LANE - oc1)).reshape(1, LANE).astype(jnp.float32)

    for idx in range(2, 5):
        w, b = params[f"conv{idx}"]
        oc, c, k, _ = w.shape
        ocp = max(oc, LANE)
        wt = jnp.transpose(w, (2, 3, 1, 0)).reshape(k * k, c, oc)  # [(ki,kj), c, oc]
        wt = jnp.pad(wt, ((0, 0), (0, LANE - c), (0, ocp - oc)))
        prep[f"w{idx}"] = wt.reshape(k * k * LANE, ocp).astype(jnp.float32)
        prep[f"b{idx}"] = jnp.pad(b, (0, ocp - oc)).reshape(1, ocp).astype(jnp.float32)

    for idx in range(1, 4):
        w, b = params[f"fc{idx}"]
        prep[f"wf{idx}"] = w.astype(jnp.float32)
        prep[f"bf{idx}"] = b.reshape(1, -1).astype(jnp.float32)
    return prep


# ----------------------------------------------------------------------------
# conv1 patch extraction (plain JAX, static strided slices only -- no gather)
# ----------------------------------------------------------------------------
def conv1_patches(x, k, s, p):
    """NCHW -> im2col patches [OH*OW*B, C*k*k].

    Row order is (oh, ow, b) (spatial-major, batch-minor) which is the layout
    the in-kernel im2col expects; feature order is (c, ki, kj), matching
    torch's weight.view(OC, C*k*k).
    """
    B, C, H, W = x.shape
    OH, OW = _out_hw(H, W, k, s, p)
    xp = jnp.pad(x, ((0, 0), (0, 0), (p, p), (p, p)))
    rows = jnp.stack(
        [xp[:, :, ki:ki + (OH - 1) * s + 1:s, :] for ki in range(k)], axis=2)
    pats = jnp.stack(
        [rows[..., kj:kj + (OW - 1) * s + 1:s] for kj in range(k)], axis=3)
    # pats: [B, C, ki, kj, OH, OW]
    pats = pats.transpose(4, 5, 0, 1, 2, 3).reshape(OH * OW * B, C * k * k)
    return pats, OH, OW


# ----------------------------------------------------------------------------
# Fused Pallas kernel: conv1..conv4 + fc1..fc3, all intermediates in VMEM
# ----------------------------------------------------------------------------
def _im2col_copy(dst_ref, src_ref, ih_n, iw_n, k, s, p, batch):
    """Build an im2col matrix in VMEM with static, lane-dense pl.ds copies.

    src_ref rows are (spatial_pos, batch), 128 lanes (padded channels).
    dst_ref rows are (out_pos, batch); columns are k*k LANE-wide blocks,
    (ki,kj)-major.  Padding taps are left as zeros.
    """
    oh_n = (ih_n + 2 * p - k) // s + 1
    ow_n = (iw_n + 2 * p - k) // s + 1
    dst_ref[...] = jnp.zeros_like(dst_ref)
    for oh in range(oh_n):
        for ow in range(ow_n):
            drow = (oh * ow_n + ow) * batch
            for ki in range(k):
                ih = oh * s + ki - p
                if ih < 0 or ih >= ih_n:
                    continue
                for kj in range(k):
                    iw = ow * s + kj - p
                    if iw < 0 or iw >= iw_n:
                        continue
                    srow = (ih * iw_n + iw) * batch
                    dst_ref[pl.ds(drow, batch),
                            pl.ds((ki * k + kj) * LANE, LANE)] = (
                        src_ref[pl.ds(srow, batch), :])


def _fused_forward_kernel(
        p1_ref, w1_ref, b1_ref, w2_ref, b2_ref, w3_ref, b3_ref, w4_ref, b4_ref,
        wf1_ref, bf1_ref, wf2_ref, bf2_ref, wf3_ref, bf3_ref,
        out_ref,
        h1_ref, p2_ref, h2_ref, p3_ref, h3_ref, p4_ref,
        *, batch, spatial):
    # spatial[i] = (OH, OW) of conv layer (i+1)'s output  (i.e. conv(i+2)'s input)

    def mm_bias_act(x, w_ref, b_ref, relu=True):
        acc = jnp.dot(x, w_ref[...], preferred_element_type=jnp.float32) + b_ref[...]
        return jnp.maximum(acc, 0.0) if relu else acc

    # conv1: single im2col matmul (patches built outside with static slices)
    h1_ref[...] = mm_bias_act(p1_ref[...], w1_ref, b1_ref)

    act_refs = [h1_ref, h2_ref, h3_ref]
    pat_refs = [p2_ref, p3_ref, p4_ref]
    w_refs = [w2_ref, w3_ref, w4_ref]
    b_refs = [b2_ref, b3_ref, b4_ref]
    conv4_out = None
    for li in range(3):  # conv2, conv3, conv4 -- all data stays in VMEM
        k, s, p = CONV_CFG[li + 1][2:]
        ih, iw = spatial[li]
        _im2col_copy(pat_refs[li], act_refs[li], ih, iw, k, s, p, batch)
        y = mm_bias_act(pat_refs[li][...], w_refs[li], b_refs[li])
        if li < 2:
            act_refs[li + 1][...] = y
        else:
            conv4_out = y                      # [B, 256], final spatial is 1x1

    # FC head.
    # TODO(synk): nn.Dropout(0.3) is identity here (inference); training-mode
    # RNG mask not implemented.
    z = mm_bias_act(conv4_out, wf1_ref, bf1_ref)
    z = mm_bias_act(z, wf2_ref, bf2_ref)
    out_ref[...] = mm_bias_act(z, wf3_ref, bf3_ref, relu=False)


# ----------------------------------------------------------------------------
# Forward wrapper (single pallas_call on the hot path)
# ----------------------------------------------------------------------------
def vision_control_net_forward(prep, x):
    """x: [B, 3, H, W] float32 (NCHW, torch interface) -> [B, output_dim]."""
    B = x.shape[0]
    _, _, k1, s1, pd1 = CONV_CFG[0]
    patches1, OH1, OW1 = conv1_patches(x.astype(jnp.float32), k1, s1, pd1)

    dims = [(OH1, OW1)]
    for (_, _, k, s, p) in CONV_CFG[1:]:
        dims.append(_out_hw(dims[-1][0], dims[-1][1], k, s, p))
    (OH1, OW1), (OH2, OW2), (OH3, OW3), (OH4, OW4) = dims
    assert OH4 == 1 and OW4 == 1, "fused FC junction assumes 1x1 final conv spatial"
    # TODO(synk): for input sizes whose conv stack does not end at 1x1 spatial
    # (e.g. 224x224 -> 7x7), the torch x.view(B,-1) flatten would need an extra
    # in-kernel spatial->lane fold / fc1 row permutation; not implemented here.

    out_dim = prep["wf3"].shape[1]
    kernel = functools.partial(
        _fused_forward_kernel, batch=B,
        spatial=((OH1, OW1), (OH2, OW2), (OH3, OW3)))

    operands = [
        patches1,
        prep["w1"], prep["b1"], prep["w2"], prep["b2"],
        prep["w3"], prep["b3"], prep["w4"], prep["b4"],
        prep["wf1"], prep["bf1"], prep["wf2"], prep["bf2"],
        prep["wf3"], prep["bf3"],
    ]
    in_specs = [pl.BlockSpec(op.shape, lambda i: (0, 0)) for op in operands]
    k2, k3, k4 = CONV_CFG[1][2], CONV_CFG[2][2], CONV_CFG[3][2]
    scratch_shapes = [
        pltpu.VMEM((OH1 * OW1 * B, LANE), jnp.float32),            # h1
        pltpu.VMEM((OH2 * OW2 * B, k2 * k2 * LANE), jnp.float32),  # conv2 im2col
        pltpu.VMEM((OH2 * OW2 * B, LANE), jnp.float32),            # h2
        pltpu.VMEM((OH3 * OW3 * B, k3 * k3 * LANE), jnp.float32),  # conv3 im2col
        pltpu.VMEM((OH3 * OW3 * B, LANE), jnp.float32),            # h3
        pltpu.VMEM((OH4 * OW4 * B, k4 * k4 * LANE), jnp.float32),  # conv4 im2col
    ]
    return pl.pallas_call(
        kernel,
        out_shape=jax.ShapeDtypeStruct((B, out_dim), jnp.float32),
        grid=(1,),
        in_specs=in_specs,
        out_specs=pl.BlockSpec((B, out_dim), lambda i: (0, 0)),
        scratch_shapes=scratch_shapes,
        compiler_params=pltpu.CompilerParams(
            dimension_semantics=("arbitrary",)),
    )(*operands)


# ----------------------------------------------------------------------------
# Pure-JAX reference (correctness check only)
# ----------------------------------------------------------------------------
def reference_forward(params, x):
    for idx, (oc, ic, k, s, p) in enumerate(CONV_CFG, 1):
        w, b = params[f"conv{idx}"]
        x = lax.conv_general_dilated(
            x, w, (s, s), [(p, p), (p, p)],
            dimension_numbers=("NCHW", "OIHW", "NCHW"))
        x = jnp.maximum(x + b[None, :, None, None], 0.0)
    feat = x.reshape(x.shape[0], -1)
    w, b = params["fc1"]; feat = jnp.maximum(feat @ w + b, 0.0)
    w, b = params["fc2"]; feat = jnp.maximum(feat @ w + b, 0.0)
    w, b = params["fc3"]; feat = feat @ w + b
    return feat


if __name__ == "__main__":
    key = jax.random.PRNGKey(0)
    pkey, xkey = jax.random.split(key)

    # Small shapes consistent with the module: B=2, 3x32x32 input,
    # hidden_dim=64, output_dim=2  ->  conv feature_size = 256*1*1.
    params = init_params(pkey, input_shape=(3, 32, 32), hidden_dim=64, output_dim=2)
    prep = prepare_params(params)          # one-time weight prep (hoisted)
    x = jax.random.normal(xkey, (2, 3, 32, 32), dtype=jnp.float32)

    fwd = jax.jit(vision_control_net_forward)
    out = jax.block_until_ready(fwd(prep, x))
    assert out.shape == (2, 2), out.shape

    ref = jax.block_until_ready(reference_forward(params, x))
    assert jnp.allclose(out, ref, rtol=1e-3, atol=1e-3), (out, ref)

    print("KERNEL_OK")
</pallas_src>

<mosaic_0001>
module attributes {stable_mosaic.version = 11 : i64} {
  func.func @_fused_forward_kernel(%arg0: i32, %arg1: memref<128x192xf32, #tpu.memory_space<vmem>>, %arg2: memref<192x128xf32, #tpu.memory_space<vmem>>, %arg3: memref<1x128xf32, #tpu.memory_space<vmem>>, %arg4: memref<2048x128xf32, #tpu.memory_space<vmem>>, %arg5: memref<1x128xf32, #tpu.memory_space<vmem>>, %arg6: memref<1152x128xf32, #tpu.memory_space<vmem>>, %arg7: memref<1x128xf32, #tpu.memory_space<vmem>>, %arg8: memref<1152x256xf32, #tpu.memory_space<vmem>>, %arg9: memref<1x256xf32, #tpu.memory_space<vmem>>, %arg10: memref<256x64xf32, #tpu.memory_space<vmem>>, %arg11: memref<1x64xf32, #tpu.memory_space<vmem>>, %arg12: memref<64x32xf32, #tpu.memory_space<vmem>>, %arg13: memref<1x32xf32, #tpu.memory_space<vmem>>, %arg14: memref<32x2xf32, #tpu.memory_space<vmem>>, %arg15: memref<1x2xf32, #tpu.memory_space<vmem>>, %arg16: memref<2x2xf32, #tpu.memory_space<vmem>>, %arg17: memref<128x128xf32, #tpu.memory_space<vmem>>, %arg18: memref<32x2048xf32, #tpu.memory_space<vmem>>, %arg19: memref<32x128xf32, #tpu.memory_space<vmem>>, %arg20: memref<8x1152xf32, #tpu.memory_space<vmem>>, %arg21: memref<8x128xf32, #tpu.memory_space<vmem>>, %arg22: memref<2x1152xf32, #tpu.memory_space<vmem>>) attributes {dimension_semantics = [#tpu.dimension_semantics<arbitrary>], iteration_bounds = array<i64: 1>, scalar_prefetch = 0 : i64, scratch_operands = 6 : i64, tpu.core_type = #tpu.core_type<tc>, window_params = [{pipeline_mode = #tpu.pipeline_mode<synchronous>, transform_indices = @transform_0, window_bounds = array<i64: 128, 192>}, {pipeline_mode = #tpu.pipeline_mode<synchronous>, transform_indices = @transform_1, window_bounds = array<i64: 192, 128>}, {pipeline_mode = #tpu.pipeline_mode<synchronous>, transform_indices = @transform_2, window_bounds = array<i64: 1, 128>}, {pipeline_mode = #tpu.pipeline_mode<synchronous>, transform_indices = @transform_3, window_bounds = array<i64: 2048, 128>}, {pipeline_mode = #tpu.pipeline_mode<synchronous>, transform_indices = @transform_4, window_bounds = array<i64: 1, 128>}, {pipeline_mode = #tpu.pipeline_mode<synchronous>, transform_indices = @transform_5, window_bounds = array<i64: 1152, 128>}, {pipeline_mode = #tpu.pipeline_mode<synchronous>, transform_indices = @transform_6, window_bounds = array<i64: 1, 128>}, {pipeline_mode = #tpu.pipeline_mode<synchronous>, transform_indices = @transform_7, window_bounds = array<i64: 1152, 256>}, {pipeline_mode = #tpu.pipeline_mode<synchronous>, transform_indices = @transform_8, window_bounds = array<i64: 1, 256>}, {pipeline_mode = #tpu.pipeline_mode<synchronous>, transform_indices = @transform_9, window_bounds = array<i64: 256, 64>}, {pipeline_mode = #tpu.pipeline_mode<synchronous>, transform_indices = @transform_10, window_bounds = array<i64: 1, 64>}, {pipeline_mode = #tpu.pipeline_mode<synchronous>, transform_indices = @transform_11, window_bounds = array<i64: 64, 32>}, {pipeline_mode = #tpu.pipeline_mode<synchronous>, transform_indices = @transform_12, window_bounds = array<i64: 1, 32>}, {pipeline_mode = #tpu.pipeline_mode<synchronous>, transform_indices = @transform_13, window_bounds = array<i64: 32, 2>}, {pipeline_mode = #tpu.pipeline_mode<synchronous>, transform_indices = @transform_14, window_bounds = array<i64: 1, 2>}, {pipeline_mode = #tpu.pipeline_mode<synchronous>, transform_indices = @transform_15, window_bounds = array<i64: 2, 2>}]} {
    %c0 = arith.constant 0 : index
    %c0_0 = arith.constant 0 : index
    %0 = vector.load %arg1[%c0, %c0_0] : memref<128x192xf32, #tpu.memory_space<vmem>>, vector<128x192xf32>
    %c0_1 = arith.constant 0 : index
    %c0_2 = arith.constant 0 : index
    %1 = vector.load %arg2[%c0_1, %c0_2] : memref<192x128xf32, #tpu.memory_space<vmem>>, vector<192x128xf32>
    %cst = arith.constant dense<0.000000e+00> : vector<128x128xf32>
    %2 = tpu.matmul %0, %1, %cst {dimension_numbers = #tpu.dot_dimension_numbers<[1], [0], [0], [1], [0, 0, 1, 1], [], []>} : vector<128x192xf32>, vector<192x128xf32>, vector<128x128xf32> -> vector<128x128xf32>
    %c0_3 = arith.constant 0 : index
    %c0_4 = arith.constant 0 : index
    %3 = vector.load %arg3[%c0_3, %c0_4] : memref<1x128xf32, #tpu.memory_space<vmem>>, vector<1x128xf32>
    %4 = vector.broadcast %3 : vector<1x128xf32> to vector<128x128xf32>
    %5 = arith.addf %2, %4 : vector<128x128xf32>
    %cst_5 = arith.constant 0.000000e+00 : f32
    %6 = vector.broadcast %cst_5 : f32 to vector<128x128xf32>
    %7 = arith.maximumf %5, %6 : vector<128x128xf32>
    %c0_6 = arith.constant 0 : index
    %c0_7 = arith.constant 0 : index
    %8 = vector.load %arg17[%c0_6, %c0_7] : memref<128x128xf32, #tpu.memory_space<vmem>>, vector<128x128xf32>
    tpu.vector_store %arg17[%c0_6, %c0_7], %7 {strides = array<i32>} : memref<128x128xf32, #tpu.memory_space<vmem>>, vector<128x128xf32>,
    %cst_8 = arith.constant 0.000000e+00 : f32
    %9 = vector.broadcast %cst_8 : f32 to vector<32x2048xf32>
    %c0_9 = arith.constant 0 : index
    %c0_10 = arith.constant 0 : index
    %10 = vector.load %arg18[%c0_9, %c0_10] : memref<32x2048xf32, #tpu.memory_space<vmem>>, vector<32x2048xf32>
    tpu.vector_store %arg18[%c0_9, %c0_10], %9 {strides = array<i32>} : memref<32x2048xf32, #tpu.memory_space<vmem>>, vector<32x2048xf32>,
    %c0_11 = arith.constant 0 : index
    %c0_12 = arith.constant 0 : index
    %11 = vector.load %arg17[%c0_11, %c0_12] : memref<128x128xf32, #tpu.memory_space<vmem>>, vector<2x128xf32>
    %c0_13 = arith.constant 0 : index
    %c640 = arith.constant 640 : index
    %12 = vector.load %arg18[%c0_13, %c640] : memref<32x2048xf32, #tpu.memory_space<vmem>>, vector<2x128xf32>
    tpu.vector_store %arg18[%c0_13, %c640], %11 {strides = array<i32>} : memref<32x2048xf32, #tpu.memory_space<vmem>>, vector<2x128xf32>,
    %c2 = arith.constant 2 : index
    %c0_14 = arith.constant 0 : index
    %13 = vector.load %arg17[%c2, %c0_14] : memref<128x128xf32, #tpu.memory_space<vmem>>, vector<2x128xf32>
    %c0_15 = arith.constant 0 : index
    %c768 = arith.constant 768 : index
    %14 = vector.load %arg18[%c0_15, %c768] : memref<32x2048xf32, #tpu.memory_space<vmem>>, vector<2x128xf32>
    tpu.vector_store %arg18[%c0_15, %c768], %13 {strides = array<i32>} : memref<32x2048xf32, #tpu.memory_space<vmem>>, vector<2x128xf32>,
    %c4 = arith.constant 4 : index
    %c0_16 = arith.constant 0 : index
    %15 = vector.load %arg17[%c4, %c0_16] : memref<128x128xf32, #tpu.memory_space<vmem>>, vector<2x128xf32>
    %c0_17 = arith.constant 0 : index
    %c896 = arith.constant 896 : index
    %16 = vector.load %arg18[%c0_17, %c896] : memref<32x2048xf32, #tpu.memory_space<vmem>>, vector<2x128xf32>
    tpu.vector_store %arg18[%c0_17, %c896], %15 {strides = array<i32>} : memref<32x2048xf32, #tpu.memory_space<vmem>>, vector<2x128xf32>,
    %c16 = arith.constant 16 : index
    %c0_18 = arith.constant 0 : index
    %17 = vector.load %arg17[%c16, %c0_18] : memref<128x128xf32, #tpu.memory_space<vmem>>, vector<2x128xf32>
    %c0_19 = arith.constant 0 : index
    %c1152 = arith.constant 1152 : index
    %18 = vector.load %arg18[%c0_19, %c1152] : memref<32x2048xf32, #tpu.memory_space<vmem>>, vector<2x128xf32>
    tpu.vector_store %arg18[%c0_19, %c1152], %17 {strides = array<i32>} : memref<32x2048xf32, #tpu.memory_space<vmem>>, vector<2x128xf32>,
    %c18 = arith.constant 18 : index
    %c0_20 = arith.constant 0 : index
    %19 = vector.load %arg17[%c18, %c0_20] : memref<128x128xf32, #tpu.memory_space<vmem>>, vector<2x128xf32>
    %c0_21 = arith.constant 0 : index
    %c1280 = arith.constant 1280 : index
    %20 = vector.load %arg18[%c0_21, %c1280] : memref<32x2048xf32, #tpu.memory_space<vmem>>, vector<2x128xf32>
    tpu.vector_store %arg18[%c0_21, %c1280], %19 {strides = array<i32>} : memref<32x2048xf32, #tpu.memory_space<vmem>>, vector<2x128xf32>,
    %c20 = arith.constant 20 : index
    %c0_22 = arith.constant 0 : index
    %21 = vector.load %arg17[%c20, %c0_22] : memref<128x128xf32, #tpu.memory_space<vmem>>, vector<2x128xf32>
    %c0_23 = arith.constant 0 : index
    %c1408 = arith.constant 1408 : index
    %22 = vector.load %arg18[%c0_23, %c1408] : memref<32x2048xf32, #tpu.memory_space<vmem>>, vector<2x128xf32>
    tpu.vector_store %arg18[%c0_23, %c1408], %21 {strides = array<i32>} : memref<32x2048xf32, #tpu.memory_space<vmem>>, vector<2x128xf32>,
    %c32 = arith.constant 32 : index
    %c0_24 = arith.constant 0 : index
    %23 = vector.load %arg17[%c32, %c0_24] : memref<128x128xf32, #tpu.memory_space<vmem>>, vector<2x128xf32>
    %c0_25 = arith.constant 0 : index
    %c1664 = arith.constant 1664 : index
    %24 = vector.load %arg18[%c0_25, %c1664] : memref<32x2048xf32, #tpu.memory_space<vmem>>, vector<2x128xf32>
    tpu.vector_store %arg18[%c0_25, %c1664], %23 {strides = array<i32>} : memref<32x2048xf32, #tpu.memory_space<vmem>>, vector<2x128xf32>,
    %c34 = arith.constant 34 : index
    %c0_26 = arith.constant 0 : index
    %25 = vector.load %arg17[%c34, %c0_26] : memref<128x128xf32, #tpu.memory_space<vmem>>, vector<2x128xf32>
    %c0_27 = arith.constant 0 : index
    %c1792 = arith.constant 1792 : index
    %26 = vector.load %arg18[%c0_27, %c1792] : memref<32x2048xf32, #tpu.memory_space<vmem>>, vector<2x128xf32>
    tpu.vector_store %arg18[%c0_27, %c1792], %25 {strides = array<i32>} : memref<32x2048xf32, #tpu.memory_space<vmem>>, vector<2x128xf32>,
    %c36 = arith.constant 36 : index
    %c0_28 = arith.constant 0 : index
    %27 = vector.load %arg17[%c36, %c0_28] : memref<128x128xf32, #tpu.memory_space<vmem>>, vector<2x128xf32>
    %c0_29 = arith.constant 0 : index
    %c1920 = arith.constant 1920 : index
    %28 = vector.load %arg18[%c0_29, %c1920] : memref<32x2048xf32, #tpu.memory_space<vmem>>, vector<2x128xf32>
    tpu.vector_store %arg18[%c0_29, %c1920], %27 {strides = array<i32>} : memref<32x2048xf32, #tpu.memory_space<vmem>>, vector<2x128xf32>,
    %c2_30 = arith.constant 2 : index
    %c0_31 = arith.constant 0 : index
    %29 = vector.load %arg17[%c2_30, %c0_31] : memref<128x128xf32, #tpu.memory_space<vmem>>, vector<2x128xf32>
    %c2_32 = arith.constant 2 : index
    %c512 = arith.constant 512 : index
    %30 = vector.load %arg18[%c2_32, %c512] : memref<32x2048xf32, #tpu.memory_space<vmem>>, vector<2x128xf32>
    tpu.vector_store %arg18[%c2_32, %c512], %29 {strides = array<i32>} : memref<32x2048xf32, #tpu.memory_space<vmem>>, vector<2x128xf32>,
    %c4_33 = arith.constant 4 : index
    %c0_34 = arith.constant 0 : index
    %31 = vector.load %arg17[%c4_33, %c0_34] : memref<128x128xf32, #tpu.memory_space<vmem>>, vector<2x128xf32>
    %c2_35 = arith.constant 2 : index
    %c640_36 = arith.constant 640 : index
    %32 = vector.load %arg18[%c2_35, %c640_36] : memref<32x2048xf32, #tpu.memory_space<vmem>>, vector<2x128xf32>
    tpu.vector_store %arg18[%c2_35, %c640_36], %31 {strides = array<i32>} : memref<32x2048xf32, #tpu.memory_space<vmem>>, vector<2x128xf32>,
    %c6 = arith.constant 6 : index
    %c0_37 = arith.constant 0 : index
    %33 = vector.load %arg17[%c6, %c0_37] : memref<128x128xf32, #tpu.memory_space<vmem>>, vector<2x128xf32>
    %c2_38 = arith.constant 2 : index
    %c768_39 = arith.constant 768 : index
    %34 = vector.load %arg18[%c2_38, %c768_39] : memref<32x2048xf32, #tpu.memory_space<vmem>>, vector<2x128xf32>
    tpu.vector_store %arg18[%c2_38, %c768_39], %33 {strides = array<i32>} : memref<32x2048xf32, #tpu.memory_space<vmem>>, vector<2x128xf32>,
    %c8 = arith.constant 8 : index
    %c0_40 = arith.constant 0 : index
    %35 = vector.load %arg17[%c8, %c0_40] : memref<128x128xf32, #tpu.memory_space<vmem>>, vector<2x128xf32>
    %c2_41 = arith.constant 2 : index
    %c896_42 = arith.constant 896 : index
    %36 = vector.load %arg18[%c2_41, %c896_42] : memref<32x2048xf32, #tpu.memory_space<vmem>>, vector<2x128xf32>
    tpu.vector_store %arg18[%c2_41, %c896_42], %35 {strides = array<i32>} : memref<32x2048xf32, #tpu.memory_space<vmem>>, vector<2x128xf32>,
    %c18_43 = arith.constant 18 : index
    %c0_44 = arith.constant 0 : index
    %37 = vector.load %arg17[%c18_43, %c0_44] : memref<128x128xf32, #tpu.memory_space<vmem>>, vector<2x128xf32>
    %c2_45 = arith.constant 2 : index
    %c1024 = arith.constant 1024 : index
    %38 = vector.load %arg18[%c2_45, %c1024] : memref<32x2048xf32, #tpu.memory_space<vmem>>, vector<2x128xf32>
    tpu.vector_store %arg18[%c2_45, %c1024], %37 {strides = array<i32>} : memref<32x2048xf32, #tpu.memory_space<vmem>>, vector<2x128xf32>,
    %c20_46 = arith.constant 20 : index
    %c0_47 = arith.constant 0 : index
    %39 = vector.load %arg17[%c20_46, %c0_47] : memref<128x128xf32, #tpu.memory_space<vmem>>, vector<2x128xf32>
    %c2_48 = arith.constant 2 : index
    %c1152_49 = arith.constant 1152 : index
    %40 = vector.load %arg18[%c2_48, %c1152_49] : memref<32x2048xf32, #tpu.memory_space<vmem>>, vector<2x128xf32>
    tpu.vector_store %arg18[%c2_48, %c1152_49], %39 {strides = array<i32>} : memref<32x2048xf32, #tpu.memory_space<vmem>>, vector<2x128xf32>,
    %c22 = arith.constant 22 : index
    %c0_50 = arith.constant 0 : index
    %41 = vector.load %arg17[%c22, %c0_50] : memref<128x128xf32, #tpu.memory_space<vmem>>, vector<2x128xf32>
    %c2_51 = arith.constant 2 : index
    %c1280_52 = arith.constant 1280 : index
    %42 = vector.load %arg18[%c2_51, %c1280_52] : memref<32x2048xf32, #tpu.memory_space<vmem>>, vector<2x128xf32>
    tpu.vector_store %arg18[%c2_51, %c1280_52], %41 {strides = array<i32>} : memref<32x2048xf32, #tpu.memory_space<vmem>>, vector<2x128xf32>,
    %c24 = arith.constant 24 : index
    %c0_53 = arith.constant 0 : index
    %43 = vector.load %arg17[%c24, %c0_53] : memref<128x128xf32, #tpu.memory_space<vmem>>, vector<2x128xf32>
    %c2_54 = arith.constant 2 : index
    %c1408_55 = arith.constant 1408 : index
    %44 = vector.load %arg18[%c2_54, %c1408_55] : memref<32x2048xf32, #tpu.memory_space<vmem>>, vector<2x128xf32>
    tpu.vector_store %arg18[%c2_54, %c1408_55], %43 {strides = array<i32>} : memref<32x2048xf32, #tpu.memory_space<vmem>>, vector<2x128xf32>,
    %c34_56 = arith.constant 34 : index
    %c0_57 = arith.constant 0 : index
    %45 = vector.load %arg17[%c34_56, %c0_57] : memref<128x128xf32, #tpu.memory_space<vmem>>, vector<2x128xf32>
    %c2_58 = arith.constant 2 : index
    %c1536 = arith.constant 1536 : index
    %46 = vector.load %arg18[%c2_58, %c1536] : memref<32x2048xf32, #tpu.memory_space<vmem>>, vector<2x128xf32>
    tpu.vector_store %arg18[%c2_58, %c1536], %45 {strides = array<i32>} : memref<32x2048xf32, #tpu.memory_space<vmem>>, vector<2x128xf32>,
    %c36_59 = arith.constant 36 : index
    %c0_60 = arith.constant 0 : index
    %47 = vector.load %arg17[%c36_59, %c0_60] : memref<128x128xf32, #tpu.memory_space<vmem>>, vector<2x128xf32>
    %c2_61 = arith.constant 2 : index
    %c1664_62 = arith.constant 1664 : index
    %48 = vector.load %arg18[%c2_61, %c1664_62] : memref<32x2048xf32, #tpu.memory_space<vmem>>, vector<2x128xf32>
    tpu.vector_store %arg18[%c2_61, %c1664_62], %47 {strides = array<i32>} : memref<32x2048xf32, #tpu.memory_space<vmem>>, vector<2x128xf32>,
    %c38 = arith.constant 38 : index
    %c0_63 = arith.constant 0 : index
    %49 = vector.load %arg17[%c38, %c0_63] : memref<128x128xf32, #tpu.memory_space<vmem>>, vector<2x128xf32>
    %c2_64 = arith.constant 2 : index
    %c1792_65 = arith.constant 1792 : index
    %50 = vector.load %arg18[%c2_64, %c1792_65] : memref<32x2048xf32, #tpu.memory_space<vmem>>, vector<2x128xf32>
    tpu.vector_store %arg18[%c2_64, %c1792_65], %49 {strides = array<i32>} : memref<32x2048xf32, #tpu.memory_space<vmem>>, vector<2x128xf32>,
    %c40 = arith.constant 40 : index
    %c0_66 = arith.constant 0 : index
    %51 = vector.load %arg17[%c40, %c0_66] : memref<128x128xf32, #tpu.memory_space<vmem>>, vector<2x128xf32>
    %c2_67 = arith.constant 2 : index
    %c1920_68 = arith.constant 1920 : index
    %52 = vector.load %arg18[%c2_67, %c1920_68] : memref<32x2048xf32, #tpu.memory_space<vmem>>, vector<2x128xf32>
    tpu.vector_store %arg18[%c2_67, %c1920_68], %51 {strides = array<i32>} : memref<32x2048xf32, #tpu.memory_space<vmem>>, vector<2x128xf32>,
    %c6_69 = arith.constant 6 : index
    %c0_70 = arith.constant 0 : index
    %53 = vector.load %arg17[%c6_69, %c0_70] : memref<128x128xf32, #tpu.memory_space<vmem>>, vector<2x128xf32>
    %c4_71 = arith.constant 4 : index
    %c512_72 = arith.constant 512 : index
    %54 = vector.load %arg18[%c4_71, %c512_72] : memref<32x2048xf32, #tpu.memory_space<vmem>>, vector<2x128xf32>
    tpu.vector_store %arg18[%c4_71, %c512_72], %53 {strides = array<i32>} : memref<32x2048xf32, #tpu.memory_space<vmem>>, vector<2x128xf32>,
    %c8_73 = arith.constant 8 : index
    %c0_74 = arith.constant 0 : index
    %55 = vector.load %arg17[%c8_73, %c0_74] : memref<128x128xf32, #tpu.memory_space<vmem>>, vector<2x128xf32>
    %c4_75 = arith.constant 4 : index
    %c640_76 = arith.constant 640 : index
    %56 = vector.load %arg18[%c4_75, %c640_76] : memref<32x2048xf32, #tpu.memory_space<vmem>>, vector<2x128xf32>
    tpu.vector_store %arg18[%c4_75, %c640_76], %55 {strides = array<i32>} : memref<32x2048xf32, #tpu.memory_space<vmem>>, vector<2x128xf32>,
    %c10 = arith.constant 10 : index
    %c0_77 = arith.constant 0 : index
    %57 = vector.load %arg17[%c10, %c0_77] : memref<128x128xf32, #tpu.memory_space<vmem>>, vector<2x128xf32>
    %c4_78 = arith.constant 4 : index
    %c768_79 = arith.constant 768 : index
    %58 = vector.load %arg18[%c4_78, %c768_79] : memref<32x2048xf32, #tpu.memory_space<vmem>>, vector<2x128xf32>
    tpu.vector_store %arg18[%c4_78, %c768_79], %57 {strides = array<i32>} : memref<32x2048xf32, #tpu.memory_space<vmem>>, vector<2x128xf32>,
    %c12 = arith.constant 12 : index
    %c0_80 = arith.constant 0 : index
    %59 = vector.load %arg17[%c12, %c0_80] : memref<128x128xf32, #tpu.memory_space<vmem>>, vector<2x128xf32>
    %c4_81 = arith.constant 4 : index
    %c896_82 = arith.constant 896 : index
    %60 = vector.load %arg18[%c4_81, %c896_82] : memref<32x2048xf32, #tpu.memory_space<vmem>>, vector<2x128xf32>
    tpu.vector_store %arg18[%c4_81, %c896_82], %59 {strides = array<i32>} : memref<32x2048xf32, #tpu.memory_space<vmem>>, vector<2x128xf32>,
    %c22_83 = arith.constant 22 : index
    %c0_84 = arith.constant 0 : index
    %61 = vector.load %arg17[%c22_83, %c0_84] : memref<128x128xf32, #tpu.memory_space<vmem>>, vector<2x128xf32>
    %c4_85 = arith.constant 4 : index
    %c1024_86 = arith.constant 1024 : index
    %62 = vector.load %arg18[%c4_85, %c1024_86] : memref<32x2048xf32, #tpu.memory_space<vmem>>, vector<2x128xf32>
    tpu.vector_store %arg18[%c4_85, %c1024_86], %61 {strides = array<i32>} : memref<32x2048xf32, #tpu.memory_space<vmem>>, vector<2x128xf32>,
    %c24_87 = arith.constant 24 : index
    %c0_88 = arith.constant 0 : index
    %63 = vector.load %arg17[%c24_87, %c0_88] : memref<128x128xf32, #tpu.memory_space<vmem>>, vector<2x128xf32>
    %c4_89 = arith.constant 4 : index
    %c1152_90 = arith.constant 1152 : index
    %64 = vector.load %arg18[%c4_89, %c1152_90] : memref<32x2048xf32, #tpu.memory_space<vmem>>, vector<2x128xf32>
    tpu.vector_store %arg18[%c4_89, %c1152_90], %63 {strides = array<i32>} : memref<32x2048xf32, #tpu.memory_space<vmem>>, vector<2x128xf32>,
    %c26 = arith.constant 26 : index
    %c0_91 = arith.constant 0 : index
    %65 = vector.load %arg17[%c26, %c0_91] : memref<128x128xf32, #tpu.memory_space<vmem>>, vector<2x128xf32>
    %c4_92 = arith.constant 4 : index
    %c1280_93 = arith.constant 1280 : index
    %66 = vector.load %arg18[%c4_92, %c1280_93] : memref<32x2048xf32, #tpu.memory_space<vmem>>, vector<2x128xf32>
    tpu.vector_store %arg18[%c4_92, %c1280_93], %65 {strides = array<i32>} : memref<32x2048xf32, #tpu.memory_space<vmem>>, vector<2x128xf32>,
    %c28 = arith.constant 28 : index
    %c0_94 = arith.constant 0 : index
    %67 = vector.load %arg17[%c28, %c0_94] : memref<128x128xf32, #tpu.memory_space<vmem>>, vector<2x128xf32>
    %c4_95 = arith.constant 4 : index
    %c1408_96 = arith.constant 1408 : index
    %68 = vector.load %arg18[%c4_95, %c1408_96] : memref<32x2048xf32, #tpu.memory_space<vmem>>, vector<2x128xf32>
    tpu.vector_store %arg18[%c4_95, %c1408_96], %67 {strides = array<i32>} : memref<32x2048xf32, #tpu.memory_space<vmem>>, vector<2x128xf32>,
    %c38_97 = arith.constant 38 : index
    %c0_98 = arith.constant 0 : index
    %69 = vector.load %arg17[%c38_97, %c0_98] : memref<128x128xf32, #tpu.memory_space<vmem>>, vector<2x128xf32>
    %c4_99 = arith.constant 4 : index
    %c1536_100 = arith.constant 1536 : index
    %70 = vector.load %arg18[%c4_99, %c1536_100] : memref<32x2048xf32, #tpu.memory_space<vmem>>, vector<2x128xf32>
    tpu.vector_store %arg18[%c4_99, %c1536_100], %69 {strides = array<i32>} : memref<32x2048xf32, #tpu.memory_space<vmem>>, vector<2x128xf32>,
    %c40_101 = arith.constant 40 : index
    %c0_102 = arith.constant 0 : index
    %71 = vector.load %arg17[%c40_101, %c0_102] : memref<128x128xf32, #tpu.memory_space<vmem>>, vector<2x128xf32>
    %c4_103 = arith.constant 4 : index
    %c1664_104 = arith.constant 1664 : index
    %72 = vector.load %arg18[%c4_103, %c1664_104] : memref<32x2048xf32, #tpu.memory_space<vmem>>, vector<2x128xf32>
    tpu.vector_store %arg18[%c4_103, %c1664_104], %71 {strides = array<i32>} : memref<32x2048xf32, #tpu.memory_space<vmem>>, vector<2x128xf32>,
    %c42 = arith.constant 42 : index
    %c0_105 = arith.constant 0 : index
    %73 = vector.load %arg17[%c42, %c0_105] : memref<128x128xf32, #tpu.memory_space<vmem>>, vector<2x128xf32>
    %c4_106 = arith.constant 4 : index
    %c1792_107 = arith.constant 1792 : index
    %74 = vector.load %arg18[%c4_106, %c1792_107] : memref<32x2048xf32, #tpu.memory_space<vmem>>, vector<2x128xf32>
    tpu.vector_store %arg18[%c4_106, %c1792_107], %73 {strides = array<i32>} : memref<32x2048xf32, #tpu.memory_space<vmem>>, vector<2x128xf32>,
    %c44 = arith.constant 44 : index
    %c0_108 = arith.constant 0 : index
    %75 = vector.load %arg17[%c44, %c0_108] : memref<128x128xf32, #tpu.memory_space<vmem>>, vector<2x128xf32>
    %c4_109 = arith.constant 4 : index
    %c1920_110 = arith.constant 1920 : index
    %76 = vector.load %arg18[%c4_109, %c1920_110] : memref<32x2048xf32, #tpu.memory_space<vmem>>, vector<2x128xf32>
    tpu.vector_store %arg18[%c4_109, %c1920_110], %75 {strides = array<i32>} : memref<32x2048xf32, #tpu.memory_space<vmem>>, vector<2x128xf32>,
    %c10_111 = arith.constant 10 : index
    %c0_112 = arith.constant 0 : index
    %77 = vector.load %arg17[%c10_111, %c0_112] : memref<128x128xf32, #tpu.memory_space<vmem>>, vector<2x128xf32>
    %c6_113 = arith.constant 6 : index
    %c512_114 = arith.constant 512 : index
    %78 = vector.load %arg18[%c6_113, %c512_114] : memref<32x2048xf32, #tpu.memory_space<vmem>>, vector<2x128xf32>
    tpu.vector_store %arg18[%c6_113, %c512_114], %77 {strides = array<i32>} : memref<32x2048xf32, #tpu.memory_space<vmem>>, vector<2x128xf32>,
    %c12_115 = arith.constant 12 : index
    %c0_116 = arith.constant 0 : index
    %79 = vector.load %arg17[%c12_115, %c0_116] : memref<128x128xf32, #tpu.memory_space<vmem>>, vector<2x128xf32>
    %c6_117 = arith.constant 6 : index
    %c640_118 = arith.constant 640 : index
    %80 = vector.load %arg18[%c6_117, %c640_118] : memref<32x2048xf32, #tpu.memory_space<vmem>>, vector<2x128xf32>
    tpu.vector_store %arg18[%c6_117, %c640_118], %79 {strides = array<i32>} : memref<32x2048xf32, #tpu.memory_space<vmem>>, vector<2x128xf32>,
    %c14 = arith.constant 14 : index
    %c0_119 = arith.constant 0 : index
    %81 = vector.load %arg17[%c14, %c0_119] : memref<128x128xf32, #tpu.memory_space<vmem>>, vector<2x128xf32>
    %c6_120 = arith.constant 6 : index
    %c768_121 = arith.constant 768 : index
    %82 = vector.load %arg18[%c6_120, %c768_121] : memref<32x2048xf32, #tpu.memory_space<vmem>>, vector<2x128xf32>
    tpu.vector_store %arg18[%c6_120, %c768_121], %81 {strides = array<i32>} : memref<32x2048xf32, #tpu.memory_space<vmem>>, vector<2x128xf32>,
    %c26_122 = arith.constant 26 : index
    %c0_123 = arith.constant 0 : index
    %83 = vector.load %arg17[%c26_122, %c0_123] : memref<128x128xf32, #tpu.memory_space<vmem>>, vector<2x128xf32>
    %c6_124 = arith.constant 6 : index
    %c1024_125 = arith.constant 1024 : index
    %84 = vector.load %arg18[%c6_124, %c1024_125] : memref<32x2048xf32, #tpu.memory_space<vmem>>, vector<2x128xf32>
    tpu.vector_store %arg18[%c6_124, %c1024_125], %83 {strides = array<i32>} : memref<32x2048xf32, #tpu.memory_space<vmem>>, vector<2x128xf32>,
    %c28_126 = arith.constant 28 : index
    %c0_127 = arith.constant 0 : index
    %85 = vector.load %arg17[%c28_126, %c0_127] : memref<128x128xf32, #tpu.memory_space<vmem>>, vector<2x128xf32>
    %c6_128 = arith.constant 6 : index
    %c1152_129 = arith.constant 1152 : index
    %86 = vector.load %arg18[%c6_128, %c1152_129] : memref<32x2048xf32, #tpu.memory_space<vmem>>, vector<2x128xf32>
    tpu.vector_store %arg18[%c6_128, %c1152_129], %85 {strides = array<i32>} : memref<32x2048xf32, #tpu.memory_space<vmem>>, vector<2x128xf32>,
    %c30 = arith.constant 30 : index
    %c0_130 = arith.constant 0 : index
    %87 = vector.load %arg17[%c30, %c0_130] : memref<128x128xf32, #tpu.memory_space<vmem>>, vector<2x128xf32>
    %c6_131 = arith.constant 6 : index
    %c1280_132 = arith.constant 1280 : index
    %88 = vector.load %arg18[%c6_131, %c1280_132] : memref<32x2048xf32, #tpu.memory_space<vmem>>, vector<2x128xf32>
    tpu.vector_store %arg18[%c6_131, %c1280_132], %87 {strides = array<i32>} : memref<32x2048xf32, #tpu.memory_space<vmem>>, vector<2x128xf32>,
    %c42_133 = arith.constant 42 : index
    %c0_134 = arith.constant 0 : index
    %89 = vector.load %arg17[%c42_133, %c0_134] : memref<128x128xf32, #tpu.memory_space<vmem>>, vector<2x128xf32>
    %c6_135 = arith.constant 6 : index
    %c1536_136 = arith.constant 1536 : index
    %90 = vector.load %arg18[%c6_135, %c1536_136] : memref<32x2048xf32, #tpu.memory_space<vmem>>, vector<2x128xf32>
    tpu.vector_store %arg18[%c6_135, %c1536_136], %89 {strides = array<i32>} : memref<32x2048xf32, #tpu.memory_space<vmem>>, vector<2x128xf32>,
    %c44_137 = arith.constant 44 : index
    %c0_138 = arith.constant 0 : index
    %91 = vector.load %arg17[%c44_137, %c0_138] : memref<128x128xf32, #tpu.memory_space<vmem>>, vector<2x128xf32>
    %c6_139 = arith.constant 6 : index
    %c1664_140 = arith.constant 1664 : index
    %92 = vector.load %arg18[%c6_139, %c1664_140] : memref<32x2048xf32, #tpu.memory_space<vmem>>, vector<2x128xf32>
    tpu.vector_store %arg18[%c6_139, %c1664_140], %91 {strides = array<i32>} : memref<32x2048xf32, #tpu.memory_space<vmem>>, vector<2x128xf32>,
    %c46 = arith.constant 46 : index
    %c0_141 = arith.constant 0 : index
    %93 = vector.load %arg17[%c46, %c0_141] : memref<128x128xf32, #tpu.memory_space<vmem>>, vector<2x128xf32>
    %c6_142 = arith.constant 6 : index
    %c1792_143 = arith.constant 1792 : index
    %94 = vector.load %arg18[%c6_142, %c1792_143] : memref<32x2048xf32, #tpu.memory_space<vmem>>, vector<2x128xf32>
    tpu.vector_store %arg18[%c6_142, %c1792_143], %93 {strides = array<i32>} : memref<32x2048xf32, #tpu.memory_space<vmem>>, vector<2x128xf32>,
    %c16_144 = arith.constant 16 : index
    %c0_145 = arith.constant 0 : index
    %95 = vector.load %arg17[%c16_144, %c0_145] : memref<128x128xf32, #tpu.memory_space<vmem>>, vector<2x128xf32>
    %c8_146 = arith.constant 8 : index
    %c128 = arith.constant 128 : index
    %96 = vector.load %arg18[%c8_146, %c128] : memref<32x2048xf32, #tpu.memory_space<vmem>>, vector<2x128xf32>
    tpu.vector_store %arg18[%c8_146, %c128], %95 {strides = array<i32>} : memref<32x2048xf32, #tpu.memory_space<vmem>>, vector<2x128xf32>,
    %c18_147 = arith.constant 18 : index
    %c0_148 = arith.constant 0 : index
    %97 = vector.load %arg17[%c18_147, %c0_148] : memref<128x128xf32, #tpu.memory_space<vmem>>, vector<2x128xf32>
    %c8_149 = arith.constant 8 : index
    %c256 = arith.constant 256 : index
    %98 = vector.load %arg18[%c8_149, %c256] : memref<32x2048xf32, #tpu.memory_space<vmem>>, vector<2x128xf32>
    tpu.vector_store %arg18[%c8_149, %c256], %97 {strides = array<i32>} : memref<32x2048xf32, #tpu.memory_space<vmem>>, vector<2x128xf32>,
    %c20_150 = arith.constant 20 : index
    %c0_151 = arith.constant 0 : index
    %99 = vector.load %arg17[%c20_150, %c0_151] : memref<128x128xf32, #tpu.memory_space<vmem>>, vector<2x128xf32>
    %c8_152 = arith.constant 8 : index
    %c384 = arith.constant 384 : index
    %100 = vector.load %arg18[%c8_152, %c384] : memref<32x2048xf32, #tpu.memory_space<vmem>>, vector<2x128xf32>
    tpu.vector_store %arg18[%c8_152, %c384], %99 {strides = array<i32>} : memref<32x2048xf32, #tpu.memory_space<vmem>>, vector<2x128xf32>,
    %c32_153 = arith.constant 32 : index
    %c0_154 = arith.constant 0 : index
    %101 = vector.load %arg17[%c32_153, %c0_154] : memref<128x128xf32, #tpu.memory_space<vmem>>, vector<2x128xf32>
    %c8_155 = arith.constant 8 : index
    %c640_156 = arith.constant 640 : index
    %102 = vector.load %arg18[%c8_155, %c640_156] : memref<32x2048xf32, #tpu.memory_space<vmem>>, vector<2x128xf32>
    tpu.vector_store %arg18[%c8_155, %c640_156], %101 {strides = array<i32>} : memref<32x2048xf32, #tpu.memory_space<vmem>>, vector<2x128xf32>,
    %c34_157 = arith.constant 34 : index
    %c0_158 = arith.constant 0 : index
    %103 = vector.load %arg17[%c34_157, %c0_158] : memref<128x128xf32, #tpu.memory_space<vmem>>, vector<2x128xf32>
    %c8_159 = arith.constant 8 : index
    %c768_160 = arith.constant 768 : index
    %104 = vector.load %arg18[%c8_159, %c768_160] : memref<32x2048xf32, #tpu.memory_space<vmem>>, vector<2x128xf32>
    tpu.vector_store %arg18[%c8_159, %c768_160], %103 {strides = array<i32>} : memref<32x2048xf32, #tpu.memory_space<vmem>>, vector<2x128xf32>,
    %c36_161 = arith.constant 36 : index
    %c0_162 = arith.constant 0 : index
    %105 = vector.load %arg17[%c36_161, %c0_162] : memref<128x128xf32, #tpu.memory_space<vmem>>, vector<2x128xf32>
    %c8_163 = arith.constant 8 : index
    %c896_164 = arith.constant 896 : index
    %106 = vector.load %arg18[%c8_163, %c896_164] : memref<32x2048xf32, #tpu.memory_space<vmem>>, vector<2x128xf32>
    tpu.vector_store %arg18[%c8_163, %c896_164], %105 {strides = array<i32>} : memref<32x2048xf32, #tpu.memory_space<vmem>>, vector<2x128xf32>,
    %c48 = arith.constant 48 : index
    %c0_165 = arith.constant 0 : index
    %107 = vector.load %arg17[%c48, %c0_165] : memref<128x128xf32, #tpu.memory_space<vmem>>, vector<2x128xf32>
    %c8_166 = arith.constant 8 : index
    %c1152_167 = arith.constant 1152 : index
    %108 = vector.load %arg18[%c8_166, %c1152_167] : memref<32x2048xf32, #tpu.memory_space<vmem>>, vector<2x128xf32>
    tpu.vector_store %arg18[%c8_166, %c1152_167], %107 {strides = array<i32>} : memref<32x2048xf32, #tpu.memory_space<vmem>>, vector<2x128xf32>,
    %c50 = arith.constant 50 : index
    %c0_168 = arith.constant 0 : index
    %109 = vector.load %arg17[%c50, %c0_168] : memref<128x128xf32, #tpu.memory_space<vmem>>, vector<2x128xf32>
    %c8_169 = arith.constant 8 : index
    %c1280_170 = arith.constant 1280 : index
    %110 = vector.load %arg18[%c8_169, %c1280_170] : memref<32x2048xf32, #tpu.memory_space<vmem>>, vector<2x128xf32>
    tpu.vector_store %arg18[%c8_169, %c1280_170], %109 {strides = array<i32>} : memref<32x2048xf32, #tpu.memory_space<vmem>>, vector<2x128xf32>,
    %c52 = arith.constant 52 : index
    %c0_171 = arith.constant 0 : index
    %111 = vector.load %arg17[%c52, %c0_171] : memref<128x128xf32, #tpu.memory_space<vmem>>, vector<2x128xf32>
    %c8_172 = arith.constant 8 : index
    %c1408_173 = arith.constant 1408 : index
    %112 = vector.load %arg18[%c8_172, %c1408_173] : memref<32x2048xf32, #tpu.memory_space<vmem>>, vector<2x128xf32>
    tpu.vector_store %arg18[%c8_172, %c1408_173], %111 {strides = array<i32>} : memref<32x2048xf32, #tpu.memory_space<vmem>>, vector<2x128xf32>,
    %c64 = arith.constant 64 : index
    %c0_174 = arith.constant 0 : index
    %113 = vector.load %arg17[%c64, %c0_174] : memref<128x128xf32, #tpu.memory_space<vmem>>, vector<2x128xf32>
    %c8_175 = arith.constant 8 : index
    %c1664_176 = arith.constant 1664 : index
    %114 = vector.load %arg18[%c8_175, %c1664_176] : memref<32x2048xf32, #tpu.memory_space<vmem>>, vector<2x128xf32>
    tpu.vector_store %arg18[%c8_175, %c1664_176], %113 {strides = array<i32>} : memref<32x2048xf32, #tpu.memory_space<vmem>>, vector<2x128xf32>,
    %c66 = arith.constant 66 : index
    %c0_177 = arith.constant 0 : index
    %115 = vector.load %arg17[%c66, %c0_177] : memref<128x128xf32, #tpu.memory_space<vmem>>, vector<2x128xf32>
    %c8_178 = arith.constant 8 : index
    %c1792_179 = arith.constant 1792 : index
    %116 = vector.load %arg18[%c8_178, %c1792_179] : memref<32x2048xf32, #tpu.memory_space<vmem>>, vector<2x128xf32>
    tpu.vector_store %arg18[%c8_178, %c1792_179], %115 {strides = array<i32>} : memref<32x2048xf32, #tpu.memory_space<vmem>>, vector<2x128xf32>,
    %c68 = arith.constant 68 : index
    %c0_180 = arith.constant 0 : index
    %117 = vector.load %arg17[%c68, %c0_180] : memref<128x128xf32, #tpu.memory_space<vmem>>, vector<2x128xf32>
    %c8_181 = arith.constant 8 : index
    %c1920_182 = arith.constant 1920 : index
    %118 = vector.load %arg18[%c8_181, %c1920_182] : memref<32x2048xf32, #tpu.memory_space<vmem>>, vector<2x128xf32>
    tpu.vector_store %arg18[%c8_181, %c1920_182], %117 {strides = array<i32>} : memref<32x2048xf32, #tpu.memory_space<vmem>>, vector<2x128xf32>,
    %c18_183 = arith.constant 18 : index
    %c0_184 = arith.constant 0 : index
    %119 = vector.load %arg17[%c18_183, %c0_184] : memref<128x128xf32, #tpu.memory_space<vmem>>, vector<2x128xf32>
    %c10_185 = arith.constant 10 : index
    %c0_186 = arith.constant 0 : index
    %120 = vector.load %arg18[%c10_185, %c0_186] : memref<32x2048xf32, #tpu.memory_space<vmem>>, vector<2x128xf32>
    tpu.vector_store %arg18[%c10_185, %c0_186], %119 {strides = array<i32>} : memref<32x2048xf32, #tpu.memory_space<vmem>>, vector<2x128xf32>,
    %c20_187 = arith.constant 20 : index
    %c0_188 = arith.constant 0 : index
    %121 = vector.load %arg17[%c20_187, %c0_188] : memref<128x128xf32, #tpu.memory_space<vmem>>, vector<2x128xf32>
    %c10_189 = arith.constant 10 : index
    %c128_190 = arith.constant 128 : index
    %122 = vector.load %arg18[%c10_189, %c128_190] : memref<32x2048xf32, #tpu.memory_space<vmem>>, vector<2x128xf32>
    tpu.vector_store %arg18[%c10_189, %c128_190], %121 {strides = array<i32>} : memref<32x2048xf32, #tpu.memory_space<vmem>>, vector<2x128xf32>,
    %c22_191 = arith.constant 22 : index
    %c0_192 = arith.constant 0 : index
    %123 = vector.load %arg17[%c22_191, %c0_192] : memref<128x128xf32, #tpu.memory_space<vmem>>, vector<2x128xf32>
    %c10_193 = arith.constant 10 : index
    %c256_194 = arith.constant 256 : index
    %124 = vector.load %arg18[%c10_193, %c256_194] : memref<32x2048xf32, #tpu.memory_space<vmem>>, vector<2x128xf32>
    tpu.vector_store %arg18[%c10_193, %c256_194], %123 {strides = array<i32>} : memref<32x2048xf32, #tpu.memory_space<vmem>>, vector<2x128xf32>,
    %c24_195 = arith.constant 24 : index
    %c0_196 = arith.constant 0 : index
    %125 = vector.load %arg17[%c24_195, %c0_196] : memref<128x128xf32, #tpu.memory_space<vmem>>, vector<2x128xf32>
    %c10_197 = arith.constant 10 : index
    %c384_198 = arith.constant 384 : index
    %126 = vector.load %arg18[%c10_197, %c384_198] : memref<32x2048xf32, #tpu.memory_space<vmem>>, vector<2x128xf32>
    tpu.vector_store %arg18[%c10_197, %c384_198], %125 {strides = array<i32>} : memref<32x2048xf32, #tpu.memory_space<vmem>>, vector<2x128xf32>,
    %c34_199 = arith.constant 34 : index
    %c0_200 = arith.constant 0 : index
    %127 = vector.load %arg17[%c34_199, %c0_200] : memref<128x128xf32, #tpu.memory_space<vmem>>, vector<2x128xf32>
    %c10_201 = arith.constant 10 : index
    %c512_202 = arith.constant 512 : index
    %128 = vector.load %arg18[%c10_201, %c512_202] : memref<32x2048xf32, #tpu.memory_space<vmem>>, vector<2x128xf32>
    tpu.vector_store %arg18[%c10_201, %c512_202], %127 {strides = array<i32>} : memref<32x2048xf32, #tpu.memory_space<vmem>>, vector<2x128xf32>,
    %c36_203 = arith.constant 36 : index
    %c0_204 = arith.constant 0 : index
    %129 = vector.load %arg17[%c36_203, %c0_204] : memref<128x128xf32, #tpu.memory_space<vmem>>, vector<2x128xf32>
    %c10_205 = arith.constant 10 : index
    %c640_206 = arith.constant 640 : index
    %130 = vector.load %arg18[%c10_205, %c640_206] : memref<32x2048xf32, #tpu.memory_space<vmem>>, vector<2x128xf32>
    tpu.vector_store %arg18[%c10_205, %c640_206], %129 {strides = array<i32>} : memref<32x2048xf32, #tpu.memory_space<vmem>>, vector<2x128xf32>,
    %c38_207 = arith.constant 38 : index
    %c0_208 = arith.constant 0 : index
    %131 = vector.load %arg17[%c38_207, %c0_208] : memref<128x128xf32, #tpu.memory_space<vmem>>, vector<2x128xf32>
    %c10_209 = arith.constant 10 : index
    %c768_210 = arith.constant 768 : index
    %132 = vector.load %arg18[%c10_209, %c768_210] : memref<32x2048xf32, #tpu.memory_space<vmem>>, vector<2x128xf32>
    tpu.vector_store %arg18[%c10_209, %c768_210], %131 {strides = array<i32>} : memref<32x2048xf32, #tpu.memory_space<vmem>>, vector<2x128xf32>,
    %c40_211 = arith.constant 40 : index
    %c0_212 = arith.constant 0 : index
    %133 = vector.load %arg17[%c40_211, %c0_212] : memref<128x128xf32, #tpu.memory_space<vmem>>, vector<2x128xf32>
    %c10_213 = arith.constant 10 : index
    %c896_214 = arith.constant 896 : index
    %134 = vector.load %arg18[%c10_213, %c896_214] : memref<32x2048xf32, #tpu.memory_space<vmem>>, vector<2x128xf32>
    tpu.vector_store %arg18[%c10_213, %c896_214], %133 {strides = array<i32>} : memref<32x2048xf32, #tpu.memory_space<vmem>>, vector<2x128xf32>,
    %c50_215 = arith.constant 50 : index
    %c0_216 = arith.constant 0 : index
    %135 = vector.load %arg17[%c50_215, %c0_216] : memref<128x128xf32, #tpu.memory_space<vmem>>, vector<2x128xf32>
    %c10_217 = arith.constant 10 : index
    %c1024_218 = arith.constant 1024 : index
    %136 = vector.load %arg18[%c10_217, %c1024_218] : memref<32x2048xf32, #tpu.memory_space<vmem>>, vector<2x128xf32>
    tpu.vector_store %arg18[%c10_217, %c1024_218], %135 {strides = array<i32>} : memref<32x2048xf32, #tpu.memory_space<vmem>>, vector<2x128xf32>,
    %c52_219 = arith.constant 52 : index
    %c0_220 = arith.constant 0 : index
    %137 = vector.load %arg17[%c52_219, %c0_220] : memref<128x128xf32, #tpu.memory_space<vmem>>, vector<2x128xf32>
    %c10_221 = arith.constant 10 : index
    %c1152_222 = arith.constant 1152 : index
    %138 = vector.load %arg18[%c10_221, %c1152_222] : memref<32x2048xf32, #tpu.memory_space<vmem>>, vector<2x128xf32>
    tpu.vector_store %arg18[%c10_221, %c1152_222], %137 {strides = array<i32>} : memref<32x2048xf32, #tpu.memory_space<vmem>>, vector<2x128xf32>,
    %c54 = arith.constant 54 : index
    %c0_223 = arith.constant 0 : index
    %139 = vector.load %arg17[%c54, %c0_223] : memref<128x128xf32, #tpu.memory_space<vmem>>, vector<2x128xf32>
    %c10_224 = arith.constant 10 : index
    %c1280_225 = arith.constant 1280 : index
    %140 = vector.load %arg18[%c10_224, %c1280_225] : memref<32x2048xf32, #tpu.memory_space<vmem>>, vector<2x128xf32>
    tpu.vector_store %arg18[%c10_224, %c1280_225], %139 {strides = array<i32>} : memref<32x2048xf32, #tpu.memory_space<vmem>>, vector<2x128xf32>,
    %c56 = arith.constant 56 : index
    %c0_226 = arith.constant 0 : index
    %141 = vector.load %arg17[%c56, %c0_226] : memref<128x128xf32, #tpu.memory_space<vmem>>, vector<2x128xf32>
    %c10_227 = arith.constant 10 : index
    %c1408_228 = arith.constant 1408 : index
    %142 = vector.load %arg18[%c10_227, %c1408_228] : memref<32x2048xf32, #tpu.memory_space<vmem>>, vector<2x128xf32>
    tpu.vector_store %arg18[%c10_227, %c1408_228], %141 {strides = array<i32>} : memref<32x2048xf32, #tpu.memory_space<vmem>>, vector<2x128xf32>,
    %c66_229 = arith.constant 66 : index
    %c0_230 = arith.constant 0 : index
    %143 = vector.load %arg17[%c66_229, %c0_230] : memref<128x128xf32, #tpu.memory_space<vmem>>, vector<2x128xf32>
    %c10_231 = arith.constant 10 : index
    %c1536_232 = arith.constant 1536 : index
    %144 = vector.load %arg18[%c10_231, %c1536_232] : memref<32x2048xf32, #tpu.memory_space<vmem>>, vector<2x128xf32>
    tpu.vector_store %arg18[%c10_231, %c1536_232], %143 {strides = array<i32>} : memref<32x2048xf32, #tpu.memory_space<vmem>>, vector<2x128xf32>,
    %c68_233 = arith.constant 68 : index
    %c0_234 = arith.constant 0 : index
    %145 = vector.load %arg17[%c68_233, %c0_234] : memref<128x128xf32, #tpu.memory_space<vmem>>, vector<2x128xf32>
    %c10_235 = arith.constant 10 : index
    %c1664_236 = arith.constant 1664 : index
    %146 = vector.load %arg18[%c10_235, %c1664_236] : memref<32x2048xf32, #tpu.memory_space<vmem>>, vector<2x128xf32>
    tpu.vector_store %arg18[%c10_235, %c1664_236], %145 {strides = array<i32>} : memref<32x2048xf32, #tpu.memory_space<vmem>>, vector<2x128xf32>,
    %c70 = arith.constant 70 : index
    %c0_237 = arith.constant 0 : index
    %147 = vector.load %arg17[%c70, %c0_237] : memref<128x128xf32, #tpu.memory_space<vmem>>, vector<2x128xf32>
    %c10_238 = arith.constant 10 : index
    %c1792_239 = arith.constant 1792 : index
    %148 = vector.load %arg18[%c10_238, %c1792_239] : memref<32x2048xf32, #tpu.memory_space<vmem>>, vector<2x128xf32>
    tpu.vector_store %arg18[%c10_238, %c1792_239], %147 {strides = array<i32>} : memref<32x2048xf32, #tpu.memory_space<vmem>>, vector<2x128xf32>,
    %c72 = arith.constant 72 : index
    %c0_240 = arith.constant 0 : index
    %149 = vector.load %arg17[%c72, %c0_240] : memref<128x128xf32, #tpu.memory_space<vmem>>, vector<2x128xf32>
    %c10_241 = arith.constant 10 : index
    %c1920_242 = arith.constant 1920 : index
    %150 = vector.load %arg18[%c10_241, %c1920_242] : memref<32x2048xf32, #tpu.memory_space<vmem>>, vector<2x128xf32>
    tpu.vector_store %arg18[%c10_241, %c1920_242], %149 {strides = array<i32>} : memref<32x2048xf32, #tpu.memory_space<vmem>>, vector<2x128xf32>,
    %c22_243 = arith.constant 22 : index
    %c0_244 = arith.constant 0 : index
    %151 = vector.load %arg17[%c22_243, %c0_244] : memref<128x128xf32, #tpu.memory_space<vmem>>, vector<2x128xf32>
    %c12_245 = arith.constant 12 : index
    %c0_246 = arith.constant 0 : index
    %152 = vector.load %arg18[%c12_245, %c0_246] : memref<32x2048xf32, #tpu.memory_space<vmem>>, vector<2x128xf32>
    tpu.vector_store %arg18[%c12_245, %c0_246], %151 {strides = array<i32>} : memref<32x2048xf32, #tpu.memory_space<vmem>>, vector<2x128xf32>,
    %c24_247 = arith.constant 24 : index
    %c0_248 = arith.constant 0 : index
    %153 = vector.load %arg17[%c24_247, %c0_248] : memref<128x128xf32, #tpu.memory_space<vmem>>, vector<2x128xf32>
    %c12_249 = arith.constant 12 : index
    %c128_250 = arith.constant 128 : index
    %154 = vector.load %arg18[%c12_249, %c128_250] : memref<32x2048xf32, #tpu.memory_space<vmem>>, vector<2x128xf32>
    tpu.vector_store %arg18[%c12_249, %c128_250], %153 {strides = array<i32>} : memref<32x2048xf32, #tpu.memory_space<vmem>>, vector<2x128xf32>,
    %c26_251 = arith.constant 26 : index
    %c0_252 = arith.constant 0 : index
    %155 = vector.load %arg17[%c26_251, %c0_252] : memref<128x128xf32, #tpu.memory_space<vmem>>, vector<2x128xf32>
    %c12_253 = arith.constant 12 : index
    %c256_254 = arith.constant 256 : index
    %156 = vector.load %arg18[%c12_253, %c256_254] : memref<32x2048xf32, #tpu.memory_space<vmem>>, vector<2x128xf32>
    tpu.vector_store %arg18[%c12_253, %c256_254], %155 {strides = array<i32>} : memref<32x2048xf32, #tpu.memory_space<vmem>>, vector<2x128xf32>,
    %c28_255 = arith.constant 28 : index
    %c0_256 = arith.constant 0 : index
    %157 = vector.load %arg17[%c28_255, %c0_256] : memref<128x128xf32, #tpu.memory_space<vmem>>, vector<2x128xf32>
    %c12_257 = arith.constant 12 : index
    %c384_258 = arith.constant 384 : index
    %158 = vector.load %arg18[%c12_257, %c384_258] : memref<32x2048xf32, #tpu.memory_space<vmem>>, vector<2x128xf32>
    tpu.vector_store %arg18[%c12_257, %c384_258], %157 {strides = array<i32>} : memref<32x2048xf32, #tpu.memory_space<vmem>>, vector<2x128xf32>,
    %c38_259 = arith.constant 38 : index
    %c0_260 = arith.constant 0 : index
    %159 = vector.load %arg17[%c38_259, %c0_260] : memref<128x128xf32, #tpu.memory_space<vmem>>, vector<2x128xf32>
    %c12_261 = arith.constant 12 : index
    %c512_262 = arith.constant 512 : index
    %160 = vector.load %arg18[%c12_261, %c512_262] : memref<32x2048xf32, #tpu.memory_space<vmem>>, vector<2x128xf32>
    tpu.vector_store %arg18[%c12_261, %c512_262], %159 {strides = array<i32>} : memref<32x2048xf32, #tpu.memory_space<vmem>>, vector<2x128xf32>,
    %c40_263 = arith.constant 40 : index
    %c0_264 = arith.constant 0 : index
    %161 = vector.load %arg17[%c40_263, %c0_264] : memref<128x128xf32, #tpu.memory_space<vmem>>, vector<2x128xf32>
    %c12_265 = arith.constant 12 : index
    %c640_266 = arith.constant 640 : index
    %162 = vector.load %arg18[%c12_265, %c640_266] : memref<32x2048xf32, #tpu.memory_space<vmem>>, vector<2x128xf32>
    tpu.vector_store %arg18[%c12_265, %c640_266], %161 {strides = array<i32>} : memref<32x2048xf32, #tpu.memory_space<vmem>>, vector<2x128xf32>,
    %c42_267 = arith.constant 42 : index
    %c0_268 = arith.constant 0 : index
    %163 = vector.load %arg17[%c42_267, %c0_268] : memref<128x128xf32, #tpu.memory_space<vmem>>, vector<2x128xf32>
    %c12_269 = arith.constant 12 : index
    %c768_270 = arith.constant 768 : index
    %164 = vector.load %arg18[%c12_269, %c768_270] : memref<32x2048xf32, #tpu.memory_space<vmem>>, vector<2x128xf32>
    tpu.vector_store %arg18[%c12_269, %c768_270], %163 {strides = array<i32>} : memref<32x2048xf32, #tpu.memory_space<vmem>>, vector<2x128xf32>,
    %c44_271 = arith.constant 44 : index
    %c0_272 = arith.constant 0 : index
    %165 = vector.load %arg17[%c44_271, %c0_272] : memref<128x128xf32, #tpu.memory_space<vmem>>, vector<2x128xf32>
    %c12_273 = arith.constant 12 : index
    %c896_274 = arith.constant 896 : index
    %166 = vector.load %arg18[%c12_273, %c896_274] : memref<32x2048xf32, #tpu.memory_space<vmem>>, vector<2x128xf32>
    tpu.vector_store %arg18[%c12_273, %c896_274], %165 {strides = array<i32>} : memref<32x2048xf32, #tpu.memory_space<vmem>>, vector<2x128xf32>,
    %c54_275 = arith.constant 54 : index
    %c0_276 = arith.constant 0 : index
    %167 = vector.load %arg17[%c54_275, %c0_276] : memref<128x128xf32, #tpu.memory_space<vmem>>, vector<2x128xf32>
    %c12_277 = arith.constant 12 : index
    %c1024_278 = arith.constant 1024 : index
    %168 = vector.load %arg18[%c12_277, %c1024_278] : memref<32x2048xf32, #tpu.memory_space<vmem>>, vector<2x128xf32>
    tpu.vector_store %arg18[%c12_277, %c1024_278], %167 {strides = array<i32>} : memref<32x2048xf32, #tpu.memory_space<vmem>>, vector<2x128xf32>,
    %c56_279 = arith.constant 56 : index
    %c0_280 = arith.constant 0 : index
    %169 = vector.load %arg17[%c56_279, %c0_280] : memref<128x128xf32, #tpu.memory_space<vmem>>, vector<2x128xf32>
    %c12_281 = arith.constant 12 : index
    %c1152_282 = arith.constant 1152 : index
    %170 = vector.load %arg18[%c12_281, %c1152_282] : memref<32x2048xf32, #tpu.memory_space<vmem>>, vector<2x128xf32>
    tpu.vector_store %arg18[%c12_281, %c1152_282], %169 {strides = array<i32>} : memref<32x2048xf32, #tpu.memory_space<vmem>>, vector<2x128xf32>,
    %c58 = arith.constant 58 : index
    %c0_283 = arith.constant 0 : index
    %171 = vector.load %arg17[%c58, %c0_283] : memref<128x128xf32, #tpu.memory_space<vmem>>, vector<2x128xf32>
    %c12_284 = arith.constant 12 : index
    %c1280_285 = arith.constant 1280 : index
    %172 = vector.load %arg18[%c12_284, %c1280_285] : memref<32x2048xf32, #tpu.memory_space<vmem>>, vector<2x128xf32>
    tpu.vector_store %arg18[%c12_284, %c1280_285], %171 {strides = array<i32>} : memref<32x2048xf32, #tpu.memory_space<vmem>>, vector<2x128xf32>,
    %c60 = arith.constant 60 : index
    %c0_286 = arith.constant 0 : index
    %173 = vector.load %arg17[%c60, %c0_286] : memref<128x128xf32, #tpu.memory_space<vmem>>, vector<2x128xf32>
    %c12_287 = arith.constant 12 : index
    %c1408_288 = arith.constant 1408 : index
    %174 = vector.load %arg18[%c12_287, %c1408_288] : memref<32x2048xf32, #tpu.memory_space<vmem>>, vector<2x128xf32>
    tpu.vector_store %arg18[%c12_287, %c1408_288], %173 {strides = array<i32>} : memref<32x2048xf32, #tpu.memory_space<vmem>>, vector<2x128xf32>,
    %c70_289 = arith.constant 70 : index
    %c0_290 = arith.constant 0 : index
    %175 = vector.load %arg17[%c70_289, %c0_290] : memref<128x128xf32, #tpu.memory_space<vmem>>, vector<2x128xf32>
    %c12_291 = arith.constant 12 : index
    %c1536_292 = arith.constant 1536 : index
    %176 = vector.load %arg18[%c12_291, %c1536_292] : memref<32x2048xf32, #tpu.memory_space<vmem>>, vector<2x128xf32>
    tpu.vector_store %arg18[%c12_291, %c1536_292], %175 {strides = array<i32>} : memref<32x2048xf32, #tpu.memory_space<vmem>>, vector<2x128xf32>,
    %c72_293 = arith.constant 72 : index
    %c0_294 = arith.constant 0 : index
    %177 = vector.load %arg17[%c72_293, %c0_294] : memref<128x128xf32, #tpu.memory_space<vmem>>, vector<2x128xf32>
    %c12_295 = arith.constant 12 : index
    %c1664_296 = arith.constant 1664 : index
    %178 = vector.load %arg18[%c12_295, %c1664_296] : memref<32x2048xf32, #tpu.memory_space<vmem>>, vector<2x128xf32>
    tpu.vector_store %arg18[%c12_295, %c1664_296], %177 {strides = array<i32>} : memref<32x2048xf32, #tpu.memory_space<vmem>>, vector<2x128xf32>,
    %c74 = arith.constant 74 : index
    %c0_297 = arith.constant 0 : index
    %179 = vector.load %arg17[%c74, %c0_297] : memref<128x128xf32, #tpu.memory_space<vmem>>, vector<2x128xf32>
    %c12_298 = arith.constant 12 : index
    %c1792_299 = arith.constant 1792 : index
    %180 = vector.load %arg18[%c12_298, %c1792_299] : memref<32x2048xf32, #tpu.memory_space<vmem>>, vector<2x128xf32>
    tpu.vector_store %arg18[%c12_298, %c1792_299], %179 {strides = array<i32>} : memref<32x2048xf32, #tpu.memory_space<vmem>>, vector<2x128xf32>,
    %c76 = arith.constant 76 : index
    %c0_300 = arith.constant 0 : index
    %181 = vector.load %arg17[%c76, %c0_300] : memref<128x128xf32, #tpu.memory_space<vmem>>, vector<2x128xf32>
    %c12_301 = arith.constant 12 : index
    %c1920_302 = arith.constant 1920 : index
    %182 = vector.load %arg18[%c12_301, %c1920_302] : memref<32x2048xf32, #tpu.memory_space<vmem>>, vector<2x128xf32>
    tpu.vector_store %arg18[%c12_301, %c1920_302], %181 {strides = array<i32>} : memref<32x2048xf32, #tpu.memory_space<vmem>>, vector<2x128xf32>,
    %c26_303 = arith.constant 26 : index
    %c0_304 = arith.constant 0 : index
    %183 = vector.load %arg17[%c26_303, %c0_304] : memref<128x128xf32, #tpu.memory_space<vmem>>, vector<2x128xf32>
    %c14_305 = arith.constant 14 : index
    %c0_306 = arith.constant 0 : index
    %184 = vector.load %arg18[%c14_305, %c0_306] : memref<32x2048xf32, #tpu.memory_space<vmem>>, vector<2x128xf32>
    tpu.vector_store %arg18[%c14_305, %c0_306], %183 {strides = array<i32>} : memref<32x2048xf32, #tpu.memory_space<vmem>>, vector<2x128xf32>,
    %c28_307 = arith.constant 28 : index
    %c0_308 = arith.constant 0 : index
    %185 = vector.load %arg17[%c28_307, %c0_308] : memref<128x128xf32, #tpu.memory_space<vmem>>, vector<2x128xf32>
    %c14_309 = arith.constant 14 : index
    %c128_310 = arith.constant 128 : index
    %186 = vector.load %arg18[%c14_309, %c128_310] : memref<32x2048xf32, #tpu.memory_space<vmem>>, vector<2x128xf32>
    tpu.vector_store %arg18[%c14_309, %c128_310], %185 {strides = array<i32>} : memref<32x2048xf32, #tpu.memory_space<vmem>>, vector<2x128xf32>,
    %c30_311 = arith.constant 30 : index
    %c0_312 = arith.constant 0 : index
    %187 = vector.load %arg17[%c30_311, %c0_312] : memref<128x128xf32, #tpu.memory_space<vmem>>, vector<2x128xf32>
    %c14_313 = arith.constant 14 : index
    %c256_314 = arith.constant 256 : index
    %188 = vector.load %arg18[%c14_313, %c256_314] : memref<32x2048xf32, #tpu.memory_space<vmem>>, vector<2x128xf32>
    tpu.vector_store %arg18[%c14_313, %c256_314], %187 {strides = array<i32>} : memref<32x2048xf32, #tpu.memory_space<vmem>>, vector<2x128xf32>,
    %c42_315 = arith.constant 42 : index
    %c0_316 = arith.constant 0 : index
    %189 = vector.load %arg17[%c42_315, %c0_316] : memref<128x128xf32, #tpu.memory_space<vmem>>, vector<2x128xf32>
    %c14_317 = arith.constant 14 : index
    %c512_318 = arith.constant 512 : index
    %190 = vector.load %arg18[%c14_317, %c512_318] : memref<32x2048xf32, #tpu.memory_space<vmem>>, vector<2x128xf32>
    tpu.vector_store %arg18[%c14_317, %c512_318], %189 {strides = array<i32>} : memref<32x2048xf32, #tpu.memory_space<vmem>>, vector<2x128xf32>,
    %c44_319 = arith.constant 44 : index
    %c0_320 = arith.constant 0 : index
    %191 = vector.load %arg17[%c44_319, %c0_320] : memref<128x128xf32, #tpu.memory_space<vmem>>, vector<2x128xf32>
    %c14_321 = arith.constant 14 : index
    %c640_322 = arith.constant 640 : index
    %192 = vector.load %arg18[%c14_321, %c640_322] : memref<32x2048xf32, #tpu.memory_space<vmem>>, vector<2x128xf32>
    tpu.vector_store %arg18[%c14_321, %c640_322], %191 {strides = array<i32>} : memref<32x2048xf32, #tpu.memory_space<vmem>>, vector<2x128xf32>,
    %c46_323 = arith.constant 46 : index
    %c0_324 = arith.constant 0 : index
    %193 = vector.load %arg17[%c46_323, %c0_324] : memref<128x128xf32, #tpu.memory_space<vmem>>, vector<2x128xf32>
    %c14_325 = arith.constant 14 : index
    %c768_326 = arith.constant 768 : index
    %194 = vector.load %arg18[%c14_325, %c768_326] : memref<32x2048xf32, #tpu.memory_space<vmem>>, vector<2x128xf32>
    tpu.vector_store %arg18[%c14_325, %c768_326], %193 {strides = array<i32>} : memref<32x2048xf32, #tpu.memory_space<vmem>>, vector<2x128xf32>,
    %c58_327 = arith.constant 58 : index
    %c0_328 = arith.constant 0 : index
    %195 = vector.load %arg17[%c58_327, %c0_328] : memref<128x128xf32, #tpu.memory_space<vmem>>, vector<2x128xf32>
    %c14_329 = arith.constant 14 : index
    %c1024_330 = arith.constant 1024 : index
    %196 = vector.load %arg18[%c14_329, %c1024_330] : memref<32x2048xf32, #tpu.memory_space<vmem>>, vector<2x128xf32>
    tpu.vector_store %arg18[%c14_329, %c1024_330], %195 {strides = array<i32>} : memref<32x2048xf32, #tpu.memory_space<vmem>>, vector<2x128xf32>,
    %c60_331 = arith.constant 60 : index
    %c0_332 = arith.constant 0 : index
    %197 = vector.load %arg17[%c60_331, %c0_332] : memref<128x128xf32, #tpu.memory_space<vmem>>, vector<2x128xf32>
    %c14_333 = arith.constant 14 : index
    %c1152_334 = arith.constant 1152 : index
    %198 = vector.load %arg18[%c14_333, %c1152_334] : memref<32x2048xf32, #tpu.memory_space<vmem>>, vector<2x128xf32>
    tpu.vector_store %arg18[%c14_333, %c1152_334], %197 {strides = array<i32>} : memref<32x2048xf32, #tpu.memory_space<vmem>>, vector<2x128xf32>,
    %c62 = arith.constant 62 : index
    %c0_335 = arith.constant 0 : index
    %199 = vector.load %arg17[%c62, %c0_335] : memref<128x128xf32, #tpu.memory_space<vmem>>, vector<2x128xf32>
    %c14_336 = arith.constant 14 : index
    %c1280_337 = arith.constant 1280 : index
    %200 = vector.load %arg18[%c14_336, %c1280_337] : memref<32x2048xf32, #tpu.memory_space<vmem>>, vector<2x128xf32>
    tpu.vector_store %arg18[%c14_336, %c1280_337], %199 {strides = array<i32>} : memref<32x2048xf32, #tpu.memory_space<vmem>>, vector<2x128xf32>,
    %c74_338 = arith.constant 74 : index
    %c0_339 = arith.constant 0 : index
    %201 = vector.load %arg17[%c74_338, %c0_339] : memref<128x128xf32, #tpu.memory_space<vmem>>, vector<2x128xf32>
    %c14_340 = arith.constant 14 : index
    %c1536_341 = arith.constant 1536 : index
    %202 = vector.load %arg18[%c14_340, %c1536_341] : memref<32x2048xf32, #tpu.memory_space<vmem>>, vector<2x128xf32>
    tpu.vector_store %arg18[%c14_340, %c1536_341], %201 {strides = array<i32>} : memref<32x2048xf32, #tpu.memory_space<vmem>>, vector<2x128xf32>,
    %c76_342 = arith.constant 76 : index
    %c0_343 = arith.constant 0 : index
    %203 = vector.load %arg17[%c76_342, %c0_343] : memref<128x128xf32, #tpu.memory_space<vmem>>, vector<2x128xf32>
    %c14_344 = arith.constant 14 : index
    %c1664_345 = arith.constant 1664 : index
    %204 = vector.load %arg18[%c14_344, %c1664_345] : memref<32x2048xf32, #tpu.memory_space<vmem>>, vector<2x128xf32>
    tpu.vector_store %arg18[%c14_344, %c1664_345], %203 {strides = array<i32>} : memref<32x2048xf32, #tpu.memory_space<vmem>>, vector<2x128xf32>,
    %c78 = arith.constant 78 : index
    %c0_346 = arith.constant 0 : index
    %205 = vector.load %arg17[%c78, %c0_346] : memref<128x128xf32, #tpu.memory_space<vmem>>, vector<2x128xf32>
    %c14_347 = arith.constant 14 : index
    %c1792_348 = arith.constant 1792 : index
    %206 = vector.load %arg18[%c14_347, %c1792_348] : memref<32x2048xf32, #tpu.memory_space<vmem>>, vector<2x128xf32>
    tpu.vector_store %arg18[%c14_347, %c1792_348], %205 {strides = array<i32>} : memref<32x2048xf32, #tpu.memory_space<vmem>>, vector<2x128xf32>,
    %c48_349 = arith.constant 48 : index
    %c0_350 = arith.constant 0 : index
    %207 = vector.load %arg17[%c48_349, %c0_350] : memref<128x128xf32, #tpu.memory_space<vmem>>, vector<2x128xf32>
    %c16_351 = arith.constant 16 : index
    %c128_352 = arith.constant 128 : index
    %208 = vector.load %arg18[%c16_351, %c128_352] : memref<32x2048xf32, #tpu.memory_space<vmem>>, vector<2x128xf32>
    tpu.vector_store %arg18[%c16_351, %c128_352], %207 {strides = array<i32>} : memref<32x2048xf32, #tpu.memory_space<vmem>>, vector<2x128xf32>,
    %c50_353 = arith.constant 50 : index
    %c0_354 = arith.constant 0 : index
    %209 = vector.load %arg17[%c50_353, %c0_354] : memref<128x128xf32, #tpu.memory_space<vmem>>, vector<2x128xf32>
    %c16_355 = arith.constant 16 : index
    %c256_356 = arith.constant 256 : index
    %210 = vector.load %arg18[%c16_355, %c256_356] : memref<32x2048xf32, #tpu.memory_space<vmem>>, vector<2x128xf32>
    tpu.vector_store %arg18[%c16_355, %c256_356], %209 {strides = array<i32>} : memref<32x2048xf32, #tpu.memory_space<vmem>>, vector<2x128xf32>,
    %c52_357 = arith.constant 52 : index
    %c0_358 = arith.constant 0 : index
    %211 = vector.load %arg17[%c52_357, %c0_358] : memref<128x128xf32, #tpu.memory_space<vmem>>, vector<2x128xf32>
    %c16_359 = arith.constant 16 : index
    %c384_360 = arith.constant 384 : index
    %212 = vector.load %arg18[%c16_359, %c384_360] : memref<32x2048xf32, #tpu.memory_space<vmem>>, vector<2x128xf32>
    tpu.vector_store %arg18[%c16_359, %c384_360], %211 {strides = array<i32>} : memref<32x2048xf32, #tpu.memory_space<vmem>>, vector<2x128xf32>,
    %c64_361 = arith.constant 64 : index
    %c0_362 = arith.constant 0 : index
    %213 = vector.load %arg17[%c64_361, %c0_362] : memref<128x128xf32, #tpu.memory_space<vmem>>, vector<2x128xf32>
    %c16_363 = arith.constant 16 : index
    %c640_364 = arith.constant 640 : index
    %214 = vector.load %arg18[%c16_363, %c640_364] : memref<32x2048xf32, #tpu.memory_space<vmem>>, vector<2x128xf32>
    tpu.vector_store %arg18[%c16_363, %c640_364], %213 {strides = array<i32>} : memref<32x2048xf32, #tpu.memory_space<vmem>>, vector<2x128xf32>,
    %c66_365 = arith.constant 66 : index
    %c0_366 = arith.constant 0 : index
    %215 = vector.load %arg17[%c66_365, %c0_366] : memref<128x128xf32, #tpu.memory_space<vmem>>, vector<2x128xf32>
    %c16_367 = arith.constant 16 : index
    %c768_368 = arith.constant 768 : index
    %216 = vector.load %arg18[%c16_367, %c768_368] : memref<32x2048xf32, #tpu.memory_space<vmem>>, vector<2x128xf32>
    tpu.vector_store %arg18[%c16_367, %c768_368], %215 {strides = array<i32>} : memref<32x2048xf32, #tpu.memory_space<vmem>>, vector<2x128xf32>,
    %c68_369 = arith.constant 68 : index
    %c0_370 = arith.constant 0 : index
    %217 = vector.load %arg17[%c68_369, %c0_370] : memref<128x128xf32, #tpu.memory_space<vmem>>, vector<2x128xf32>
    %c16_371 = arith.constant 16 : index
    %c896_372 = arith.constant 896 : index
    %218 = vector.load %arg18[%c16_371, %c896_372] : memref<32x2048xf32, #tpu.memory_space<vmem>>, vector<2x128xf32>
    tpu.vector_store %arg18[%c16_371, %c896_372], %217 {strides = array<i32>} : memref<32x2048xf32, #tpu.memory_space<vmem>>, vector<2x128xf32>,
    %c80 = arith.constant 80 : index
    %c0_373 = arith.constant 0 : index
    %219 = vector.load %arg17[%c80, %c0_373] : memref<128x128xf32, #tpu.memory_space<vmem>>, vector<2x128xf32>
    %c16_374 = arith.constant 16 : index
    %c1152_375 = arith.constant 1152 : index
    %220 = vector.load %arg18[%c16_374, %c1152_375] : memref<32x2048xf32, #tpu.memory_space<vmem>>, vector<2x128xf32>
    tpu.vector_store %arg18[%c16_374, %c1152_375], %219 {strides = array<i32>} : memref<32x2048xf32, #tpu.memory_space<vmem>>, vector<2x128xf32>,
    %c82 = arith.constant 82 : index
    %c0_376 = arith.constant 0 : index
    %221 = vector.load %arg17[%c82, %c0_376] : memref<128x128xf32, #tpu.memory_space<vmem>>, vector<2x128xf32>
    %c16_377 = arith.constant 16 : index
    %c1280_378 = arith.constant 1280 : index
    %222 = vector.load %arg18[%c16_377, %c1280_378] : memref<32x2048xf32, #tpu.memory_space<vmem>>, vector<2x128xf32>
    tpu.vector_store %arg18[%c16_377, %c1280_378], %221 {strides = array<i32>} : memref<32x2048xf32, #tpu.memory_space<vmem>>, vector<2x128xf32>,
    %c84 = arith.constant 84 : index
    %c0_379 = arith.constant 0 : index
    %223 = vector.load %arg17[%c84, %c0_379] : memref<128x128xf32, #tpu.memory_space<vmem>>, vector<2x128xf32>
    %c16_380 = arith.constant 16 : index
    %c1408_381 = arith.constant 1408 : index
    %224 = vector.load %arg18[%c16_380, %c1408_381] : memref<32x2048xf32, #tpu.memory_space<vmem>>, vector<2x128xf32>
    tpu.vector_store %arg18[%c16_380, %c1408_381], %223 {strides = array<i32>} : memref<32x2048xf32, #tpu.memory_space<vmem>>, vector<2x128xf32>,
    %c96 = arith.constant 96 : index
    %c0_382 = arith.constant 0 : index
    %225 = vector.load %arg17[%c96, %c0_382] : memref<128x128xf32, #tpu.memory_space<vmem>>, vector<2x128xf32>
    %c16_383 = arith.constant 16 : index
    %c1664_384 = arith.constant 1664 : index
    %226 = vector.load %arg18[%c16_383, %c1664_384] : memref<32x2048xf32, #tpu.memory_space<vmem>>, vector<2x128xf32>
    tpu.vector_store %arg18[%c16_383, %c1664_384], %225 {strides = array<i32>} : memref<32x2048xf32, #tpu.memory_space<vmem>>, vector<2x128xf32>,
    %c98 = arith.constant 98 : index
    %c0_385 = arith.constant 0 : index
    %227 = vector.load %arg17[%c98, %c0_385] : memref<128x128xf32, #tpu.memory_space<vmem>>, vector<2x128xf32>
    %c16_386 = arith.constant 16 : index
    %c1792_387 = arith.constant 1792 : index
    %228 = vector.load %arg18[%c16_386, %c1792_387] : memref<32x2048xf32, #tpu.memory_space<vmem>>, vector<2x128xf32>
    tpu.vector_store %arg18[%c16_386, %c1792_387], %227 {strides = array<i32>} : memref<32x2048xf32, #tpu.memory_space<vmem>>, vector<2x128xf32>,
    %c100 = arith.constant 100 : index
    %c0_388 = arith.constant 0 : index
    %229 = vector.load %arg17[%c100, %c0_388] : memref<128x128xf32, #tpu.memory_space<vmem>>, vector<2x128xf32>
    %c16_389 = arith.constant 16 : index
    %c1920_390 = arith.constant 1920 : index
    %230 = vector.load %arg18[%c16_389, %c1920_390] : memref<32x2048xf32, #tpu.memory_space<vmem>>, vector<2x128xf32>
    tpu.vector_store %arg18[%c16_389, %c1920_390], %229 {strides = array<i32>} : memref<32x2048xf32, #tpu.memory_space<vmem>>, vector<2x128xf32>,
    %c50_391 = arith.constant 50 : index
    %c0_392 = arith.constant 0 : index
    %231 = vector.load %arg17[%c50_391, %c0_392] : memref<128x128xf32, #tpu.memory_space<vmem>>, vector<2x128xf32>
    %c18_393 = arith.constant 18 : index
    %c0_394 = arith.constant 0 : index
    %232 = vector.load %arg18[%c18_393, %c0_394] : memref<32x2048xf32, #tpu.memory_space<vmem>>, vector<2x128xf32>
    tpu.vector_store %arg18[%c18_393, %c0_394], %231 {strides = array<i32>} : memref<32x2048xf32, #tpu.memory_space<vmem>>, vector<2x128xf32>,
    %c52_395 = arith.constant 52 : index
    %c0_396 = arith.constant 0 : index
    %233 = vector.load %arg17[%c52_395, %c0_396] : memref<128x128xf32, #tpu.memory_space<vmem>>, vector<2x128xf32>
    %c18_397 = arith.constant 18 : index
    %c128_398 = arith.constant 128 : index
    %234 = vector.load %arg18[%c18_397, %c128_398] : memref<32x2048xf32, #tpu.memory_space<vmem>>, vector<2x128xf32>
    tpu.vector_store %arg18[%c18_397, %c128_398], %233 {strides = array<i32>} : memref<32x2048xf32, #tpu.memory_space<vmem>>, vector<2x128xf32>,
    %c54_399 = arith.constant 54 : index
    %c0_400 = arith.constant 0 : index
    %235 = vector.load %arg17[%c54_399, %c0_400] : memref<128x128xf32, #tpu.memory_space<vmem>>, vector<2x128xf32>
    %c18_401 = arith.constant 18 : index
    %c256_402 = arith.constant 256 : index
    %236 = vector.load %arg18[%c18_401, %c256_402] : memref<32x2048xf32, #tpu.memory_space<vmem>>, vector<2x128xf32>
    tpu.vector_store %arg18[%c18_401, %c256_402], %235 {strides = array<i32>} : memref<32x2048xf32, #tpu.memory_space<vmem>>, vector<2x128xf32>,
    %c56_403 = arith.constant 56 : index
    %c0_404 = arith.constant 0 : index
    %237 = vector.load %arg17[%c56_403, %c0_404] : memref<128x128xf32, #tpu.memory_space<vmem>>, vector<2x128xf32>
    %c18_405 = arith.constant 18 : index
    %c384_406 = arith.constant 384 : index
    %238 = vector.load %arg18[%c18_405, %c384_406] : memref<32x2048xf32, #tpu.memory_space<vmem>>, vector<2x128xf32>
    tpu.vector_store %arg18[%c18_405, %c384_406], %237 {strides = array<i32>} : memref<32x2048xf32, #tpu.memory_space<vmem>>, vector<2x128xf32>,
    %c66_407 = arith.constant 66 : index
    %c0_408 = arith.constant 0 : index
    %239 = vector.load %arg17[%c66_407, %c0_408] : memref<128x128xf32, #tpu.memory_space<vmem>>, vector<2x128xf32>
    %c18_409 = arith.constant 18 : index
    %c512_410 = arith.constant 512 : index
    %240 = vector.load %arg18[%c18_409, %c512_410] : memref<32x2048xf32, #tpu.memory_space<vmem>>, vector<2x128xf32>
    tpu.vector_store %arg18[%c18_409, %c512_410], %239 {strides = array<i32>} : memref<32x2048xf32, #tpu.memory_space<vmem>>, vector<2x128xf32>,
    %c68_411 = arith.constant 68 : index
    %c0_412 = arith.constant 0 : index
    %241 = vector.load %arg17[%c68_411, %c0_412] : memref<128x128xf32, #tpu.memory_space<vmem>>, vector<2x128xf32>
    %c18_413 = arith.constant 18 : index
    %c640_414 = arith.constant 640 : index
    %242 = vector.load %arg18[%c18_413, %c640_414] : memref<32x2048xf32, #tpu.memory_space<vmem>>, vector<2x128xf32>
    tpu.vector_store %arg18[%c18_413, %c640_414], %241 {strides = array<i32>} : memref<32x2048xf32, #tpu.memory_space<vmem>>, vector<2x128xf32>,
    %c70_415 = arith.constant 70 : index
    %c0_416 = arith.constant 0 : index
    %243 = vector.load %arg17[%c70_415, %c0_416] : memref<128x128xf32, #tpu.memory_space<vmem>>, vector<2x128xf32>
    %c18_417 = arith.constant 18 : index
    %c768_418 = arith.constant 768 : index
    %244 = vector.load %arg18[%c18_417, %c768_418] : memref<32x2048xf32, #tpu.memory_space<vmem>>, vector<2x128xf32>
    tpu.vector_store %arg18[%c18_417, %c768_418], %243 {strides = array<i32>} : memref<32x2048xf32, #tpu.memory_space<vmem>>, vector<2x128xf32>,
    %c72_419 = arith.constant 72 : index
    %c0_420 = arith.constant 0 : index
    %245 = vector.load %arg17[%c72_419, %c0_420] : memref<128x128xf32, #tpu.memory_space<vmem>>, vector<2x128xf32>
    %c18_421 = arith.constant 18 : index
    %c896_422 = arith.constant 896 : index
    %246 = vector.load %arg18[%c18_421, %c896_422] : memref<32x2048xf32, #tpu.memory_space<vmem>>, vector<2x128xf32>
    tpu.vector_store %arg18[%c18_421, %c896_422], %245 {strides = array<i32>} : memref<32x2048xf32, #tpu.memory_space<vmem>>, vector<2x128xf32>,
    %c82_423 = arith.constant 82 : index
    %c0_424 = arith.constant 0 : index
    %247 = vector.load %arg17[%c82_423, %c0_424] : memref<128x128xf32, #tpu.memory_space<vmem>>, vector<2x128xf32>
    %c18_425 = arith.constant 18 : index
    %c1024_426 = arith.constant 1024 : index
    %248 = vector.load %arg18[%c18_425, %c1024_426] : memref<32x2048xf32, #tpu.memory_space<vmem>>, vector<2x128xf32>
    tpu.vector_store %arg18[%c18_425, %c1024_426], %247 {strides = array<i32>} : memref<32x2048xf32, #tpu.memory_space<vmem>>, vector<2x128xf32>,
    %c84_427 = arith.constant 84 : index
    %c0_428 = arith.constant 0 : index
    %249 = vector.load %arg17[%c84_427, %c0_428] : memref<128x128xf32, #tpu.memory_space<vmem>>, vector<2x128xf32>
    %c18_429 = arith.constant 18 : index
    %c1152_430 = arith.constant 1152 : index
    %250 = vector.load %arg18[%c18_429, %c1152_430] : memref<32x2048xf32, #tpu.memory_space<vmem>>, vector<2x128xf32>
    tpu.vector_store %arg18[%c18_429, %c1152_430], %249 {strides = array<i32>} : memref<32x2048xf32, #tpu.memory_space<vmem>>, vector<2x128xf32>,
    %c86 = arith.constant 86 : index
    %c0_431 = arith.constant 0 : index
    %251 = vector.load %arg17[%c86, %c0_431] : memref<128x128xf32, #tpu.memory_space<vmem>>, vector<2x128xf32>
    %c18_432 = arith.constant 18 : index
    %c1280_433 = arith.constant 1280 : index
    %252 = vector.load %arg18[%c18_432, %c1280_433] : memref<32x2048xf32, #tpu.memory_space<vmem>>, vector<2x128xf32>
    tpu.vector_store %arg18[%c18_432, %c1280_433], %251 {strides = array<i32>} : memref<32x2048xf32, #tpu.memory_space<vmem>>, vector<2x128xf32>,
    %c88 = arith.constant 88 : index
    %c0_434 = arith.constant 0 : index
    %253 = vector.load %arg17[%c88, %c0_434] : memref<128x128xf32, #tpu.memory_space<vmem>>, vector<2x128xf32>
    %c18_435 = arith.constant 18 : index
    %c1408_436 = arith.constant 1408 : index
    %254 = vector.load %arg18[%c18_435, %c1408_436] : memref<32x2048xf32, #tpu.memory_space<vmem>>, vector<2x128xf32>
    tpu.vector_store %arg18[%c18_435, %c1408_436], %253 {strides = array<i32>} : memref<32x2048xf32, #tpu.memory_space<vmem>>, vector<2x128xf32>,
    %c98_437 = arith.constant 98 : index
    %c0_438 = arith.constant 0 : index
    %255 = vector.load %arg17[%c98_437, %c0_438] : memref<128x128xf32, #tpu.memory_space<vmem>>, vector<2x128xf32>
    %c18_439 = arith.constant 18 : index
    %c1536_440 = arith.constant 1536 : index
    %256 = vector.load %arg18[%c18_439, %c1536_440] : memref<32x2048xf32, #tpu.memory_space<vmem>>, vector<2x128xf32>
    tpu.vector_store %arg18[%c18_439, %c1536_440], %255 {strides = array<i32>} : memref<32x2048xf32, #tpu.memory_space<vmem>>, vector<2x128xf32>,
    %c100_441 = arith.constant 100 : index
    %c0_442 = arith.constant 0 : index
    %257 = vector.load %arg17[%c100_441, %c0_442] : memref<128x128xf32, #tpu.memory_space<vmem>>, vector<2x128xf32>
    %c18_443 = arith.constant 18 : index
    %c1664_444 = arith.constant 1664 : index
    %258 = vector.load %arg18[%c18_443, %c1664_444] : memref<32x2048xf32, #tpu.memory_space<vmem>>, vector<2x128xf32>
    tpu.vector_store %arg18[%c18_443, %c1664_444], %257 {strides = array<i32>} : memref<32x2048xf32, #tpu.memory_space<vmem>>, vector<2x128xf32>,
    %c102 = arith.constant 102 : index
    %c0_445 = arith.constant 0 : index
    %259 = vector.load %arg17[%c102, %c0_445] : memref<128x128xf32, #tpu.memory_space<vmem>>, vector<2x128xf32>
    %c18_446 = arith.constant 18 : index
    %c1792_447 = arith.constant 1792 : index
    %260 = vector.load %arg18[%c18_446, %c1792_447] : memref<32x2048xf32, #tpu.memory_space<vmem>>, vector<2x128xf32>
    tpu.vector_store %arg18[%c18_446, %c1792_447], %259 {strides = array<i32>} : memref<32x2048xf32, #tpu.memory_space<vmem>>, vector<2x128xf32>,
    %c104 = arith.constant 104 : index
    %c0_448 = arith.constant 0 : index
    %261 = vector.load %arg17[%c104, %c0_448] : memref<128x128xf32, #tpu.memory_space<vmem>>, vector<2x128xf32>
    %c18_449 = arith.constant 18 : index
    %c1920_450 = arith.constant 1920 : index
    %262 = vector.load %arg18[%c18_449, %c1920_450] : memref<32x2048xf32, #tpu.memory_space<vmem>>, vector<2x128xf32>
    tpu.vector_store %arg18[%c18_449, %c1920_450], %261 {strides = array<i32>} : memref<32x2048xf32, #tpu.memory_space<vmem>>, vector<2x128xf32>,
    %c54_451 = arith.constant 54 : index
    %c0_452 = arith.constant 0 : index
    %263 = vector.load %arg17[%c54_451, %c0_452] : memref<128x128xf32, #tpu.memory_space<vmem>>, vector<2x128xf32>
    %c20_453 = arith.constant 20 : index
    %c0_454 = arith.constant 0 : index
    %264 = vector.load %arg18[%c20_453, %c0_454] : memref<32x2048xf32, #tpu.memory_space<vmem>>, vector<2x128xf32>
    tpu.vector_store %arg18[%c20_453, %c0_454], %263 {strides = array<i32>} : memref<32x2048xf32, #tpu.memory_space<vmem>>, vector<2x128xf32>,
    %c56_455 = arith.constant 56 : index
    %c0_456 = arith.constant 0 : index
    %265 = vector.load %arg17[%c56_455, %c0_456] : memref<128x128xf32, #tpu.memory_space<vmem>>, vector<2x128xf32>
    %c20_457 = arith.constant 20 : index
    %c128_458 = arith.constant 128 : index
    %266 = vector.load %arg18[%c20_457, %c128_458] : memref<32x2048xf32, #tpu.memory_space<vmem>>, vector<2x128xf32>
    tpu.vector_store %arg18[%c20_457, %c128_458], %265 {strides = array<i32>} : memref<32x2048xf32, #tpu.memory_space<vmem>>, vector<2x128xf32>,
    %c58_459 = arith.constant 58 : index
    %c0_460 = arith.constant 0 : index
    %267 = vector.load %arg17[%c58_459, %c0_460] : memref<128x128xf32, #tpu.memory_space<vmem>>, vector<2x128xf32>
    %c20_461 = arith.constant 20 : index
    %c256_462 = arith.constant 256 : index
    %268 = vector.load %arg18[%c20_461, %c256_462] : memref<32x2048xf32, #tpu.memory_space<vmem>>, vector<2x128xf32>
    tpu.vector_store %arg18[%c20_461, %c256_462], %267 {strides = array<i32>} : memref<32x2048xf32, #tpu.memory_space<vmem>>, vector<2x128xf32>,
    %c60_463 = arith.constant 60 : index
    %c0_464 = arith.constant 0 : index
    %269 = vector.load %arg17[%c60_463, %c0_464] : memref<128x128xf32, #tpu.memory_space<vmem>>, vector<2x128xf32>
    %c20_465 = arith.constant 20 : index
    %c384_466 = arith.constant 384 : index
    %270 = vector.load %arg18[%c20_465, %c384_466] : memref<32x2048xf32, #tpu.memory_space<vmem>>, vector<2x128xf32>
    tpu.vector_store %arg18[%c20_465, %c384_466], %269 {strides = array<i32>} : memref<32x2048xf32, #tpu.memory_space<vmem>>, vector<2x128xf32>,
    %c70_467 = arith.constant 70 : index
    %c0_468 = arith.constant 0 : index
    %271 = vector.load %arg17[%c70_467, %c0_468] : memref<128x128xf32, #tpu.memory_space<vmem>>, vector<2x128xf32>
    %c20_469 = arith.constant 20 : index
    %c512_470 = arith.constant 512 : index
    %272 = vector.load %arg18[%c20_469, %c512_470] : memref<32x2048xf32, #tpu.memory_space<vmem>>, vector<2x128xf32>
    tpu.vector_store %arg18[%c20_469, %c512_470], %271 {strides = array<i32>} : memref<32x2048xf32, #tpu.memory_space<vmem>>, vector<2x128xf32>,
    %c72_471 = arith.constant 72 : index
    %c0_472 = arith.constant 0 : index
    %273 = vector.load %arg17[%c72_471, %c0_472] : memref<128x128xf32, #tpu.memory_space<vmem>>, vector<2x128xf32>
    %c20_473 = arith.constant 20 : index
    %c640_474 = arith.constant 640 : index
    %274 = vector.load %arg18[%c20_473, %c640_474] : memref<32x2048xf32, #tpu.memory_space<vmem>>, vector<2x128xf32>
    tpu.vector_store %arg18[%c20_473, %c640_474], %273 {strides = array<i32>} : memref<32x2048xf32, #tpu.memory_space<vmem>>, vector<2x128xf32>,
    %c74_475 = arith.constant 74 : index
    %c0_476 = arith.constant 0 : index
    %275 = vector.load %arg17[%c74_475, %c0_476] : memref<128x128xf32, #tpu.memory_space<vmem>>, vector<2x128xf32>
    %c20_477 = arith.constant 20 : index
    %c768_478 = arith.constant 768 : index
    %276 = vector.load %arg18[%c20_477, %c768_478] : memref<32x2048xf32, #tpu.memory_space<vmem>>, vector<2x128xf32>
    tpu.vector_store %arg18[%c20_477, %c768_478], %275 {strides = array<i32>} : memref<32x2048xf32, #tpu.memory_space<vmem>>, vector<2x128xf32>,
    %c76_479 = arith.constant 76 : index
    %c0_480 = arith.constant 0 : index
    %277 = vector.load %arg17[%c76_479, %c0_480] : memref<128x128xf32, #tpu.memory_space<vmem>>, vector<2x128xf32>
    %c20_481 = arith.constant 20 : index
    %c896_482 = arith.constant 896 : index
    %278 = vector.load %arg18[%c20_481, %c896_482] : memref<32x2048xf32, #tpu.memory_space<vmem>>, vector<2x128xf32>
    tpu.vector_store %arg18[%c20_481, %c896_482], %277 {strides = array<i32>} : memref<32x2048xf32, #tpu.memory_space<vmem>>, vector<2x128xf32>,
    %c86_483 = arith.constant 86 : index
    %c0_484 = arith.constant 0 : index
    %279 = vector.load %arg17[%c86_483, %c0_484] : memref<128x128xf32, #tpu.memory_space<vmem>>, vector<2x128xf32>
    %c20_485 = arith.constant 20 : index
    %c1024_486 = arith.constant 1024 : index
    %280 = vector.load %arg18[%c20_485, %c1024_486] : memref<32x2048xf32, #tpu.memory_space<vmem>>, vector<2x128xf32>
    tpu.vector_store %arg18[%c20_485, %c1024_486], %279 {strides = array<i32>} : memref<32x2048xf32, #tpu.memory_space<vmem>>, vector<2x128xf32>,
    %c88_487 = arith.constant 88 : index
    %c0_488 = arith.constant 0 : index
    %281 = vector.load %arg17[%c88_487, %c0_488] : memref<128x128xf32, #tpu.memory_space<vmem>>, vector<2x128xf32>
    %c20_489 = arith.constant 20 : index
    %c1152_490 = arith.constant 1152 : index
    %282 = vector.load %arg18[%c20_489, %c1152_490] : memref<32x2048xf32, #tpu.memory_space<vmem>>, vector<2x128xf32>
    tpu.vector_store %arg18[%c20_489, %c1152_490], %281 {strides = array<i32>} : memref<32x2048xf32, #tpu.memory_space<vmem>>, vector<2x128xf32>,
    %c90 = arith.constant 90 : index
    %c0_491 = arith.constant 0 : index
    %283 = vector.load %arg17[%c90, %c0_491] : memref<128x128xf32, #tpu.memory_space<vmem>>, vector<2x128xf32>
    %c20_492 = arith.constant 20 : index
    %c1280_493 = arith.constant 1280 : index
    %284 = vector.load %arg18[%c20_492, %c1280_493] : memref<32x2048xf32, #tpu.memory_space<vmem>>, vector<2x128xf32>
    tpu.vector_store %arg18[%c20_492, %c1280_493], %283 {strides = array<i32>} : memref<32x2048xf32, #tpu.memory_space<vmem>>, vector<2x128xf32>,
    %c92 = arith.constant 92 : index
    %c0_494 = arith.constant 0 : index
    %285 = vector.load %arg17[%c92, %c0_494] : memref<128x128xf32, #tpu.memory_space<vmem>>, vector<2x128xf32>
    %c20_495 = arith.constant 20 : index
    %c1408_496 = arith.constant 1408 : index
    %286 = vector.load %arg18[%c20_495, %c1408_496] : memref<32x2048xf32, #tpu.memory_space<vmem>>, vector<2x128xf32>
    tpu.vector_store %arg18[%c20_495, %c1408_496], %285 {strides = array<i32>} : memref<32x2048xf32, #tpu.memory_space<vmem>>, vector<2x128xf32>,
    %c102_497 = arith.constant 102 : index
    %c0_498 = arith.constant 0 : index
    %287 = vector.load %arg17[%c102_497, %c0_498] : memref<128x128xf32, #tpu.memory_space<vmem>>, vector<2x128xf32>
    %c20_499 = arith.constant 20 : index
    %c1536_500 = arith.constant 1536 : index
    %288 = vector.load %arg18[%c20_499, %c1536_500] : memref<32x2048xf32, #tpu.memory_space<vmem>>, vector<2x128xf32>
    tpu.vector_store %arg18[%c20_499, %c1536_500], %287 {strides = array<i32>} : memref<32x2048xf32, #tpu.memory_space<vmem>>, vector<2x128xf32>,
    %c104_501 = arith.constant 104 : index
    %c0_502 = arith.constant 0 : index
    %289 = vector.load %arg17[%c104_501, %c0_502] : memref<128x128xf32, #tpu.memory_space<vmem>>, vector<2x128xf32>
    %c20_503 = arith.constant 20 : index
    %c1664_504 = arith.constant 1664 : index
    %290 = vector.load %arg18[%c20_503, %c1664_504] : memref<32x2048xf32, #tpu.memory_space<vmem>>, vector<2x128xf32>
    tpu.vector_store %arg18[%c20_503, %c1664_504], %289 {strides = array<i32>} : memref<32x2048xf32, #tpu.memory_space<vmem>>, vector<2x128xf32>,
    %c106 = arith.constant 106 : index
    %c0_505 = arith.constant 0 : index
    %291 = vector.load %arg17[%c106, %c0_505] : memref<128x128xf32, #tpu.memory_space<vmem>>, vector<2x128xf32>
    %c20_506 = arith.constant 20 : index
    %c1792_507 = arith.constant 1792 : index
    %292 = vector.load %arg18[%c20_506, %c1792_507] : memref<32x2048xf32, #tpu.memory_space<vmem>>, vector<2x128xf32>
    tpu.vector_store %arg18[%c20_506, %c1792_507], %291 {strides = array<i32>} : memref<32x2048xf32, #tpu.memory_space<vmem>>, vector<2x128xf32>,
    %c108 = arith.constant 108 : index
    %c0_508 = arith.constant 0 : index
    %293 = vector.load %arg17[%c108, %c0_508] : memref<128x128xf32, #tpu.memory_space<vmem>>, vector<2x128xf32>
    %c20_509 = arith.constant 20 : index
    %c1920_510 = arith.constant 1920 : index
    %294 = vector.load %arg18[%c20_509, %c1920_510] : memref<32x2048xf32, #tpu.memory_space<vmem>>, vector<2x128xf32>
    tpu.vector_store %arg18[%c20_509, %c1920_510], %293 {strides = array<i32>} : memref<32x2048xf32, #tpu.memory_space<vmem>>, vector<2x128xf32>,
    %c58_511 = arith.constant 58 : index
    %c0_512 = arith.constant 0 : index
    %295 = vector.load %arg17[%c58_511, %c0_512] : memref<128x128xf32, #tpu.memory_space<vmem>>, vector<2x128xf32>
    %c22_513 = arith.constant 22 : index
    %c0_514 = arith.constant 0 : index
    %296 = vector.load %arg18[%c22_513, %c0_514] : memref<32x2048xf32, #tpu.memory_space<vmem>>, vector<2x128xf32>
    tpu.vector_store %arg18[%c22_513, %c0_514], %295 {strides = array<i32>} : memref<32x2048xf32, #tpu.memory_space<vmem>>, vector<2x128xf32>,
    %c60_515 = arith.constant 60 : index
    %c0_516 = arith.constant 0 : index
    %297 = vector.load %arg17[%c60_515, %c0_516] : memref<128x128xf32, #tpu.memory_space<vmem>>, vector<2x128xf32>
    %c22_517 = arith.constant 22 : index
    %c128_518 = arith.constant 128 : index
    %298 = vector.load %arg18[%c22_517, %c128_518] : memref<32x2048xf32, #tpu.memory_space<vmem>>, vector<2x128xf32>
    tpu.vector_store %arg18[%c22_517, %c128_518], %297 {strides = array<i32>} : memref<32x2048xf32, #tpu.memory_space<vmem>>, vector<2x128xf32>,
    %c62_519 = arith.constant 62 : index
    %c0_520 = arith.constant 0 : index
    %299 = vector.load %arg17[%c62_519, %c0_520] : memref<128x128xf32, #tpu.memory_space<vmem>>, vector<2x128xf32>
    %c22_521 = arith.constant 22 : index
    %c256_522 = arith.constant 256 : index
    %300 = vector.load %arg18[%c22_521, %c256_522] : memref<32x2048xf32, #tpu.memory_space<vmem>>, vector<2x128xf32>
    tpu.vector_store %arg18[%c22_521, %c256_522], %299 {strides = array<i32>} : memref<32x2048xf32, #tpu.memory_space<vmem>>, vector<2x128xf32>,
    %c74_523 = arith.constant 74 : index
    %c0_524 = arith.constant 0 : index
    %301 = vector.load %arg17[%c74_523, %c0_524] : memref<128x128xf32, #tpu.memory_space<vmem>>, vector<2x128xf32>
    %c22_525 = arith.constant 22 : index
    %c512_526 = arith.constant 512 : index
    %302 = vector.load %arg18[%c22_525, %c512_526] : memref<32x2048xf32, #tpu.memory_space<vmem>>, vector<2x128xf32>
    tpu.vector_store %arg18[%c22_525, %c512_526], %301 {strides = array<i32>} : memref<32x2048xf32, #tpu.memory_space<vmem>>, vector<2x128xf32>,
    %c76_527 = arith.constant 76 : index
    %c0_528 = arith.constant 0 : index
    %303 = vector.load %arg17[%c76_527, %c0_528] : memref<128x128xf32, #tpu.memory_space<vmem>>, vector<2x128xf32>
    %c22_529 = arith.constant 22 : index
    %c640_530 = arith.constant 640 : index
    %304 = vector.load %arg18[%c22_529, %c640_530] : memref<32x2048xf32, #tpu.memory_space<vmem>>, vector<2x128xf32>
    tpu.vector_store %arg18[%c22_529, %c640_530], %303 {strides = array<i32>} : memref<32x2048xf32, #tpu.memory_space<vmem>>, vector<2x128xf32>,
    %c78_531 = arith.constant 78 : index
    %c0_532 = arith.constant 0 : index
    %305 = vector.load %arg17[%c78_531, %c0_532] : memref<128x128xf32, #tpu.memory_space<vmem>>, vector<2x128xf32>
    %c22_533 = arith.constant 22 : index
    %c768_534 = arith.constant 768 : index
    %306 = vector.load %arg18[%c22_533, %c768_534] : memref<32x2048xf32, #tpu.memory_space<vmem>>, vector<2x128xf32>
    tpu.vector_store %arg18[%c22_533, %c768_534], %305 {strides = array<i32>} : memref<32x2048xf32, #tpu.memory_space<vmem>>, vector<2x128xf32>,
    %c90_535 = arith.constant 90 : index
    %c0_536 = arith.constant 0 : index
    %307 = vector.load %arg17[%c90_535, %c0_536] : memref<128x128xf32, #tpu.memory_space<vmem>>, vector<2x128xf32>
    %c22_537 = arith.constant 22 : index
    %c1024_538 = arith.constant 1024 : index
    %308 = vector.load %arg18[%c22_537, %c1024_538] : memref<32x2048xf32, #tpu.memory_space<vmem>>, vector<2x128xf32>
    tpu.vector_store %arg18[%c22_537, %c1024_538], %307 {strides = array<i32>} : memref<32x2048xf32, #tpu.memory_space<vmem>>, vector<2x128xf32>,
    %c92_539 = arith.constant 92 : index
    %c0_540 = arith.constant 0 : index
    %309 = vector.load %arg17[%c92_539, %c0_540] : memref<128x128xf32, #tpu.memory_space<vmem>>, vector<2x128xf32>
    %c22_541 = arith.constant 22 : index
    %c1152_542 = arith.constant 1152 : index
    %310 = vector.load %arg18[%c22_541, %c1152_542] : memref<32x2048xf32, #tpu.memory_space<vmem>>, vector<2x128xf32>
    tpu.vector_store %arg18[%c22_541, %c1152_542], %309 {strides = array<i32>} : memref<32x2048xf32, #tpu.memory_space<vmem>>, vector<2x128xf32>,
    %c94 = arith.constant 94 : index
    %c0_543 = arith.constant 0 : index
    %311 = vector.load %arg17[%c94, %c0_543] : memref<128x128xf32, #tpu.memory_space<vmem>>, vector<2x128xf32>
    %c22_544 = arith.constant 22 : index
    %c1280_545 = arith.constant 1280 : index
    %312 = vector.load %arg18[%c22_544, %c1280_545] : memref<32x2048xf32, #tpu.memory_space<vmem>>, vector<2x128xf32>
    tpu.vector_store %arg18[%c22_544, %c1280_545], %311 {strides = array<i32>} : memref<32x2048xf32, #tpu.memory_space<vmem>>, vector<2x128xf32>,
    %c106_546 = arith.constant 106 : index
    %c0_547 = arith.constant 0 : index
    %313 = vector.load %arg17[%c106_546, %c0_547] : memref<128x128xf32, #tpu.memory_space<vmem>>, vector<2x128xf32>
    %c22_548 = arith.constant 22 : index
    %c1536_549 = arith.constant 1536 : index
    %314 = vector.load %arg18[%c22_548, %c1536_549] : memref<32x2048xf32, #tpu.memory_space<vmem>>, vector<2x128xf32>
    tpu.vector_store %arg18[%c22_548, %c1536_549], %313 {strides = array<i32>} : memref<32x2048xf32, #tpu.memory_space<vmem>>, vector<2x128xf32>,
    %c108_550 = arith.constant 108 : index
    %c0_551 = arith.constant 0 : index
    %315 = vector.load %arg17[%c108_550, %c0_551] : memref<128x128xf32, #tpu.memory_space<vmem>>, vector<2x128xf32>
    %c22_552 = arith.constant 22 : index
    %c1664_553 = arith.constant 1664 : index
    %316 = vector.load %arg18[%c22_552, %c1664_553] : memref<32x2048xf32, #tpu.memory_space<vmem>>, vector<2x128xf32>
    tpu.vector_store %arg18[%c22_552, %c1664_553], %315 {strides = array<i32>} : memref<32x2048xf32, #tpu.memory_space<vmem>>, vector<2x128xf32>,
    %c110 = arith.constant 110 : index
    %c0_554 = arith.constant 0 : index
    %317 = vector.load %arg17[%c110, %c0_554] : memref<128x128xf32, #tpu.memory_space<vmem>>, vector<2x128xf32>
    %c22_555 = arith.constant 22 : index
    %c1792_556 = arith.constant 1792 : index
    %318 = vector.load %arg18[%c22_555, %c1792_556] : memref<32x2048xf32, #tpu.memory_space<vmem>>, vector<2x128xf32>
    tpu.vector_store %arg18[%c22_555, %c1792_556], %317 {strides = array<i32>} : memref<32x2048xf32, #tpu.memory_space<vmem>>, vector<2x128xf32>,
    %c80_557 = arith.constant 80 : index
    %c0_558 = arith.constant 0 : index
    %319 = vector.load %arg17[%c80_557, %c0_558] : memref<128x128xf32, #tpu.memory_space<vmem>>, vector<2x128xf32>
    %c24_559 = arith.constant 24 : index
    %c128_560 = arith.constant 128 : index
    %320 = vector.load %arg18[%c24_559, %c128_560] : memref<32x2048xf32, #tpu.memory_space<vmem>>, vector<2x128xf32>
    tpu.vector_store %arg18[%c24_559, %c128_560], %319 {strides = array<i32>} : memref<32x2048xf32, #tpu.memory_space<vmem>>, vector<2x128xf32>,
    %c82_561 = arith.constant 82 : index
    %c0_562 = arith.constant 0 : index
    %321 = vector.load %arg17[%c82_561, %c0_562] : memref<128x128xf32, #tpu.memory_space<vmem>>, vector<2x128xf32>
    %c24_563 = arith.constant 24 : index
    %c256_564 = arith.constant 256 : index
    %322 = vector.load %arg18[%c24_563, %c256_564] : memref<32x2048xf32, #tpu.memory_space<vmem>>, vector<2x128xf32>
    tpu.vector_store %arg18[%c24_563, %c256_564], %321 {strides = array<i32>} : memref<32x2048xf32, #tpu.memory_space<vmem>>, vector<2x128xf32>,
    %c84_565 = arith.constant 84 : index
    %c0_566 = arith.constant 0 : index
    %323 = vector.load %arg17[%c84_565, %c0_566] : memref<128x128xf32, #tpu.memory_space<vmem>>, vector<2x128xf32>
    %c24_567 = arith.constant 24 : index
    %c384_568 = arith.constant 384 : index
    %324 = vector.load %arg18[%c24_567, %c384_568] : memref<32x2048xf32, #tpu.memory_space<vmem>>, vector<2x128xf32>
    tpu.vector_store %arg18[%c24_567, %c384_568], %323 {strides = array<i32>} : memref<32x2048xf32, #tpu.memory_space<vmem>>, vector<2x128xf32>,
    %c96_569 = arith.constant 96 : index
    %c0_570 = arith.constant 0 : index
    %325 = vector.load %arg17[%c96_569, %c0_570] : memref<128x128xf32, #tpu.memory_space<vmem>>, vector<2x128xf32>
    %c24_571 = arith.constant 24 : index
    %c640_572 = arith.constant 640 : index
    %326 = vector.load %arg18[%c24_571, %c640_572] : memref<32x2048xf32, #tpu.memory_space<vmem>>, vector<2x128xf32>
    tpu.vector_store %arg18[%c24_571, %c640_572], %325 {strides = array<i32>} : memref<32x2048xf32, #tpu.memory_space<vmem>>, vector<2x128xf32>,
    %c98_573 = arith.constant 98 : index
    %c0_574 = arith.constant 0 : index
    %327 = vector.load %arg17[%c98_573, %c0_574] : memref<128x128xf32, #tpu.memory_space<vmem>>, vector<2x128xf32>
    %c24_575 = arith.constant 24 : index
    %c768_576 = arith.constant 768 : index
    %328 = vector.load %arg18[%c24_575, %c768_576] : memref<32x2048xf32, #tpu.memory_space<vmem>>, vector<2x128xf32>
    tpu.vector_store %arg18[%c24_575, %c768_576], %327 {strides = array<i32>} : memref<32x2048xf32, #tpu.memory_space<vmem>>, vector<2x128xf32>,
    %c100_577 = arith.constant 100 : index
    %c0_578 = arith.constant 0 : index
    %329 = vector.load %arg17[%c100_577, %c0_578] : memref<128x128xf32, #tpu.memory_space<vmem>>, vector<2x128xf32>
    %c24_579 = arith.constant 24 : index
    %c896_580 = arith.constant 896 : index
    %330 = vector.load %arg18[%c24_579, %c896_580] : memref<32x2048xf32, #tpu.memory_space<vmem>>, vector<2x128xf32>
    tpu.vector_store %arg18[%c24_579, %c896_580], %329 {strides = array<i32>} : memref<32x2048xf32, #tpu.memory_space<vmem>>, vector<2x128xf32>,
    %c112 = arith.constant 112 : index
    %c0_581 = arith.constant 0 : index
    %331 = vector.load %arg17[%c112, %c0_581] : memref<128x128xf32, #tpu.memory_space<vmem>>, vector<2x128xf32>
    %c24_582 = arith.constant 24 : index
    %c1152_583 = arith.constant 1152 : index
    %332 = vector.load %arg18[%c24_582, %c1152_583] : memref<32x2048xf32, #tpu.memory_space<vmem>>, vector<2x128xf32>
    tpu.vector_store %arg18[%c24_582, %c1152_583], %331 {strides = array<i32>} : memref<32x2048xf32, #tpu.memory_space<vmem>>, vector<2x128xf32>,
    %c114 = arith.constant 114 : index
    %c0_584 = arith.constant 0 : index
    %333 = vector.load %arg17[%c114, %c0_584] : memref<128x128xf32, #tpu.memory_space<vmem>>, vector<2x128xf32>
    %c24_585 = arith.constant 24 : index
    %c1280_586 = arith.constant 1280 : index
    %334 = vector.load %arg18[%c24_585, %c1280_586] : memref<32x2048xf32, #tpu.memory_space<vmem>>, vector<2x128xf32>
    tpu.vector_store %arg18[%c24_585, %c1280_586], %333 {strides = array<i32>} : memref<32x2048xf32, #tpu.memory_space<vmem>>, vector<2x128xf32>,
    %c116 = arith.constant 116 : index
    %c0_587 = arith.constant 0 : index
    %335 = vector.load %arg17[%c116, %c0_587] : memref<128x128xf32, #tpu.memory_space<vmem>>, vector<2x128xf32>
    %c24_588 = arith.constant 24 : index
    %c1408_589 = arith.constant 1408 : index
    %336 = vector.load %arg18[%c24_588, %c1408_589] : memref<32x2048xf32, #tpu.memory_space<vmem>>, vector<2x128xf32>
    tpu.vector_store %arg18[%c24_588, %c1408_589], %335 {strides = array<i32>} : memref<32x2048xf32, #tpu.memory_space<vmem>>, vector<2x128xf32>,
    %c82_590 = arith.constant 82 : index
    %c0_591 = arith.constant 0 : index
    %337 = vector.load %arg17[%c82_590, %c0_591] : memref<128x128xf32, #tpu.memory_space<vmem>>, vector<2x128xf32>
    %c26_592 = arith.constant 26 : index
    %c0_593 = arith.constant 0 : index
    %338 = vector.load %arg18[%c26_592, %c0_593] : memref<32x2048xf32, #tpu.memory_space<vmem>>, vector<2x128xf32>
    tpu.vector_store %arg18[%c26_592, %c0_593], %337 {strides = array<i32>} : memref<32x2048xf32, #tpu.memory_space<vmem>>, vector<2x128xf32>,
    %c84_594 = arith.constant 84 : index
    %c0_595 = arith.constant 0 : index
    %339 = vector.load %arg17[%c84_594, %c0_595] : memref<128x128xf32, #tpu.memory_space<vmem>>, vector<2x128xf32>
    %c26_596 = arith.constant 26 : index
    %c128_597 = arith.constant 128 : index
    %340 = vector.load %arg18[%c26_596, %c128_597] : memref<32x2048xf32, #tpu.memory_space<vmem>>, vector<2x128xf32>
    tpu.vector_store %arg18[%c26_596, %c128_597], %339 {strides = array<i32>} : memref<32x2048xf32, #tpu.memory_space<vmem>>, vector<2x128xf32>,
    %c86_598 = arith.constant 86 : index
    %c0_599 = arith.constant 0 : index
    %341 = vector.load %arg17[%c86_598, %c0_599] : memref<128x128xf32, #tpu.memory_space<vmem>>, vector<2x128xf32>
    %c26_600 = arith.constant 26 : index
    %c256_601 = arith.constant 256 : index
    %342 = vector.load %arg18[%c26_600, %c256_601] : memref<32x2048xf32, #tpu.memory_space<vmem>>, vector<2x128xf32>
    tpu.vector_store %arg18[%c26_600, %c256_601], %341 {strides = array<i32>} : memref<32x2048xf32, #tpu.memory_space<vmem>>, vector<2x128xf32>,
    %c88_602 = arith.constant 88 : index
    %c0_603 = arith.constant 0 : index
    %343 = vector.load %arg17[%c88_602, %c0_603] : memref<128x128xf32, #tpu.memory_space<vmem>>, vector<2x128xf32>
    %c26_604 = arith.constant 26 : index
    %c384_605 = arith.constant 384 : index
    %344 = vector.load %arg18[%c26_604, %c384_605] : memref<32x2048xf32, #tpu.memory_space<vmem>>, vector<2x128xf32>
    tpu.vector_store %arg18[%c26_604, %c384_605], %343 {strides = array<i32>} : memref<32x2048xf32, #tpu.memory_space<vmem>>, vector<2x128xf32>,
    %c98_606 = arith.constant 98 : index
    %c0_607 = arith.constant 0 : index
    %345 = vector.load %arg17[%c98_606, %c0_607] : memref<128x128xf32, #tpu.memory_space<vmem>>, vector<2x128xf32>
    %c26_608 = arith.constant 26 : index
    %c512_609 = arith.constant 512 : index
    %346 = vector.load %arg18[%c26_608, %c512_609] : memref<32x2048xf32, #tpu.memory_space<vmem>>, vector<2x128xf32>
    tpu.vector_store %arg18[%c26_608, %c512_609], %345 {strides = array<i32>} : memref<32x2048xf32, #tpu.memory_space<vmem>>, vector<2x128xf32>,
    %c100_610 = arith.constant 100 : index
    %c0_611 = arith.constant 0 : index
    %347 = vector.load %arg17[%c100_610, %c0_611] : memref<128x128xf32, #tpu.memory_space<vmem>>, vector<2x128xf32>
    %c26_612 = arith.constant 26 : index
    %c640_613 = arith.constant 640 : index
    %348 = vector.load %arg18[%c26_612, %c640_613] : memref<32x2048xf32, #tpu.memory_space<vmem>>, vector<2x128xf32>
    tpu.vector_store %arg18[%c26_612, %c640_613], %347 {strides = array<i32>} : memref<32x2048xf32, #tpu.memory_space<vmem>>, vector<2x128xf32>,
    %c102_614 = arith.constant 102 : index
    %c0_615 = arith.constant 0 : index
    %349 = vector.load %arg17[%c102_614, %c0_615] : memref<128x128xf32, #tpu.memory_space<vmem>>, vector<2x128xf32>
    %c26_616 = arith.constant 26 : index
    %c768_617 = arith.constant 768 : index
    %350 = vector.load %arg18[%c26_616, %c768_617] : memref<32x2048xf32, #tpu.memory_space<vmem>>, vector<2x128xf32>
    tpu.vector_store %arg18[%c26_616, %c768_617], %349 {strides = array<i32>} : memref<32x2048xf32, #tpu.memory_space<vmem>>, vector<2x128xf32>,
    %c104_618 = arith.constant 104 : index
    %c0_619 = arith.constant 0 : index
    %351 = vector.load %arg17[%c104_618, %c0_619] : memref<128x128xf32, #tpu.memory_space<vmem>>, vector<2x128xf32>
    %c26_620 = arith.constant 26 : index
    %c896_621 = arith.constant 896 : index
    %352 = vector.load %arg18[%c26_620, %c896_621] : memref<32x2048xf32, #tpu.memory_space<vmem>>, vector<2x128xf32>
    tpu.vector_store %arg18[%c26_620, %c896_621], %351 {strides = array<i32>} : memref<32x2048xf32, #tpu.memory_space<vmem>>, vector<2x128xf32>,
    %c114_622 = arith.constant 114 : index
    %c0_623 = arith.constant 0 : index
    %353 = vector.load %arg17[%c114_622, %c0_623] : memref<128x128xf32, #tpu.memory_space<vmem>>, vector<2x128xf32>
    %c26_624 = arith.constant 26 : index
    %c1024_625 = arith.constant 1024 : index
    %354 = vector.load %arg18[%c26_624, %c1024_625] : memref<32x2048xf32, #tpu.memory_space<vmem>>, vector<2x128xf32>
    tpu.vector_store %arg18[%c26_624, %c1024_625], %353 {strides = array<i32>} : memref<32x2048xf32, #tpu.memory_space<vmem>>, vector<2x128xf32>,
    %c116_626 = arith.constant 116 : index
    %c0_627 = arith.constant 0 : index
    %355 = vector.load %arg17[%c116_626, %c0_627] : memref<128x128xf32, #tpu.memory_space<vmem>>, vector<2x128xf32>
    %c26_628 = arith.constant 26 : index
    %c1152_629 = arith.constant 1152 : index
    %356 = vector.load %arg18[%c26_628, %c1152_629] : memref<32x2048xf32, #tpu.memory_space<vmem>>, vector<2x128xf32>
    tpu.vector_store %arg18[%c26_628, %c1152_629], %355 {strides = array<i32>} : memref<32x2048xf32, #tpu.memory_space<vmem>>, vector<2x128xf32>,
    %c118 = arith.constant 118 : index
    %c0_630 = arith.constant 0 : index
    %357 = vector.load %arg17[%c118, %c0_630] : memref<128x128xf32, #tpu.memory_space<vmem>>, vector<2x128xf32>
    %c26_631 = arith.constant 26 : index
    %c1280_632 = arith.constant 1280 : index
    %358 = vector.load %arg18[%c26_631, %c1280_632] : memref<32x2048xf32, #tpu.memory_space<vmem>>, vector<2x128xf32>
    tpu.vector_store %arg18[%c26_631, %c1280_632], %357 {strides = array<i32>} : memref<32x2048xf32, #tpu.memory_space<vmem>>, vector<2x128xf32>,
    %c120 = arith.constant 120 : index
    %c0_633 = arith.constant 0 : index
    %359 = vector.load %arg17[%c120, %c0_633] : memref<128x128xf32, #tpu.memory_space<vmem>>, vector<2x128xf32>
    %c26_634 = arith.constant 26 : index
    %c1408_635 = arith.constant 1408 : index
    %360 = vector.load %arg18[%c26_634, %c1408_635] : memref<32x2048xf32, #tpu.memory_space<vmem>>, vector<2x128xf32>
    tpu.vector_store %arg18[%c26_634, %c1408_635], %359 {strides = array<i32>} : memref<32x2048xf32, #tpu.memory_space<vmem>>, vector<2x128xf32>,
    %c86_636 = arith.constant 86 : index
    %c0_637 = arith.constant 0 : index
    %361 = vector.load %arg17[%c86_636, %c0_637] : memref<128x128xf32, #tpu.memory_space<vmem>>, vector<2x128xf32>
    %c28_638 = arith.constant 28 : index
    %c0_639 = arith.constant 0 : index
    %362 = vector.load %arg18[%c28_638, %c0_639] : memref<32x2048xf32, #tpu.memory_space<vmem>>, vector<2x128xf32>
    tpu.vector_store %arg18[%c28_638, %c0_639], %361 {strides = array<i32>} : memref<32x2048xf32, #tpu.memory_space<vmem>>, vector<2x128xf32>,
    %c88_640 = arith.constant 88 : index
    %c0_641 = arith.constant 0 : index
    %363 = vector.load %arg17[%c88_640, %c0_641] : memref<128x128xf32, #tpu.memory_space<vmem>>, vector<2x128xf32>
    %c28_642 = arith.constant 28 : index
    %c128_643 = arith.constant 128 : index
    %364 = vector.load %arg18[%c28_642, %c128_643] : memref<32x2048xf32, #tpu.memory_space<vmem>>, vector<2x128xf32>
    tpu.vector_store %arg18[%c28_642, %c128_643], %363 {strides = array<i32>} : memref<32x2048xf32, #tpu.memory_space<vmem>>, vector<2x128xf32>,
    %c90_644 = arith.constant 90 : index
    %c0_645 = arith.constant 0 : index
    %365 = vector.load %arg17[%c90_644, %c0_645] : memref<128x128xf32, #tpu.memory_space<vmem>>, vector<2x128xf32>
    %c28_646 = arith.constant 28 : index
    %c256_647 = arith.constant 256 : index
    %366 = vector.load %arg18[%c28_646, %c256_647] : memref<32x2048xf32, #tpu.memory_space<vmem>>, vector<2x128xf32>
    tpu.vector_store %arg18[%c28_646, %c256_647], %365 {strides = array<i32>} : memref<32x2048xf32, #tpu.memory_space<vmem>>, vector<2x128xf32>,
    %c92_648 = arith.constant 92 : index
    %c0_649 = arith.constant 0 : index
    %367 = vector.load %arg17[%c92_648, %c0_649] : memref<128x128xf32, #tpu.memory_space<vmem>>, vector<2x128xf32>
    %c28_650 = arith.constant 28 : index
    %c384_651 = arith.constant 384 : index
    %368 = vector.load %arg18[%c28_650, %c384_651] : memref<32x2048xf32, #tpu.memory_space<vmem>>, vector<2x128xf32>
    tpu.vector_store %arg18[%c28_650, %c384_651], %367 {strides = array<i32>} : memref<32x2048xf32, #tpu.memory_space<vmem>>, vector<2x128xf32>,
    %c102_652 = arith.constant 102 : index
    %c0_653 = arith.constant 0 : index
    %369 = vector.load %arg17[%c102_652, %c0_653] : memref<128x128xf32, #tpu.memory_space<vmem>>, vector<2x128xf32>
    %c28_654 = arith.constant 28 : index
    %c512_655 = arith.constant 512 : index
    %370 = vector.load %arg18[%c28_654, %c512_655] : memref<32x2048xf32, #tpu.memory_space<vmem>>, vector<2x128xf32>
    tpu.vector_store %arg18[%c28_654, %c512_655], %369 {strides = array<i32>} : memref<32x2048xf32, #tpu.memory_space<vmem>>, vector<2x128xf32>,
    %c104_656 = arith.constant 104 : index
    %c0_657 = arith.constant 0 : index
    %371 = vector.load %arg17[%c104_656, %c0_657] : memref<128x128xf32, #tpu.memory_space<vmem>>, vector<2x128xf32>
    %c28_658 = arith.constant 28 : index
    %c640_659 = arith.constant 640 : index
    %372 = vector.load %arg18[%c28_658, %c640_659] : memref<32x2048xf32, #tpu.memory_space<vmem>>, vector<2x128xf32>
    tpu.vector_store %arg18[%c28_658, %c640_659], %371 {strides = array<i32>} : memref<32x2048xf32, #tpu.memory_space<vmem>>, vector<2x128xf32>,
    %c106_660 = arith.constant 106 : index
    %c0_661 = arith.constant 0 : index
    %373 = vector.load %arg17[%c106_660, %c0_661] : memref<128x128xf32, #tpu.memory_space<vmem>>, vector<2x128xf32>
    %c28_662 = arith.constant 28 : index
    %c768_663 = arith.constant 768 : index
    %374 = vector.load %arg18[%c28_662, %c768_663] : memref<32x2048xf32, #tpu.memory_space<vmem>>, vector<2x128xf32>
    tpu.vector_store %arg18[%c28_662, %c768_663], %373 {strides = array<i32>} : memref<32x2048xf32, #tpu.memory_space<vmem>>, vector<2x128xf32>,
    %c108_664 = arith.constant 108 : index
    %c0_665 = arith.constant 0 : index
    %375 = vector.load %arg17[%c108_664, %c0_665] : memref<128x128xf32, #tpu.memory_space<vmem>>, vector<2x128xf32>
    %c28_666 = arith.constant 28 : index
    %c896_667 = arith.constant 896 : index
    %376 = vector.load %arg18[%c28_666, %c896_667] : memref<32x2048xf32, #tpu.memory_space<vmem>>, vector<2x128xf32>
    tpu.vector_store %arg18[%c28_666, %c896_667], %375 {strides = array<i32>} : memref<32x2048xf32, #tpu.memory_space<vmem>>, vector<2x128xf32>,
    %c118_668 = arith.constant 118 : index
    %c0_669 = arith.constant 0 : index
    %377 = vector.load %arg17[%c118_668, %c0_669] : memref<128x128xf32, #tpu.memory_space<vmem>>, vector<2x128xf32>
    %c28_670 = arith.constant 28 : index
    %c1024_671 = arith.constant 1024 : index
    %378 = vector.load %arg18[%c28_670, %c1024_671] : memref<32x2048xf32, #tpu.memory_space<vmem>>, vector<2x128xf32>
    tpu.vector_store %arg18[%c28_670, %c1024_671], %377 {strides = array<i32>} : memref<32x2048xf32, #tpu.memory_space<vmem>>, vector<2x128xf32>,
    %c120_672 = arith.constant 120 : index
    %c0_673 = arith.constant 0 : index
    %379 = vector.load %arg17[%c120_672, %c0_673] : memref<128x128xf32, #tpu.memory_space<vmem>>, vector<2x128xf32>
    %c28_674 = arith.constant 28 : index
    %c1152_675 = arith.constant 1152 : index
    %380 = vector.load %arg18[%c28_674, %c1152_675] : memref<32x2048xf32, #tpu.memory_space<vmem>>, vector<2x128xf32>
    tpu.vector_store %arg18[%c28_674, %c1152_675], %379 {strides = array<i32>} : memref<32x2048xf32, #tpu.memory_space<vmem>>, vector<2x128xf32>,
    %c122 = arith.constant 122 : index
    %c0_676 = arith.constant 0 : index
    %381 = vector.load %arg17[%c122, %c0_676] : memref<128x128xf32, #tpu.memory_space<vmem>>, vector<2x128xf32>
    %c28_677 = arith.constant 28 : index
    %c1280_678 = arith.constant 1280 : index
    %382 = vector.load %arg18[%c28_677, %c1280_678] : memref<32x2048xf32, #tpu.memory_space<vmem>>, vector<2x128xf32>
    tpu.vector_store %arg18[%c28_677, %c1280_678], %381 {strides = array<i32>} : memref<32x2048xf32, #tpu.memory_space<vmem>>, vector<2x128xf32>,
    %c124 = arith.constant 124 : index
    %c0_679 = arith.constant 0 : index
    %383 = vector.load %arg17[%c124, %c0_679] : memref<128x128xf32, #tpu.memory_space<vmem>>, vector<2x128xf32>
    %c28_680 = arith.constant 28 : index
    %c1408_681 = arith.constant 1408 : index
    %384 = vector.load %arg18[%c28_680, %c1408_681] : memref<32x2048xf32, #tpu.memory_space<vmem>>, vector<2x128xf32>
    tpu.vector_store %arg18[%c28_680, %c1408_681], %383 {strides = array<i32>} : memref<32x2048xf32, #tpu.memory_space<vmem>>, vector<2x128xf32>,
    %c90_682 = arith.constant 90 : index
    %c0_683 = arith.constant 0 : index
    %385 = vector.load %arg17[%c90_682, %c0_683] : memref<128x128xf32, #tpu.memory_space<vmem>>, vector<2x128xf32>
    %c30_684 = arith.constant 30 : index
    %c0_685 = arith.constant 0 : index
    %386 = vector.load %arg18[%c30_684, %c0_685] : memref<32x2048xf32, #tpu.memory_space<vmem>>, vector<2x128xf32>
    tpu.vector_store %arg18[%c30_684, %c0_685], %385 {strides = array<i32>} : memref<32x2048xf32, #tpu.memory_space<vmem>>, vector<2x128xf32>,
    %c92_686 = arith.constant 92 : index
    %c0_687 = arith.constant 0 : index
    %387 = vector.load %arg17[%c92_686, %c0_687] : memref<128x128xf32, #tpu.memory_space<vmem>>, vector<2x128xf32>
    %c30_688 = arith.constant 30 : index
    %c128_689 = arith.constant 128 : index
    %388 = vector.load %arg18[%c30_688, %c128_689] : memref<32x2048xf32, #tpu.memory_space<vmem>>, vector<2x128xf32>
    tpu.vector_store %arg18[%c30_688, %c128_689], %387 {strides = array<i32>} : memref<32x2048xf32, #tpu.memory_space<vmem>>, vector<2x128xf32>,
    %c94_690 = arith.constant 94 : index
    %c0_691 = arith.constant 0 : index
    %389 = vector.load %arg17[%c94_690, %c0_691] : memref<128x128xf32, #tpu.memory_space<vmem>>, vector<2x128xf32>
    %c30_692 = arith.constant 30 : index
    %c256_693 = arith.constant 256 : index
    %390 = vector.load %arg18[%c30_692, %c256_693] : memref<32x2048xf32, #tpu.memory_space<vmem>>, vector<2x128xf32>
    tpu.vector_store %arg18[%c30_692, %c256_693], %389 {strides = array<i32>} : memref<32x2048xf32, #tpu.memory_space<vmem>>, vector<2x128xf32>,
    %c106_694 = arith.constant 106 : index
    %c0_695 = arith.constant 0 : index
    %391 = vector.load %arg17[%c106_694, %c0_695] : memref<128x128xf32, #tpu.memory_space<vmem>>, vector<2x128xf32>
    %c30_696 = arith.constant 30 : index
    %c512_697 = arith.constant 512 : index
    %392 = vector.load %arg18[%c30_696, %c512_697] : memref<32x2048xf32, #tpu.memory_space<vmem>>, vector<2x128xf32>
    tpu.vector_store %arg18[%c30_696, %c512_697], %391 {strides = array<i32>} : memref<32x2048xf32, #tpu.memory_space<vmem>>, vector<2x128xf32>,
    %c108_698 = arith.constant 108 : index
    %c0_699 = arith.constant 0 : index
    %393 = vector.load %arg17[%c108_698, %c0_699] : memref<128x128xf32, #tpu.memory_space<vmem>>, vector<2x128xf32>
    %c30_700 = arith.constant 30 : index
    %c640_701 = arith.constant 640 : index
    %394 = vector.load %arg18[%c30_700, %c640_701] : memref<32x2048xf32, #tpu.memory_space<vmem>>, vector<2x128xf32>
    tpu.vector_store %arg18[%c30_700, %c640_701], %393 {strides = array<i32>} : memref<32x2048xf32, #tpu.memory_space<vmem>>, vector<2x128xf32>,
    %c110_702 = arith.constant 110 : index
    %c0_703 = arith.constant 0 : index
    %395 = vector.load %arg17[%c110_702, %c0_703] : memref<128x128xf32, #tpu.memory_space<vmem>>, vector<2x128xf32>
    %c30_704 = arith.constant 30 : index
    %c768_705 = arith.constant 768 : index
    %396 = vector.load %arg18[%c30_704, %c768_705] : memref<32x2048xf32, #tpu.memory_space<vmem>>, vector<2x128xf32>
    tpu.vector_store %arg18[%c30_704, %c768_705], %395 {strides = array<i32>} : memref<32x2048xf32, #tpu.memory_space<vmem>>, vector<2x128xf32>,
    %c122_706 = arith.constant 122 : index
    %c0_707 = arith.constant 0 : index
    %397 = vector.load %arg17[%c122_706, %c0_707] : memref<128x128xf32, #tpu.memory_space<vmem>>, vector<2x128xf32>
    %c30_708 = arith.constant 30 : index
    %c1024_709 = arith.constant 1024 : index
    %398 = vector.load %arg18[%c30_708, %c1024_709] : memref<32x2048xf32, #tpu.memory_space<vmem>>, vector<2x128xf32>
    tpu.vector_store %arg18[%c30_708, %c1024_709], %397 {strides = array<i32>} : memref<32x2048xf32, #tpu.memory_space<vmem>>, vector<2x128xf32>,
    %c124_710 = arith.constant 124 : index
    %c0_711 = arith.constant 0 : index
    %399 = vector.load %arg17[%c124_710, %c0_711] : memref<128x128xf32, #tpu.memory_space<vmem>>, vector<2x128xf32>
    %c30_712 = arith.constant 30 : index
    %c1152_713 = arith.constant 1152 : index
    %400 = vector.load %arg18[%c30_712, %c1152_713] : memref<32x2048xf32, #tpu.memory_space<vmem>>, vector<2x128xf32>
    tpu.vector_store %arg18[%c30_712, %c1152_713], %399 {strides = array<i32>} : memref<32x2048xf32, #tpu.memory_space<vmem>>, vector<2x128xf32>,
    %c126 = arith.constant 126 : index
    %c0_714 = arith.constant 0 : index
    %401 = vector.load %arg17[%c126, %c0_714] : memref<128x128xf32, #tpu.memory_space<vmem>>, vector<2x128xf32>
    %c30_715 = arith.constant 30 : index
    %c1280_716 = arith.constant 1280 : index
    %402 = vector.load %arg18[%c30_715, %c1280_716] : memref<32x2048xf32, #tpu.memory_space<vmem>>, vector<2x128xf32>
    tpu.vector_store %arg18[%c30_715, %c1280_716], %401 {strides = array<i32>} : memref<32x2048xf32, #tpu.memory_space<vmem>>, vector<2x128xf32>,
    %c0_717 = arith.constant 0 : index
    %c0_718 = arith.constant 0 : index
    %403 = vector.load %arg18[%c0_717, %c0_718] : memref<32x2048xf32, #tpu.memory_space<vmem>>, vector<32x2048xf32>
    %c0_719 = arith.constant 0 : index
    %c0_720 = arith.constant 0 : index
    %404 = vector.load %arg4[%c0_719, %c0_720] : memref<2048x128xf32, #tpu.memory_space<vmem>>, vector<2048x128xf32>
    %cst_721 = arith.constant dense<0.000000e+00> : vector<32x128xf32>
    %405 = tpu.matmul %403, %404, %cst_721 {dimension_numbers = #tpu.dot_dimension_numbers<[1], [0], [0], [1], [0, 0, 1, 1], [], []>} : vector<32x2048xf32>, vector<2048x128xf32>, vector<32x128xf32> -> vector<32x128xf32>
    %c0_722 = arith.constant 0 : index
    %c0_723 = arith.constant 0 : index
    %406 = vector.load %arg5[%c0_722, %c0_723] : memref<1x128xf32, #tpu.memory_space<vmem>>, vector<1x128xf32>
    %407 = vector.broadcast %406 : vector<1x128xf32> to vector<32x128xf32>
    %408 = arith.addf %405, %407 : vector<32x128xf32>
    %cst_724 = arith.constant 0.000000e+00 : f32
    %409 = vector.broadcast %cst_724 : f32 to vector<32x128xf32>
    %410 = arith.maximumf %408, %409 : vector<32x128xf32>
    %c0_725 = arith.constant 0 : index
    %c0_726 = arith.constant 0 : index
    %411 = vector.load %arg19[%c0_725, %c0_726] : memref<32x128xf32, #tpu.memory_space<vmem>>, vector<32x128xf32>
    tpu.vector_store %arg19[%c0_725, %c0_726], %410 {strides = array<i32>} : memref<32x128xf32, #tpu.memory_space<vmem>>, vector<32x128xf32>,
    %cst_727 = arith.constant 0.000000e+00 : f32
    %412 = vector.broadcast %cst_727 : f32 to vector<8x1152xf32>
    %c0_728 = arith.constant 0 : index
    %c0_729 = arith.constant 0 : index
    %413 = vector.load %arg20[%c0_728, %c0_729] : memref<8x1152xf32, #tpu.memory_space<vmem>>, vector<8x1152xf32>
    tpu.vector_store %arg20[%c0_728, %c0_729], %412 {strides = array<i32>} : memref<8x1152xf32, #tpu.memory_space<vmem>>, vector<8x1152xf32>,
    %c0_730 = arith.constant 0 : index
    %c0_731 = arith.constant 0 : index
    %414 = vector.load %arg19[%c0_730, %c0_731] : memref<32x128xf32, #tpu.memory_space<vmem>>, vector<2x128xf32>
    %c0_732 = arith.constant 0 : index
    %c512_733 = arith.constant 512 : index
    %415 = vector.load %arg20[%c0_732, %c512_733] : memref<8x1152xf32, #tpu.memory_space<vmem>>, vector<2x128xf32>
    tpu.vector_store %arg20[%c0_732, %c512_733], %414 {strides = array<i32>} : memref<8x1152xf32, #tpu.memory_space<vmem>>, vector<2x128xf32>,
    %c2_734 = arith.constant 2 : index
    %c0_735 = arith.constant 0 : index
    %416 = vector.load %arg19[%c2_734, %c0_735] : memref<32x128xf32, #tpu.memory_space<vmem>>, vector<2x128xf32>
    %c0_736 = arith.constant 0 : index
    %c640_737 = arith.constant 640 : index
    %417 = vector.load %arg20[%c0_736, %c640_737] : memref<8x1152xf32, #tpu.memory_space<vmem>>, vector<2x128xf32>
    tpu.vector_store %arg20[%c0_736, %c640_737], %416 {strides = array<i32>} : memref<8x1152xf32, #tpu.memory_space<vmem>>, vector<2x128xf32>,
    %c8_738 = arith.constant 8 : index
    %c0_739 = arith.constant 0 : index
    %418 = vector.load %arg19[%c8_738, %c0_739] : memref<32x128xf32, #tpu.memory_space<vmem>>, vector<2x128xf32>
    %c0_740 = arith.constant 0 : index
    %c896_741 = arith.constant 896 : index
    %419 = vector.load %arg20[%c0_740, %c896_741] : memref<8x1152xf32, #tpu.memory_space<vmem>>, vector<2x128xf32>
    tpu.vector_store %arg20[%c0_740, %c896_741], %418 {strides = array<i32>} : memref<8x1152xf32, #tpu.memory_space<vmem>>, vector<2x128xf32>,
    %c10_742 = arith.constant 10 : index
    %c0_743 = arith.constant 0 : index
    %420 = vector.load %arg19[%c10_742, %c0_743] : memref<32x128xf32, #tpu.memory_space<vmem>>, vector<2x128xf32>
    %c0_744 = arith.constant 0 : index
    %c1024_745 = arith.constant 1024 : index
    %421 = vector.load %arg20[%c0_744, %c1024_745] : memref<8x1152xf32, #tpu.memory_space<vmem>>, vector<2x128xf32>
    tpu.vector_store %arg20[%c0_744, %c1024_745], %420 {strides = array<i32>} : memref<8x1152xf32, #tpu.memory_space<vmem>>, vector<2x128xf32>,
    %c2_746 = arith.constant 2 : index
    %c0_747 = arith.constant 0 : index
    %422 = vector.load %arg19[%c2_746, %c0_747] : memref<32x128xf32, #tpu.memory_space<vmem>>, vector<2x128xf32>
    %c2_748 = arith.constant 2 : index
    %c384_749 = arith.constant 384 : index
    %423 = vector.load %arg20[%c2_748, %c384_749] : memref<8x1152xf32, #tpu.memory_space<vmem>>, vector<2x128xf32>
    tpu.vector_store %arg20[%c2_748, %c384_749], %422 {strides = array<i32>} : memref<8x1152xf32, #tpu.memory_space<vmem>>, vector<2x128xf32>,
    %c4_750 = arith.constant 4 : index
    %c0_751 = arith.constant 0 : index
    %424 = vector.load %arg19[%c4_750, %c0_751] : memref<32x128xf32, #tpu.memory_space<vmem>>, vector<2x128xf32>
    %c2_752 = arith.constant 2 : index
    %c512_753 = arith.constant 512 : index
    %425 = vector.load %arg20[%c2_752, %c512_753] : memref<8x1152xf32, #tpu.memory_space<vmem>>, vector<2x128xf32>
    tpu.vector_store %arg20[%c2_752, %c512_753], %424 {strides = array<i32>} : memref<8x1152xf32, #tpu.memory_space<vmem>>, vector<2x128xf32>,
    %c6_754 = arith.constant 6 : index
    %c0_755 = arith.constant 0 : index
    %426 = vector.load %arg19[%c6_754, %c0_755] : memref<32x128xf32, #tpu.memory_space<vmem>>, vector<2x128xf32>
    %c2_756 = arith.constant 2 : index
    %c640_757 = arith.constant 640 : index
    %427 = vector.load %arg20[%c2_756, %c640_757] : memref<8x1152xf32, #tpu.memory_space<vmem>>, vector<2x128xf32>
    tpu.vector_store %arg20[%c2_756, %c640_757], %426 {strides = array<i32>} : memref<8x1152xf32, #tpu.memory_space<vmem>>, vector<2x128xf32>,
    %c10_758 = arith.constant 10 : index
    %c0_759 = arith.constant 0 : index
    %428 = vector.load %arg19[%c10_758, %c0_759] : memref<32x128xf32, #tpu.memory_space<vmem>>, vector<2x128xf32>
    %c2_760 = arith.constant 2 : index
    %c768_761 = arith.constant 768 : index
    %429 = vector.load %arg20[%c2_760, %c768_761] : memref<8x1152xf32, #tpu.memory_space<vmem>>, vector<2x128xf32>
    tpu.vector_store %arg20[%c2_760, %c768_761], %428 {strides = array<i32>} : memref<8x1152xf32, #tpu.memory_space<vmem>>, vector<2x128xf32>,
    %c12_762 = arith.constant 12 : index
    %c0_763 = arith.constant 0 : index
    %430 = vector.load %arg19[%c12_762, %c0_763] : memref<32x128xf32, #tpu.memory_space<vmem>>, vector<2x128xf32>
    %c2_764 = arith.constant 2 : index
    %c896_765 = arith.constant 896 : index
    %431 = vector.load %arg20[%c2_764, %c896_765] : memref<8x1152xf32, #tpu.memory_space<vmem>>, vector<2x128xf32>
    tpu.vector_store %arg20[%c2_764, %c896_765], %430 {strides = array<i32>} : memref<8x1152xf32, #tpu.memory_space<vmem>>, vector<2x128xf32>,
    %c14_766 = arith.constant 14 : index
    %c0_767 = arith.constant 0 : index
    %432 = vector.load %arg19[%c14_766, %c0_767] : memref<32x128xf32, #tpu.memory_space<vmem>>, vector<2x128xf32>
    %c2_768 = arith.constant 2 : index
    %c1024_769 = arith.constant 1024 : index
    %433 = vector.load %arg20[%c2_768, %c1024_769] : memref<8x1152xf32, #tpu.memory_space<vmem>>, vector<2x128xf32>
    tpu.vector_store %arg20[%c2_768, %c1024_769], %432 {strides = array<i32>} : memref<8x1152xf32, #tpu.memory_space<vmem>>, vector<2x128xf32>,
    %c8_770 = arith.constant 8 : index
    %c0_771 = arith.constant 0 : index
    %434 = vector.load %arg19[%c8_770, %c0_771] : memref<32x128xf32, #tpu.memory_space<vmem>>, vector<2x128xf32>
    %c4_772 = arith.constant 4 : index
    %c128_773 = arith.constant 128 : index
    %435 = vector.load %arg20[%c4_772, %c128_773] : memref<8x1152xf32, #tpu.memory_space<vmem>>, vector<2x128xf32>
    tpu.vector_store %arg20[%c4_772, %c128_773], %434 {strides = array<i32>} : memref<8x1152xf32, #tpu.memory_space<vmem>>, vector<2x128xf32>,
    %c10_774 = arith.constant 10 : index
    %c0_775 = arith.constant 0 : index
    %436 = vector.load %arg19[%c10_774, %c0_775] : memref<32x128xf32, #tpu.memory_space<vmem>>, vector<2x128xf32>
    %c4_776 = arith.constant 4 : index
    %c256_777 = arith.constant 256 : index
    %437 = vector.load %arg20[%c4_776, %c256_777] : memref<8x1152xf32, #tpu.memory_space<vmem>>, vector<2x128xf32>
    tpu.vector_store %arg20[%c4_776, %c256_777], %436 {strides = array<i32>} : memref<8x1152xf32, #tpu.memory_space<vmem>>, vector<2x128xf32>,
    %c16_778 = arith.constant 16 : index
    %c0_779 = arith.constant 0 : index
    %438 = vector.load %arg19[%c16_778, %c0_779] : memref<32x128xf32, #tpu.memory_space<vmem>>, vector<2x128xf32>
    %c4_780 = arith.constant 4 : index
    %c512_781 = arith.constant 512 : index
    %439 = vector.load %arg20[%c4_780, %c512_781] : memref<8x1152xf32, #tpu.memory_space<vmem>>, vector<2x128xf32>
    tpu.vector_store %arg20[%c4_780, %c512_781], %438 {strides = array<i32>} : memref<8x1152xf32, #tpu.memory_space<vmem>>, vector<2x128xf32>,
    %c18_782 = arith.constant 18 : index
    %c0_783 = arith.constant 0 : index
    %440 = vector.load %arg19[%c18_782, %c0_783] : memref<32x128xf32, #tpu.memory_space<vmem>>, vector<2x128xf32>
    %c4_784 = arith.constant 4 : index
    %c640_785 = arith.constant 640 : index
    %441 = vector.load %arg20[%c4_784, %c640_785] : memref<8x1152xf32, #tpu.memory_space<vmem>>, vector<2x128xf32>
    tpu.vector_store %arg20[%c4_784, %c640_785], %440 {strides = array<i32>} : memref<8x1152xf32, #tpu.memory_space<vmem>>, vector<2x128xf32>,
    %c24_786 = arith.constant 24 : index
    %c0_787 = arith.constant 0 : index
    %442 = vector.load %arg19[%c24_786, %c0_787] : memref<32x128xf32, #tpu.memory_space<vmem>>, vector<2x128xf32>
    %c4_788 = arith.constant 4 : index
    %c896_789 = arith.constant 896 : index
    %443 = vector.load %arg20[%c4_788, %c896_789] : memref<8x1152xf32, #tpu.memory_space<vmem>>, vector<2x128xf32>
    tpu.vector_store %arg20[%c4_788, %c896_789], %442 {strides = array<i32>} : memref<8x1152xf32, #tpu.memory_space<vmem>>, vector<2x128xf32>,
    %c26_790 = arith.constant 26 : index
    %c0_791 = arith.constant 0 : index
    %444 = vector.load %arg19[%c26_790, %c0_791] : memref<32x128xf32, #tpu.memory_space<vmem>>, vector<2x128xf32>
    %c4_792 = arith.constant 4 : index
    %c1024_793 = arith.constant 1024 : index
    %445 = vector.load %arg20[%c4_792, %c1024_793] : memref<8x1152xf32, #tpu.memory_space<vmem>>, vector<2x128xf32>
    tpu.vector_store %arg20[%c4_792, %c1024_793], %444 {strides = array<i32>} : memref<8x1152xf32, #tpu.memory_space<vmem>>, vector<2x128xf32>,
    %c10_794 = arith.constant 10 : index
    %c0_795 = arith.constant 0 : index
    %446 = vector.load %arg19[%c10_794, %c0_795] : memref<32x128xf32, #tpu.memory_space<vmem>>, vector<2x128xf32>
    %c6_796 = arith.constant 6 : index
    %c0_797 = arith.constant 0 : index
    %447 = vector.load %arg20[%c6_796, %c0_797] : memref<8x1152xf32, #tpu.memory_space<vmem>>, vector<2x128xf32>
    tpu.vector_store %arg20[%c6_796, %c0_797], %446 {strides = array<i32>} : memref<8x1152xf32, #tpu.memory_space<vmem>>, vector<2x128xf32>,
    %c12_798 = arith.constant 12 : index
    %c0_799 = arith.constant 0 : index
    %448 = vector.load %arg19[%c12_798, %c0_799] : memref<32x128xf32, #tpu.memory_space<vmem>>, vector<2x128xf32>
    %c6_800 = arith.constant 6 : index
    %c128_801 = arith.constant 128 : index
    %449 = vector.load %arg20[%c6_800, %c128_801] : memref<8x1152xf32, #tpu.memory_space<vmem>>, vector<2x128xf32>
    tpu.vector_store %arg20[%c6_800, %c128_801], %448 {strides = array<i32>} : memref<8x1152xf32, #tpu.memory_space<vmem>>, vector<2x128xf32>,
    %c14_802 = arith.constant 14 : index
    %c0_803 = arith.constant 0 : index
    %450 = vector.load %arg19[%c14_802, %c0_803] : memref<32x128xf32, #tpu.memory_space<vmem>>, vector<2x128xf32>
    %c6_804 = arith.constant 6 : index
    %c256_805 = arith.constant 256 : index
    %451 = vector.load %arg20[%c6_804, %c256_805] : memref<8x1152xf32, #tpu.memory_space<vmem>>, vector<2x128xf32>
    tpu.vector_store %arg20[%c6_804, %c256_805], %450 {strides = array<i32>} : memref<8x1152xf32, #tpu.memory_space<vmem>>, vector<2x128xf32>,
    %c18_806 = arith.constant 18 : index
    %c0_807 = arith.constant 0 : index
    %452 = vector.load %arg19[%c18_806, %c0_807] : memref<32x128xf32, #tpu.memory_space<vmem>>, vector<2x128xf32>
    %c6_808 = arith.constant 6 : index
    %c384_809 = arith.constant 384 : index
    %453 = vector.load %arg20[%c6_808, %c384_809] : memref<8x1152xf32, #tpu.memory_space<vmem>>, vector<2x128xf32>
    tpu.vector_store %arg20[%c6_808, %c384_809], %452 {strides = array<i32>} : memref<8x1152xf32, #tpu.memory_space<vmem>>, vector<2x128xf32>,
    %c20_810 = arith.constant 20 : index
    %c0_811 = arith.constant 0 : index
    %454 = vector.load %arg19[%c20_810, %c0_811] : memref<32x128xf32, #tpu.memory_space<vmem>>, vector<2x128xf32>
    %c6_812 = arith.constant 6 : index
    %c512_813 = arith.constant 512 : index
    %455 = vector.load %arg20[%c6_812, %c512_813] : memref<8x1152xf32, #tpu.memory_space<vmem>>, vector<2x128xf32>
    tpu.vector_store %arg20[%c6_812, %c512_813], %454 {strides = array<i32>} : memref<8x1152xf32, #tpu.memory_space<vmem>>, vector<2x128xf32>,
    %c22_814 = arith.constant 22 : index
    %c0_815 = arith.constant 0 : index
    %456 = vector.load %arg19[%c22_814, %c0_815] : memref<32x128xf32, #tpu.memory_space<vmem>>, vector<2x128xf32>
    %c6_816 = arith.constant 6 : index
    %c640_817 = arith.constant 640 : index
    %457 = vector.load %arg20[%c6_816, %c640_817] : memref<8x1152xf32, #tpu.memory_space<vmem>>, vector<2x128xf32>
    tpu.vector_store %arg20[%c6_816, %c640_817], %456 {strides = array<i32>} : memref<8x1152xf32, #tpu.memory_space<vmem>>, vector<2x128xf32>,
    %c26_818 = arith.constant 26 : index
    %c0_819 = arith.constant 0 : index
    %458 = vector.load %arg19[%c26_818, %c0_819] : memref<32x128xf32, #tpu.memory_space<vmem>>, vector<2x128xf32>
    %c6_820 = arith.constant 6 : index
    %c768_821 = arith.constant 768 : index
    %459 = vector.load %arg20[%c6_820, %c768_821] : memref<8x1152xf32, #tpu.memory_space<vmem>>, vector<2x128xf32>
    tpu.vector_store %arg20[%c6_820, %c768_821], %458 {strides = array<i32>} : memref<8x1152xf32, #tpu.memory_space<vmem>>, vector<2x128xf32>,
    %c28_822 = arith.constant 28 : index
    %c0_823 = arith.constant 0 : index
    %460 = vector.load %arg19[%c28_822, %c0_823] : memref<32x128xf32, #tpu.memory_space<vmem>>, vector<2x128xf32>
    %c6_824 = arith.constant 6 : index
    %c896_825 = arith.constant 896 : index
    %461 = vector.load %arg20[%c6_824, %c896_825] : memref<8x1152xf32, #tpu.memory_space<vmem>>, vector<2x128xf32>
    tpu.vector_store %arg20[%c6_824, %c896_825], %460 {strides = array<i32>} : memref<8x1152xf32, #tpu.memory_space<vmem>>, vector<2x128xf32>,
    %c30_826 = arith.constant 30 : index
    %c0_827 = arith.constant 0 : index
    %462 = vector.load %arg19[%c30_826, %c0_827] : memref<32x128xf32, #tpu.memory_space<vmem>>, vector<2x128xf32>
    %c6_828 = arith.constant 6 : index
    %c1024_829 = arith.constant 1024 : index
    %463 = vector.load %arg20[%c6_828, %c1024_829] : memref<8x1152xf32, #tpu.memory_space<vmem>>, vector<2x128xf32>
    tpu.vector_store %arg20[%c6_828, %c1024_829], %462 {strides = array<i32>} : memref<8x1152xf32, #tpu.memory_space<vmem>>, vector<2x128xf32>,
    %c0_830 = arith.constant 0 : index
    %c0_831 = arith.constant 0 : index
    %464 = vector.load %arg20[%c0_830, %c0_831] : memref<8x1152xf32, #tpu.memory_space<vmem>>, vector<8x1152xf32>
    %c0_832 = arith.constant 0 : index
    %c0_833 = arith.constant 0 : index
    %465 = vector.load %arg6[%c0_832, %c0_833] : memref<1152x128xf32, #tpu.memory_space<vmem>>, vector<1152x128xf32>
    %cst_834 = arith.constant dense<0.000000e+00> : vector<8x128xf32>
    %466 = tpu.matmul %464, %465, %cst_834 {dimension_numbers = #tpu.dot_dimension_numbers<[1], [0], [0], [1], [0, 0, 1, 1], [], []>} : vector<8x1152xf32>, vector<1152x128xf32>, vector<8x128xf32> -> vector<8x128xf32>
    %c0_835 = arith.constant 0 : index
    %c0_836 = arith.constant 0 : index
    %467 = vector.load %arg7[%c0_835, %c0_836] : memref<1x128xf32, #tpu.memory_space<vmem>>, vector<1x128xf32>
    %468 = vector.broadcast %467 : vector<1x128xf32> to vector<8x128xf32>
    %469 = arith.addf %466, %468 : vector<8x128xf32>
    %cst_837 = arith.constant 0.000000e+00 : f32
    %470 = vector.broadcast %cst_837 : f32 to vector<8x128xf32>
    %471 = arith.maximumf %469, %470 : vector<8x128xf32>
    %c0_838 = arith.constant 0 : index
    %c0_839 = arith.constant 0 : index
    %472 = vector.load %arg21[%c0_838, %c0_839] : memref<8x128xf32, #tpu.memory_space<vmem>>, vector<8x128xf32>
    tpu.vector_store %arg21[%c0_838, %c0_839], %471 {strides = array<i32>} : memref<8x128xf32, #tpu.memory_space<vmem>>, vector<8x128xf32>,
    %cst_840 = arith.constant 0.000000e+00 : f32
    %473 = vector.broadcast %cst_840 : f32 to vector<2x1152xf32>
    %c0_841 = arith.constant 0 : index
    %c0_842 = arith.constant 0 : index
    %474 = vector.load %arg22[%c0_841, %c0_842] : memref<2x1152xf32, #tpu.memory_space<vmem>>, vector<2x1152xf32>
    tpu.vector_store %arg22[%c0_841, %c0_842], %473 {strides = array<i32>} : memref<2x1152xf32, #tpu.memory_space<vmem>>, vector<2x1152xf32>,
    %c0_843 = arith.constant 0 : index
    %c0_844 = arith.constant 0 : index
    %475 = vector.load %arg21[%c0_843, %c0_844] : memref<8x128xf32, #tpu.memory_space<vmem>>, vector<2x128xf32>
    %c0_845 = arith.constant 0 : index
    %c512_846 = arith.constant 512 : index
    %476 = vector.load %arg22[%c0_845, %c512_846] : memref<2x1152xf32, #tpu.memory_space<vmem>>, vector<2x128xf32>
    tpu.vector_store %arg22[%c0_845, %c512_846], %475 {strides = array<i32>} : memref<2x1152xf32, #tpu.memory_space<vmem>>, vector<2x128xf32>,
    %c2_847 = arith.constant 2 : index
    %c0_848 = arith.constant 0 : index
    %477 = vector.load %arg21[%c2_847, %c0_848] : memref<8x128xf32, #tpu.memory_space<vmem>>, vector<2x128xf32>
    %c0_849 = arith.constant 0 : index
    %c640_850 = arith.constant 640 : index
    %478 = vector.load %arg22[%c0_849, %c640_850] : memref<2x1152xf32, #tpu.memory_space<vmem>>, vector<2x128xf32>
    tpu.vector_store %arg22[%c0_849, %c640_850], %477 {strides = array<i32>} : memref<2x1152xf32, #tpu.memory_space<vmem>>, vector<2x128xf32>,
    %c4_851 = arith.constant 4 : index
    %c0_852 = arith.constant 0 : index
    %479 = vector.load %arg21[%c4_851, %c0_852] : memref<8x128xf32, #tpu.memory_space<vmem>>, vector<2x128xf32>
    %c0_853 = arith.constant 0 : index
    %c896_854 = arith.constant 896 : index
    %480 = vector.load %arg22[%c0_853, %c896_854] : memref<2x1152xf32, #tpu.memory_space<vmem>>, vector<2x128xf32>
    tpu.vector_store %arg22[%c0_853, %c896_854], %479 {strides = array<i32>} : memref<2x1152xf32, #tpu.memory_space<vmem>>, vector<2x128xf32>,
    %c6_855 = arith.constant 6 : index
    %c0_856 = arith.constant 0 : index
    %481 = vector.load %arg21[%c6_855, %c0_856] : memref<8x128xf32, #tpu.memory_space<vmem>>, vector<2x128xf32>
    %c0_857 = arith.constant 0 : index
    %c1024_858 = arith.constant 1024 : index
    %482 = vector.load %arg22[%c0_857, %c1024_858] : memref<2x1152xf32, #tpu.memory_space<vmem>>, vector<2x128xf32>
    tpu.vector_store %arg22[%c0_857, %c1024_858], %481 {strides = array<i32>} : memref<2x1152xf32, #tpu.memory_space<vmem>>, vector<2x128xf32>,
    %c0_859 = arith.constant 0 : index
    %c0_860 = arith.constant 0 : index
    %483 = vector.load %arg22[%c0_859, %c0_860] : memref<2x1152xf32, #tpu.memory_space<vmem>>, vector<2x1152xf32>
    %c0_861 = arith.constant 0 : index
    %c0_862 = arith.constant 0 : index
    %484 = vector.load %arg8[%c0_861, %c0_862] : memref<1152x256xf32, #tpu.memory_space<vmem>>, vector<1152x256xf32>
    %cst_863 = arith.constant dense<0.000000e+00> : vector<2x256xf32>
    %485 = tpu.matmul %483, %484, %cst_863 {dimension_numbers = #tpu.dot_dimension_numbers<[1], [0], [0], [1], [0, 0, 1, 1], [], []>} : vector<2x1152xf32>, vector<1152x256xf32>, vector<2x256xf32> -> vector<2x256xf32>
    %c0_864 = arith.constant 0 : index
    %c0_865 = arith.constant 0 : index
    %486 = vector.load %arg9[%c0_864, %c0_865] : memref<1x256xf32, #tpu.memory_space<vmem>>, vector<1x256xf32>
    %487 = vector.broadcast %486 : vector<1x256xf32> to vector<2x256xf32>
    %488 = arith.addf %485, %487 : vector<2x256xf32>
    %cst_866 = arith.constant 0.000000e+00 : f32
    %489 = vector.broadcast %cst_866 : f32 to vector<2x256xf32>
    %490 = arith.maximumf %488, %489 : vector<2x256xf32>
    %c0_867 = arith.constant 0 : index
    %c0_868 = arith.constant 0 : index
    %491 = vector.load %arg10[%c0_867, %c0_868] : memref<256x64xf32, #tpu.memory_space<vmem>>, vector<256x64xf32>
    %cst_869 = arith.constant dense<0.000000e+00> : vector<2x64xf32>
    %492 = tpu.matmul %490, %491, %cst_869 {dimension_numbers = #tpu.dot_dimension_numbers<[1], [0], [0], [1], [0, 0, 1, 1], [], []>} : vector<2x256xf32>, vector<256x64xf32>, vector<2x64xf32> -> vector<2x64xf32>
    %c0_870 = arith.constant 0 : index
    %c0_871 = arith.constant 0 : index
    %493 = vector.load %arg11[%c0_870, %c0_871] : memref<1x64xf32, #tpu.memory_space<vmem>>, vector<1x64xf32>
    %494 = vector.broadcast %493 : vector<1x64xf32> to vector<2x64xf32>
    %495 = arith.addf %492, %494 : vector<2x64xf32>
    %cst_872 = arith.constant 0.000000e+00 : f32
    %496 = vector.broadcast %cst_872 : f32 to vector<2x64xf32>
    %497 = arith.maximumf %495, %496 : vector<2x64xf32>
    %c0_873 = arith.constant 0 : index
    %c0_874 = arith.constant 0 : index
    %498 = vector.load %arg12[%c0_873, %c0_874] : memref<64x32xf32, #tpu.memory_space<vmem>>, vector<64x32xf32>
    %cst_875 = arith.constant dense<0.000000e+00> : vector<2x32xf32>
    %499 = tpu.matmul %497, %498, %cst_875 {dimension_numbers = #tpu.dot_dimension_numbers<[1], [0], [0], [1], [0, 0, 1, 1], [], []>} : vector<2x64xf32>, vector<64x32xf32>, vector<2x32xf32> -> vector<2x32xf32>
    %c0_876 = arith.constant 0 : index
    %c0_877 = arith.constant 0 : index
    %500 = vector.load %arg13[%c0_876, %c0_877] : memref<1x32xf32, #tpu.memory_space<vmem>>, vector<1x32xf32>
    %501 = vector.broadcast %500 : vector<1x32xf32> to vector<2x32xf32>
    %502 = arith.addf %499, %501 : vector<2x32xf32>
    %cst_878 = arith.constant 0.000000e+00 : f32
    %503 = vector.broadcast %cst_878 : f32 to vector<2x32xf32>
    %504 = arith.maximumf %502, %503 : vector<2x32xf32>
    %c0_879 = arith.constant 0 : index
    %c0_880 = arith.constant 0 : index
    %505 = vector.load %arg14[%c0_879, %c0_880] : memref<32x2xf32, #tpu.memory_space<vmem>>, vector<32x2xf32>
    %cst_881 = arith.constant dense<0.000000e+00> : vector<2x2xf32>
    %506 = tpu.matmul %504, %505, %cst_881 {dimension_numbers = #tpu.dot_dimension_numbers<[1], [0], [0], [1], [0, 0, 1, 1], [], []>} : vector<2x32xf32>, vector<32x2xf32>, vector<2x2xf32> -> vector<2x2xf32>
    %c0_882 = arith.constant 0 : index
    %c0_883 = arith.constant 0 : index
    %507 = vector.load %arg15[%c0_882, %c0_883] : memref<1x2xf32, #tpu.memory_space<vmem>>, vector<1x2xf32>
    %508 = vector.broadcast %507 : vector<1x2xf32> to vector<2x2xf32>
    %509 = arith.addf %506, %508 : vector<2x2xf32>
    %c0_884 = arith.constant 0 : index
    %c0_885 = arith.constant 0 : index
    %510 = vector.load %arg16[%c0_884, %c0_885] : memref<2x2xf32, #tpu.memory_space<vmem>>, vector<2x2xf32>
    tpu.vector_store %arg16[%c0_884, %c0_885], %509 {strides = array<i32>} : memref<2x2xf32, #tpu.memory_space<vmem>>, vector<2x2xf32>,
    return
  }
  func.func @transform_0(%arg0: i32) -> (i32, i32) {
    %c0_i32 = arith.constant 0 : i32
    %c0_i32_0 = arith.constant 0 : i32
    %c0_i32_1 = arith.constant 0 : i32
    return %c0_i32, %c0_i32_0 : i32, i32
  }
  func.func @transform_1(%arg0: i32) -> (i32, i32) {
    %c0_i32 = arith.constant 0 : i32
    %c0_i32_0 = arith.constant 0 : i32
    %c0_i32_1 = arith.constant 0 : i32
    return %c0_i32, %c0_i32_0 : i32, i32
  }
  func.func @transform_2(%arg0: i32) -> (i32, i32) {
    %c0_i32 = arith.constant 0 : i32
    %c0_i32_0 = arith.constant 0 : i32
    %c0_i32_1 = arith.constant 0 : i32
    return %c0_i32, %c0_i32_0 : i32, i32
  }
  func.func @transform_3(%arg0: i32) -> (i32, i32) {
    %c0_i32 = arith.constant 0 : i32
    %c0_i32_0 = arith.constant 0 : i32
    %c0_i32_1 = arith.constant 0 : i32
    return %c0_i32, %c0_i32_0 : i32, i32
  }
  func.func @transform_4(%arg0: i32) -> (i32, i32) {
    %c0_i32 = arith.constant 0 : i32
    %c0_i32_0 = arith.constant 0 : i32
    %c0_i32_1 = arith.constant 0 : i32
    return %c0_i32, %c0_i32_0 : i32, i32
  }
  func.func @transform_5(%arg0: i32) -> (i32, i32) {
    %c0_i32 = arith.constant 0 : i32
    %c0_i32_0 = arith.constant 0 : i32
    %c0_i32_1 = arith.constant 0 : i32
    return %c0_i32, %c0_i32_0 : i32, i32
  }
  func.func @transform_6(%arg0: i32) -> (i32, i32) {
    %c0_i32 = arith.constant 0 : i32
    %c0_i32_0 = arith.constant 0 : i32
    %c0_i32_1 = arith.constant 0 : i32
    return %c0_i32, %c0_i32_0 : i32, i32
  }
  func.func @transform_7(%arg0: i32) -> (i32, i32) {
    %c0_i32 = arith.constant 0 : i32
    %c0_i32_0 = arith.constant 0 : i32
    %c0_i32_1 = arith.constant 0 : i32
    return %c0_i32, %c0_i32_0 : i32, i32
  }
  func.func @transform_8(%arg0: i32) -> (i32, i32) {
    %c0_i32 = arith.constant 0 : i32
    %c0_i32_0 = arith.constant 0 : i32
    %c0_i32_1 = arith.constant 0 : i32
    return %c0_i32, %c0_i32_0 : i32, i32
  }
  func.func @transform_9(%arg0: i32) -> (i32, i32) {
    %c0_i32 = arith.constant 0 : i32
    %c0_i32_0 = arith.constant 0 : i32
    %c0_i32_1 = arith.constant 0 : i32
    return %c0_i32, %c0_i32_0 : i32, i32
  }
  func.func @transform_10(%arg0: i32) -> (i32, i32) {
    %c0_i32 = arith.constant 0 : i32
    %c0_i32_0 = arith.constant 0 : i32
    %c0_i32_1 = arith.constant 0 : i32
    return %c0_i32, %c0_i32_0 : i32, i32
  }
  func.func @transform_11(%arg0: i32) -> (i32, i32) {
    %c0_i32 = arith.constant 0 : i32
    %c0_i32_0 = arith.constant 0 : i32
    %c0_i32_1 = arith.constant 0 : i32
    return %c0_i32, %c0_i32_0 : i32, i32
  }
  func.func @transform_12(%arg0: i32) -> (i32, i32) {
    %c0_i32 = arith.constant 0 : i32
    %c0_i32_0 = arith.constant 0 : i32
    %c0_i32_1 = arith.constant 0 : i32
    return %c0_i32, %c0_i32_0 : i32, i32
  }
  func.func @transform_13(%arg0: i32) -> (i32, i32) {
    %c0_i32 = arith.constant 0 : i32
    %c0_i32_0 = arith.constant 0 : i32
    %c0_i32_1 = arith.constant 0 : i32
    return %c0_i32, %c0_i32_0 : i32, i32
  }
  func.func @transform_14(%arg0: i32) -> (i32, i32) {
    %c0_i32 = arith.constant 0 : i32
    %c0_i32_0 = arith.constant 0 : i32
    %c0_i32_1 = arith.constant 0 : i32
    return %c0_i32, %c0_i32_0 : i32, i32
  }
  func.func @transform_15(%arg0: i32) -> (i32, i32) {
    %c0_i32 = arith.constant 0 : i32
    %c0_i32_0 = arith.constant 0 : i32
    %c0_i32_1 = arith.constant 0 : i32
    return %c0_i32, %c0_i32_0 : i32, i32
  }
}

</mosaic_0001>

<llo_original>
// kernel: vision_control_net_forward.1
$region0: #{vision_control_net_forward.1}
  #allocation0 [shape = 'u32[]', space=smem, size = 0x4, offset = 0x4, fixed_abs, tag = 'smem constant byte address 0x4 - core index']
  #allocation1 [shape = 'u32[144,128]{1,0:T(1,128)}', space=vmem, size = 0x12000, scoped, tag = 'internal scratch']
  #allocation2 [shape = 'f32[128,128]{1,0:T(8,128)}', space=vmem, size = 0x10000, scoped, tag = 'scratch operand']
  #allocation3 [shape = 'f32[32,2048]{1,0:T(8,128)}', space=vmem, size = 0x40000, scoped, tag = 'scratch operand']
  #allocation4 [shape = 'f32[32,128]{1,0:T(8,128)}', space=vmem, size = 0x4000, scoped, tag = 'scratch operand']
  #allocation5 [shape = 'f32[8,1152]{1,0:T(8,128)}', space=vmem, size = 0x9000, scoped, tag = 'scratch operand']
  #allocation6 [shape = 'f32[8,128]{1,0:T(8,128)}', space=vmem, size = 0x1000, scoped, tag = 'scratch operand']
  #allocation7 [shape = 'f32[2,1152]{1,0:T(2,128)}', space=vmem, size = 0x2400, scoped, tag = 'scratch operand']
  %s0 = inlined_call_operand.vmem [shape: f32[128,192], index: 0, kind: input, shape index: {}]
  %s1 = inlined_call_operand.vmem [shape: f32[192,128], index: 1, kind: input, shape index: {}]
  %s2 = inlined_call_operand.vmem [shape: f32[1,128], index: 2, kind: input, shape index: {}]
  %s3 = inlined_call_operand.vmem [shape: f32[2048,128], index: 3, kind: input, shape index: {}]
  %s4 = inlined_call_operand.vmem [shape: f32[1,128], index: 4, kind: input, shape index: {}]
  %s5 = inlined_call_operand.vmem [shape: f32[1152,128], index: 5, kind: input, shape index: {}]
  %s6 = inlined_call_operand.vmem [shape: f32[1,128], index: 6, kind: input, shape index: {}]
  %s7 = inlined_call_operand.vmem [shape: f32[1152,256], index: 7, kind: input, shape index: {}]
  %s8 = inlined_call_operand.vmem [shape: f32[1,256], index: 8, kind: input, shape index: {}]
  %s9 = inlined_call_operand.vmem [shape: f32[256,64], index: 9, kind: input, shape index: {}]
  %s10 = inlined_call_operand.vmem [shape: f32[1,64], index: 10, kind: input, shape index: {}]
  %s11 = inlined_call_operand.vmem [shape: f32[64,32], index: 11, kind: input, shape index: {}]
  %s12 = inlined_call_operand.vmem [shape: f32[1,32], index: 12, kind: input, shape index: {}]
  %s13 = inlined_call_operand.vmem [shape: f32[32,2], index: 13, kind: input, shape index: {}]
  %s14 = inlined_call_operand.vmem [shape: f32[1,2], index: 14, kind: input, shape index: {}]
  %s15 = inlined_call_operand.hbm [shape: f32[2,2], index: 15, kind: output, shape index: {}]
  %s16 = sld [smem:[#allocation0]]
  $region70: #{vision_control_net_forward.1} parent=0
    _
  %s18 = ssub.s32 1, %s16
  %s19 = scalar_select 0, %s18, %s16
  $region1: #{vision_control_net_forward.1} parent=0
    #allocation8 [shape = 'u8[1024]{0}', space=vmem, size = 0x400, scoped, tag = 'output window, operand 0, single buffered']
    #allocation9 [shape = 's32[1]{0}', space=sflag, size = 0x4, scoped, tag = 'scoped memory for vision_control_net_forward.1']
    %20 = vsyncpa [#allocation9], 0
    // Predicated region
    $region2: #{vision_control_net_forward.1} parent=1 // pred_check
      _
    $region3: #{vision_control_net_forward.1} parent=1 // pred_check_branch
      %22 = sbr.rel (0) target = $region5
    $region4: #{vision_control_net_forward.1} parent=1 // pred_region
      _
    $region5: #{vision_control_net_forward.1} parent=1 // pred_fallthru
      _
    // Predicated region
    $region6: #{vision_control_net_forward.1} parent=1 // pred_check
      _
    $region7: #{vision_control_net_forward.1} parent=1 // pred_check_branch
      %24 = sbr.rel (0) target = $region9
    $region8: #{vision_control_net_forward.1} parent=1 // pred_region
      _
    $region9: #{vision_control_net_forward.1} parent=1 // pred_fallthru
      _
    // Predicated region
    $region10: #{vision_control_net_forward.1} parent=1 // pred_check
      _
    $region11: #{vision_control_net_forward.1} parent=1 // pred_check_branch
      %26 = sbr.rel (0) target = $region13
    $region12: #{vision_control_net_forward.1} parent=1 // pred_region
      _
    $region13: #{vision_control_net_forward.1} parent=1 // pred_fallthru
      _
    // Predicated region
    $region14: #{vision_control_net_forward.1} parent=1 // pred_check
      _
    $region15: #{vision_control_net_forward.1} parent=1 // pred_check_branch
      %28 = sbr.rel (0) target = $region17
    $region16: #{vision_control_net_forward.1} parent=1 // pred_region
      _
    $region17: #{vision_control_net_forward.1} parent=1 // pred_fallthru
      _
    // Predicated region
    $region18: #{vision_control_net_forward.1} parent=1 // pred_check
      _
    $region19: #{vision_control_net_forward.1} parent=1 // pred_check_branch
      %30 = sbr.rel (0) target = $region21
    $region20: #{vision_control_net_forward.1} parent=1 // pred_region
      _
    $region21: #{vision_control_net_forward.1} parent=1 // pred_fallthru
      _
    // Predicated region
    $region22: #{vision_control_net_forward.1} parent=1 // pred_check
      _
    $region23: #{vision_control_net_forward.1} parent=1 // pred_check_branch
      %32 = sbr.rel (0) target = $region25
    $region24: #{vision_control_net_forward.1} parent=1 // pred_region
      _
    $region25: #{vision_control_net_forward.1} parent=1 // pred_fallthru
      _
    // Predicated region
    $region26: #{vision_control_net_forward.1} parent=1 // pred_check
      _
    $region27: #{vision_control_net_forward.1} parent=1 // pred_check_branch
      %34 = sbr.rel (0) target = $region29
    $region28: #{vision_control_net_forward.1} parent=1 // pred_region
      _
    $region29: #{vision_control_net_forward.1} parent=1 // pred_fallthru
      _
    // Predicated region
    $region30: #{vision_control_net_forward.1} parent=1 // pred_check
      _
    $region31: #{vision_control_net_forward.1} parent=1 // pred_check_branch
      %36 = sbr.rel (0) target = $region33
    $region32: #{vision_control_net_forward.1} parent=1 // pred_region
      _
    $region33: #{vision_control_net_forward.1} parent=1 // pred_fallthru
      _
    // Predicated region
    $region34: #{vision_control_net_forward.1} parent=1 // pred_check
      _
    $region35: #{vision_control_net_forward.1} parent=1 // pred_check_branch
      %38 = sbr.rel (0) target = $region37
    $region36: #{vision_control_net_forward.1} parent=1 // pred_region
      _
    $region37: #{vision_control_net_forward.1} parent=1 // pred_fallthru
      _
    // Predicated region
    $region38: #{vision_control_net_forward.1} parent=1 // pred_check
      _
    $region39: #{vision_control_net_forward.1} parent=1 // pred_check_branch
      %40 = sbr.rel (0) target = $region41
    $region40: #{vision_control_net_forward.1} parent=1 // pred_region
      _
    $region41: #{vision_control_net_forward.1} parent=1 // pred_fallthru
      _
    // Predicated region
    $region42: #{vision_control_net_forward.1} parent=1 // pred_check
      _
    $region43: #{vision_control_net_forward.1} parent=1 // pred_check_branch
      %42 = sbr.rel (0) target = $region45
    $region44: #{vision_control_net_forward.1} parent=1 // pred_region
      _
    $region45: #{vision_control_net_forward.1} parent=1 // pred_fallthru
      _
    // Predicated region
    $region46: #{vision_control_net_forward.1} parent=1 // pred_check
      _
    $region47: #{vision_control_net_forward.1} parent=1 // pred_check_branch
      %44 = sbr.rel (0) target = $region49
    $region48: #{vision_control_net_forward.1} parent=1 // pred_region
      _
    $region49: #{vision_control_net_forward.1} parent=1 // pred_fallthru
      _
    // Predicated region
    $region50: #{vision_control_net_forward.1} parent=1 // pred_check
      _
    $region51: #{vision_control_net_forward.1} parent=1 // pred_check_branch
      %46 = sbr.rel (0) target = $region53
    $region52: #{vision_control_net_forward.1} parent=1 // pred_region
      _
    $region53: #{vision_control_net_forward.1} parent=1 // pred_fallthru
      _
    // Predicated region
    $region54: #{vision_control_net_forward.1} parent=1 // pred_check
      _
    $region55: #{vision_control_net_forward.1} parent=1 // pred_check_branch
      %48 = sbr.rel (0) target = $region57
    $region56: #{vision_control_net_forward.1} parent=1 // pred_region
      _
    $region57: #{vision_control_net_forward.1} parent=1 // pred_fallthru
      _
    // Predicated region
    $region58: #{vision_control_net_forward.1} parent=1 // pred_check
      _
    $region59: #{vision_control_net_forward.1} parent=1 // pred_check_branch
      %50 = sbr.rel (0) target = $region61
    $region60: #{vision_control_net_forward.1} parent=1 // pred_region
      _
    $region61: #{vision_control_net_forward.1} parent=1 // pred_fallthru
      _
    %v51 = vld [vmem:[%s0] sm:$0xff]
    %v52 = vld [vmem:[%s0 + $0x8] sm:$0xff]
    %v53 = vld [vmem:[%s0 + $0x10] sm:$0xff]
    %v54 = vld [vmem:[%s0 + $0x18] sm:$0xff]
    %v55 = vld [vmem:[%s0 + $0x20] sm:$0xff]
    %v56 = vld [vmem:[%s0 + $0x28] sm:$0xff]
    %v57 = vld [vmem:[%s0 + $0x30] sm:$0xff]
    %v58 = vld [vmem:[%s0 + $0x38] sm:$0xff]
    %v59 = vld [vmem:[%s0 + $0x40] sm:$0xff]
    %v60 = vld [vmem:[%s0 + $0x48] sm:$0xff]
    %v61 = vld [vmem:[%s0 + $0x50] sm:$0xff]
    %v62 = vld [vmem:[%s0 + $0x58] sm:$0xff]
    %v63 = vld [vmem:[%s0 + $0x60] sm:$0xff]
    %v64 = vld [vmem:[%s0 + $0x68] sm:$0xff]
    %v65 = vld [vmem:[%s0 + $0x70] sm:$0xff]
    %v66 = vld [vmem:[%s0 + $0x78] sm:$0xff]
    %v67 = vld [vmem:[%s0 + $0x80] sm:$0xff]
    %v68 = vld [vmem:[%s0 + $0x88] sm:$0xff]
    %v69 = vld [vmem:[%s0 + $0x90] sm:$0xff]
    %v70 = vld [vmem:[%s0 + $0x98] sm:$0xff]
    %v71 = vld [vmem:[%s0 + $0xa0] sm:$0xff]
    %v72 = vld [vmem:[%s0 + $0xa8] sm:$0xff]
    %v73 = vld [vmem:[%s0 + $0xb0] sm:$0xff]
    %v74 = vld [vmem:[%s0 + $0xb8] sm:$0xff]
    %v75 = vld [vmem:[%s0 + $0xc0] sm:$0xff]
    %v76 = vld [vmem:[%s0 + $0xc8] sm:$0xff]
    %v77 = vld [vmem:[%s0 + $0xd0] sm:$0xff]
    %v78 = vld [vmem:[%s0 + $0xd8] sm:$0xff]
    %v79 = vld [vmem:[%s0 + $0xe0] sm:$0xff]
    %v80 = vld [vmem:[%s0 + $0xe8] sm:$0xff]
    %v81 = vld [vmem:[%s0 + $0xf0] sm:$0xff]
    %v82 = vld [vmem:[%s0 + $0xf8] sm:$0xff]
    %v83 = vld [vmem:[%s1] sm:$0xff]
    %v84 = vld [vmem:[%s1 + $0x8] sm:$0xff]
    %v85 = vld [vmem:[%s1 + $0x10] sm:$0xff]
    %v86 = vld [vmem:[%s1 + $0x18] sm:$0xff]
    %v87 = vld [vmem:[%s1 + $0x20] sm:$0xff]
    %v88 = vld [vmem:[%s1 + $0x28] sm:$0xff]
    %v89 = vld [vmem:[%s1 + $0x30] sm:$0xff]
    %v90 = vld [vmem:[%s1 + $0x38] sm:$0xff]
    %v91 = vld [vmem:[%s1 + $0x40] sm:$0xff]
    %v92 = vld [vmem:[%s1 + $0x48] sm:$0xff]
    %v93 = vld [vmem:[%s1 + $0x50] sm:$0xff]
    %v94 = vld [vmem:[%s1 + $0x58] sm:$0xff]
    %v95 = vld [vmem:[%s1 + $0x60] sm:$0xff]
    %v96 = vld [vmem:[%s1 + $0x68] sm:$0xff]
    %v97 = vld [vmem:[%s1 + $0x70] sm:$0xff]
    %v98 = vld [vmem:[%s1 + $0x78] sm:$0xff]
    %v99 = vld [vmem:[%s1 + $0x80] sm:$0xff]
    %v100 = vld [vmem:[%s1 + $0x88] sm:$0xff]
    %v101 = vld [vmem:[%s1 + $0x90] sm:$0xff]
    %v102 = vld [vmem:[%s1 + $0x98] sm:$0xff]
    %v103 = vld [vmem:[%s1 + $0xa0] sm:$0xff]
    %v104 = vld [vmem:[%s1 + $0xa8] sm:$0xff]
    %v105 = vld [vmem:[%s1 + $0xb0] sm:$0xff]
    %v106 = vld [vmem:[%s1 + $0xb8] sm:$0xff]
    %v107 = vld [vmem:[%s2] sm:$0x1]
    %v109 = vlaneseq
    %v110 = vshrl.u32 %v109, 7
    %v111 = vsub.s32 0, %v110
    %v112 = vrot.slane %v107, %v111
    %vm114 = vcmask 523264
    %v116 = vsel %vm114, %v52, 0
    %v119 = vsel %vm114, %v54, 0
    %v122 = vsel %vm114, %v56, 0
    %v125 = vsel %vm114, %v58, 0
    %v128 = vsel %vm114, %v60, 0
    %v131 = vsel %vm114, %v62, 0
    %v134 = vsel %vm114, %v64, 0
    %v137 = vsel %vm114, %v66, 0
    %v140 = vsel %vm114, %v68, 0
    %v143 = vsel %vm114, %v70, 0
    %v146 = vsel %vm114, %v72, 0
    %v149 = vsel %vm114, %v74, 0
    %v152 = vsel %vm114, %v76, 0
    %v155 = vsel %vm114, %v78, 0
    %v158 = vsel %vm114, %v80, 0
    %v161 = vsel %vm114, %v82, 0
    %163 = vmatprep.subr.mxu0 0.0
    %164 = vmatpush1.msra.mxu0 %v83
    %165 = vmatprep.subr.mxu0 0.0
    %166 = vmatpush1.msra.mxu0 %v84
    %167 = vmatprep.subr.mxu0 0.0
    %168 = vmatpush1.msra.mxu0 %v85
    %169 = vmatprep.subr.mxu0 0.0
    %170 = vmatpush1.msra.mxu0 %v86
    %171 = vmatprep.subr.mxu0 0.0
    %172 = vmatpush1.msra.mxu0 %v87
    %173 = vmatprep.subr.mxu0 0.0
    %174 = vmatpush1.msra.mxu0 %v88
    %175 = vmatprep.subr.mxu0 0.0
    %176 = vmatpush1.msra.mxu0 %v89
    %177 = vmatprep.subr.mxu0 0.0
    %178 = vmatpush1.msra.mxu0 %v90
    %179 = vmatprep.subr.mxu0 0.0
    %180 = vmatpush1.msra.mxu0 %v91
    %181 = vmatprep.subr.mxu0 0.0
    %182 = vmatpush1.msra.mxu0 %v92
    %183 = vmatprep.subr.mxu0 0.0
    %184 = vmatpush1.msra.mxu0 %v93
    %185 = vmatprep.subr.mxu0 0.0
    %186 = vmatpush1.msra.mxu0 %v94
    %187 = vmatprep.subr.mxu0 0.0
    %188 = vmatpush1.msra.mxu0 %v95
    %189 = vmatprep.subr.mxu0 0.0
    %190 = vmatpush1.msra.mxu0 %v96
    %191 = vmatprep.subr.mxu0 0.0
    %192 = vmatpush1.msra.mxu0 %v97
    %193 = vmatprep.subr.mxu0 0.0
    %194 = vmatpush1.msra.mxu0 %v98
    %195 = vmatprep.subr.mxu0 0.0
    %196 = vmatpush1.msra.mxu0 %v99
    %197 = vmatprep.subr.mxu0 0.0
    %198 = vmatpush1.msra.mxu0 %v100
    %199 = vmatprep.subr.mxu0 0.0
    %200 = vmatpush1.msra.mxu0 %v101
    %201 = vmatprep.subr.mxu0 0.0
    %202 = vmatpush1.msra.mxu0 %v102
    %203 = vmatprep.subr.mxu0 0.0
    %204 = vmatpush1.msra.mxu0 %v103
    %205 = vmatprep.subr.mxu0 0.0
    %206 = vmatpush1.msra.mxu0 %v104
    %207 = vmatprep.subr.mxu0 0.0
    %208 = vmatpush1.msra.mxu0 %v105
    %209 = vmatprep.subr.mxu0 0.0
    %210 = vmatpush1.msra.mxu0 %v106
    %211 = vmatprep.subr.mxu0 0.0
    %212 = vmatpush1.msra.mxu0 0.0
    %213 = vmatprep.subr.mxu0 0.0
    %214 = vmatpush1.msra.mxu0 0.0
    %215 = vmatprep.subr.mxu0 0.0
    %216 = vmatpush1.msra.mxu0 0.0
    %217 = vmatprep.subr.mxu0 0.0
    %218 = vmatpush1.msra.mxu0 0.0
    %219 = vmatprep.subr.mxu0 0.0
    %220 = vmatpush1.msra.mxu0 0.0
    %221 = vmatprep.subr.mxu0 0.0
    %222 = vmatpush1.msra.mxu0 0.0
    %223 = vmatprep.subr.mxu0 0.0
    %224 = vmatpush1.msra.mxu0 0.0
    %225 = vmatprep.subr.mxu0 0.0
    %226 = vmatpush1.msra.mxu0 0.0
    %227 = vmatprep.mubr.f32.mxu0 %v116
    %228 = vmatmul.mubr.f32.gmra.mrb[0].mxu0 %v51
    %v229 = vpop.f32.mrb[0].mxu0
    %v230 = vadd.f32 %v112, %v229
    %v231 = vpop.f32.mrb[0].mxu0
    %232 = vmatprep.mubr.f32.mxu0 %v119
    %233 = vmatmul.mubr.f32.gmra.mrb[0].mxu0 %v53
    %v234 = vpop.f32.mrb[0].mxu0
    %v235 = vadd.f32 %v112, %v234
    %v236 = vpop.f32.mrb[0].mxu0
    %237 = vmatprep.mubr.f32.mxu0 %v122
    %238 = vmatmul.mubr.f32.gmra.mrb[0].mxu0 %v55
    %v239 = vpop.f32.mrb[0].mxu0
    %v240 = vadd.f32 %v112, %v239
    %v241 = vpop.f32.mrb[0].mxu0
    %242 = vmatprep.mubr.f32.mxu0 %v125
    %243 = vmatmul.mubr.f32.gmra.mrb[0].mxu0 %v57
    %v244 = vpop.f32.mrb[0].mxu0
    %v245 = vadd.f32 %v112, %v244
    %v246 = vpop.f32.mrb[0].mxu0
    %247 = vmatprep.mubr.f32.mxu0 %v128
    %248 = vmatmul.mubr.f32.gmra.mrb[0].mxu0 %v59
    %v249 = vpop.f32.mrb[0].mxu0
    %v250 = vadd.f32 %v112, %v249
    %v251 = vpop.f32.mrb[0].mxu0
    %252 = vmatprep.mubr.f32.mxu0 %v131
    %253 = vmatmul.mubr.f32.gmra.mrb[0].mxu0 %v61
    %v254 = vpop.f32.mrb[0].mxu0
    %v255 = vadd.f32 %v112, %v254
    %v256 = vpop.f32.mrb[0].mxu0
    %257 = vmatprep.mubr.f32.mxu0 %v134
    %258 = vmatmul.mubr.f32.gmra.mrb[0].mxu0 %v63
    %v259 = vpop.f32.mrb[0].mxu0
    %v260 = vadd.f32 %v112, %v259
    %v261 = vpop.f32.mrb[0].mxu0
    %262 = vmatprep.mubr.f32.mxu0 %v137
    %263 = vmatmul.mubr.f32.gmra.mrb[0].mxu0 %v65
    %v264 = vpop.f32.mrb[0].mxu0
    %v265 = vadd.f32 %v112, %v264
    %v266 = vpop.f32.mrb[0].mxu0
    %267 = vmatprep.mubr.f32.mxu0 %v140
    %268 = vmatmul.mubr.f32.gmra.mrb[0].mxu0 %v67
    %v269 = vpop.f32.mrb[0].mxu0
    %v270 = vadd.f32 %v112, %v269
    %v271 = vpop.f32.mrb[0].mxu0
    %272 = vmatprep.mubr.f32.mxu0 %v143
    %273 = vmatmul.mubr.f32.gmra.mrb[0].mxu0 %v69
    %v274 = vpop.f32.mrb[0].mxu0
    %v275 = vadd.f32 %v112, %v274
    %v276 = vpop.f32.mrb[0].mxu0
    %277 = vmatprep.mubr.f32.mxu0 %v146
    %278 = vmatmul.mubr.f32.gmra.mrb[0].mxu0 %v71
    %v279 = vpop.f32.mrb[0].mxu0
    %v280 = vadd.f32 %v112, %v279
    %v281 = vpop.f32.mrb[0].mxu0
    %282 = vmatprep.mubr.f32.mxu0 %v149
    %283 = vmatmul.mubr.f32.gmra.mrb[0].mxu0 %v73
    %v284 = vpop.f32.mrb[0].mxu0
    %v285 = vadd.f32 %v112, %v284
    %v286 = vpop.f32.mrb[0].mxu0
    %287 = vmatprep.mubr.f32.mxu0 %v152
    %288 = vmatmul.mubr.f32.gmra.mrb[0].mxu0 %v75
    %v289 = vpop.f32.mrb[0].mxu0
    %v290 = vadd.f32 %v112, %v289
    %v291 = vpop.f32.mrb[0].mxu0
    %292 = vmatprep.mubr.f32.mxu0 %v155
    %293 = vmatmul.mubr.f32.gmra.mrb[0].mxu0 %v77
    %v294 = vpop.f32.mrb[0].mxu0
    %v295 = vadd.f32 %v112, %v294
    %v296 = vpop.f32.mrb[0].mxu0
    %297 = vmatprep.mubr.f32.mxu0 %v158
    %298 = vmatmul.mubr.f32.gmra.mrb[0].mxu0 %v79
    %v299 = vpop.f32.mrb[0].mxu0
    %v300 = vadd.f32 %v112, %v299
    %v301 = vpop.f32.mrb[0].mxu0
    %302 = vmatprep.mubr.f32.mxu0 %v161
    %303 = vmatmul.mubr.f32.gmra.mrb[0].mxu0 %v81
    %v304 = vpop.f32.mrb[0].mxu0
    %v305 = vadd.f32 %v112, %v304
    %v306 = vpop.f32.mrb[0].mxu0
    %307 = vdwg.mxu0
    %v308 = vmax.f32 %v230, 0.0
    %v309 = vmax.f32 %v235, 0.0
    %v310 = vmax.f32 %v240, 0.0
    %v311 = vmax.f32 %v245, 0.0
    %v312 = vmax.f32 %v250, 0.0
    %v313 = vmax.f32 %v255, 0.0
    %v314 = vmax.f32 %v260, 0.0
    %v315 = vmax.f32 %v265, 0.0
    %v316 = vmax.f32 %v270, 0.0
    %v317 = vmax.f32 %v275, 0.0
    %v318 = vmax.f32 %v280, 0.0
    %v319 = vmax.f32 %v285, 0.0
    %v320 = vmax.f32 %v290, 0.0
    %v321 = vmax.f32 %v295, 0.0
    %v322 = vmax.f32 %v300, 0.0
    %v323 = vmax.f32 %v305, 0.0
    %324 = vst [vmem:[#allocation2] sm:$0xff] %v308
    %325 = vst [vmem:[#allocation2 + $0x8] sm:$0xff] %v309
    %326 = vst [vmem:[#allocation2 + $0x10] sm:$0xff] %v310
    %327 = vst [vmem:[#allocation2 + $0x18] sm:$0xff] %v311
    %328 = vst [vmem:[#allocation2 + $0x20] sm:$0xff] %v312
    %329 = vst [vmem:[#allocation2 + $0x28] sm:$0xff] %v313
    %330 = vst [vmem:[#allocation2 + $0x30] sm:$0xff] %v314
    %331 = vst [vmem:[#allocation2 + $0x38] sm:$0xff] %v315
    %332 = vst [vmem:[#allocation2 + $0x40] sm:$0xff] %v316
    %333 = vst [vmem:[#allocation2 + $0x48] sm:$0xff] %v317
    %334 = vst [vmem:[#allocation2 + $0x50] sm:$0xff] %v318
    %335 = vst [vmem:[#allocation2 + $0x58] sm:$0xff] %v319
    %336 = vst [vmem:[#allocation2 + $0x60] sm:$0xff] %v320
    %337 = vst [vmem:[#allocation2 + $0x68] sm:$0xff] %v321
    %338 = vst [vmem:[#allocation2 + $0x70] sm:$0xff] %v322
    %339 = vst [vmem:[#allocation2 + $0x78] sm:$0xff] %v323
    %340 = vst [vmem:[#allocation3] sm:$0xff] 0.0
    %341 = vst [vmem:[#allocation3 + $0x8] sm:$0xff] 0.0
    %342 = vst [vmem:[#allocation3 + $0x10] sm:$0xff] 0.0
    %343 = vst [vmem:[#allocation3 + $0x18] sm:$0xff] 0.0
    %344 = vst [vmem:[#allocation3 + $0x20] sm:$0xff] 0.0
    %345 = vst [vmem:[#allocation3 + $0x28] sm:$0xff] 0.0
    %346 = vst [vmem:[#allocation3 + $0x30] sm:$0xff] 0.0
    %347 = vst [vmem:[#allocation3 + $0x38] sm:$0xff] 0.0
    %348 = vst [vmem:[#allocation3 + $0x40] sm:$0xff] 0.0
    %349 = vst [vmem:[#allocation3 + $0x48] sm:$0xff] 0.0
    %350 = vst [vmem:[#allocation3 + $0x50] sm:$0xff] 0.0
    %351 = vst [vmem:[#allocation3 + $0x58] sm:$0xff] 0.0
    %352 = vst [vmem:[#allocation3 + $0x60] sm:$0xff] 0.0
    %353 = vst [vmem:[#allocation3 + $0x68] sm:$0xff] 0.0
    %354 = vst [vmem:[#allocation3 + $0x70] sm:$0xff] 0.0
    %355 = vst [vmem:[#allocation3 + $0x78] sm:$0xff] 0.0
    %356 = vst [vmem:[#allocation3 + $0x80] sm:$0xff] 0.0
    %357 = vst [vmem:[#allocation3 + $0x88] sm:$0xff] 0.0
    %358 = vst [vmem:[#allocation3 + $0x90] sm:$0xff] 0.0
    %359 = vst [vmem:[#allocation3 + $0x98] sm:$0xff] 0.0
    %360 = vst [vmem:[#allocation3 + $0xa0] sm:$0xff] 0.0
    %361 = vst [vmem:[#allocation3 + $0xa8] sm:$0xff] 0.0
    %362 = vst [vmem:[#allocation3 + $0xb0] sm:$0xff] 0.0
    %363 = vst [vmem:[#allocation3 + $0xb8] sm:$0xff] 0.0
    %364 = vst [vmem:[#allocation3 + $0xc0] sm:$0xff] 0.0
    %365 = vst [vmem:[#allocation3 + $0xc8] sm:$0xff] 0.0
    %366 = vst [vmem:[#allocation3 + $0xd0] sm:$0xff] 0.0
    %367 = vst [vmem:[#allocation3 + $0xd8] sm:$0xff] 0.0
    %368 = vst [vmem:[#allocation3 + $0xe0] sm:$0xff] 0.0
    %369 = vst [vmem:[#allocation3 + $0xe8] sm:$0xff] 0.0
    %370 = vst [vmem:[#allocation3 + $0xf0] sm:$0xff] 0.0
    %371 = vst [vmem:[#allocation3 + $0xf8] sm:$0xff] 0.0
    %372 = vst [vmem:[#allocation3 + $0x100] sm:$0xff] 0.0
    %373 = vst [vmem:[#allocation3 + $0x108] sm:$0xff] 0.0
    %374 = vst [vmem:[#allocation3 + $0x110] sm:$0xff] 0.0
    %375 = vst [vmem:[#allocation3 + $0x118] sm:$0xff] 0.0
    %376 = vst [vmem:[#allocation3 + $0x120] sm:$0xff] 0.0
    %377 = vst [vmem:[#allocation3 + $0x128] sm:$0xff] 0.0
    %378 = vst [vmem:[#allocation3 + $0x130] sm:$0xff] 0.0
    %379 = vst [vmem:[#allocation3 + $0x138] sm:$0xff] 0.0
    %380 = vst [vmem:[#allocation3 + $0x140] sm:$0xff] 0.0
    %381 = vst [vmem:[#allocation3 + $0x148] sm:$0xff] 0.0
    %382 = vst [vmem:[#allocation3 + $0x150] sm:$0xff] 0.0
    %383 = vst [vmem:[#allocation3 + $0x158] sm:$0xff] 0.0
    %384 = vst [vmem:[#allocation3 + $0x160] sm:$0xff] 0.0
    %385 = vst [vmem:[#allocation3 + $0x168] sm:$0xff] 0.0
    %386 = vst [vmem:[#allocation3 + $0x170] sm:$0xff] 0.0
    %387 = vst [vmem:[#allocation3 + $0x178] sm:$0xff] 0.0
    %388 = vst [vmem:[#allocation3 + $0x180] sm:$0xff] 0.0
    %389 = vst [vmem:[#allocation3 + $0x188] sm:$0xff] 0.0
    %390 = vst [vmem:[#allocation3 + $0x190] sm:$0xff] 0.0
    %391 = vst [vmem:[#allocation3 + $0x198] sm:$0xff] 0.0
    %392 = vst [vmem:[#allocation3 + $0x1a0] sm:$0xff] 0.0
    %393 = vst [vmem:[#allocation3 + $0x1a8] sm:$0xff] 0.0
    %394 = vst [vmem:[#allocation3 + $0x1b0] sm:$0xff] 0.0
    %395 = vst [vmem:[#allocation3 + $0x1b8] sm:$0xff] 0.0
    %396 = vst [vmem:[#allocation3 + $0x1c0] sm:$0xff] 0.0
    %397 = vst [vmem:[#allocation3 + $0x1c8] sm:$0xff] 0.0
    %398 = vst [vmem:[#allocation3 + $0x1d0] sm:$0xff] 0.0
    %399 = vst [vmem:[#allocation3 + $0x1d8] sm:$0xff] 0.0
    %400 = vst [vmem:[#allocation3 + $0x1e0] sm:$0xff] 0.0
    %401 = vst [vmem:[#allocation3 + $0x1e8] sm:$0xff] 0.0
    %402 = vst [vmem:[#allocation3 + $0x1f0] sm:$0xff] 0.0
    %403 = vst [vmem:[#allocation3 + $0x1f8] sm:$0xff] 0.0
    %v404 = vld [vmem:[#allocation2] sm:$0x3]
    %405 = vst [vmem:[#allocation3 + $0x28] sm:$0x3] %v404
    %v406 = vld [vmem:[#allocation2 + $0x2] sm:$0x3]
    %407 = vst [vmem:[#allocation3 + $0x30] sm:$0x3] %v406
    %v408 = vld [vmem:[#allocation2 + $0x4] sm:$0x3]
    %409 = vst [vmem:[#allocation3 + $0x38] sm:$0x3] %v408
    %v410 = vld [vmem:[#allocation2 + $0x10] sm:$0x3]
    %411 = vst [vmem:[#allocation3 + $0x48] sm:$0x3] %v410
    %v412 = vld [vmem:[#allocation2 + $0x12] sm:$0x3]
    %413 = vst [vmem:[#allocation3 + $0x50] sm:$0x3] %v412
    %v414 = vld [vmem:[#allocation2 + $0x14] sm:$0x3]
    %415 = vst [vmem:[#allocation3 + $0x58] sm:$0x3] %v414
    %v416 = vld [vmem:[#allocation2 + $0x20] sm:$0x3]
    %417 = vst [vmem:[#allocation3 + $0x68] sm:$0x3] %v416
    %v418 = vld [vmem:[#allocation2 + $0x22] sm:$0x3]
    %419 = vst [vmem:[#allocation3 + $0x70] sm:$0x3] %v418
    %v420 = vld [vmem:[#allocation2 + $0x24] sm:$0x3]
    %421 = vst [vmem:[#allocation3 + $0x78] sm:$0x3] %v420
    %v422 = vld [vmem:[#allocation2 + $0x2] sm:$0x3]
    %v424 = vrot.slane %v422, 6
    %426 = vst [vmem:[#allocation3 + $0x20] sm:$0xc] %v424
    %v427 = vld [vmem:[#allocation2 + $0x4] sm:$0x3]
    %v429 = vrot.slane %v427, 6
    %431 = vst [vmem:[#allocation3 + $0x28] sm:$0xc] %v429
    %v432 = vld [vmem:[#allocation2 + $0x6] sm:$0x3]
    %v434 = vrot.slane %v432, 6
    %436 = vst [vmem:[#allocation3 + $0x30] sm:$0xc] %v434
    %v437 = vld [vmem:[#allocation2 + $0x8] sm:$0x3]
    %v439 = vrot.slane %v437, 6
    %441 = vst [vmem:[#allocation3 + $0x38] sm:$0xc] %v439
    %v442 = vld [vmem:[#allocation2 + $0x12] sm:$0x3]
    %v444 = vrot.slane %v442, 6
    %446 = vst [vmem:[#allocation3 + $0x40] sm:$0xc] %v444
    %v447 = vld [vmem:[#allocation2 + $0x14] sm:$0x3]
    %v449 = vrot.slane %v447, 6
    %451 = vst [vmem:[#allocation3 + $0x48] sm:$0xc] %v449
    %v452 = vld [vmem:[#allocation2 + $0x16] sm:$0x3]
    %v454 = vrot.slane %v452, 6
    %456 = vst [vmem:[#allocation3 + $0x50] sm:$0xc] %v454
    %v457 = vld [vmem:[#allocation2 + $0x18] sm:$0x3]
    %v459 = vrot.slane %v457, 6
    %461 = vst [vmem:[#allocation3 + $0x58] sm:$0xc] %v459
    %v462 = vld [vmem:[#allocation2 + $0x22] sm:$0x3]
    %v464 = vrot.slane %v462, 6
    %466 = vst [vmem:[#allocation3 + $0x60] sm:$0xc] %v464
    %v467 = vld [vmem:[#allocation2 + $0x24] sm:$0x3]
    %v469 = vrot.slane %v467, 6
    %471 = vst [vmem:[#allocation3 + $0x68] sm:$0xc] %v469
    %v472 = vld [vmem:[#allocation2 + $0x26] sm:$0x3]
    %v474 = vrot.slane %v472, 6
    %476 = vst [vmem:[#allocation3 + $0x70] sm:$0xc] %v474
    %v477 = vld [vmem:[#allocation2 + $0x28] sm:$0x3]
    %v479 = vrot.slane %v477, 6
    %481 = vst [vmem:[#allocation3 + $0x78] sm:$0xc] %v479
    %v482 = vld [vmem:[#allocation2 + $0x6] sm:$0x3]
    %v484 = vrot.slane %v482, 4
    %486 = vst [vmem:[#allocation3 + $0x20] sm:$0x30] %v484
    %v487 = vld [vmem:[#allocation2 + $0x8] sm:$0x3]
    %v489 = vrot.slane %v487, 4
    %491 = vst [vmem:[#allocation3 + $0x28] sm:$0x30] %v489
    %v492 = vld [vmem:[#allocation2 + $0xa] sm:$0x3]
    %v494 = vrot.slane %v492, 4
    %496 = vst [vmem:[#allocation3 + $0x30] sm:$0x30] %v494
    %v497 = vld [vmem:[#allocation2 + $0xc] sm:$0x3]
    %v499 = vrot.slane %v497, 4
    %501 = vst [vmem:[#allocation3 + $0x38] sm:$0x30] %v499
    %v502 = vld [vmem:[#allocation2 + $0x16] sm:$0x3]
    %v504 = vrot.slane %v502, 4
    %506 = vst [vmem:[#allocation3 + $0x40] sm:$0x30] %v504
    %v507 = vld [vmem:[#allocation2 + $0x18] sm:$0x3]
    %v509 = vrot.slane %v507, 4
    %511 = vst [vmem:[#allocation3 + $0x48] sm:$0x30] %v509
    %v512 = vld [vmem:[#allocation2 + $0x1a] sm:$0x3]
    %v514 = vrot.slane %v512, 4
    %516 = vst [vmem:[#allocation3 + $0x50] sm:$0x30] %v514
    %v517 = vld [vmem:[#allocation2 + $0x1c] sm:$0x3]
    %v519 = vrot.slane %v517, 4
    %521 = vst [vmem:[#allocation3 + $0x58] sm:$0x30] %v519
    %v522 = vld [vmem:[#allocation2 + $0x26] sm:$0x3]
    %v524 = vrot.slane %v522, 4
    %526 = vst [vmem:[#allocation3 + $0x60] sm:$0x30] %v524
    %v527 = vld [vmem:[#allocation2 + $0x28] sm:$0x3]
    %v529 = vrot.slane %v527, 4
    %531 = vst [vmem:[#allocation3 + $0x68] sm:$0x30] %v529
    %v532 = vld [vmem:[#allocation2 + $0x2a] sm:$0x3]
    %v534 = vrot.slane %v532, 4
    %536 = vst [vmem:[#allocation3 + $0x70] sm:$0x30] %v534
    %v537 = vld [vmem:[#allocation2 + $0x2c] sm:$0x3]
    %v539 = vrot.slane %v537, 4
    %541 = vst [vmem:[#allocation3 + $0x78] sm:$0x30] %v539
    %v542 = vld [vmem:[#allocation2 + $0xa] sm:$0x3]
    %v544 = vrot.slane %v542, 2
    %546 = vst [vmem:[#allocation3 + $0x20] sm:$0xc0] %v544
    %v547 = vld [vmem:[#allocation2 + $0xc] sm:$0x3]
    %v549 = vrot.slane %v547, 2
    %551 = vst [vmem:[#allocation3 + $0x28] sm:$0xc0] %v549
    %v552 = vld [vmem:[#allocation2 + $0xe] sm:$0x3]
    %v554 = vrot.slane %v552, 2
    %556 = vst [vmem:[#allocation3 + $0x30] sm:$0xc0] %v554
    %v557 = vld [vmem:[#allocation2 + $0x1a] sm:$0x3]
    %v559 = vrot.slane %v557, 2
    %561 = vst [vmem:[#allocation3 + $0x40] sm:$0xc0] %v559
    %v562 = vld [vmem:[#allocation2 + $0x1c] sm:$0x3]
    %v564 = vrot.slane %v562, 2
    %566 = vst [vmem:[#allocation3 + $0x48] sm:$0xc0] %v564
    %v567 = vld [vmem:[#allocation2 + $0x1e] sm:$0x3]
    %v569 = vrot.slane %v567, 2
    %571 = vst [vmem:[#allocation3 + $0x50] sm:$0xc0] %v569
    %v572 = vld [vmem:[#allocation2 + $0x2a] sm:$0x3]
    %v574 = vrot.slane %v572, 2
    %576 = vst [vmem:[#allocation3 + $0x60] sm:$0xc0] %v574
    %v577 = vld [vmem:[#allocation2 + $0x2c] sm:$0x3]
    %v579 = vrot.slane %v577, 2
    %581 = vst [vmem:[#allocation3 + $0x68] sm:$0xc0] %v579
    %v582 = vld [vmem:[#allocation2 + $0x2e] sm:$0x3]
    %v584 = vrot.slane %v582, 2
    %586 = vst [vmem:[#allocation3 + $0x70] sm:$0xc0] %v584
    %v587 = vld [vmem:[#allocation2 + $0x10] sm:$0x3]
    %588 = vst [vmem:[#allocation3 + $0x88] sm:$0x3] %v587
    %v589 = vld [vmem:[#allocation2 + $0x12] sm:$0x3]
    %590 = vst [vmem:[#allocation3 + $0x90] sm:$0x3] %v589
    %v591 = vld [vmem:[#allocation2 + $0x14] sm:$0x3]
    %592 = vst [vmem:[#allocation3 + $0x98] sm:$0x3] %v591
    %v593 = vld [vmem:[#allocation2 + $0x20] sm:$0x3]
    %594 = vst [vmem:[#allocation3 + $0xa8] sm:$0x3] %v593
    %v595 = vld [vmem:[#allocation2 + $0x22] sm:$0x3]
    %596 = vst [vmem:[#allocation3 + $0xb0] sm:$0x3] %v595
    %v597 = vld [vmem:[#allocation2 + $0x24] sm:$0x3]
    %598 = vst [vmem:[#allocation3 + $0xb8] sm:$0x3] %v597
    %v599 = vld [vmem:[#allocation2 + $0x30] sm:$0x3]
    %600 = vst [vmem:[#allocation3 + $0xc8] sm:$0x3] %v599
    %v601 = vld [vmem:[#allocation2 + $0x32] sm:$0x3]
    %602 = vst [vmem:[#allocation3 + $0xd0] sm:$0x3] %v601
    %v603 = vld [vmem:[#allocation2 + $0x34] sm:$0x3]
    %604 = vst [vmem:[#allocation3 + $0xd8] sm:$0x3] %v603
    %v605 = vld [vmem:[#allocation2 + $0x40] sm:$0x3]
    %606 = vst [vmem:[#allocation3 + $0xe8] sm:$0x3] %v605
    %v607 = vld [vmem:[#allocation2 + $0x42] sm:$0x3]
    %608 = vst [vmem:[#allocation3 + $0xf0] sm:$0x3] %v607
    %v609 = vld [vmem:[#allocation2 + $0x44] sm:$0x3]
    %610 = vst [vmem:[#allocation3 + $0xf8] sm:$0x3] %v609
    %v611 = vld [vmem:[#allocation2 + $0x12] sm:$0x3]
    %v613 = vrot.slane %v611, 6
    %615 = vst [vmem:[#allocation3 + $0x80] sm:$0xc] %v613
    %v616 = vld [vmem:[#allocation2 + $0x14] sm:$0x3]
    %v618 = vrot.slane %v616, 6
    %620 = vst [vmem:[#allocation3 + $0x88] sm:$0xc] %v618
    %v621 = vld [vmem:[#allocation2 + $0x16] sm:$0x3]
    %v623 = vrot.slane %v621, 6
    %625 = vst [vmem:[#allocation3 + $0x90] sm:$0xc] %v623
    %v626 = vld [vmem:[#allocation2 + $0x18] sm:$0x3]
    %v628 = vrot.slane %v626, 6
    %630 = vst [vmem:[#allocation3 + $0x98] sm:$0xc] %v628
    %v631 = vld [vmem:[#allocation2 + $0x22] sm:$0x3]
    %v633 = vrot.slane %v631, 6
    %635 = vst [vmem:[#allocation3 + $0xa0] sm:$0xc] %v633
    %v636 = vld [vmem:[#allocation2 + $0x24] sm:$0x3]
    %v638 = vrot.slane %v636, 6
    %640 = vst [vmem:[#allocation3 + $0xa8] sm:$0xc] %v638
    %v641 = vld [vmem:[#allocation2 + $0x26] sm:$0x3]
    %v643 = vrot.slane %v641, 6
    %645 = vst [vmem:[#allocation3 + $0xb0] sm:$0xc] %v643
    %v646 = vld [vmem:[#allocation2 + $0x28] sm:$0x3]
    %v648 = vrot.slane %v646, 6
    %650 = vst [vmem:[#allocation3 + $0xb8] sm:$0xc] %v648
    %v651 = vld [vmem:[#allocation2 + $0x32] sm:$0x3]
    %v653 = vrot.slane %v651, 6
    %655 = vst [vmem:[#allocation3 + $0xc0] sm:$0xc] %v653
    %v656 = vld [vmem:[#allocation2 + $0x34] sm:$0x3]
    %v658 = vrot.slane %v656, 6
    %660 = vst [vmem:[#allocation3 + $0xc8] sm:$0xc] %v658
    %v661 = vld [vmem:[#allocation2 + $0x36] sm:$0x3]
    %v663 = vrot.slane %v661, 6
    %665 = vst [vmem:[#allocation3 + $0xd0] sm:$0xc] %v663
    %v666 = vld [vmem:[#allocation2 + $0x38] sm:$0x3]
    %v668 = vrot.slane %v666, 6
    %670 = vst [vmem:[#allocation3 + $0xd8] sm:$0xc] %v668
    %v671 = vld [vmem:[#allocation2 + $0x42] sm:$0x3]
    %v673 = vrot.slane %v671, 6
    %675 = vst [vmem:[#allocation3 + $0xe0] sm:$0xc] %v673
    %v676 = vld [vmem:[#allocation2 + $0x44] sm:$0x3]
    %v678 = vrot.slane %v676, 6
    %680 = vst [vmem:[#allocation3 + $0xe8] sm:$0xc] %v678
    %v681 = vld [vmem:[#allocation2 + $0x46] sm:$0x3]
    %v683 = vrot.slane %v681, 6
    %685 = vst [vmem:[#allocation3 + $0xf0] sm:$0xc] %v683
    %v686 = vld [vmem:[#allocation2 + $0x48] sm:$0x3]
    %v688 = vrot.slane %v686, 6
    %690 = vst [vmem:[#allocation3 + $0xf8] sm:$0xc] %v688
    %v691 = vld [vmem:[#allocation2 + $0x16] sm:$0x3]
    %v693 = vrot.slane %v691, 4
    %695 = vst [vmem:[#allocation3 + $0x80] sm:$0x30] %v693
    %v696 = vld [vmem:[#allocation2 + $0x18] sm:$0x3]
    %v698 = vrot.slane %v696, 4
    %700 = vst [vmem:[#allocation3 + $0x88] sm:$0x30] %v698
    %v701 = vld [vmem:[#allocation2 + $0x1a] sm:$0x3]
    %v703 = vrot.slane %v701, 4
    %705 = vst [vmem:[#allocation3 + $0x90] sm:$0x30] %v703
    %v706 = vld [vmem:[#allocation2 + $0x1c] sm:$0x3]
    %v708 = vrot.slane %v706, 4
    %710 = vst [vmem:[#allocation3 + $0x98] sm:$0x30] %v708
    %v711 = vld [vmem:[#allocation2 + $0x26] sm:$0x3]
    %v713 = vrot.slane %v711, 4
    %715 = vst [vmem:[#allocation3 + $0xa0] sm:$0x30] %v713
    %v716 = vld [vmem:[#allocation2 + $0x28] sm:$0x3]
    %v718 = vrot.slane %v716, 4
    %720 = vst [vmem:[#allocation3 + $0xa8] sm:$0x30] %v718
    %v721 = vld [vmem:[#allocation2 + $0x2a] sm:$0x3]
    %v723 = vrot.slane %v721, 4
    %725 = vst [vmem:[#allocation3 + $0xb0] sm:$0x30] %v723
    %v726 = vld [vmem:[#allocation2 + $0x2c] sm:$0x3]
    %v728 = vrot.slane %v726, 4
    %730 = vst [vmem:[#allocation3 + $0xb8] sm:$0x30] %v728
    %v731 = vld [vmem:[#allocation2 + $0x36] sm:$0x3]
    %v733 = vrot.slane %v731, 4
    %735 = vst [vmem:[#allocation3 + $0xc0] sm:$0x30] %v733
    %v736 = vld [vmem:[#allocation2 + $0x38] sm:$0x3]
    %v738 = vrot.slane %v736, 4
    %740 = vst [vmem:[#allocation3 + $0xc8] sm:$0x30] %v738
    %v741 = vld [vmem:[#allocation2 + $0x3a] sm:$0x3]
    %v743 = vrot.slane %v741, 4
    %745 = vst [vmem:[#allocation3 + $0xd0] sm:$0x30] %v743
    %v746 = vld [vmem:[#allocation2 + $0x3c] sm:$0x3]
    %v748 = vrot.slane %v746, 4
    %750 = vst [vmem:[#allocation3 + $0xd8] sm:$0x30] %v748
    %v751 = vld [vmem:[#allocation2 + $0x46] sm:$0x3]
    %v753 = vrot.slane %v751, 4
    %755 = vst [vmem:[#allocation3 + $0xe0] sm:$0x30] %v753
    %v756 = vld [vmem:[#allocation2 + $0x48] sm:$0x3]
    %v758 = vrot.slane %v756, 4
    %760 = vst [vmem:[#allocation3 + $0xe8] sm:$0x30] %v758
    %v761 = vld [vmem:[#allocation2 + $0x4a] sm:$0x3]
    %v763 = vrot.slane %v761, 4
    %765 = vst [vmem:[#allocation3 + $0xf0] sm:$0x30] %v763
    %v766 = vld [vmem:[#allocation2 + $0x4c] sm:$0x3]
    %v768 = vrot.slane %v766, 4
    %770 = vst [vmem:[#allocation3 + $0xf8] sm:$0x30] %v768
    %v771 = vld [vmem:[#allocation2 + $0x1a] sm:$0x3]
    %v773 = vrot.slane %v771, 2
    %775 = vst [vmem:[#allocation3 + $0x80] sm:$0xc0] %v773
    %v776 = vld [vmem:[#allocation2 + $0x1c] sm:$0x3]
    %v778 = vrot.slane %v776, 2
    %780 = vst [vmem:[#allocation3 + $0x88] sm:$0xc0] %v778
    %v781 = vld [vmem:[#allocation2 + $0x1e] sm:$0x3]
    %v783 = vrot.slane %v781, 2
    %785 = vst [vmem:[#allocation3 + $0x90] sm:$0xc0] %v783
    %v786 = vld [vmem:[#allocation2 + $0x2a] sm:$0x3]
    %v788 = vrot.slane %v786, 2
    %790 = vst [vmem:[#allocation3 + $0xa0] sm:$0xc0] %v788
    %v791 = vld [vmem:[#allocation2 + $0x2c] sm:$0x3]
    %v793 = vrot.slane %v791, 2
    %795 = vst [vmem:[#allocation3 + $0xa8] sm:$0xc0] %v793
    %v796 = vld [vmem:[#allocation2 + $0x2e] sm:$0x3]
    %v798 = vrot.slane %v796, 2
    %800 = vst [vmem:[#allocation3 + $0xb0] sm:$0xc0] %v798
    %v801 = vld [vmem:[#allocation2 + $0x3a] sm:$0x3]
    %v803 = vrot.slane %v801, 2
    %805 = vst [vmem:[#allocation3 + $0xc0] sm:$0xc0] %v803
    %v806 = vld [vmem:[#allocation2 + $0x3c] sm:$0x3]
    %v808 = vrot.slane %v806, 2
    %810 = vst [vmem:[#allocation3 + $0xc8] sm:$0xc0] %v808
    %v811 = vld [vmem:[#allocation2 + $0x3e] sm:$0x3]
    %v813 = vrot.slane %v811, 2
    %815 = vst [vmem:[#allocation3 + $0xd0] sm:$0xc0] %v813
    %v816 = vld [vmem:[#allocation2 + $0x4a] sm:$0x3]
    %v818 = vrot.slane %v816, 2
    %820 = vst [vmem:[#allocation3 + $0xe0] sm:$0xc0] %v818
    %v821 = vld [vmem:[#allocation2 + $0x4c] sm:$0x3]
    %v823 = vrot.slane %v821, 2
    %825 = vst [vmem:[#allocation3 + $0xe8] sm:$0xc0] %v823
    %v826 = vld [vmem:[#allocation2 + $0x4e] sm:$0x3]
    %v828 = vrot.slane %v826, 2
    %830 = vst [vmem:[#allocation3 + $0xf0] sm:$0xc0] %v828
    %v831 = vld [vmem:[#allocation2 + $0x30] sm:$0x3]
    %832 = vst [vmem:[#allocation3 + $0x108] sm:$0x3] %v831
    %v833 = vld [vmem:[#allocation2 + $0x32] sm:$0x3]
    %834 = vst [vmem:[#allocation3 + $0x110] sm:$0x3] %v833
    %v835 = vld [vmem:[#allocation2 + $0x34] sm:$0x3]
    %836 = vst [vmem:[#allocation3 + $0x118] sm:$0x3] %v835
    %v837 = vld [vmem:[#allocation2 + $0x40] sm:$0x3]
    %838 = vst [vmem:[#allocation3 + $0x128] sm:$0x3] %v837
    %v839 = vld [vmem:[#allocation2 + $0x42] sm:$0x3]
    %840 = vst [vmem:[#allocation3 + $0x130] sm:$0x3] %v839
    %v841 = vld [vmem:[#allocation2 + $0x44] sm:$0x3]
    %842 = vst [vmem:[#allocation3 + $0x138] sm:$0x3] %v841
    %v843 = vld [vmem:[#allocation2 + $0x50] sm:$0x3]
    %844 = vst [vmem:[#allocation3 + $0x148] sm:$0x3] %v843
    %v845 = vld [vmem:[#allocation2 + $0x52] sm:$0x3]
    %846 = vst [vmem:[#allocation3 + $0x150] sm:$0x3] %v845
    %v847 = vld [vmem:[#allocation2 + $0x54] sm:$0x3]
    %848 = vst [vmem:[#allocation3 + $0x158] sm:$0x3] %v847
    %v849 = vld [vmem:[#allocation2 + $0x60] sm:$0x3]
    %850 = vst [vmem:[#allocation3 + $0x168] sm:$0x3] %v849
    %v851 = vld [vmem:[#allocation2 + $0x62] sm:$0x3]
    %852 = vst [vmem:[#allocation3 + $0x170] sm:$0x3] %v851
    %v853 = vld [vmem:[#allocation2 + $0x64] sm:$0x3]
    %854 = vst [vmem:[#allocation3 + $0x178] sm:$0x3] %v853
    %v855 = vld [vmem:[#allocation2 + $0x32] sm:$0x3]
    %v857 = vrot.slane %v855, 6
    %859 = vst [vmem:[#allocation3 + $0x100] sm:$0xc] %v857
    %v860 = vld [vmem:[#allocation2 + $0x34] sm:$0x3]
    %v862 = vrot.slane %v860, 6
    %864 = vst [vmem:[#allocation3 + $0x108] sm:$0xc] %v862
    %v865 = vld [vmem:[#allocation2 + $0x36] sm:$0x3]
    %v867 = vrot.slane %v865, 6
    %869 = vst [vmem:[#allocation3 + $0x110] sm:$0xc] %v867
    %v870 = vld [vmem:[#allocation2 + $0x38] sm:$0x3]
    %v872 = vrot.slane %v870, 6
    %874 = vst [vmem:[#allocation3 + $0x118] sm:$0xc] %v872
    %v875 = vld [vmem:[#allocation2 + $0x42] sm:$0x3]
    %v877 = vrot.slane %v875, 6
    %879 = vst [vmem:[#allocation3 + $0x120] sm:$0xc] %v877
    %v880 = vld [vmem:[#allocation2 + $0x44] sm:$0x3]
    %v882 = vrot.slane %v880, 6
    %884 = vst [vmem:[#allocation3 + $0x128] sm:$0xc] %v882
    %v885 = vld [vmem:[#allocation2 + $0x46] sm:$0x3]
    %v887 = vrot.slane %v885, 6
    %889 = vst [vmem:[#allocation3 + $0x130] sm:$0xc] %v887
    %v890 = vld [vmem:[#allocation2 + $0x48] sm:$0x3]
    %v892 = vrot.slane %v890, 6
    %894 = vst [vmem:[#allocation3 + $0x138] sm:$0xc] %v892
    %v895 = vld [vmem:[#allocation2 + $0x52] sm:$0x3]
    %v897 = vrot.slane %v895, 6
    %899 = vst [vmem:[#allocation3 + $0x140] sm:$0xc] %v897
    %v900 = vld [vmem:[#allocation2 + $0x54] sm:$0x3]
    %v902 = vrot.slane %v900, 6
    %904 = vst [vmem:[#allocation3 + $0x148] sm:$0xc] %v902
    %v905 = vld [vmem:[#allocation2 + $0x56] sm:$0x3]
    %v907 = vrot.slane %v905, 6
    %909 = vst [vmem:[#allocation3 + $0x150] sm:$0xc] %v907
    %v910 = vld [vmem:[#allocation2 + $0x58] sm:$0x3]
    %v912 = vrot.slane %v910, 6
    %914 = vst [vmem:[#allocation3 + $0x158] sm:$0xc] %v912
    %v915 = vld [vmem:[#allocation2 + $0x62] sm:$0x3]
    %v917 = vrot.slane %v915, 6
    %919 = vst [vmem:[#allocation3 + $0x160] sm:$0xc] %v917
    %v920 = vld [vmem:[#allocation2 + $0x64] sm:$0x3]
    %v922 = vrot.slane %v920, 6
    %924 = vst [vmem:[#allocation3 + $0x168] sm:$0xc] %v922
    %v925 = vld [vmem:[#allocation2 + $0x66] sm:$0x3]
    %v927 = vrot.slane %v925, 6
    %929 = vst [vmem:[#allocation3 + $0x170] sm:$0xc] %v927
    %v930 = vld [vmem:[#allocation2 + $0x68] sm:$0x3]
    %v932 = vrot.slane %v930, 6
    %934 = vst [vmem:[#allocation3 + $0x178] sm:$0xc] %v932
    %v935 = vld [vmem:[#allocation2 + $0x36] sm:$0x3]
    %v937 = vrot.slane %v935, 4
    %939 = vst [vmem:[#allocation3 + $0x100] sm:$0x30] %v937
    %v940 = vld [vmem:[#allocation2 + $0x38] sm:$0x3]
    %v942 = vrot.slane %v940, 4
    %944 = vst [vmem:[#allocation3 + $0x108] sm:$0x30] %v942
    %v945 = vld [vmem:[#allocation2 + $0x3a] sm:$0x3]
    %v947 = vrot.slane %v945, 4
    %949 = vst [vmem:[#allocation3 + $0x110] sm:$0x30] %v947
    %v950 = vld [vmem:[#allocation2 + $0x3c] sm:$0x3]
    %v952 = vrot.slane %v950, 4
    %954 = vst [vmem:[#allocation3 + $0x118] sm:$0x30] %v952
    %v955 = vld [vmem:[#allocation2 + $0x46] sm:$0x3]
    %v957 = vrot.slane %v955, 4
    %959 = vst [vmem:[#allocation3 + $0x120] sm:$0x30] %v957
    %v960 = vld [vmem:[#allocation2 + $0x48] sm:$0x3]
    %v962 = vrot.slane %v960, 4
    %964 = vst [vmem:[#allocation3 + $0x128] sm:$0x30] %v962
    %v965 = vld [vmem:[#allocation2 + $0x4a] sm:$0x3]
    %v967 = vrot.slane %v965, 4
    %969 = vst [vmem:[#allocation3 + $0x130] sm:$0x30] %v967
    %v970 = vld [vmem:[#allocation2 + $0x4c] sm:$0x3]
    %v972 = vrot.slane %v970, 4
    %974 = vst [vmem:[#allocation3 + $0x138] sm:$0x30] %v972
    %v975 = vld [vmem:[#allocation2 + $0x56] sm:$0x3]
    %v977 = vrot.slane %v975, 4
    %979 = vst [vmem:[#allocation3 + $0x140] sm:$0x30] %v977
    %v980 = vld [vmem:[#allocation2 + $0x58] sm:$0x3]
    %v982 = vrot.slane %v980, 4
    %984 = vst [vmem:[#allocation3 + $0x148] sm:$0x30] %v982
    %v985 = vld [vmem:[#allocation2 + $0x5a] sm:$0x3]
    %v987 = vrot.slane %v985, 4
    %989 = vst [vmem:[#allocation3 + $0x150] sm:$0x30] %v987
    %v990 = vld [vmem:[#allocation2 + $0x5c] sm:$0x3]
    %v992 = vrot.slane %v990, 4
    %994 = vst [vmem:[#allocation3 + $0x158] sm:$0x30] %v992
    %v995 = vld [vmem:[#allocation2 + $0x66] sm:$0x3]
    %v997 = vrot.slane %v995, 4
    %999 = vst [vmem:[#allocation3 + $0x160] sm:$0x30] %v997
    %v1000 = vld [vmem:[#allocation2 + $0x68] sm:$0x3]
    %v1002 = vrot.slane %v1000, 4
    %1004 = vst [vmem:[#allocation3 + $0x168] sm:$0x30] %v1002
    %v1005 = vld [vmem:[#allocation2 + $0x6a] sm:$0x3]
    %v1007 = vrot.slane %v1005, 4
    %1009 = vst [vmem:[#allocation3 + $0x170] sm:$0x30] %v1007
    %v1010 = vld [vmem:[#allocation2 + $0x6c] sm:$0x3]
    %v1012 = vrot.slane %v1010, 4
    %1014 = vst [vmem:[#allocation3 + $0x178] sm:$0x30] %v1012
    %v1015 = vld [vmem:[#allocation2 + $0x3a] sm:$0x3]
    %v1017 = vrot.slane %v1015, 2
    %1019 = vst [vmem:[#allocation3 + $0x100] sm:$0xc0] %v1017
    %v1020 = vld [vmem:[#allocation2 + $0x3c] sm:$0x3]
    %v1022 = vrot.slane %v1020, 2
    %1024 = vst [vmem:[#allocation3 + $0x108] sm:$0xc0] %v1022
    %v1025 = vld [vmem:[#allocation2 + $0x3e] sm:$0x3]
    %v1027 = vrot.slane %v1025, 2
    %1029 = vst [vmem:[#allocation3 + $0x110] sm:$0xc0] %v1027
    %v1030 = vld [vmem:[#allocation2 + $0x4a] sm:$0x3]
    %v1032 = vrot.slane %v1030, 2
    %1034 = vst [vmem:[#allocation3 + $0x120] sm:$0xc0] %v1032
    %v1035 = vld [vmem:[#allocation2 + $0x4c] sm:$0x3]
    %v1037 = vrot.slane %v1035, 2
    %1039 = vst [vmem:[#allocation3 + $0x128] sm:$0xc0] %v1037
    %v1040 = vld [vmem:[#allocation2 + $0x4e] sm:$0x3]
    %v1042 = vrot.slane %v1040, 2
    %1044 = vst [vmem:[#allocation3 + $0x130] sm:$0xc0] %v1042
    %v1045 = vld [vmem:[#allocation2 + $0x5a] sm:$0x3]
    %v1047 = vrot.slane %v1045, 2
    %1049 = vst [vmem:[#allocation3 + $0x140] sm:$0xc0] %v1047
    %v1050 = vld [vmem:[#allocation2 + $0x5c] sm:$0x3]
    %v1052 = vrot.slane %v1050, 2
    %1054 = vst [vmem:[#allocation3 + $0x148] sm:$0xc0] %v1052
    %v1055 = vld [vmem:[#allocation2 + $0x5e] sm:$0x3]
    %v1057 = vrot.slane %v1055, 2
    %1059 = vst [vmem:[#allocation3 + $0x150] sm:$0xc0] %v1057
    %v1060 = vld [vmem:[#allocation2 + $0x6a] sm:$0x3]
    %v1062 = vrot.slane %v1060, 2
    %1064 = vst [vmem:[#allocation3 + $0x160] sm:$0xc0] %v1062
    %v1065 = vld [vmem:[#allocation2 + $0x6c] sm:$0x3]
    %v1067 = vrot.slane %v1065, 2
    %1069 = vst [vmem:[#allocation3 + $0x168] sm:$0xc0] %v1067
    %v1070 = vld [vmem:[#allocation2 + $0x6e] sm:$0x3]
    %v1072 = vrot.slane %v1070, 2
    %1074 = vst [vmem:[#allocation3 + $0x170] sm:$0xc0] %v1072
    %v1075 = vld [vmem:[#allocation2 + $0x50] sm:$0x3]
    %1076 = vst [vmem:[#allocation3 + $0x188] sm:$0x3] %v1075
    %v1077 = vld [vmem:[#allocation2 + $0x52] sm:$0x3]
    %1078 = vst [vmem:[#allocation3 + $0x190] sm:$0x3] %v1077
    %v1079 = vld [vmem:[#allocation2 + $0x54] sm:$0x3]
    %1080 = vst [vmem:[#allocation3 + $0x198] sm:$0x3] %v1079
    %v1081 = vld [vmem:[#allocation2 + $0x60] sm:$0x3]
    %1082 = vst [vmem:[#allocation3 + $0x1a8] sm:$0x3] %v1081
    %v1083 = vld [vmem:[#allocation2 + $0x62] sm:$0x3]
    %1084 = vst [vmem:[#allocation3 + $0x1b0] sm:$0x3] %v1083
    %v1085 = vld [vmem:[#allocation2 + $0x64] sm:$0x3]
    %1086 = vst [vmem:[#allocation3 + $0x1b8] sm:$0x3] %v1085
    %v1087 = vld [vmem:[#allocation2 + $0x70] sm:$0x3]
    %1088 = vst [vmem:[#allocation3 + $0x1c8] sm:$0x3] %v1087
    %v1089 = vld [vmem:[#allocation2 + $0x72] sm:$0x3]
    %1090 = vst [vmem:[#allocation3 + $0x1d0] sm:$0x3] %v1089
    %v1091 = vld [vmem:[#allocation2 + $0x74] sm:$0x3]
    %1092 = vst [vmem:[#allocation3 + $0x1d8] sm:$0x3] %v1091
    %v1093 = vld [vmem:[#allocation2 + $0x52] sm:$0x3]
    %v1095 = vrot.slane %v1093, 6
    %1097 = vst [vmem:[#allocation3 + $0x180] sm:$0xc] %v1095
    %v1098 = vld [vmem:[#allocation2 + $0x54] sm:$0x3]
    %v1100 = vrot.slane %v1098, 6
    %1102 = vst [vmem:[#allocation3 + $0x188] sm:$0xc] %v1100
    %v1103 = vld [vmem:[#allocation2 + $0x56] sm:$0x3]
    %v1105 = vrot.slane %v1103, 6
    %1107 = vst [vmem:[#allocation3 + $0x190] sm:$0xc] %v1105
    %v1108 = vld [vmem:[#allocation2 + $0x58] sm:$0x3]
    %v1110 = vrot.slane %v1108, 6
    %1112 = vst [vmem:[#allocation3 + $0x198] sm:$0xc] %v1110
    %v1113 = vld [vmem:[#allocation2 + $0x62] sm:$0x3]
    %v1115 = vrot.slane %v1113, 6
    %1117 = vst [vmem:[#allocation3 + $0x1a0] sm:$0xc] %v1115
    %v1118 = vld [vmem:[#allocation2 + $0x64] sm:$0x3]
    %v1120 = vrot.slane %v1118, 6
    %1122 = vst [vmem:[#allocation3 + $0x1a8] sm:$0xc] %v1120
    %v1123 = vld [vmem:[#allocation2 + $0x66] sm:$0x3]
    %v1125 = vrot.slane %v1123, 6
    %1127 = vst [vmem:[#allocation3 + $0x1b0] sm:$0xc] %v1125
    %v1128 = vld [vmem:[#allocation2 + $0x68] sm:$0x3]
    %v1130 = vrot.slane %v1128, 6
    %1132 = vst [vmem:[#allocation3 + $0x1b8] sm:$0xc] %v1130
    %v1133 = vld [vmem:[#allocation2 + $0x72] sm:$0x3]
    %v1135 = vrot.slane %v1133, 6
    %1137 = vst [vmem:[#allocation3 + $0x1c0] sm:$0xc] %v1135
    %v1138 = vld [vmem:[#allocation2 + $0x74] sm:$0x3]
    %v1140 = vrot.slane %v1138, 6
    %1142 = vst [vmem:[#allocation3 + $0x1c8] sm:$0xc] %v1140
    %v1143 = vld [vmem:[#allocation2 + $0x76] sm:$0x3]
    %v1145 = vrot.slane %v1143, 6
    %1147 = vst [vmem:[#allocation3 + $0x1d0] sm:$0xc] %v1145
    %v1148 = vld [vmem:[#allocation2 + $0x78] sm:$0x3]
    %v1150 = vrot.slane %v1148, 6
    %1152 = vst [vmem:[#allocation3 + $0x1d8] sm:$0xc] %v1150
    %v1153 = vld [vmem:[#allocation2 + $0x56] sm:$0x3]
    %v1155 = vrot.slane %v1153, 4
    %1157 = vst [vmem:[#allocation3 + $0x180] sm:$0x30] %v1155
    %v1158 = vld [vmem:[#allocation2 + $0x58] sm:$0x3]
    %v1160 = vrot.slane %v1158, 4
    %1162 = vst [vmem:[#allocation3 + $0x188] sm:$0x30] %v1160
    %v1163 = vld [vmem:[#allocation2 + $0x5a] sm:$0x3]
    %v1165 = vrot.slane %v1163, 4
    %1167 = vst [vmem:[#allocation3 + $0x190] sm:$0x30] %v1165
    %v1168 = vld [vmem:[#allocation2 + $0x5c] sm:$0x3]
    %v1170 = vrot.slane %v1168, 4
    %1172 = vst [vmem:[#allocation3 + $0x198] sm:$0x30] %v1170
    %v1173 = vld [vmem:[#allocation2 + $0x66] sm:$0x3]
    %v1175 = vrot.slane %v1173, 4
    %1177 = vst [vmem:[#allocation3 + $0x1a0] sm:$0x30] %v1175
    %v1178 = vld [vmem:[#allocation2 + $0x68] sm:$0x3]
    %v1180 = vrot.slane %v1178, 4
    %1182 = vst [vmem:[#allocation3 + $0x1a8] sm:$0x30] %v1180
    %v1183 = vld [vmem:[#allocation2 + $0x6a] sm:$0x3]
    %v1185 = vrot.slane %v1183, 4
    %1187 = vst [vmem:[#allocation3 + $0x1b0] sm:$0x30] %v1185
    %v1188 = vld [vmem:[#allocation2 + $0x6c] sm:$0x3]
    %v1190 = vrot.slane %v1188, 4
    %1192 = vst [vmem:[#allocation3 + $0x1b8] sm:$0x30] %v1190
    %v1193 = vld [vmem:[#allocation2 + $0x76] sm:$0x3]
    %v1195 = vrot.slane %v1193, 4
    %1197 = vst [vmem:[#allocation3 + $0x1c0] sm:$0x30] %v1195
    %v1198 = vld [vmem:[#allocation2 + $0x78] sm:$0x3]
    %v1200 = vrot.slane %v1198, 4
    %1202 = vst [vmem:[#allocation3 + $0x1c8] sm:$0x30] %v1200
    %v1203 = vld [vmem:[#allocation2 + $0x7a] sm:$0x3]
    %v1205 = vrot.slane %v1203, 4
    %1207 = vst [vmem:[#allocation3 + $0x1d0] sm:$0x30] %v1205
    %v1208 = vld [vmem:[#allocation2 + $0x7c] sm:$0x3]
    %v1210 = vrot.slane %v1208, 4
    %1212 = vst [vmem:[#allocation3 + $0x1d8] sm:$0x30] %v1210
    %v1213 = vld [vmem:[#allocation2 + $0x5a] sm:$0x3]
    %v1215 = vrot.slane %v1213, 2
    %1217 = vst [vmem:[#allocation3 + $0x180] sm:$0xc0] %v1215
    %v1218 = vld [vmem:[#allocation2 + $0x5c] sm:$0x3]
    %v1220 = vrot.slane %v1218, 2
    %1222 = vst [vmem:[#allocation3 + $0x188] sm:$0xc0] %v1220
    %v1223 = vld [vmem:[#allocation2 + $0x5e] sm:$0x3]
    %v1225 = vrot.slane %v1223, 2
    %1227 = vst [vmem:[#allocation3 + $0x190] sm:$0xc0] %v1225
    %v1228 = vld [vmem:[#allocation2 + $0x6a] sm:$0x3]
    %v1230 = vrot.slane %v1228, 2
    %1232 = vst [vmem:[#allocation3 + $0x1a0] sm:$0xc0] %v1230
    %v1233 = vld [vmem:[#allocation2 + $0x6c] sm:$0x3]
    %v1235 = vrot.slane %v1233, 2
    %1237 = vst [vmem:[#allocation3 + $0x1a8] sm:$0xc0] %v1235
    %v1238 = vld [vmem:[#allocation2 + $0x6e] sm:$0x3]
    %v1240 = vrot.slane %v1238, 2
    %1242 = vst [vmem:[#allocation3 + $0x1b0] sm:$0xc0] %v1240
    %v1243 = vld [vmem:[#allocation2 + $0x7a] sm:$0x3]
    %v1245 = vrot.slane %v1243, 2
    %1247 = vst [vmem:[#allocation3 + $0x1c0] sm:$0xc0] %v1245
    %v1248 = vld [vmem:[#allocation2 + $0x7c] sm:$0x3]
    %v1250 = vrot.slane %v1248, 2
    %1252 = vst [vmem:[#allocation3 + $0x1c8] sm:$0xc0] %v1250
    %v1253 = vld [vmem:[#allocation2 + $0x7e] sm:$0x3]
    %v1255 = vrot.slane %v1253, 2
    %1257 = vst [vmem:[#allocation3 + $0x1d0] sm:$0xc0] %v1255
    %v1258 = vld [vmem:[#allocation3] sm:$0xff]
    %v1259 = vld [vmem:[#allocation3 + $0x8] sm:$0xff]
    %v1260 = vld [vmem:[#allocation3 + $0x10] sm:$0xff]
    %v1261 = vld [vmem:[#allocation3 + $0x18] sm:$0xff]
    %v1262 = vld [vmem:[#allocation3 + $0x20] sm:$0xff]
    %v1263 = vld [vmem:[#allocation3 + $0x28] sm:$0xff]
    %v1264 = vld [vmem:[#allocation3 + $0x30] sm:$0xff]
    %v1265 = vld [vmem:[#allocation3 + $0x38] sm:$0xff]
    %v1266 = vld [vmem:[#allocation3 + $0x40] sm:$0xff]
    %v1267 = vld [vmem:[#allocation3 + $0x48] sm:$0xff]
    %v1268 = vld [vmem:[#allocation3 + $0x50] sm:$0xff]
    %v1269 = vld [vmem:[#allocation3 + $0x58] sm:$0xff]
    %v1270 = vld [vmem:[#allocation3 + $0x60] sm:$0xff]
    %v1271 = vld [vmem:[#allocation3 + $0x68] sm:$0xff]
    %v1272 = vld [vmem:[#allocation3 + $0x70] sm:$0xff]
    %v1273 = vld [vmem:[#allocation3 + $0x78] sm:$0xff]
    %v1274 = vld [vmem:[#allocation3 + $0x80] sm:$0xff]
    %v1275 = vld [vmem:[#allocation3 + $0x88] sm:$0xff]
    %v1276 = vld [vmem:[#allocation3 + $0x90] sm:$0xff]
    %v1277 = vld [vmem:[#allocation3 + $0x98] sm:$0xff]
    %v1278 = vld [vmem:[#allocation3 + $0xa0] sm:$0xff]
    %v1279 = vld [vmem:[#allocation3 + $0xa8] sm:$0xff]
    %v1280 = vld [vmem:[#allocation3 + $0xb0] sm:$0xff]
    %v1281 = vld [vmem:[#allocation3 + $0xb8] sm:$0xff]
    %v1282 = vld [vmem:[#allocation3 + $0xc0] sm:$0xff]
    %v1283 = vld [vmem:[#allocation3 + $0xc8] sm:$0xff]
    %v1284 = vld [vmem:[#allocation3 + $0xd0] sm:$0xff]
    %v1285 = vld [vmem:[#allocation3 + $0xd8] sm:$0xff]
    %v1286 = vld [vmem:[#allocation3 + $0xe0] sm:$0xff]
    %v1287 = vld [vmem:[#allocation3 + $0xe8] sm:$0xff]
    %v1288 = vld [vmem:[#allocation3 + $0xf0] sm:$0xff]
    %v1289 = vld [vmem:[#allocation3 + $0xf8] sm:$0xff]
    %v1290 = vld [vmem:[#allocation3 + $0x100] sm:$0xff]
    %v1291 = vld [vmem:[#allocation3 + $0x108] sm:$0xff]
    %v1292 = vld [vmem:[#allocation3 + $0x110] sm:$0xff]
    %v1293 = vld [vmem:[#allocation3 + $0x118] sm:$0xff]
    %v1294 = vld [vmem:[#allocation3 + $0x120] sm:$0xff]
    %v1295 = vld [vmem:[#allocation3 + $0x128] sm:$0xff]
    %v1296 = vld [vmem:[#allocation3 + $0x130] sm:$0xff]
    %v1297 = vld [vmem:[#allocation3 + $0x138] sm:$0xff]
    %v1298 = vld [vmem:[#allocation3 + $0x140] sm:$0xff]
    %v1299 = vld [vmem:[#allocation3 + $0x148] sm:$0xff]
    %v1300 = vld [vmem:[#allocation3 + $0x150] sm:$0xff]
    %v1301 = vld [vmem:[#allocation3 + $0x158] sm:$0xff]
    %v1302 = vld [vmem:[#allocation3 + $0x160] sm:$0xff]
    %v1303 = vld [vmem:[#allocation3 + $0x168] sm:$0xff]
    %v1304 = vld [vmem:[#allocation3 + $0x170] sm:$0xff]
    %v1305 = vld [vmem:[#allocation3 + $0x178] sm:$0xff]
    %v1306 = vld [vmem:[#allocation3 + $0x180] sm:$0xff]
    %v1307 = vld [vmem:[#allocation3 + $0x188] sm:$0xff]
    %v1308 = vld [vmem:[#allocation3 + $0x190] sm:$0xff]
    %v1309 = vld [vmem:[#allocation3 + $0x198] sm:$0xff]
    %v1310 = vld [vmem:[#allocation3 + $0x1a0] sm:$0xff]
    %v1311 = vld [vmem:[#allocation3 + $0x1a8] sm:$0xff]
    %v1312 = vld [vmem:[#allocation3 + $0x1b0] sm:$0xff]
    %v1313 = vld [vmem:[#allocation3 + $0x1b8] sm:$0xff]
    %v1314 = vld [vmem:[#allocation3 + $0x1c0] sm:$0xff]
    %v1315 = vld [vmem:[#allocation3 + $0x1c8] sm:$0xff]
    %v1316 = vld [vmem:[#allocation3 + $0x1d0] sm:$0xff]
    %v1317 = vld [vmem:[#allocation3 + $0x1d8] sm:$0xff]
    %v1318 = vld [vmem:[#allocation3 + $0x1e0] sm:$0xff]
    %v1319 = vld [vmem:[#allocation3 + $0x1e8] sm:$0xff]
    %v1320 = vld [vmem:[#allocation3 + $0x1f0] sm:$0xff]
    %v1321 = vld [vmem:[#allocation3 + $0x1f8] sm:$0xff]
    %v1322 = vld [vmem:[%s3] sm:$0xff]
    %v1323 = vld [vmem:[%s3 + $0x8] sm:$0xff]
    %v1324 = vld [vmem:[%s3 + $0x10] sm:$0xff]
    %v1325 = vld [vmem:[%s3 + $0x18] sm:$0xff]
    %v1326 = vld [vmem:[%s3 + $0x20] sm:$0xff]
    %v1327 = vld [vmem:[%s3 + $0x28] sm:$0xff]
    %v1328 = vld [vmem:[%s3 + $0x30] sm:$0xff]
    %v1329 = vld [vmem:[%s3 + $0x38] sm:$0xff]
    %v1330 = vld [vmem:[%s3 + $0x40] sm:$0xff]
    %v1331 = vld [vmem:[%s3 + $0x48] sm:$0xff]
    %v1332 = vld [vmem:[%s3 + $0x50] sm:$0xff]
    %v1333 = vld [vmem:[%s3 + $0x58] sm:$0xff]
    %v1334 = vld [vmem:[%s3 + $0x60] sm:$0xff]
    %v1335 = vld [vmem:[%s3 + $0x68] sm:$0xff]
    %v1336 = vld [vmem:[%s3 + $0x70] sm:$0xff]
    %v1337 = vld [vmem:[%s3 + $0x78] sm:$0xff]
    %v1338 = vld [vmem:[%s3 + $0x80] sm:$0xff]
    %v1339 = vld [vmem:[%s3 + $0x88] sm:$0xff]
    %v1340 = vld [vmem:[%s3 + $0x90] sm:$0xff]
    %v1341 = vld [vmem:[%s3 + $0x98] sm:$0xff]
    %v1342 = vld [vmem:[%s3 + $0xa0] sm:$0xff]
    %v1343 = vld [vmem:[%s3 + $0xa8] sm:$0xff]
    %v1344 = vld [vmem:[%s3 + $0xb0] sm:$0xff]
    %v1345 = vld [vmem:[%s3 + $0xb8] sm:$0xff]
    %v1346 = vld [vmem:[%s3 + $0xc0] sm:$0xff]
    %v1347 = vld [vmem:[%s3 + $0xc8] sm:$0xff]
    %v1348 = vld [vmem:[%s3 + $0xd0] sm:$0xff]
    %v1349 = vld [vmem:[%s3 + $0xd8] sm:$0xff]
    %v1350 = vld [vmem:[%s3 + $0xe0] sm:$0xff]
    %v1351 = vld [vmem:[%s3 + $0xe8] sm:$0xff]
    %v1352 = vld [vmem:[%s3 + $0xf0] sm:$0xff]
    %v1353 = vld [vmem:[%s3 + $0xf8] sm:$0xff]
    %v1354 = vld [vmem:[%s3 + $0x100] sm:$0xff]
    %v1355 = vld [vmem:[%s3 + $0x108] sm:$0xff]
    %v1356 = vld [vmem:[%s3 + $0x110] sm:$0xff]
    %v1357 = vld [vmem:[%s3 + $0x118] sm:$0xff]
    %v1358 = vld [vmem:[%s3 + $0x120] sm:$0xff]
    %v1359 = vld [vmem:[%s3 + $0x128] sm:$0xff]
    %v1360 = vld [vmem:[%s3 + $0x130] sm:$0xff]
    %v1361 = vld [vmem:[%s3 + $0x138] sm:$0xff]
    %v1362 = vld [vmem:[%s3 + $0x140] sm:$0xff]
    %v1363 = vld [vmem:[%s3 + $0x148] sm:$0xff]
    %v1364 = vld [vmem:[%s3 + $0x150] sm:$0xff]
    %v1365 = vld [vmem:[%s3 + $0x158] sm:$0xff]
    %v1366 = vld [vmem:[%s3 + $0x160] sm:$0xff]
    %v1367 = vld [vmem:[%s3 + $0x168] sm:$0xff]
    %v1368 = vld [vmem:[%s3 + $0x170] sm:$0xff]
    %v1369 = vld [vmem:[%s3 + $0x178] sm:$0xff]
    %v1370 = vld [vmem:[%s3 + $0x180] sm:$0xff]
    %v1371 = vld [vmem:[%s3 + $0x188] sm:$0xff]
    %v1372 = vld [vmem:[%s3 + $0x190] sm:$0xff]
    %v1373 = vld [vmem:[%s3 + $0x198] sm:$0xff]
    %v1374 = vld [vmem:[%s3 + $0x1a0] sm:$0xff]
    %v1375 = vld [vmem:[%s3 + $0x1a8] sm:$0xff]
    %v1376 = vld [vmem:[%s3 + $0x1b0] sm:$0xff]
    %v1377 = vld [vmem:[%s3 + $0x1b8] sm:$0xff]
    %v1378 = vld [vmem:[%s3 + $0x1c0] sm:$0xff]
    %v1379 = vld [vmem:[%s3 + $0x1c8] sm:$0xff]
    %v1380 = vld [vmem:[%s3 + $0x1d0] sm:$0xff]
    %v1381 = vld [vmem:[%s3 + $0x1d8] sm:$0xff]
    %v1382 = vld [vmem:[%s3 + $0x1e0] sm:$0xff]
    %v1383 = vld [vmem:[%s3 + $0x1e8] sm:$0xff]
    %v1384 = vld [vmem:[%s3 + $0x1f0] sm:$0xff]
    %v1385 = vld [vmem:[%s3 + $0x1f8] sm:$0xff]
    %v1386 = vld [vmem:[%s3 + $0x200] sm:$0xff]
    %v1387 = vld [vmem:[%s3 + $0x208] sm:$0xff]
    %v1388 = vld [vmem:[%s3 + $0x210] sm:$0xff]
    %v1389 = vld [vmem:[%s3 + $0x218] sm:$0xff]
    %v1390 = vld [vmem:[%s3 + $0x220] sm:$0xff]
    %v1391 = vld [vmem:[%s3 + $0x228] sm:$0xff]
    %v1392 = vld [vmem:[%s3 + $0x230] sm:$0xff]
    %v1393 = vld [vmem:[%s3 + $0x238] sm:$0xff]
    %v1394 = vld [vmem:[%s3 + $0x240] sm:$0xff]
    %v1395 = vld [vmem:[%s3 + $0x248] sm:$0xff]
    %v1396 = vld [vmem:[%s3 + $0x250] sm:$0xff]
    %v1397 = vld [vmem:[%s3 + $0x258] sm:$0xff]
    %v1398 = vld [vmem:[%s3 + $0x260] sm:$0xff]
    %v1399 = vld [vmem:[%s3 + $0x268] sm:$0xff]
    %v1400 = vld [vmem:[%s3 + $0x270] sm:$0xff]
    %v1401 = vld [vmem:[%s3 + $0x278] sm:$0xff]
    %v1402 = vld [vmem:[%s3 + $0x280] sm:$0xff]
    %v1403 = vld [vmem:[%s3 + $0x288] sm:$0xff]
    %v1404 = vld [vmem:[%s3 + $0x290] sm:$0xff]
    %v1405 = vld [vmem:[%s3 + $0x298] sm:$0xff]
    %v1406 = vld [vmem:[%s3 + $0x2a0] sm:$0xff]
    %v1407 = vld [vmem:[%s3 + $0x2a8] sm:$0xff]
    %v1408 = vld [vmem:[%s3 + $0x2b0] sm:$0xff]
    %v1409 = vld [vmem:[%s3 + $0x2b8] sm:$0xff]
    %v1410 = vld [vmem:[%s3 + $0x2c0] sm:$0xff]
    %v1411 = vld [vmem:[%s3 + $0x2c8] sm:$0xff]
    %v1412 = vld [vmem:[%s3 + $0x2d0] sm:$0xff]
    %v1413 = vld [vmem:[%s3 + $0x2d8] sm:$0xff]
    %v1414 = vld [vmem:[%s3 + $0x2e0] sm:$0xff]
    %v1415 = vld [vmem:[%s3 + $0x2e8] sm:$0xff]
    %v1416 = vld [vmem:[%s3 + $0x2f0] sm:$0xff]
    %v1417 = vld [vmem:[%s3 + $0x2f8] sm:$0xff]
    %v1418 = vld [vmem:[%s3 + $0x300] sm:$0xff]
    %v1419 = vld [vmem:[%s3 + $0x308] sm:$0xff]
    %v1420 = vld [vmem:[%s3 + $0x310] sm:$0xff]
    %v1421 = vld [vmem:[%s3 + $0x318] sm:$0xff]
    %v1422 = vld [vmem:[%s3 + $0x320] sm:$0xff]
    %v1423 = vld [vmem:[%s3 + $0x328] sm:$0xff]
    %v1424 = vld [vmem:[%s3 + $0x330] sm:$0xff]
    %v1425 = vld [vmem:[%s3 + $0x338] sm:$0xff]
    %v1426 = vld [vmem:[%s3 + $0x340] sm:$0xff]
    %v1427 = vld [vmem:[%s3 + $0x348] sm:$0xff]
    %v1428 = vld [vmem:[%s3 + $0x350] sm:$0xff]
    %v1429 = vld [vmem:[%s3 + $0x358] sm:$0xff]
    %v1430 = vld [vmem:[%s3 + $0x360] sm:$0xff]
    %v1431 = vld [vmem:[%s3 + $0x368] sm:$0xff]
    %v1432 = vld [vmem:[%s3 + $0x370] sm:$0xff]
    %v1433 = vld [vmem:[%s3 + $0x378] sm:$0xff]
    %v1434 = vld [vmem:[%s3 + $0x380] sm:$0xff]
    %v1435 = vld [vmem:[%s3 + $0x388] sm:$0xff]
    %v1436 = vld [vmem:[%s3 + $0x390] sm:$0xff]
    %v1437 = vld [vmem:[%s3 + $0x398] sm:$0xff]
    %v1438 = vld [vmem:[%s3 + $0x3a0] sm:$0xff]
    %v1439 = vld [vmem:[%s3 + $0x3a8] sm:$0xff]
    %v1440 = vld [vmem:[%s3 + $0x3b0] sm:$0xff]
    %v1441 = vld [vmem:[%s3 + $0x3b8] sm:$0xff]
    %v1442 = vld [vmem:[%s3 + $0x3c0] sm:$0xff]
    %v1443 = vld [vmem:[%s3 + $0x3c8] sm:$0xff]
    %v1444 = vld [vmem:[%s3 + $0x3d0] sm:$0xff]
    %v1445 = vld [vmem:[%s3 + $0x3d8] sm:$0xff]
    %v1446 = vld [vmem:[%s3 + $0x3e0] sm:$0xff]
    %v1447 = vld [vmem:[%s3 + $0x3e8] sm:$0xff]
    %v1448 = vld [vmem:[%s3 + $0x3f0] sm:$0xff]
    %v1449 = vld [vmem:[%s3 + $0x3f8] sm:$0xff]
    %v1450 = vld [vmem:[%s3 + $0x400] sm:$0xff]
    %v1451 = vld [vmem:[%s3 + $0x408] sm:$0xff]
    %v1452 = vld [vmem:[%s3 + $0x410] sm:$0xff]
    %v1453 = vld [vmem:[%s3 + $0x418] sm:$0xff]
    %v1454 = vld [vmem:[%s3 + $0x420] sm:$0xff]
    %v1455 = vld [vmem:[%s3 + $0x428] sm:$0xff]
    %v1456 = vld [vmem:[%s3 + $0x430] sm:$0xff]
    %v1457 = vld [vmem:[%s3 + $0x438] sm:$0xff]
    %v1458 = vld [vmem:[%s3 + $0x440] sm:$0xff]
    %v1459 = vld [vmem:[%s3 + $0x448] sm:$0xff]
    %v1460 = vld [vmem:[%s3 + $0x450] sm:$0xff]
    %v1461 = vld [vmem:[%s3 + $0x458] sm:$0xff]
    %v1462 = vld [vmem:[%s3 + $0x460] sm:$0xff]
    %v1463 = vld [vmem:[%s3 + $0x468] sm:$0xff]
    %v1464 = vld [vmem:[%s3 + $0x470] sm:$0xff]
    %v1465 = vld [vmem:[%s3 + $0x478] sm:$0xff]
    %v1466 = vld [vmem:[%s3 + $0x480] sm:$0xff]
    %v1467 = vld [vmem:[%s3 + $0x488] sm:$0xff]
    %v1468 = vld [vmem:[%s3 + $0x490] sm:$0xff]
    %v1469 = vld [vmem:[%s3 + $0x498] sm:$0xff]
    %v1470 = vld [vmem:[%s3 + $0x4a0] sm:$0xff]
    %v1471 = vld [vmem:[%s3 + $0x4a8] sm:$0xff]
    %v1472 = vld [vmem:[%s3 + $0x4b0] sm:$0xff]
    %v1473 = vld [vmem:[%s3 + $0x4b8] sm:$0xff]
    %v1474 = vld [vmem:[%s3 + $0x4c0] sm:$0xff]
    %v1475 = vld [vmem:[%s3 + $0x4c8] sm:$0xff]
    %v1476 = vld [vmem:[%s3 + $0x4d0] sm:$0xff]
    %v1477 = vld [vmem:[%s3 + $0x4d8] sm:$0xff]
    %v1478 = vld [vmem:[%s3 + $0x4e0] sm:$0xff]
    %v1479 = vld [vmem:[%s3 + $0x4e8] sm:$0xff]
    %v1480 = vld [vmem:[%s3 + $0x4f0] sm:$0xff]
    %v1481 = vld [vmem:[%s3 + $0x4f8] sm:$0xff]
    %v1482 = vld [vmem:[%s3 + $0x500] sm:$0xff]
    %v1483 = vld [vmem:[%s3 + $0x508] sm:$0xff]
    %v1484 = vld [vmem:[%s3 + $0x510] sm:$0xff]
    %v1485 = vld [vmem:[%s3 + $0x518] sm:$0xff]
    %v1486 = vld [vmem:[%s3 + $0x520] sm:$0xff]
    %v1487 = vld [vmem:[%s3 + $0x528] sm:$0xff]
    %v1488 = vld [vmem:[%s3 + $0x530] sm:$0xff]
    %v1489 = vld [vmem:[%s3 + $0x538] sm:$0xff]
    %v1490 = vld [vmem:[%s3 + $0x540] sm:$0xff]
    %v1491 = vld [vmem:[%s3 + $0x548] sm:$0xff]
    %v1492 = vld [vmem:[%s3 + $0x550] sm:$0xff]
    %v1493 = vld [vmem:[%s3 + $0x558] sm:$0xff]
    %v1494 = vld [vmem:[%s3 + $0x560] sm:$0xff]
    %v1495 = vld [vmem:[%s3 + $0x568] sm:$0xff]
    %v1496 = vld [vmem:[%s3 + $0x570] sm:$0xff]
    %v1497 = vld [vmem:[%s3 + $0x578] sm:$0xff]
    %v1498 = vld [vmem:[%s3 + $0x580] sm:$0xff]
    %v1499 = vld [vmem:[%s3 + $0x588] sm:$0xff]
    %v1500 = vld [vmem:[%s3 + $0x590] sm:$0xff]
    %v1501 = vld [vmem:[%s3 + $0x598] sm:$0xff]
    %v1502 = vld [vmem:[%s3 + $0x5a0] sm:$0xff]
    %v1503 = vld [vmem:[%s3 + $0x5a8] sm:$0xff]
    %v1504 = vld [vmem:[%s3 + $0x5b0] sm:$0xff]
    %v1505 = vld [vmem:[%s3 + $0x5b8] sm:$0xff]
    %v1506 = vld [vmem:[%s3 + $0x5c0] sm:$0xff]
    %v1507 = vld [vmem:[%s3 + $0x5c8] sm:$0xff]
    %v1508 = vld [vmem:[%s3 + $0x5d0] sm:$0xff]
    %v1509 = vld [vmem:[%s3 + $0x5d8] sm:$0xff]
    %v1510 = vld [vmem:[%s3 + $0x5e0] sm:$0xff]
    %v1511 = vld [vmem:[%s3 + $0x5e8] sm:$0xff]
    %v1512 = vld [vmem:[%s3 + $0x5f0] sm:$0xff]
    %v1513 = vld [vmem:[%s3 + $0x5f8] sm:$0xff]
    %v1514 = vld [vmem:[%s3 + $0x600] sm:$0xff]
    %v1515 = vld [vmem:[%s3 + $0x608] sm:$0xff]
    %v1516 = vld [vmem:[%s3 + $0x610] sm:$0xff]
    %v1517 = vld [vmem:[%s3 + $0x618] sm:$0xff]
    %v1518 = vld [vmem:[%s3 + $0x620] sm:$0xff]
    %v1519 = vld [vmem:[%s3 + $0x628] sm:$0xff]
    %v1520 = vld [vmem:[%s3 + $0x630] sm:$0xff]
    %v1521 = vld [vmem:[%s3 + $0x638] sm:$0xff]
    %v1522 = vld [vmem:[%s3 + $0x640] sm:$0xff]
    %v1523 = vld [vmem:[%s3 + $0x648] sm:$0xff]
    %v1524 = vld [vmem:[%s3 + $0x650] sm:$0xff]
    %v1525 = vld [vmem:[%s3 + $0x658] sm:$0xff]
    %v1526 = vld [vmem:[%s3 + $0x660] sm:$0xff]
    %v1527 = vld [vmem:[%s3 + $0x668] sm:$0xff]
    %v1528 = vld [vmem:[%s3 + $0x670] sm:$0xff]
    %v1529 = vld [vmem:[%s3 + $0x678] sm:$0xff]
    %v1530 = vld [vmem:[%s3 + $0x680] sm:$0xff]
    %v1531 = vld [vmem:[%s3 + $0x688] sm:$0xff]
    %v1532 = vld [vmem:[%s3 + $0x690] sm:$0xff]
    %v1533 = vld [vmem:[%s3 + $0x698] sm:$0xff]
    %v1534 = vld [vmem:[%s3 + $0x6a0] sm:$0xff]
    %v1535 = vld [vmem:[%s3 + $0x6a8] sm:$0xff]
    %v1536 = vld [vmem:[%s3 + $0x6b0] sm:$0xff]
    %v1537 = vld [vmem:[%s3 + $0x6b8] sm:$0xff]
    %v1538 = vld [vmem:[%s3 + $0x6c0] sm:$0xff]
    %v1539 = vld [vmem:[%s3 + $0x6c8] sm:$0xff]
    %v1540 = vld [vmem:[%s3 + $0x6d0] sm:$0xff]
    %v1541 = vld [vmem:[%s3 + $0x6d8] sm:$0xff]
    %v1542 = vld [vmem:[%s3 + $0x6e0] sm:$0xff]
    %v1543 = vld [vmem:[%s3 + $0x6e8] sm:$0xff]
    %v1544 = vld [vmem:[%s3 + $0x6f0] sm:$0xff]
    %v1545 = vld [vmem:[%s3 + $0x6f8] sm:$0xff]
    %v1546 = vld [vmem:[%s3 + $0x700] sm:$0xff]
    %v1547 = vld [vmem:[%s3 + $0x708] sm:$0xff]
    %v1548 = vld [vmem:[%s3 + $0x710] sm:$0xff]
    %v1549 = vld [vmem:[%s3 + $0x718] sm:$0xff]
    %v1550 = vld [vmem:[%s3 + $0x720] sm:$0xff]
    %v1551 = vld [vmem:[%s3 + $0x728] sm:$0xff]
    %v1552 = vld [vmem:[%s3 + $0x730] sm:$0xff]
    %v1553 = vld [vmem:[%s3 + $0x738] sm:$0xff]
    %v1554 = vld [vmem:[%s3 + $0x740] sm:$0xff]
    %v1555 = vld [vmem:[%s3 + $0x748] sm:$0xff]
    %v1556 = vld [vmem:[%s3 + $0x750] sm:$0xff]
    %v1557 = vld [vmem:[%s3 + $0x758] sm:$0xff]
    %v1558 = vld [vmem:[%s3 + $0x760] sm:$0xff]
    %v1559 = vld [vmem:[%s3 + $0x768] sm:$0xff]
    %v1560 = vld [vmem:[%s3 + $0x770] sm:$0xff]
    %v1561 = vld [vmem:[%s3 + $0x778] sm:$0xff]
    %v1562 = vld [vmem:[%s3 + $0x780] sm:$0xff]
    %v1563 = vld [vmem:[%s3 + $0x788] sm:$0xff]
    %v1564 = vld [vmem:[%s3 + $0x790] sm:$0xff]
    %v1565 = vld [vmem:[%s3 + $0x798] sm:$0xff]
    %v1566 = vld [vmem:[%s3 + $0x7a0] sm:$0xff]
    %v1567 = vld [vmem:[%s3 + $0x7a8] sm:$0xff]
    %v1568 = vld [vmem:[%s3 + $0x7b0] sm:$0xff]
    %v1569 = vld [vmem:[%s3 + $0x7b8] sm:$0xff]
    %v1570 = vld [vmem:[%s3 + $0x7c0] sm:$0xff]
    %v1571 = vld [vmem:[%s3 + $0x7c8] sm:$0xff]
    %v1572 = vld [vmem:[%s3 + $0x7d0] sm:$0xff]
    %v1573 = vld [vmem:[%s3 + $0x7d8] sm:$0xff]
    %v1574 = vld [vmem:[%s3 + $0x7e0] sm:$0xff]
    %v1575 = vld [vmem:[%s3 + $0x7e8] sm:$0xff]
    %v1576 = vld [vmem:[%s3 + $0x7f0] sm:$0xff]
    %v1577 = vld [vmem:[%s3 + $0x7f8] sm:$0xff]
    %v1578 = vld [vmem:[%s4] sm:$0x1]
    %v1580 = vlaneseq
    %v1581 = vshrl.u32 %v1580, 7
    %v1582 = vsub.s32 0, %v1581
    %v1583 = vrot.slane %v1578, %v1582
    %1585 = vmatprep.subr.mxu0 0.0
    %1586 = vmatpush1.msra.mxu0 %v1322
    %1587 = vmatprep.subr.mxu0 0.0
    %1588 = vmatpush1.msra.mxu0 %v1323
    %1589 = vmatprep.subr.mxu0 0.0
    %1590 = vmatpush1.msra.mxu0 %v1324
    %1591 = vmatprep.subr.mxu0 0.0
    %1592 = vmatpush1.msra.mxu0 %v1325
    %1593 = vmatprep.subr.mxu0 0.0
    %1594 = vmatpush1.msra.mxu0 %v1326
    %1595 = vmatprep.subr.mxu0 0.0
    %1596 = vmatpush1.msra.mxu0 %v1327
    %1597 = vmatprep.subr.mxu0 0.0
    %1598 = vmatpush1.msra.mxu0 %v1328
    %1599 = vmatprep.subr.mxu0 0.0
    %1600 = vmatpush1.msra.mxu0 %v1329
    %1601 = vmatprep.subr.mxu0 0.0
    %1602 = vmatpush1.msra.mxu0 %v1330
    %1603 = vmatprep.subr.mxu0 0.0
    %1604 = vmatpush1.msra.mxu0 %v1331
    %1605 = vmatprep.subr.mxu0 0.0
    %1606 = vmatpush1.msra.mxu0 %v1332
    %1607 = vmatprep.subr.mxu0 0.0
    %1608 = vmatpush1.msra.mxu0 %v1333
    %1609 = vmatprep.subr.mxu0 0.0
    %1610 = vmatpush1.msra.mxu0 %v1334
    %1611 = vmatprep.subr.mxu0 0.0
    %1612 = vmatpush1.msra.mxu0 %v1335
    %1613 = vmatprep.subr.mxu0 0.0
    %1614 = vmatpush1.msra.mxu0 %v1336
    %1615 = vmatprep.subr.mxu0 0.0
    %1616 = vmatpush1.msra.mxu0 %v1337
    %1617 = vmatprep.subr.mxu0 0.0
    %1618 = vmatpush1.msra.mxu0 %v1338
    %1619 = vmatprep.subr.mxu0 0.0
    %1620 = vmatpush1.msra.mxu0 %v1339
    %1621 = vmatprep.subr.mxu0 0.0
    %1622 = vmatpush1.msra.mxu0 %v1340
    %1623 = vmatprep.subr.mxu0 0.0
    %1624 = vmatpush1.msra.mxu0 %v1341
    %1625 = vmatprep.subr.mxu0 0.0
    %1626 = vmatpush1.msra.mxu0 %v1342
    %1627 = vmatprep.subr.mxu0 0.0
    %1628 = vmatpush1.msra.mxu0 %v1343
    %1629 = vmatprep.subr.mxu0 0.0
    %1630 = vmatpush1.msra.mxu0 %v1344
    %1631 = vmatprep.subr.mxu0 0.0
    %1632 = vmatpush1.msra.mxu0 %v1345
    %1633 = vmatprep.subr.mxu0 0.0
    %1634 = vmatpush1.msra.mxu0 %v1346
    %1635 = vmatprep.subr.mxu0 0.0
    %1636 = vmatpush1.msra.mxu0 %v1347
    %1637 = vmatprep.subr.mxu0 0.0
    %1638 = vmatpush1.msra.mxu0 %v1348
    %1639 = vmatprep.subr.mxu0 0.0
    %1640 = vmatpush1.msra.mxu0 %v1349
    %1641 = vmatprep.subr.mxu0 0.0
    %1642 = vmatpush1.msra.mxu0 %v1350
    %1643 = vmatprep.subr.mxu0 0.0
    %1644 = vmatpush1.msra.mxu0 %v1351
    %1645 = vmatprep.subr.mxu0 0.0
    %1646 = vmatpush1.msra.mxu0 %v1352
    %1647 = vmatprep.subr.mxu0 0.0
    %1648 = vmatpush1.msra.mxu0 %v1353
    %1649 = vmatprep.mubr.f32.mxu0 %v1259
    %1650 = vmatmul.mubr.f32.gmra.mrb[0].mxu0 %v1258
    %v1651 = vpop.f32.mrb[0].mxu0
    %v1652 = vadd.f32 %v1583, %v1651
    %v1653 = vpop.f32.mrb[0].mxu0
    %1654 = vmatprep.mubr.f32.mxu0 %v1275
    %1655 = vmatmul.mubr.f32.gmra.mrb[0].mxu0 %v1274
    %v1656 = vpop.f32.mrb[0].mxu0
    %v1657 = vadd.f32 %v1583, %v1656
    %v1658 = vpop.f32.mrb[0].mxu0
    %1659 = vmatprep.mubr.f32.mxu0 %v1291
    %1660 = vmatmul.mubr.f32.gmra.mrb[0].mxu0 %v1290
    %v1661 = vpop.f32.mrb[0].mxu0
    %v1662 = vadd.f32 %v1583, %v1661
    %v1663 = vpop.f32.mrb[0].mxu0
    %1664 = vmatprep.mubr.f32.mxu0 %v1307
    %1665 = vmatmul.mubr.f32.gmra.mrb[0].mxu0 %v1306
    %v1666 = vpop.f32.mrb[0].mxu0
    %v1667 = vadd.f32 %v1583, %v1666
    %v1668 = vpop.f32.mrb[0].mxu0
    %1669 = vdwg.mxu0
    %1670 = vmatprep.subr.mxu0 0.0
    %1671 = vmatpush1.msra.mxu0 %v1354
    %1672 = vmatprep.subr.mxu0 0.0
    %1673 = vmatpush1.msra.mxu0 %v1355
    %1674 = vmatprep.subr.mxu0 0.0
    %1675 = vmatpush1.msra.mxu0 %v1356
    %1676 = vmatprep.subr.mxu0 0.0
    %1677 = vmatpush1.msra.mxu0 %v1357
    %1678 = vmatprep.subr.mxu0 0.0
    %1679 = vmatpush1.msra.mxu0 %v1358
    %1680 = vmatprep.subr.mxu0 0.0
    %1681 = vmatpush1.msra.mxu0 %v1359
    %1682 = vmatprep.subr.mxu0 0.0
    %1683 = vmatpush1.msra.mxu0 %v1360
    %1684 = vmatprep.subr.mxu0 0.0
    %1685 = vmatpush1.msra.mxu0 %v1361
    %1686 = vmatprep.subr.mxu0 0.0
    %1687 = vmatpush1.msra.mxu0 %v1362
    %1688 = vmatprep.subr.mxu0 0.0
    %1689 = vmatpush1.msra.mxu0 %v1363
    %1690 = vmatprep.subr.mxu0 0.0
    %1691 = vmatpush1.msra.mxu0 %v1364
    %1692 = vmatprep.subr.mxu0 0.0
    %1693 = vmatpush1.msra.mxu0 %v1365
    %1694 = vmatprep.subr.mxu0 0.0
    %1695 = vmatpush1.msra.mxu0 %v1366
    %1696 = vmatprep.subr.mxu0 0.0
    %1697 = vmatpush1.msra.mxu0 %v1367
    %1698 = vmatprep.subr.mxu0 0.0
    %1699 = vmatpush1.msra.mxu0 %v1368
    %1700 = vmatprep.subr.mxu0 0.0
    %1701 = vmatpush1.msra.mxu0 %v1369
    %1702 = vmatprep.subr.mxu0 0.0
    %1703 = vmatpush1.msra.mxu0 %v1370
    %1704 = vmatprep.subr.mxu0 0.0
    %1705 = vmatpush1.msra.mxu0 %v1371
    %1706 = vmatprep.subr.mxu0 0.0
    %1707 = vmatpush1.msra.mxu0 %v1372
    %1708 = vmatprep.subr.mxu0 0.0
    %1709 = vmatpush1.msra.mxu0 %v1373
    %1710 = vmatprep.subr.mxu0 0.0
    %1711 = vmatpush1.msra.mxu0 %v1374
    %1712 = vmatprep.subr.mxu0 0.0
    %1713 = vmatpush1.msra.mxu0 %v1375
    %1714 = vmatprep.subr.mxu0 0.0
    %1715 = vmatpush1.msra.mxu0 %v1376
    %1716 = vmatprep.subr.mxu0 0.0
    %1717 = vmatpush1.msra.mxu0 %v1377
    %1718 = vmatprep.subr.mxu0 0.0
    %1719 = vmatpush1.msra.mxu0 %v1378
    %1720 = vmatprep.subr.mxu0 0.0
    %1721 = vmatpush1.msra.mxu0 %v1379
    %1722 = vmatprep.subr.mxu0 0.0
    %1723 = vmatpush1.msra.mxu0 %v1380
    %1724 = vmatprep.subr.mxu0 0.0
    %1725 = vmatpush1.msra.mxu0 %v1381
    %1726 = vmatprep.subr.mxu0 0.0
    %1727 = vmatpush1.msra.mxu0 %v1382
    %1728 = vmatprep.subr.mxu0 0.0
    %1729 = vmatpush1.msra.mxu0 %v1383
    %1730 = vmatprep.subr.mxu0 0.0
    %1731 = vmatpush1.msra.mxu0 %v1384
    %1732 = vmatprep.subr.mxu0 0.0
    %1733 = vmatpush1.msra.mxu0 %v1385
    %1734 = vmatprep.mubr.f32.mxu0 %v1261
    %1735 = vmatmul.mubr.f32.gmra.mrb[0].mxu0 %v1260
    %v1736 = vpop.f32.mrb[0].mxu0
    %v1737 = vadd.f32 %v1652, %v1736
    %v1738 = vpop.f32.mrb[0].mxu0
    %1739 = vmatprep.mubr.f32.mxu0 %v1277
    %1740 = vmatmul.mubr.f32.gmra.mrb[0].mxu0 %v1276
    %v1741 = vpop.f32.mrb[0].mxu0
    %v1742 = vadd.f32 %v1657, %v1741
    %v1743 = vpop.f32.mrb[0].mxu0
    %1744 = vmatprep.mubr.f32.mxu0 %v1293
    %1745 = vmatmul.mubr.f32.gmra.mrb[0].mxu0 %v1292
    %v1746 = vpop.f32.mrb[0].mxu0
    %v1747 = vadd.f32 %v1662, %v1746
    %v1748 = vpop.f32.mrb[0].mxu0
    %1749 = vmatprep.mubr.f32.mxu0 %v1309
    %1750 = vmatmul.mubr.f32.gmra.mrb[0].mxu0 %v1308
    %v1751 = vpop.f32.mrb[0].mxu0
    %v1752 = vadd.f32 %v1667, %v1751
    %v1753 = vpop.f32.mrb[0].mxu0
    %1754 = vdwg.mxu0
    %1755 = vmatprep.subr.mxu0 0.0
    %1756 = vmatpush1.msra.mxu0 %v1386
    %1757 = vmatprep.subr.mxu0 0.0
    %1758 = vmatpush1.msra.mxu0 %v1387
    %1759 = vmatprep.subr.mxu0 0.0
    %1760 = vmatpush1.msra.mxu0 %v1388
    %1761 = vmatprep.subr.mxu0 0.0
    %1762 = vmatpush1.msra.mxu0 %v1389
    %1763 = vmatprep.subr.mxu0 0.0
    %1764 = vmatpush1.msra.mxu0 %v1390
    %1765 = vmatprep.subr.mxu0 0.0
    %1766 = vmatpush1.msra.mxu0 %v1391
    %1767 = vmatprep.subr.mxu0 0.0
    %1768 = vmatpush1.msra.mxu0 %v1392
    %1769 = vmatprep.subr.mxu0 0.0
    %1770 = vmatpush1.msra.mxu0 %v1393
    %1771 = vmatprep.subr.mxu0 0.0
    %1772 = vmatpush1.msra.mxu0 %v1394
    %1773 = vmatprep.subr.mxu0 0.0
    %1774 = vmatpush1.msra.mxu0 %v1395
    %1775 = vmatprep.subr.mxu0 0.0
    %1776 = vmatpush1.msra.mxu0 %v1396
    %1777 = vmatprep.subr.mxu0 0.0
    %1778 = vmatpush1.msra.mxu0 %v1397
    %1779 = vmatprep.subr.mxu0 0.0
    %1780 = vmatpush1.msra.mxu0 %v1398
    %1781 = vmatprep.subr.mxu0 0.0
    %1782 = vmatpush1.msra.mxu0 %v1399
    %1783 = vmatprep.subr.mxu0 0.0
    %1784 = vmatpush1.msra.mxu0 %v1400
    %1785 = vmatprep.subr.mxu0 0.0
    %1786 = vmatpush1.msra.mxu0 %v1401
    %1787 = vmatprep.subr.mxu0 0.0
    %1788 = vmatpush1.msra.mxu0 %v1402
    %1789 = vmatprep.subr.mxu0 0.0
    %1790 = vmatpush1.msra.mxu0 %v1403
    %1791 = vmatprep.subr.mxu0 0.0
    %1792 = vmatpush1.msra.mxu0 %v1404
    %1793 = vmatprep.subr.mxu0 0.0
    %1794 = vmatpush1.msra.mxu0 %v1405
    %1795 = vmatprep.subr.mxu0 0.0
    %1796 = vmatpush1.msra.mxu0 %v1406
    %1797 = vmatprep.subr.mxu0 0.0
    %1798 = vmatpush1.msra.mxu0 %v1407
    %1799 = vmatprep.subr.mxu0 0.0
    %1800 = vmatpush1.msra.mxu0 %v1408
    %1801 = vmatprep.subr.mxu0 0.0
    %1802 = vmatpush1.msra.mxu0 %v1409
    %1803 = vmatprep.subr.mxu0 0.0
    %1804 = vmatpush1.msra.mxu0 %v1410
    %1805 = vmatprep.subr.mxu0 0.0
    %1806 = vmatpush1.msra.mxu0 %v1411
    %1807 = vmatprep.subr.mxu0 0.0
    %1808 = vmatpush1.msra.mxu0 %v1412
    %1809 = vmatprep.subr.mxu0 0.0
    %1810 = vmatpush1.msra.mxu0 %v1413
    %1811 = vmatprep.subr.mxu0 0.0
    %1812 = vmatpush1.msra.mxu0 %v1414
    %1813 = vmatprep.subr.mxu0 0.0
    %1814 = vmatpush1.msra.mxu0 %v1415
    %1815 = vmatprep.subr.mxu0 0.0
    %1816 = vmatpush1.msra.mxu0 %v1416
    %1817 = vmatprep.subr.mxu0 0.0
    %1818 = vmatpush1.msra.mxu0 %v1417
    %1819 = vmatprep.mubr.f32.mxu0 %v1263
    %1820 = vmatmul.mubr.f32.gmra.mrb[0].mxu0 %v1262
    %v1821 = vpop.f32.mrb[0].mxu0
    %v1822 = vadd.f32 %v1737, %v1821
    %v1823 = vpop.f32.mrb[0].mxu0
    %1824 = vmatprep.mubr.f32.mxu0 %v1279
    %1825 = vmatmul.mubr.f32.gmra.mrb[0].mxu0 %v1278
    %v1826 = vpop.f32.mrb[0].mxu0
    %v1827 = vadd.f32 %v1742, %v1826
    %v1828 = vpop.f32.mrb[0].mxu0
    %1829 = vmatprep.mubr.f32.mxu0 %v1295
    %1830 = vmatmul.mubr.f32.gmra.mrb[0].mxu0 %v1294
    %v1831 = vpop.f32.mrb[0].mxu0
    %v1832 = vadd.f32 %v1747, %v1831
    %v1833 = vpop.f32.mrb[0].mxu0
    %1834 = vmatprep.mubr.f32.mxu0 %v1311
    %1835 = vmatmul.mubr.f32.gmra.mrb[0].mxu0 %v1310
    %v1836 = vpop.f32.mrb[0].mxu0
    %v1837 = vadd.f32 %v1752, %v1836
    %v1838 = vpop.f32.mrb[0].mxu0
    %1839 = vdwg.mxu0
    %1840 = vmatprep.subr.mxu0 0.0
    %1841 = vmatpush1.msra.mxu0 %v1418
    %1842 = vmatprep.subr.mxu0 0.0
    %1843 = vmatpush1.msra.mxu0 %v1419
    %1844 = vmatprep.subr.mxu0 0.0
    %1845 = vmatpush1.msra.mxu0 %v1420
    %1846 = vmatprep.subr.mxu0 0.0
    %1847 = vmatpush1.msra.mxu0 %v1421
    %1848 = vmatprep.subr.mxu0 0.0
    %1849 = vmatpush1.msra.mxu0 %v1422
    %1850 = vmatprep.subr.mxu0 0.0
    %1851 = vmatpush1.msra.mxu0 %v1423
    %1852 = vmatprep.subr.mxu0 0.0
    %1853 = vmatpush1.msra.mxu0 %v1424
    %1854 = vmatprep.subr.mxu0 0.0
    %1855 = vmatpush1.msra.mxu0 %v1425
    %1856 = vmatprep.subr.mxu0 0.0
    %1857 = vmatpush1.msra.mxu0 %v1426
    %1858 = vmatprep.subr.mxu0 0.0
    %1859 = vmatpush1.msra.mxu0 %v1427
    %1860 = vmatprep.subr.mxu0 0.0
    %1861 = vmatpush1.msra.mxu0 %v1428
    %1862 = vmatprep.subr.mxu0 0.0
    %1863 = vmatpush1.msra.mxu0 %v1429
    %1864 = vmatprep.subr.mxu0 0.0
    %1865 = vmatpush1.msra.mxu0 %v1430
    %1866 = vmatprep.subr.mxu0 0.0
    %1867 = vmatpush1.msra.mxu0 %v1431
    %1868 = vmatprep.subr.mxu0 0.0
    %1869 = vmatpush1.msra.mxu0 %v1432
    %1870 = vmatprep.subr.mxu0 0.0
    %1871 = vmatpush1.msra.mxu0 %v1433
    %1872 = vmatprep.subr.mxu0 0.0
    %1873 = vmatpush1.msra.mxu0 %v1434
    %1874 = vmatprep.subr.mxu0 0.0
    %1875 = vmatpush1.msra.mxu0 %v1435
    %1876 = vmatprep.subr.mxu0 0.0
    %1877 = vmatpush1.msra.mxu0 %v1436
    %1878 = vmatprep.subr.mxu0 0.0
    %1879 = vmatpush1.msra.mxu0 %v1437
    %1880 = vmatprep.subr.mxu0 0.0
    %1881 = vmatpush1.msra.mxu0 %v1438
    %1882 = vmatprep.subr.mxu0 0.0
    %1883 = vmatpush1.msra.mxu0 %v1439
    %1884 = vmatprep.subr.mxu0 0.0
    %1885 = vmatpush1.msra.mxu0 %v1440
    %1886 = vmatprep.subr.mxu0 0.0
    %1887 = vmatpush1.msra.mxu0 %v1441
    %1888 = vmatprep.subr.mxu0 0.0
    %1889 = vmatpush1.msra.mxu0 %v1442
    %1890 = vmatprep.subr.mxu0 0.0
    %1891 = vmatpush1.msra.mxu0 %v1443
    %1892 = vmatprep.subr.mxu0 0.0
    %1893 = vmatpush1.msra.mxu0 %v1444
    %1894 = vmatprep.subr.mxu0 0.0
    %1895 = vmatpush1.msra.mxu0 %v1445
    %1896 = vmatprep.subr.mxu0 0.0
    %1897 = vmatpush1.msra.mxu0 %v1446
    %1898 = vmatprep.subr.mxu0 0.0
    %1899 = vmatpush1.msra.mxu0 %v1447
    %1900 = vmatprep.subr.mxu0 0.0
    %1901 = vmatpush1.msra.mxu0 %v1448
    %1902 = vmatprep.subr.mxu0 0.0
    %1903 = vmatpush1.msra.mxu0 %v1449
    %1904 = vmatprep.mubr.f32.mxu0 %v1265
    %1905 = vmatmul.mubr.f32.gmra.mrb[0].mxu0 %v1264
    %v1906 = vpop.f32.mrb[0].mxu0
    %v1907 = vadd.f32 %v1822, %v1906
    %v1908 = vpop.f32.mrb[0].mxu0
    %1909 = vmatprep.mubr.f32.mxu0 %v1281
    %1910 = vmatmul.mubr.f32.gmra.mrb[0].mxu0 %v1280
    %v1911 = vpop.f32.mrb[0].mxu0
    %v1912 = vadd.f32 %v1827, %v1911
    %v1913 = vpop.f32.mrb[0].mxu0
    %1914 = vmatprep.mubr.f32.mxu0 %v1297
    %1915 = vmatmul.mubr.f32.gmra.mrb[0].mxu0 %v1296
    %v1916 = vpop.f32.mrb[0].mxu0
    %v1917 = vadd.f32 %v1832, %v1916
    %v1918 = vpop.f32.mrb[0].mxu0
    %1919 = vmatprep.mubr.f32.mxu0 %v1313
    %1920 = vmatmul.mubr.f32.gmra.mrb[0].mxu0 %v1312
    %v1921 = vpop.f32.mrb[0].mxu0
    %v1922 = vadd.f32 %v1837, %v1921
    %v1923 = vpop.f32.mrb[0].mxu0
    %1924 = vdwg.mxu0
    %1925 = vmatprep.subr.mxu0 0.0
    %1926 = vmatpush1.msra.mxu0 %v1450
    %1927 = vmatprep.subr.mxu0 0.0
    %1928 = vmatpush1.msra.mxu0 %v1451
    %1929 = vmatprep.subr.mxu0 0.0
    %1930 = vmatpush1.msra.mxu0 %v1452
    %1931 = vmatprep.subr.mxu0 0.0
    %1932 = vmatpush1.msra.mxu0 %v1453
    %1933 = vmatprep.subr.mxu0 0.0
    %1934 = vmatpush1.msra.mxu0 %v1454
    %1935 = vmatprep.subr.mxu0 0.0
    %1936 = vmatpush1.msra.mxu0 %v1455
    %1937 = vmatprep.subr.mxu0 0.0
    %1938 = vmatpush1.msra.mxu0 %v1456
    %1939 = vmatprep.subr.mxu0 0.0
    %1940 = vmatpush1.msra.mxu0 %v1457
    %1941 = vmatprep.subr.mxu0 0.0
    %1942 = vmatpush1.msra.mxu0 %v1458
    %1943 = vmatprep.subr.mxu0 0.0
    %1944 = vmatpush1.msra.mxu0 %v1459
    %1945 = vmatprep.subr.mxu0 0.0
    %1946 = vmatpush1.msra.mxu0 %v1460
    %1947 = vmatprep.subr.mxu0 0.0
    %1948 = vmatpush1.msra.mxu0 %v1461
    %1949 = vmatprep.subr.mxu0 0.0
    %1950 = vmatpush1.msra.mxu0 %v1462
    %1951 = vmatprep.subr.mxu0 0.0
    %1952 = vmatpush1.msra.mxu0 %v1463
    %1953 = vmatprep.subr.mxu0 0.0
    %1954 = vmatpush1.msra.mxu0 %v1464
    %1955 = vmatprep.subr.mxu0 0.0
    %1956 = vmatpush1.msra.mxu0 %v1465
    %1957 = vmatprep.subr.mxu0 0.0
    %1958 = vmatpush1.msra.mxu0 %v1466
    %1959 = vmatprep.subr.mxu0 0.0
    %1960 = vmatpush1.msra.mxu0 %v1467
    %1961 = vmatprep.subr.mxu0 0.0
    %1962 = vmatpush1.msra.mxu0 %v1468
    %1963 = vmatprep.subr.mxu0 0.0
    %1964 = vmatpush1.msra.mxu0 %v1469
    %1965 = vmatprep.subr.mxu0 0.0
    %1966 = vmatpush1.msra.mxu0 %v1470
    %1967 = vmatprep.subr.mxu0 0.0
    %1968 = vmatpush1.msra.mxu0 %v1471
    %1969 = vmatprep.subr.mxu0 0.0
    %1970 = vmatpush1.msra.mxu0 %v1472
    %1971 = vmatprep.subr.mxu0 0.0
    %1972 = vmatpush1.msra.mxu0 %v1473
    %1973 = vmatprep.subr.mxu0 0.0
    %1974 = vmatpush1.msra.mxu0 %v1474
    %1975 = vmatprep.subr.mxu0 0.0
    %1976 = vmatpush1.msra.mxu0 %v1475
    %1977 = vmatprep.subr.mxu0 0.0
    %1978 = vmatpush1.msra.mxu0 %v1476
    %1979 = vmatprep.subr.mxu0 0.0
    %1980 = vmatpush1.msra.mxu0 %v1477
    %1981 = vmatprep.subr.mxu0 0.0
    %1982 = vmatpush1.msra.mxu0 %v1478
    %1983 = vmatprep.subr.mxu0 0.0
    %1984 = vmatpush1.msra.mxu0 %v1479
    %1985 = vmatprep.subr.mxu0 0.0
    %1986 = vmatpush1.msra.mxu0 %v1480
    %1987 = vmatprep.subr.mxu0 0.0
    %1988 = vmatpush1.msra.mxu0 %v1481
    %1989 = vmatprep.mubr.f32.mxu0 %v1267
    %1990 = vmatmul.mubr.f32.gmra.mrb[0].mxu0 %v1266
    %v1991 = vpop.f32.mrb[0].mxu0
    %v1992 = vadd.f32 %v1907, %v1991
    %v1993 = vpop.f32.mrb[0].mxu0
    %1994 = vmatprep.mubr.f32.mxu0 %v1283
    %1995 = vmatmul.mubr.f32.gmra.mrb[0].mxu0 %v1282
    %v1996 = vpop.f32.mrb[0].mxu0
    %v1997 = vadd.f32 %v1912, %v1996
    %v1998 = vpop.f32.mrb[0].mxu0
    %1999 = vmatprep.mubr.f32.mxu0 %v1299
    %2000 = vmatmul.mubr.f32.gmra.mrb[0].mxu0 %v1298
    %v2001 = vpop.f32.mrb[0].mxu0
    %v2002 = vadd.f32 %v1917, %v2001
    %v2003 = vpop.f32.mrb[0].mxu0
    %2004 = vmatprep.mubr.f32.mxu0 %v1315
    %2005 = vmatmul.mubr.f32.gmra.mrb[0].mxu0 %v1314
    %v2006 = vpop.f32.mrb[0].mxu0
    %v2007 = vadd.f32 %v1922, %v2006
    %v2008 = vpop.f32.mrb[0].mxu0
    %2009 = vdwg.mxu0
    %2010 = vmatprep.subr.mxu0 0.0
    %2011 = vmatpush1.msra.mxu0 %v1482
    %2012 = vmatprep.subr.mxu0 0.0
    %2013 = vmatpush1.msra.mxu0 %v1483
    %2014 = vmatprep.subr.mxu0 0.0
    %2015 = vmatpush1.msra.mxu0 %v1484
    %2016 = vmatprep.subr.mxu0 0.0
    %2017 = vmatpush1.msra.mxu0 %v1485
    %2018 = vmatprep.subr.mxu0 0.0
    %2019 = vmatpush1.msra.mxu0 %v1486
    %2020 = vmatprep.subr.mxu0 0.0
    %2021 = vmatpush1.msra.mxu0 %v1487
    %2022 = vmatprep.subr.mxu0 0.0
    %2023 = vmatpush1.msra.mxu0 %v1488
    %2024 = vmatprep.subr.mxu0 0.0
    %2025 = vmatpush1.msra.mxu0 %v1489
    %2026 = vmatprep.subr.mxu0 0.0
    %2027 = vmatpush1.msra.mxu0 %v1490
    %2028 = vmatprep.subr.mxu0 0.0
    %2029 = vmatpush1.msra.mxu0 %v1491
    %2030 = vmatprep.subr.mxu0 0.0
    %2031 = vmatpush1.msra.mxu0 %v1492
    %2032 = vmatprep.subr.mxu0 0.0
    %2033 = vmatpush1.msra.mxu0 %v1493
    %2034 = vmatprep.subr.mxu0 0.0
    %2035 = vmatpush1.msra.mxu0 %v1494
    %2036 = vmatprep.subr.mxu0 0.0
    %2037 = vmatpush1.msra.mxu0 %v1495
    %2038 = vmatprep.subr.mxu0 0.0
    %2039 = vmatpush1.msra.mxu0 %v1496
    %2040 = vmatprep.subr.mxu0 0.0
    %2041 = vmatpush1.msra.mxu0 %v1497
    %2042 = vmatprep.subr.mxu0 0.0
    %2043 = vmatpush1.msra.mxu0 %v1498
    %2044 = vmatprep.subr.mxu0 0.0
    %2045 = vmatpush1.msra.mxu0 %v1499
    %2046 = vmatprep.subr.mxu0 0.0
    %2047 = vmatpush1.msra.mxu0 %v1500
    %2048 = vmatprep.subr.mxu0 0.0
    %2049 = vmatpush1.msra.mxu0 %v1501
    %2050 = vmatprep.subr.mxu0 0.0
    %2051 = vmatpush1.msra.mxu0 %v1502
    %2052 = vmatprep.subr.mxu0 0.0
    %2053 = vmatpush1.msra.mxu0 %v1503
    %2054 = vmatprep.subr.mxu0 0.0
    %2055 = vmatpush1.msra.mxu0 %v1504
    %2056 = vmatprep.subr.mxu0 0.0
    %2057 = vmatpush1.msra.mxu0 %v1505
    %2058 = vmatprep.subr.mxu0 0.0
    %2059 = vmatpush1.msra.mxu0 %v1506
    %2060 = vmatprep.subr.mxu0 0.0
    %2061 = vmatpush1.msra.mxu0 %v1507
    %2062 = vmatprep.subr.mxu0 0.0
    %2063 = vmatpush1.msra.mxu0 %v1508
    %2064 = vmatprep.subr.mxu0 0.0
    %2065 = vmatpush1.msra.mxu0 %v1509
    %2066 = vmatprep.subr.mxu0 0.0
    %2067 = vmatpush1.msra.mxu0 %v1510
    %2068 = vmatprep.subr.mxu0 0.0
    %2069 = vmatpush1.msra.mxu0 %v1511
    %2070 = vmatprep.subr.mxu0 0.0
    %2071 = vmatpush1.msra.mxu0 %v1512
    %2072 = vmatprep.subr.mxu0 0.0
    %2073 = vmatpush1.msra.mxu0 %v1513
    %2074 = vmatprep.mubr.f32.mxu0 %v1269
    %2075 = vmatmul.mubr.f32.gmra.mrb[0].mxu0 %v1268
    %v2076 = vpop.f32.mrb[0].mxu0
    %v2077 = vadd.f32 %v1992, %v2076
    %v2078 = vpop.f32.mrb[0].mxu0
    %2079 = vmatprep.mubr.f32.mxu0 %v1285
    %2080 = vmatmul.mubr.f32.gmra.mrb[0].mxu0 %v1284
    %v2081 = vpop.f32.mrb[0].mxu0
    %v2082 = vadd.f32 %v1997, %v2081
    %v2083 = vpop.f32.mrb[0].mxu0
    %2084 = vmatprep.mubr.f32.mxu0 %v1301
    %2085 = vmatmul.mubr.f32.gmra.mrb[0].mxu0 %v1300
    %v2086 = vpop.f32.mrb[0].mxu0
    %v2087 = vadd.f32 %v2002, %v2086
    %v2088 = vpop.f32.mrb[0].mxu0
    %2089 = vmatprep.mubr.f32.mxu0 %v1317
    %2090 = vmatmul.mubr.f32.gmra.mrb[0].mxu0 %v1316
    %v2091 = vpop.f32.mrb[0].mxu0
    %v2092 = vadd.f32 %v2007, %v2091
    %v2093 = vpop.f32.mrb[0].mxu0
    %2094 = vdwg.mxu0
    %2095 = vmatprep.subr.mxu0 0.0
    %2096 = vmatpush1.msra.mxu0 %v1514
    %2097 = vmatprep.subr.mxu0 0.0
    %2098 = vmatpush1.msra.mxu0 %v1515
    %2099 = vmatprep.subr.mxu0 0.0
    %2100 = vmatpush1.msra.mxu0 %v1516
    %2101 = vmatprep.subr.mxu0 0.0
    %2102 = vmatpush1.msra.mxu0 %v1517
    %2103 = vmatprep.subr.mxu0 0.0
    %2104 = vmatpush1.msra.mxu0 %v1518
    %2105 = vmatprep.subr.mxu0 0.0
    %2106 = vmatpush1.msra.mxu0 %v1519
    %2107 = vmatprep.subr.mxu0 0.0
    %2108 = vmatpush1.msra.mxu0 %v1520
    %2109 = vmatprep.subr.mxu0 0.0
    %2110 = vmatpush1.msra.mxu0 %v1521
    %2111 = vmatprep.subr.mxu0 0.0
    %2112 = vmatpush1.msra.mxu0 %v1522
    %2113 = vmatprep.subr.mxu0 0.0
    %2114 = vmatpush1.msra.mxu0 %v1523
    %2115 = vmatprep.subr.mxu0 0.0
    %2116 = vmatpush1.msra.mxu0 %v1524
    %2117 = vmatprep.subr.mxu0 0.0
    %2118 = vmatpush1.msra.mxu0 %v1525
    %2119 = vmatprep.subr.mxu0 0.0
    %2120 = vmatpush1.msra.mxu0 %v1526
    %2121 = vmatprep.subr.mxu0 0.0
    %2122 = vmatpush1.msra.mxu0 %v1527
    %2123 = vmatprep.subr.mxu0 0.0
    %2124 = vmatpush1.msra.mxu0 %v1528
    %2125 = vmatprep.subr.mxu0 0.0
    %2126 = vmatpush1.msra.mxu0 %v1529
    %2127 = vmatprep.subr.mxu0 0.0
    %2128 = vmatpush1.msra.mxu0 %v1530
    %2129 = vmatprep.subr.mxu0 0.0
    %2130 = vmatpush1.msra.mxu0 %v1531
    %2131 = vmatprep.subr.mxu0 0.0
    %2132 = vmatpush1.msra.mxu0 %v1532
    %2133 = vmatprep.subr.mxu0 0.0
    %2134 = vmatpush1.msra.mxu0 %v1533
    %2135 = vmatprep.subr.mxu0 0.0
    %2136 = vmatpush1.msra.mxu0 %v1534
    %2137 = vmatprep.subr.mxu0 0.0
    %2138 = vmatpush1.msra.mxu0 %v1535
    %2139 = vmatprep.subr.mxu0 0.0
    %2140 = vmatpush1.msra.mxu0 %v1536
    %2141 = vmatprep.subr.mxu0 0.0
    %2142 = vmatpush1.msra.mxu0 %v1537
    %2143 = vmatprep.subr.mxu0 0.0
    %2144 = vmatpush1.msra.mxu0 %v1538
    %2145 = vmatprep.subr.mxu0 0.0
    %2146 = vmatpush1.msra.mxu0 %v1539
    %2147 = vmatprep.subr.mxu0 0.0
    %2148 = vmatpush1.msra.mxu0 %v1540
    %2149 = vmatprep.subr.mxu0 0.0
    %2150 = vmatpush1.msra.mxu0 %v1541
    %2151 = vmatprep.subr.mxu0 0.0
    %2152 = vmatpush1.msra.mxu0 %v1542
    %2153 = vmatprep.subr.mxu0 0.0
    %2154 = vmatpush1.msra.mxu0 %v1543
    %2155 = vmatprep.subr.mxu0 0.0
    %2156 = vmatpush1.msra.mxu0 %v1544
    %2157 = vmatprep.subr.mxu0 0.0
    %2158 = vmatpush1.msra.mxu0 %v1545
    %2159 = vmatprep.mubr.f32.mxu0 %v1271
    %2160 = vmatmul.mubr.f32.gmra.mrb[0].mxu0 %v1270
    %v2161 = vpop.f32.mrb[0].mxu0
    %v2162 = vadd.f32 %v2077, %v2161
    %v2163 = vpop.f32.mrb[0].mxu0
    %2164 = vmatprep.mubr.f32.mxu0 %v1287
    %2165 = vmatmul.mubr.f32.gmra.mrb[0].mxu0 %v1286
    %v2166 = vpop.f32.mrb[0].mxu0
    %v2167 = vadd.f32 %v2082, %v2166
    %v2168 = vpop.f32.mrb[0].mxu0
    %2169 = vmatprep.mubr.f32.mxu0 %v1303
    %2170 = vmatmul.mubr.f32.gmra.mrb[0].mxu0 %v1302
    %v2171 = vpop.f32.mrb[0].mxu0
    %v2172 = vadd.f32 %v2087, %v2171
    %v2173 = vpop.f32.mrb[0].mxu0
    %2174 = vmatprep.mubr.f32.mxu0 %v1319
    %2175 = vmatmul.mubr.f32.gmra.mrb[0].mxu0 %v1318
    %v2176 = vpop.f32.mrb[0].mxu0
    %v2177 = vadd.f32 %v2092, %v2176
    %v2178 = vpop.f32.mrb[0].mxu0
    %2179 = vdwg.mxu0
    %2180 = vmatprep.subr.mxu0 0.0
    %2181 = vmatpush1.msra.mxu0 %v1546
    %2182 = vmatprep.subr.mxu0 0.0
    %2183 = vmatpush1.msra.mxu0 %v1547
    %2184 = vmatprep.subr.mxu0 0.0
    %2185 = vmatpush1.msra.mxu0 %v1548
    %2186 = vmatprep.subr.mxu0 0.0
    %2187 = vmatpush1.msra.mxu0 %v1549
    %2188 = vmatprep.subr.mxu0 0.0
    %2189 = vmatpush1.msra.mxu0 %v1550
    %2190 = vmatprep.subr.mxu0 0.0
    %2191 = vmatpush1.msra.mxu0 %v1551
    %2192 = vmatprep.subr.mxu0 0.0
    %2193 = vmatpush1.msra.mxu0 %v1552
    %2194 = vmatprep.subr.mxu0 0.0
    %2195 = vmatpush1.msra.mxu0 %v1553
    %2196 = vmatprep.subr.mxu0 0.0
    %2197 = vmatpush1.msra.mxu0 %v1554
    %2198 = vmatprep.subr.mxu0 0.0
    %2199 = vmatpush1.msra.mxu0 %v1555
    %2200 = vmatprep.subr.mxu0 0.0
    %2201 = vmatpush1.msra.mxu0 %v1556
    %2202 = vmatprep.subr.mxu0 0.0
    %2203 = vmatpush1.msra.mxu0 %v1557
    %2204 = vmatprep.subr.mxu0 0.0
    %2205 = vmatpush1.msra.mxu0 %v1558
    %2206 = vmatprep.subr.mxu0 0.0
    %2207 = vmatpush1.msra.mxu0 %v1559
    %2208 = vmatprep.subr.mxu0 0.0
    %2209 = vmatpush1.msra.mxu0 %v1560
    %2210 = vmatprep.subr.mxu0 0.0
    %2211 = vmatpush1.msra.mxu0 %v1561
    %2212 = vmatprep.subr.mxu0 0.0
    %2213 = vmatpush1.msra.mxu0 %v1562
    %2214 = vmatprep.subr.mxu0 0.0
    %2215 = vmatpush1.msra.mxu0 %v1563
    %2216 = vmatprep.subr.mxu0 0.0
    %2217 = vmatpush1.msra.mxu0 %v1564
    %2218 = vmatprep.subr.mxu0 0.0
    %2219 = vmatpush1.msra.mxu0 %v1565
    %2220 = vmatprep.subr.mxu0 0.0
    %2221 = vmatpush1.msra.mxu0 %v1566
    %2222 = vmatprep.subr.mxu0 0.0
    %2223 = vmatpush1.msra.mxu0 %v1567
    %2224 = vmatprep.subr.mxu0 0.0
    %2225 = vmatpush1.msra.mxu0 %v1568
    %2226 = vmatprep.subr.mxu0 0.0
    %2227 = vmatpush1.msra.mxu0 %v1569
    %2228 = vmatprep.subr.mxu0 0.0
    %2229 = vmatpush1.msra.mxu0 %v1570
    %2230 = vmatprep.subr.mxu0 0.0
    %2231 = vmatpush1.msra.mxu0 %v1571
    %2232 = vmatprep.subr.mxu0 0.0
    %2233 = vmatpush1.msra.mxu0 %v1572
    %2234 = vmatprep.subr.mxu0 0.0
    %2235 = vmatpush1.msra.mxu0 %v1573
    %2236 = vmatprep.subr.mxu0 0.0
    %2237 = vmatpush1.msra.mxu0 %v1574
    %2238 = vmatprep.subr.mxu0 0.0
    %2239 = vmatpush1.msra.mxu0 %v1575
    %2240 = vmatprep.subr.mxu0 0.0
    %2241 = vmatpush1.msra.mxu0 %v1576
    %2242 = vmatprep.subr.mxu0 0.0
    %2243 = vmatpush1.msra.mxu0 %v1577
    %2244 = vmatprep.mubr.f32.mxu0 %v1273
    %2245 = vmatmul.mubr.f32.gmra.mrb[0].mxu0 %v1272
    %v2246 = vpop.f32.mrb[0].mxu0
    %v2247 = vadd.f32 %v2162, %v2246
    %v2248 = vpop.f32.mrb[0].mxu0
    %2249 = vmatprep.mubr.f32.mxu0 %v1289
    %2250 = vmatmul.mubr.f32.gmra.mrb[0].mxu0 %v1288
    %v2251 = vpop.f32.mrb[0].mxu0
    %v2252 = vadd.f32 %v2167, %v2251
    %v2253 = vpop.f32.mrb[0].mxu0
    %2254 = vmatprep.mubr.f32.mxu0 %v1305
    %2255 = vmatmul.mubr.f32.gmra.mrb[0].mxu0 %v1304
    %v2256 = vpop.f32.mrb[0].mxu0
    %v2257 = vadd.f32 %v2172, %v2256
    %v2258 = vpop.f32.mrb[0].mxu0
    %2259 = vmatprep.mubr.f32.mxu0 %v1321
    %2260 = vmatmul.mubr.f32.gmra.mrb[0].mxu0 %v1320
    %v2261 = vpop.f32.mrb[0].mxu0
    %v2262 = vadd.f32 %v2177, %v2261
    %v2263 = vpop.f32.mrb[0].mxu0
    %2264 = vdwg.mxu0
    %v2265 = vmax.f32 %v2247, 0.0
    %v2266 = vmax.f32 %v2252, 0.0
    %v2267 = vmax.f32 %v2257, 0.0
    %v2268 = vmax.f32 %v2262, 0.0
    %2269 = vst [vmem:[#allocation4] sm:$0xff] %v2265
    %2270 = vst [vmem:[#allocation4 + $0x8] sm:$0xff] %v2266
    %2271 = vst [vmem:[#allocation4 + $0x10] sm:$0xff] %v2267
    %2272 = vst [vmem:[#allocation4 + $0x18] sm:$0xff] %v2268
    %2273 = vst [vmem:[#allocation5] sm:$0xff] 0.0
    %2274 = vst [vmem:[#allocation5 + $0x8] sm:$0xff] 0.0
    %2275 = vst [vmem:[#allocation5 + $0x10] sm:$0xff] 0.0
    %2276 = vst [vmem:[#allocation5 + $0x18] sm:$0xff] 0.0
    %2277 = vst [vmem:[#allocation5 + $0x20] sm:$0xff] 0.0
    %2278 = vst [vmem:[#allocation5 + $0x28] sm:$0xff] 0.0
    %2279 = vst [vmem:[#allocation5 + $0x30] sm:$0xff] 0.0
    %2280 = vst [vmem:[#allocation5 + $0x38] sm:$0xff] 0.0
    %2281 = vst [vmem:[#allocation5 + $0x40] sm:$0xff] 0.0
    %v2282 = vld [vmem:[#allocation4] sm:$0x3]
    %2283 = vst [vmem:[#allocation5 + $0x20] sm:$0x3] %v2282
    %v2284 = vld [vmem:[#allocation4 + $0x2] sm:$0x3]
    %2285 = vst [vmem:[#allocation5 + $0x28] sm:$0x3] %v2284
    %v2286 = vld [vmem:[#allocation4 + $0x8] sm:$0x3]
    %2287 = vst [vmem:[#allocation5 + $0x38] sm:$0x3] %v2286
    %v2288 = vld [vmem:[#allocation4 + $0xa] sm:$0x3]
    %2289 = vst [vmem:[#allocation5 + $0x40] sm:$0x3] %v2288
    %v2290 = vld [vmem:[#allocation4 + $0x2] sm:$0x3]
    %v2292 = vrot.slane %v2290, 6
    %2294 = vst [vmem:[#allocation5 + $0x18] sm:$0xc] %v2292
    %v2295 = vld [vmem:[#allocation4 + $0x4] sm:$0x3]
    %v2297 = vrot.slane %v2295, 6
    %2299 = vst [vmem:[#allocation5 + $0x20] sm:$0xc] %v2297
    %v2300 = vld [vmem:[#allocation4 + $0x6] sm:$0x3]
    %v2302 = vrot.slane %v2300, 6
    %2304 = vst [vmem:[#allocation5 + $0x28] sm:$0xc] %v2302
    %v2305 = vld [vmem:[#allocation4 + $0xa] sm:$0x3]
    %v2307 = vrot.slane %v2305, 6
    %2309 = vst [vmem:[#allocation5 + $0x30] sm:$0xc] %v2307
    %v2310 = vld [vmem:[#allocation4 + $0xc] sm:$0x3]
    %v2312 = vrot.slane %v2310, 6
    %2314 = vst [vmem:[#allocation5 + $0x38] sm:$0xc] %v2312
    %v2315 = vld [vmem:[#allocation4 + $0xe] sm:$0x3]
    %v2317 = vrot.slane %v2315, 6
    %2319 = vst [vmem:[#allocation5 + $0x40] sm:$0xc] %v2317
    %v2320 = vld [vmem:[#allocation4 + $0x8] sm:$0x3]
    %v2322 = vrot.slane %v2320, 4
    %2324 = vst [vmem:[#allocation5 + $0x8] sm:$0x30] %v2322
    %v2325 = vld [vmem:[#allocation4 + $0xa] sm:$0x3]
    %v2327 = vrot.slane %v2325, 4
    %2329 = vst [vmem:[#allocation5 + $0x10] sm:$0x30] %v2327
    %v2330 = vld [vmem:[#allocation4 + $0x10] sm:$0x3]
    %v2332 = vrot.slane %v2330, 4
    %2334 = vst [vmem:[#allocation5 + $0x20] sm:$0x30] %v2332
    %v2335 = vld [vmem:[#allocation4 + $0x12] sm:$0x3]
    %v2337 = vrot.slane %v2335, 4
    %2339 = vst [vmem:[#allocation5 + $0x28] sm:$0x30] %v2337
    %v2340 = vld [vmem:[#allocation4 + $0x18] sm:$0x3]
    %v2342 = vrot.slane %v2340, 4
    %2344 = vst [vmem:[#allocation5 + $0x38] sm:$0x30] %v2342
    %v2345 = vld [vmem:[#allocation4 + $0x1a] sm:$0x3]
    %v2347 = vrot.slane %v2345, 4
    %2349 = vst [vmem:[#allocation5 + $0x40] sm:$0x30] %v2347
    %v2350 = vld [vmem:[#allocation4 + $0xa] sm:$0x3]
    %v2352 = vrot.slane %v2350, 2
    %2354 = vst [vmem:[#allocation5] sm:$0xc0] %v2352
    %v2355 = vld [vmem:[#allocation4 + $0xc] sm:$0x3]
    %v2357 = vrot.slane %v2355, 2
    %2359 = vst [vmem:[#allocation5 + $0x8] sm:$0xc0] %v2357
    %v2360 = vld [vmem:[#allocation4 + $0xe] sm:$0x3]
    %v2362 = vrot.slane %v2360, 2
    %2364 = vst [vmem:[#allocation5 + $0x10] sm:$0xc0] %v2362
    %v2365 = vld [vmem:[#allocation4 + $0x12] sm:$0x3]
    %v2367 = vrot.slane %v2365, 2
    %2369 = vst [vmem:[#allocation5 + $0x18] sm:$0xc0] %v2367
    %v2370 = vld [vmem:[#allocation4 + $0x14] sm:$0x3]
    %v2372 = vrot.slane %v2370, 2
    %2374 = vst [vmem:[#allocation5 + $0x20] sm:$0xc0] %v2372
    %v2375 = vld [vmem:[#allocation4 + $0x16] sm:$0x3]
    %v2377 = vrot.slane %v2375, 2
    %2379 = vst [vmem:[#allocation5 + $0x28] sm:$0xc0] %v2377
    %v2380 = vld [vmem:[#allocation4 + $0x1a] sm:$0x3]
    %v2382 = vrot.slane %v2380, 2
    %2384 = vst [vmem:[#allocation5 + $0x30] sm:$0xc0] %v2382
    %v2385 = vld [vmem:[#allocation4 + $0x1c] sm:$0x3]
    %v2387 = vrot.slane %v2385, 2
    %2389 = vst [vmem:[#allocation5 + $0x38] sm:$0xc0] %v2387
    %v2390 = vld [vmem:[#allocation4 + $0x1e] sm:$0x3]
    %v2392 = vrot.slane %v2390, 2
    %2394 = vst [vmem:[#allocation5 + $0x40] sm:$0xc0] %v2392
    %v2395 = vld [vmem:[#allocation5] sm:$0xff]
    %v2396 = vld [vmem:[#allocation5 + $0x8] sm:$0xff]
    %v2397 = vld [vmem:[#allocation5 + $0x10] sm:$0xff]
    %v2398 = vld [vmem:[#allocation5 + $0x18] sm:$0xff]
    %v2399 = vld [vmem:[#allocation5 + $0x20] sm:$0xff]
    %v2400 = vld [vmem:[#allocation5 + $0x28] sm:$0xff]
    %v2401 = vld [vmem:[#allocation5 + $0x30] sm:$0xff]
    %v2402 = vld [vmem:[#allocation5 + $0x38] sm:$0xff]
    %v2403 = vld [vmem:[#allocation5 + $0x40] sm:$0xff]
    %v2404 = vld [vmem:[%s5] sm:$0xff]
    %v2405 = vld [vmem:[%s5 + $0x8] sm:$0xff]
    %v2406 = vld [vmem:[%s5 + $0x10] sm:$0xff]
    %v2407 = vld [vmem:[%s5 + $0x18] sm:$0xff]
    %v2408 = vld [vmem:[%s5 + $0x20] sm:$0xff]
    %v2409 = vld [vmem:[%s5 + $0x28] sm:$0xff]
    %v2410 = vld [vmem:[%s5 + $0x30] sm:$0xff]
    %v2411 = vld [vmem:[%s5 + $0x38] sm:$0xff]
    %v2412 = vld [vmem:[%s5 + $0x40] sm:$0xff]
    %v2413 = vld [vmem:[%s5 + $0x48] sm:$0xff]
    %v2414 = vld [vmem:[%s5 + $0x50] sm:$0xff]
    %v2415 = vld [vmem:[%s5 + $0x58] sm:$0xff]
    %v2416 = vld [vmem:[%s5 + $0x60] sm:$0xff]
    %v2417 = vld [vmem:[%s5 + $0x68] sm:$0xff]
    %v2418 = vld [vmem:[%s5 + $0x70] sm:$0xff]
    %v2419 = vld [vmem:[%s5 + $0x78] sm:$0xff]
    %v2420 = vld [vmem:[%s5 + $0x80] sm:$0xff]
    %v2421 = vld [vmem:[%s5 + $0x88] sm:$0xff]
    %v2422 = vld [vmem:[%s5 + $0x90] sm:$0xff]
    %v2423 = vld [vmem:[%s5 + $0x98] sm:$0xff]
    %v2424 = vld [vmem:[%s5 + $0xa0] sm:$0xff]
    %v2425 = vld [vmem:[%s5 + $0xa8] sm:$0xff]
    %v2426 = vld [vmem:[%s5 + $0xb0] sm:$0xff]
    %v2427 = vld [vmem:[%s5 + $0xb8] sm:$0xff]
    %v2428 = vld [vmem:[%s5 + $0xc0] sm:$0xff]
    %v2429 = vld [vmem:[%s5 + $0xc8] sm:$0xff]
    %v2430 = vld [vmem:[%s5 + $0xd0] sm:$0xff]
    %v2431 = vld [vmem:[%s5 + $0xd8] sm:$0xff]
    %v2432 = vld [vmem:[%s5 + $0xe0] sm:$0xff]
    %v2433 = vld [vmem:[%s5 + $0xe8] sm:$0xff]
    %v2434 = vld [vmem:[%s5 + $0xf0] sm:$0xff]
    %v2435 = vld [vmem:[%s5 + $0xf8] sm:$0xff]
    %v2436 = vld [vmem:[%s5 + $0x100] sm:$0xff]
    %v2437 = vld [vmem:[%s5 + $0x108] sm:$0xff]
    %v2438 = vld [vmem:[%s5 + $0x110] sm:$0xff]
    %v2439 = vld [vmem:[%s5 + $0x118] sm:$0xff]
    %v2440 = vld [vmem:[%s5 + $0x120] sm:$0xff]
    %v2441 = vld [vmem:[%s5 + $0x128] sm:$0xff]
    %v2442 = vld [vmem:[%s5 + $0x130] sm:$0xff]
    %v2443 = vld [vmem:[%s5 + $0x138] sm:$0xff]
    %v2444 = vld [vmem:[%s5 + $0x140] sm:$0xff]
    %v2445 = vld [vmem:[%s5 + $0x148] sm:$0xff]
    %v2446 = vld [vmem:[%s5 + $0x150] sm:$0xff]
    %v2447 = vld [vmem:[%s5 + $0x158] sm:$0xff]
    %v2448 = vld [vmem:[%s5 + $0x160] sm:$0xff]
    %v2449 = vld [vmem:[%s5 + $0x168] sm:$0xff]
    %v2450 = vld [vmem:[%s5 + $0x170] sm:$0xff]
    %v2451 = vld [vmem:[%s5 + $0x178] sm:$0xff]
    %v2452 = vld [vmem:[%s5 + $0x180] sm:$0xff]
    %v2453 = vld [vmem:[%s5 + $0x188] sm:$0xff]
    %v2454 = vld [vmem:[%s5 + $0x190] sm:$0xff]
    %v2455 = vld [vmem:[%s5 + $0x198] sm:$0xff]
    %v2456 = vld [vmem:[%s5 + $0x1a0] sm:$0xff]
    %v2457 = vld [vmem:[%s5 + $0x1a8] sm:$0xff]
    %v2458 = vld [vmem:[%s5 + $0x1b0] sm:$0xff]
    %v2459 = vld [vmem:[%s5 + $0x1b8] sm:$0xff]
    %v2460 = vld [vmem:[%s5 + $0x1c0] sm:$0xff]
    %v2461 = vld [vmem:[%s5 + $0x1c8] sm:$0xff]
    %v2462 = vld [vmem:[%s5 + $0x1d0] sm:$0xff]
    %v2463 = vld [vmem:[%s5 + $0x1d8] sm:$0xff]
    %v2464 = vld [vmem:[%s5 + $0x1e0] sm:$0xff]
    %v2465 = vld [vmem:[%s5 + $0x1e8] sm:$0xff]
    %v2466 = vld [vmem:[%s5 + $0x1f0] sm:$0xff]
    %v2467 = vld [vmem:[%s5 + $0x1f8] sm:$0xff]
    %v2468 = vld [vmem:[%s5 + $0x200] sm:$0xff]
    %v2469 = vld [vmem:[%s5 + $0x208] sm:$0xff]
    %v2470 = vld [vmem:[%s5 + $0x210] sm:$0xff]
    %v2471 = vld [vmem:[%s5 + $0x218] sm:$0xff]
    %v2472 = vld [vmem:[%s5 + $0x220] sm:$0xff]
    %v2473 = vld [vmem:[%s5 + $0x228] sm:$0xff]
    %v2474 = vld [vmem:[%s5 + $0x230] sm:$0xff]
    %v2475 = vld [vmem:[%s5 + $0x238] sm:$0xff]
    %v2476 = vld [vmem:[%s5 + $0x240] sm:$0xff]
    %v2477 = vld [vmem:[%s5 + $0x248] sm:$0xff]
    %v2478 = vld [vmem:[%s5 + $0x250] sm:$0xff]
    %v2479 = vld [vmem:[%s5 + $0x258] sm:$0xff]
    %v2480 = vld [vmem:[%s5 + $0x260] sm:$0xff]
    %v2481 = vld [vmem:[%s5 + $0x268] sm:$0xff]
    %v2482 = vld [vmem:[%s5 + $0x270] sm:$0xff]
    %v2483 = vld [vmem:[%s5 + $0x278] sm:$0xff]
    %v2484 = vld [vmem:[%s5 + $0x280] sm:$0xff]
    %v2485 = vld [vmem:[%s5 + $0x288] sm:$0xff]
    %v2486 = vld [vmem:[%s5 + $0x290] sm:$0xff]
    %v2487 = vld [vmem:[%s5 + $0x298] sm:$0xff]
    %v2488 = vld [vmem:[%s5 + $0x2a0] sm:$0xff]
    %v2489 = vld [vmem:[%s5 + $0x2a8] sm:$0xff]
    %v2490 = vld [vmem:[%s5 + $0x2b0] sm:$0xff]
    %v2491 = vld [vmem:[%s5 + $0x2b8] sm:$0xff]
    %v2492 = vld [vmem:[%s5 + $0x2c0] sm:$0xff]
    %v2493 = vld [vmem:[%s5 + $0x2c8] sm:$0xff]
    %v2494 = vld [vmem:[%s5 + $0x2d0] sm:$0xff]
    %v2495 = vld [vmem:[%s5 + $0x2d8] sm:$0xff]
    %v2496 = vld [vmem:[%s5 + $0x2e0] sm:$0xff]
    %v2497 = vld [vmem:[%s5 + $0x2e8] sm:$0xff]
    %v2498 = vld [vmem:[%s5 + $0x2f0] sm:$0xff]
    %v2499 = vld [vmem:[%s5 + $0x2f8] sm:$0xff]
    %v2500 = vld [vmem:[%s5 + $0x300] sm:$0xff]
    %v2501 = vld [vmem:[%s5 + $0x308] sm:$0xff]
    %v2502 = vld [vmem:[%s5 + $0x310] sm:$0xff]
    %v2503 = vld [vmem:[%s5 + $0x318] sm:$0xff]
    %v2504 = vld [vmem:[%s5 + $0x320] sm:$0xff]
    %v2505 = vld [vmem:[%s5 + $0x328] sm:$0xff]
    %v2506 = vld [vmem:[%s5 + $0x330] sm:$0xff]
    %v2507 = vld [vmem:[%s5 + $0x338] sm:$0xff]
    %v2508 = vld [vmem:[%s5 + $0x340] sm:$0xff]
    %v2509 = vld [vmem:[%s5 + $0x348] sm:$0xff]
    %v2510 = vld [vmem:[%s5 + $0x350] sm:$0xff]
    %v2511 = vld [vmem:[%s5 + $0x358] sm:$0xff]
    %v2512 = vld [vmem:[%s5 + $0x360] sm:$0xff]
    %v2513 = vld [vmem:[%s5 + $0x368] sm:$0xff]
    %v2514 = vld [vmem:[%s5 + $0x370] sm:$0xff]
    %v2515 = vld [vmem:[%s5 + $0x378] sm:$0xff]
    %v2516 = vld [vmem:[%s5 + $0x380] sm:$0xff]
    %v2517 = vld [vmem:[%s5 + $0x388] sm:$0xff]
    %v2518 = vld [vmem:[%s5 + $0x390] sm:$0xff]
    %v2519 = vld [vmem:[%s5 + $0x398] sm:$0xff]
    %v2520 = vld [vmem:[%s5 + $0x3a0] sm:$0xff]
    %v2521 = vld [vmem:[%s5 + $0x3a8] sm:$0xff]
    %v2522 = vld [vmem:[%s5 + $0x3b0] sm:$0xff]
    %v2523 = vld [vmem:[%s5 + $0x3b8] sm:$0xff]
    %v2524 = vld [vmem:[%s5 + $0x3c0] sm:$0xff]
    %v2525 = vld [vmem:[%s5 + $0x3c8] sm:$0xff]
    %v2526 = vld [vmem:[%s5 + $0x3d0] sm:$0xff]
    %v2527 = vld [vmem:[%s5 + $0x3d8] sm:$0xff]
    %v2528 = vld [vmem:[%s5 + $0x3e0] sm:$0xff]
    %v2529 = vld [vmem:[%s5 + $0x3e8] sm:$0xff]
    %v2530 = vld [vmem:[%s5 + $0x3f0] sm:$0xff]
    %v2531 = vld [vmem:[%s5 + $0x3f8] sm:$0xff]
    %v2532 = vld [vmem:[%s5 + $0x400] sm:$0xff]
    %v2533 = vld [vmem:[%s5 + $0x408] sm:$0xff]
    %v2534 = vld [vmem:[%s5 + $0x410] sm:$0xff]
    %v2535 = vld [vmem:[%s5 + $0x418] sm:$0xff]
    %v2536 = vld [vmem:[%s5 + $0x420] sm:$0xff]
    %v2537 = vld [vmem:[%s5 + $0x428] sm:$0xff]
    %v2538 = vld [vmem:[%s5 + $0x430] sm:$0xff]
    %v2539 = vld [vmem:[%s5 + $0x438] sm:$0xff]
    %v2540 = vld [vmem:[%s5 + $0x440] sm:$0xff]
    %v2541 = vld [vmem:[%s5 + $0x448] sm:$0xff]
    %v2542 = vld [vmem:[%s5 + $0x450] sm:$0xff]
    %v2543 = vld [vmem:[%s5 + $0x458] sm:$0xff]
    %v2544 = vld [vmem:[%s5 + $0x460] sm:$0xff]
    %v2545 = vld [vmem:[%s5 + $0x468] sm:$0xff]
    %v2546 = vld [vmem:[%s5 + $0x470] sm:$0xff]
    %v2547 = vld [vmem:[%s5 + $0x478] sm:$0xff]
    %v2548 = vld [vmem:[%s6] sm:$0x1]
    %v2550 = vlaneseq
    %v2551 = vshrl.u32 %v2550, 7
    %v2552 = vsub.s32 0, %v2551
    %v2553 = vrot.slane %v2548, %v2552
    %2555 = vmatprep.subr.mxu0 0.0
    %2556 = vmatpush1.msra.mxu0 %v2404
    %2557 = vmatprep.subr.mxu0 0.0
    %2558 = vmatpush1.msra.mxu0 %v2405
    %2559 = vmatprep.subr.mxu0 0.0
    %2560 = vmatpush1.msra.mxu0 %v2406
    %2561 = vmatprep.subr.mxu0 0.0
    %2562 = vmatpush1.msra.mxu0 %v2407
    %2563 = vmatprep.subr.mxu0 0.0
    %2564 = vmatpush1.msra.mxu0 %v2408
    %2565 = vmatprep.subr.mxu0 0.0
    %2566 = vmatpush1.msra.mxu0 %v2409
    %2567 = vmatprep.subr.mxu0 0.0
    %2568 = vmatpush1.msra.mxu0 %v2410
    %2569 = vmatprep.subr.mxu0 0.0
    %2570 = vmatpush1.msra.mxu0 %v2411
    %2571 = vmatprep.subr.mxu0 0.0
    %2572 = vmatpush1.msra.mxu0 %v2412
    %2573 = vmatprep.subr.mxu0 0.0
    %2574 = vmatpush1.msra.mxu0 %v2413
    %2575 = vmatprep.subr.mxu0 0.0
    %2576 = vmatpush1.msra.mxu0 %v2414
    %2577 = vmatprep.subr.mxu0 0.0
    %2578 = vmatpush1.msra.mxu0 %v2415
    %2579 = vmatprep.subr.mxu0 0.0
    %2580 = vmatpush1.msra.mxu0 %v2416
    %2581 = vmatprep.subr.mxu0 0.0
    %2582 = vmatpush1.msra.mxu0 %v2417
    %2583 = vmatprep.subr.mxu0 0.0
    %2584 = vmatpush1.msra.mxu0 %v2418
    %2585 = vmatprep.subr.mxu0 0.0
    %2586 = vmatpush1.msra.mxu0 %v2419
    %2587 = vmatprep.subr.mxu0 0.0
    %2588 = vmatpush1.msra.mxu0 %v2420
    %2589 = vmatprep.subr.mxu0 0.0
    %2590 = vmatpush1.msra.mxu0 %v2421
    %2591 = vmatprep.subr.mxu0 0.0
    %2592 = vmatpush1.msra.mxu0 %v2422
    %2593 = vmatprep.subr.mxu0 0.0
    %2594 = vmatpush1.msra.mxu0 %v2423
    %2595 = vmatprep.subr.mxu0 0.0
    %2596 = vmatpush1.msra.mxu0 %v2424
    %2597 = vmatprep.subr.mxu0 0.0
    %2598 = vmatpush1.msra.mxu0 %v2425
    %2599 = vmatprep.subr.mxu0 0.0
    %2600 = vmatpush1.msra.mxu0 %v2426
    %2601 = vmatprep.subr.mxu0 0.0
    %2602 = vmatpush1.msra.mxu0 %v2427
    %2603 = vmatprep.subr.mxu0 0.0
    %2604 = vmatpush1.msra.mxu0 %v2428
    %2605 = vmatprep.subr.mxu0 0.0
    %2606 = vmatpush1.msra.mxu0 %v2429
    %2607 = vmatprep.subr.mxu0 0.0
    %2608 = vmatpush1.msra.mxu0 %v2430
    %2609 = vmatprep.subr.mxu0 0.0
    %2610 = vmatpush1.msra.mxu0 %v2431
    %2611 = vmatprep.subr.mxu0 0.0
    %2612 = vmatpush1.msra.mxu0 %v2432
    %2613 = vmatprep.subr.mxu0 0.0
    %2614 = vmatpush1.msra.mxu0 %v2433
    %2615 = vmatprep.subr.mxu0 0.0
    %2616 = vmatpush1.msra.mxu0 %v2434
    %2617 = vmatprep.subr.mxu0 0.0
    %2618 = vmatpush1.msra.mxu0 %v2435
    %2619 = vmatprep.mubr.f32.mxu0 %v2396
    %2620 = vmatmul.mubr.f32.gmra.mrb[0].mxu0 %v2395
    %v2621 = vpop.f32.mrb[0].mxu0
    %v2622 = vadd.f32 %v2553, %v2621
    %v2623 = vpop.f32.mrb[0].mxu0
    %2624 = vdwg.mxu0
    %2625 = vmatprep.subr.mxu0 0.0
    %2626 = vmatpush1.msra.mxu0 %v2436
    %2627 = vmatprep.subr.mxu0 0.0
    %2628 = vmatpush1.msra.mxu0 %v2437
    %2629 = vmatprep.subr.mxu0 0.0
    %2630 = vmatpush1.msra.mxu0 %v2438
    %2631 = vmatprep.subr.mxu0 0.0
    %2632 = vmatpush1.msra.mxu0 %v2439
    %2633 = vmatprep.subr.mxu0 0.0
    %2634 = vmatpush1.msra.mxu0 %v2440
    %2635 = vmatprep.subr.mxu0 0.0
    %2636 = vmatpush1.msra.mxu0 %v2441
    %2637 = vmatprep.subr.mxu0 0.0
    %2638 = vmatpush1.msra.mxu0 %v2442
    %2639 = vmatprep.subr.mxu0 0.0
    %2640 = vmatpush1.msra.mxu0 %v2443
    %2641 = vmatprep.subr.mxu0 0.0
    %2642 = vmatpush1.msra.mxu0 %v2444
    %2643 = vmatprep.subr.mxu0 0.0
    %2644 = vmatpush1.msra.mxu0 %v2445
    %2645 = vmatprep.subr.mxu0 0.0
    %2646 = vmatpush1.msra.mxu0 %v2446
    %2647 = vmatprep.subr.mxu0 0.0
    %2648 = vmatpush1.msra.mxu0 %v2447
    %2649 = vmatprep.subr.mxu0 0.0
    %2650 = vmatpush1.msra.mxu0 %v2448
    %2651 = vmatprep.subr.mxu0 0.0
    %2652 = vmatpush1.msra.mxu0 %v2449
    %2653 = vmatprep.subr.mxu0 0.0
    %2654 = vmatpush1.msra.mxu0 %v2450
    %2655 = vmatprep.subr.mxu0 0.0
    %2656 = vmatpush1.msra.mxu0 %v2451
    %2657 = vmatprep.subr.mxu0 0.0
    %2658 = vmatpush1.msra.mxu0 %v2452
    %2659 = vmatprep.subr.mxu0 0.0
    %2660 = vmatpush1.msra.mxu0 %v2453
    %2661 = vmatprep.subr.mxu0 0.0
    %2662 = vmatpush1.msra.mxu0 %v2454
    %2663 = vmatprep.subr.mxu0 0.0
    %2664 = vmatpush1.msra.mxu0 %v2455
    %2665 = vmatprep.subr.mxu0 0.0
    %2666 = vmatpush1.msra.mxu0 %v2456
    %2667 = vmatprep.subr.mxu0 0.0
    %2668 = vmatpush1.msra.mxu0 %v2457
    %2669 = vmatprep.subr.mxu0 0.0
    %2670 = vmatpush1.msra.mxu0 %v2458
    %2671 = vmatprep.subr.mxu0 0.0
    %2672 = vmatpush1.msra.mxu0 %v2459
    %2673 = vmatprep.subr.mxu0 0.0
    %2674 = vmatpush1.msra.mxu0 %v2460
    %2675 = vmatprep.subr.mxu0 0.0
    %2676 = vmatpush1.msra.mxu0 %v2461
    %2677 = vmatprep.subr.mxu0 0.0
    %2678 = vmatpush1.msra.mxu0 %v2462
    %2679 = vmatprep.subr.mxu0 0.0
    %2680 = vmatpush1.msra.mxu0 %v2463
    %2681 = vmatprep.subr.mxu0 0.0
    %2682 = vmatpush1.msra.mxu0 %v2464
    %2683 = vmatprep.subr.mxu0 0.0
    %2684 = vmatpush1.msra.mxu0 %v2465
    %2685 = vmatprep.subr.mxu0 0.0
    %2686 = vmatpush1.msra.mxu0 %v2466
    %2687 = vmatprep.subr.mxu0 0.0
    %2688 = vmatpush1.msra.mxu0 %v2467
    %2689 = vmatprep.mubr.f32.mxu0 %v2398
    %2690 = vmatmul.mubr.f32.gmra.mrb[0].mxu0 %v2397
    %v2691 = vpop.f32.mrb[0].mxu0
    %v2692 = vadd.f32 %v2622, %v2691
    %v2693 = vpop.f32.mrb[0].mxu0
    %2694 = vdwg.mxu0
    %2695 = vmatprep.subr.mxu0 0.0
    %2696 = vmatpush1.msra.mxu0 %v2468
    %2697 = vmatprep.subr.mxu0 0.0
    %2698 = vmatpush1.msra.mxu0 %v2469
    %2699 = vmatprep.subr.mxu0 0.0
    %2700 = vmatpush1.msra.mxu0 %v2470
    %2701 = vmatprep.subr.mxu0 0.0
    %2702 = vmatpush1.msra.mxu0 %v2471
    %2703 = vmatprep.subr.mxu0 0.0
    %2704 = vmatpush1.msra.mxu0 %v2472
    %2705 = vmatprep.subr.mxu0 0.0
    %2706 = vmatpush1.msra.mxu0 %v2473
    %2707 = vmatprep.subr.mxu0 0.0
    %2708 = vmatpush1.msra.mxu0 %v2474
    %2709 = vmatprep.subr.mxu0 0.0
    %2710 = vmatpush1.msra.mxu0 %v2475
    %2711 = vmatprep.subr.mxu0 0.0
    %2712 = vmatpush1.msra.mxu0 %v2476
    %2713 = vmatprep.subr.mxu0 0.0
    %2714 = vmatpush1.msra.mxu0 %v2477
    %2715 = vmatprep.subr.mxu0 0.0
    %2716 = vmatpush1.msra.mxu0 %v2478
    %2717 = vmatprep.subr.mxu0 0.0
    %2718 = vmatpush1.msra.mxu0 %v2479
    %2719 = vmatprep.subr.mxu0 0.0
    %2720 = vmatpush1.msra.mxu0 %v2480
    %2721 = vmatprep.subr.mxu0 0.0
    %2722 = vmatpush1.msra.mxu0 %v2481
    %2723 = vmatprep.subr.mxu0 0.0
    %2724 = vmatpush1.msra.mxu0 %v2482
    %2725 = vmatprep.subr.mxu0 0.0
    %2726 = vmatpush1.msra.mxu0 %v2483
    %2727 = vmatprep.subr.mxu0 0.0
    %2728 = vmatpush1.msra.mxu0 %v2484
    %2729 = vmatprep.subr.mxu0 0.0
    %2730 = vmatpush1.msra.mxu0 %v2485
    %2731 = vmatprep.subr.mxu0 0.0
    %2732 = vmatpush1.msra.mxu0 %v2486
    %2733 = vmatprep.subr.mxu0 0.0
    %2734 = vmatpush1.msra.mxu0 %v2487
    %2735 = vmatprep.subr.mxu0 0.0
    %2736 = vmatpush1.msra.mxu0 %v2488
    %2737 = vmatprep.subr.mxu0 0.0
    %2738 = vmatpush1.msra.mxu0 %v2489
    %2739 = vmatprep.subr.mxu0 0.0
    %2740 = vmatpush1.msra.mxu0 %v2490
    %2741 = vmatprep.subr.mxu0 0.0
    %2742 = vmatpush1.msra.mxu0 %v2491
    %2743 = vmatprep.subr.mxu0 0.0
    %2744 = vmatpush1.msra.mxu0 %v2492
    %2745 = vmatprep.subr.mxu0 0.0
    %2746 = vmatpush1.msra.mxu0 %v2493
    %2747 = vmatprep.subr.mxu0 0.0
    %2748 = vmatpush1.msra.mxu0 %v2494
    %2749 = vmatprep.subr.mxu0 0.0
    %2750 = vmatpush1.msra.mxu0 %v2495
    %2751 = vmatprep.subr.mxu0 0.0
    %2752 = vmatpush1.msra.mxu0 %v2496
    %2753 = vmatprep.subr.mxu0 0.0
    %2754 = vmatpush1.msra.mxu0 %v2497
    %2755 = vmatprep.subr.mxu0 0.0
    %2756 = vmatpush1.msra.mxu0 %v2498
    %2757 = vmatprep.subr.mxu0 0.0
    %2758 = vmatpush1.msra.mxu0 %v2499
    %2759 = vmatprep.mubr.f32.mxu0 %v2400
    %2760 = vmatmul.mubr.f32.gmra.mrb[0].mxu0 %v2399
    %v2761 = vpop.f32.mrb[0].mxu0
    %v2762 = vadd.f32 %v2692, %v2761
    %v2763 = vpop.f32.mrb[0].mxu0
    %2764 = vdwg.mxu0
    %2765 = vmatprep.subr.mxu0 0.0
    %2766 = vmatpush1.msra.mxu0 %v2500
    %2767 = vmatprep.subr.mxu0 0.0
    %2768 = vmatpush1.msra.mxu0 %v2501
    %2769 = vmatprep.subr.mxu0 0.0
    %2770 = vmatpush1.msra.mxu0 %v2502
    %2771 = vmatprep.subr.mxu0 0.0
    %2772 = vmatpush1.msra.mxu0 %v2503
    %2773 = vmatprep.subr.mxu0 0.0
    %2774 = vmatpush1.msra.mxu0 %v2504
    %2775 = vmatprep.subr.mxu0 0.0
    %2776 = vmatpush1.msra.mxu0 %v2505
    %2777 = vmatprep.subr.mxu0 0.0
    %2778 = vmatpush1.msra.mxu0 %v2506
    %2779 = vmatprep.subr.mxu0 0.0
    %2780 = vmatpush1.msra.mxu0 %v2507
    %2781 = vmatprep.subr.mxu0 0.0
    %2782 = vmatpush1.msra.mxu0 %v2508
    %2783 = vmatprep.subr.mxu0 0.0
    %2784 = vmatpush1.msra.mxu0 %v2509
    %2785 = vmatprep.subr.mxu0 0.0
    %2786 = vmatpush1.msra.mxu0 %v2510
    %2787 = vmatprep.subr.mxu0 0.0
    %2788 = vmatpush1.msra.mxu0 %v2511
    %2789 = vmatprep.subr.mxu0 0.0
    %2790 = vmatpush1.msra.mxu0 %v2512
    %2791 = vmatprep.subr.mxu0 0.0
    %2792 = vmatpush1.msra.mxu0 %v2513
    %2793 = vmatprep.subr.mxu0 0.0
    %2794 = vmatpush1.msra.mxu0 %v2514
    %2795 = vmatprep.subr.mxu0 0.0
    %2796 = vmatpush1.msra.mxu0 %v2515
    %2797 = vmatprep.subr.mxu0 0.0
    %2798 = vmatpush1.msra.mxu0 %v2516
    %2799 = vmatprep.subr.mxu0 0.0
    %2800 = vmatpush1.msra.mxu0 %v2517
    %2801 = vmatprep.subr.mxu0 0.0
    %2802 = vmatpush1.msra.mxu0 %v2518
    %2803 = vmatprep.subr.mxu0 0.0
    %2804 = vmatpush1.msra.mxu0 %v2519
    %2805 = vmatprep.subr.mxu0 0.0
    %2806 = vmatpush1.msra.mxu0 %v2520
    %2807 = vmatprep.subr.mxu0 0.0
    %2808 = vmatpush1.msra.mxu0 %v2521
    %2809 = vmatprep.subr.mxu0 0.0
    %2810 = vmatpush1.msra.mxu0 %v2522
    %2811 = vmatprep.subr.mxu0 0.0
    %2812 = vmatpush1.msra.mxu0 %v2523
    %2813 = vmatprep.subr.mxu0 0.0
    %2814 = vmatpush1.msra.mxu0 %v2524
    %2815 = vmatprep.subr.mxu0 0.0
    %2816 = vmatpush1.msra.mxu0 %v2525
    %2817 = vmatprep.subr.mxu0 0.0
    %2818 = vmatpush1.msra.mxu0 %v2526
    %2819 = vmatprep.subr.mxu0 0.0
    %2820 = vmatpush1.msra.mxu0 %v2527
    %2821 = vmatprep.subr.mxu0 0.0
    %2822 = vmatpush1.msra.mxu0 %v2528
    %2823 = vmatprep.subr.mxu0 0.0
    %2824 = vmatpush1.msra.mxu0 %v2529
    %2825 = vmatprep.subr.mxu0 0.0
    %2826 = vmatpush1.msra.mxu0 %v2530
    %2827 = vmatprep.subr.mxu0 0.0
    %2828 = vmatpush1.msra.mxu0 %v2531
    %2829 = vmatprep.mubr.f32.mxu0 %v2402
    %2830 = vmatmul.mubr.f32.gmra.mrb[0].mxu0 %v2401
    %v2831 = vpop.f32.mrb[0].mxu0
    %v2832 = vadd.f32 %v2762, %v2831
    %v2833 = vpop.f32.mrb[0].mxu0
    %2834 = vdwg.mxu0
    %2835 = vmatprep.subr.mxu0 0.0
    %2836 = vmatpush1.msra.mxu0 %v2532
    %2837 = vmatprep.subr.mxu0 0.0
    %2838 = vmatpush1.msra.mxu0 %v2533
    %2839 = vmatprep.subr.mxu0 0.0
    %2840 = vmatpush1.msra.mxu0 %v2534
    %2841 = vmatprep.subr.mxu0 0.0
    %2842 = vmatpush1.msra.mxu0 %v2535
    %2843 = vmatprep.subr.mxu0 0.0
    %2844 = vmatpush1.msra.mxu0 %v2536
    %2845 = vmatprep.subr.mxu0 0.0
    %2846 = vmatpush1.msra.mxu0 %v2537
    %2847 = vmatprep.subr.mxu0 0.0
    %2848 = vmatpush1.msra.mxu0 %v2538
    %2849 = vmatprep.subr.mxu0 0.0
    %2850 = vmatpush1.msra.mxu0 %v2539
    %2851 = vmatprep.subr.mxu0 0.0
    %2852 = vmatpush1.msra.mxu0 %v2540
    %2853 = vmatprep.subr.mxu0 0.0
    %2854 = vmatpush1.msra.mxu0 %v2541
    %2855 = vmatprep.subr.mxu0 0.0
    %2856 = vmatpush1.msra.mxu0 %v2542
    %2857 = vmatprep.subr.mxu0 0.0
    %2858 = vmatpush1.msra.mxu0 %v2543
    %2859 = vmatprep.subr.mxu0 0.0
    %2860 = vmatpush1.msra.mxu0 %v2544
    %2861 = vmatprep.subr.mxu0 0.0
    %2862 = vmatpush1.msra.mxu0 %v2545
    %2863 = vmatprep.subr.mxu0 0.0
    %2864 = vmatpush1.msra.mxu0 %v2546
    %2865 = vmatprep.subr.mxu0 0.0
    %2866 = vmatpush1.msra.mxu0 %v2547
    %2867 = vmatprep.subr.mxu0 0.0
    %2868 = vmatpush1.msra.mxu0 0.0
    %2869 = vmatprep.subr.mxu0 0.0
    %2870 = vmatpush1.msra.mxu0 0.0
    %2871 = vmatprep.subr.mxu0 0.0
    %2872 = vmatpush1.msra.mxu0 0.0
    %2873 = vmatprep.subr.mxu0 0.0
    %2874 = vmatpush1.msra.mxu0 0.0
    %2875 = vmatprep.subr.mxu0 0.0
    %2876 = vmatpush1.msra.mxu0 0.0
    %2877 = vmatprep.subr.mxu0 0.0
    %2878 = vmatpush1.msra.mxu0 0.0
    %2879 = vmatprep.subr.mxu0 0.0
    %2880 = vmatpush1.msra.mxu0 0.0
    %2881 = vmatprep.subr.mxu0 0.0
    %2882 = vmatpush1.msra.mxu0 0.0
    %2883 = vmatprep.subr.mxu0 0.0
    %2884 = vmatpush1.msra.mxu0 0.0
    %2885 = vmatprep.subr.mxu0 0.0
    %2886 = vmatpush1.msra.mxu0 0.0
    %2887 = vmatprep.subr.mxu0 0.0
    %2888 = vmatpush1.msra.mxu0 0.0
    %2889 = vmatprep.subr.mxu0 0.0
    %2890 = vmatpush1.msra.mxu0 0.0
    %2891 = vmatprep.subr.mxu0 0.0
    %2892 = vmatpush1.msra.mxu0 0.0
    %2893 = vmatprep.subr.mxu0 0.0
    %2894 = vmatpush1.msra.mxu0 0.0
    %2895 = vmatprep.subr.mxu0 0.0
    %2896 = vmatpush1.msra.mxu0 0.0
    %2897 = vmatprep.subr.mxu0 0.0
    %2898 = vmatpush1.msra.mxu0 0.0
    %2899 = vmatprep.mubr.f32.mxu0 0.0
    %2900 = vmatmul.mubr.f32.gmra.mrb[0].mxu0 %v2403
    %v2901 = vpop.f32.mrb[0].mxu0
    %v2902 = vadd.f32 %v2832, %v2901
    %v2903 = vpop.f32.mrb[0].mxu0
    %2904 = vdwg.mxu0
    %v2905 = vmax.f32 %v2902, 0.0
    %2906 = vst [vmem:[#allocation6] sm:$0xff] %v2905
    %2907 = vst [vmem:[#allocation7] sm:$0xff] 0.0
    %2908 = vst [vmem:[#allocation7 + $0x8] sm:$0xff] 0.0
    %2909 = vst [vmem:[#allocation7 + $0x10] sm:$0x3] 0.0
    %v2910 = vld [vmem:[#allocation6] sm:$0x3]
    %2911 = vst [vmem:[#allocation7 + $0x8] sm:$0x3] %v2910
    %v2912 = vld [vmem:[#allocation6 + $0x2] sm:$0x3]
    %2913 = vst [vmem:[#allocation7 + $0xa] sm:$0x3] %v2912
    %v2914 = vld [vmem:[#allocation6 + $0x4] sm:$0x3]
    %2915 = vst [vmem:[#allocation7 + $0xe] sm:$0x3] %v2914
    %v2916 = vld [vmem:[#allocation6 + $0x6] sm:$0x3]
    %2917 = vst [vmem:[#allocation7 + $0x10] sm:$0x3] %v2916
    %v2918 = vld [vmem:[#allocation7] sm:$0xff]
    %v2919 = vld [vmem:[#allocation7 + $0x8] sm:$0xff]
    %v2920 = vld [vmem:[#allocation7 + $0x10] sm:$0x3]
    %v2921 = vld [vmem:[%s7] sm:$0xff]
    %v2922 = vld [vmem:[%s7 + $0x8] sm:$0xff]
    %v2923 = vld [vmem:[%s7 + $0x10] sm:$0xff]
    %v2924 = vld [vmem:[%s7 + $0x18] sm:$0xff]
    %v2925 = vld [vmem:[%s7 + $0x20] sm:$0xff]
    %v2926 = vld [vmem:[%s7 + $0x28] sm:$0xff]
    %v2927 = vld [vmem:[%s7 + $0x30] sm:$0xff]
    %v2928 = vld [vmem:[%s7 + $0x38] sm:$0xff]
    %v2929 = vld [vmem:[%s7 + $0x40] sm:$0xff]
    %v2930 = vld [vmem:[%s7 + $0x48] sm:$0xff]
    %v2931 = vld [vmem:[%s7 + $0x50] sm:$0xff]
    %v2932 = vld [vmem:[%s7 + $0x58] sm:$0xff]
    %v2933 = vld [vmem:[%s7 + $0x60] sm:$0xff]
    %v2934 = vld [vmem:[%s7 + $0x68] sm:$0xff]
    %v2935 = vld [vmem:[%s7 + $0x70] sm:$0xff]
    %v2936 = vld [vmem:[%s7 + $0x78] sm:$0xff]
    %v2937 = vld [vmem:[%s7 + $0x80] sm:$0xff]
    %v2938 = vld [vmem:[%s7 + $0x88] sm:$0xff]
    %v2939 = vld [vmem:[%s7 + $0x90] sm:$0xff]
    %v2940 = vld [vmem:[%s7 + $0x98] sm:$0xff]
    %v2941 = vld [vmem:[%s7 + $0xa0] sm:$0xff]
    %v2942 = vld [vmem:[%s7 + $0xa8] sm:$0xff]
    %v2943 = vld [vmem:[%s7 + $0xb0] sm:$0xff]
    %v2944 = vld [vmem:[%s7 + $0xb8] sm:$0xff]
    %v2945 = vld [vmem:[%s7 + $0xc0] sm:$0xff]
    %v2946 = vld [vmem:[%s7 + $0xc8] sm:$0xff]
    %v2947 = vld [vmem:[%s7 + $0xd0] sm:$0xff]
    %v2948 = vld [vmem:[%s7 + $0xd8] sm:$0xff]
    %v2949 = vld [vmem:[%s7 + $0xe0] sm:$0xff]
    %v2950 = vld [vmem:[%s7 + $0xe8] sm:$0xff]
    %v2951 = vld [vmem:[%s7 + $0xf0] sm:$0xff]
    %v2952 = vld [vmem:[%s7 + $0xf8] sm:$0xff]
    %v2953 = vld [vmem:[%s7 + $0x100] sm:$0xff]
    %v2954 = vld [vmem:[%s7 + $0x108] sm:$0xff]
    %v2955 = vld [vmem:[%s7 + $0x110] sm:$0xff]
    %v2956 = vld [vmem:[%s7 + $0x118] sm:$0xff]
    %v2957 = vld [vmem:[%s7 + $0x120] sm:$0xff]
    %v2958 = vld [vmem:[%s7 + $0x128] sm:$0xff]
    %v2959 = vld [vmem:[%s7 + $0x130] sm:$0xff]
    %v2960 = vld [vmem:[%s7 + $0x138] sm:$0xff]
    %v2961 = vld [vmem:[%s7 + $0x140] sm:$0xff]
    %v2962 = vld [vmem:[%s7 + $0x148] sm:$0xff]
    %v2963 = vld [vmem:[%s7 + $0x150] sm:$0xff]
    %v2964 = vld [vmem:[%s7 + $0x158] sm:$0xff]
    %v2965 = vld [vmem:[%s7 + $0x160] sm:$0xff]
    %v2966 = vld [vmem:[%s7 + $0x168] sm:$0xff]
    %v2967 = vld [vmem:[%s7 + $0x170] sm:$0xff]
    %v2968 = vld [vmem:[%s7 + $0x178] sm:$0xff]
    %v2969 = vld [vmem:[%s7 + $0x180] sm:$0xff]
    %v2970 = vld [vmem:[%s7 + $0x188] sm:$0xff]
    %v2971 = vld [vmem:[%s7 + $0x190] sm:$0xff]
    %v2972 = vld [vmem:[%s7 + $0x198] sm:$0xff]
    %v2973 = vld [vmem:[%s7 + $0x1a0] sm:$0xff]
    %v2974 = vld [vmem:[%s7 + $0x1a8] sm:$0xff]
    %v2975 = vld [vmem:[%s7 + $0x1b0] sm:$0xff]
    %v2976 = vld [vmem:[%s7 + $0x1b8] sm:$0xff]
    %v2977 = vld [vmem:[%s7 + $0x1c0] sm:$0xff]
    %v2978 = vld [vmem:[%s7 + $0x1c8] sm:$0xff]
    %v2979 = vld [vmem:[%s7 + $0x1d0] sm:$0xff]
    %v2980 = vld [vmem:[%s7 + $0x1d8] sm:$0xff]
    %v2981 = vld [vmem:[%s7 + $0x1e0] sm:$0xff]
    %v2982 = vld [vmem:[%s7 + $0x1e8] sm:$0xff]
    %v2983 = vld [vmem:[%s7 + $0x1f0] sm:$0xff]
    %v2984 = vld [vmem:[%s7 + $0x1f8] sm:$0xff]
    %v2985 = vld [vmem:[%s7 + $0x200] sm:$0xff]
    %v2986 = vld [vmem:[%s7 + $0x208] sm:$0xff]
    %v2987 = vld [vmem:[%s7 + $0x210] sm:$0xff]
    %v2988 = vld [vmem:[%s7 + $0x218] sm:$0xff]
    %v2989 = vld [vmem:[%s7 + $0x220] sm:$0xff]
    %v2990 = vld [vmem:[%s7 + $0x228] sm:$0xff]
    %v2991 = vld [vmem:[%s7 + $0x230] sm:$0xff]
    %v2992 = vld [vmem:[%s7 + $0x238] sm:$0xff]
    %v2993 = vld [vmem:[%s7 + $0x240] sm:$0xff]
    %v2994 = vld [vmem:[%s7 + $0x248] sm:$0xff]
    %v2995 = vld [vmem:[%s7 + $0x250] sm:$0xff]
    %v2996 = vld [vmem:[%s7 + $0x258] sm:$0xff]
    %v2997 = vld [vmem:[%s7 + $0x260] sm:$0xff]
    %v2998 = vld [vmem:[%s7 + $0x268] sm:$0xff]
    %v2999 = vld [vmem:[%s7 + $0x270] sm:$0xff]
    %v3000 = vld [vmem:[%s7 + $0x278] sm:$0xff]
    %v3001 = vld [vmem:[%s7 + $0x280] sm:$0xff]
    %v3002 = vld [vmem:[%s7 + $0x288] sm:$0xff]
    %v3003 = vld [vmem:[%s7 + $0x290] sm:$0xff]
    %v3004 = vld [vmem:[%s7 + $0x298] sm:$0xff]
    %v3005 = vld [vmem:[%s7 + $0x2a0] sm:$0xff]
    %v3006 = vld [vmem:[%s7 + $0x2a8] sm:$0xff]
    %v3007 = vld [vmem:[%s7 + $0x2b0] sm:$0xff]
    %v3008 = vld [vmem:[%s7 + $0x2b8] sm:$0xff]
    %v3009 = vld [vmem:[%s7 + $0x2c0] sm:$0xff]
    %v3010 = vld [vmem:[%s7 + $0x2c8] sm:$0xff]
    %v3011 = vld [vmem:[%s7 + $0x2d0] sm:$0xff]
    %v3012 = vld [vmem:[%s7 + $0x2d8] sm:$0xff]
    %v3013 = vld [vmem:[%s7 + $0x2e0] sm:$0xff]
    %v3014 = vld [vmem:[%s7 + $0x2e8] sm:$0xff]
    %v3015 = vld [vmem:[%s7 + $0x2f0] sm:$0xff]
    %v3016 = vld [vmem:[%s7 + $0x2f8] sm:$0xff]
    %v3017 = vld [vmem:[%s7 + $0x300] sm:$0xff]
    %v3018 = vld [vmem:[%s7 + $0x308] sm:$0xff]
    %v3019 = vld [vmem:[%s7 + $0x310] sm:$0xff]
    %v3020 = vld [vmem:[%s7 + $0x318] sm:$0xff]
    %v3021 = vld [vmem:[%s7 + $0x320] sm:$0xff]
    %v3022 = vld [vmem:[%s7 + $0x328] sm:$0xff]
    %v3023 = vld [vmem:[%s7 + $0x330] sm:$0xff]
    %v3024 = vld [vmem:[%s7 + $0x338] sm:$0xff]
    %v3025 = vld [vmem:[%s7 + $0x340] sm:$0xff]
    %v3026 = vld [vmem:[%s7 + $0x348] sm:$0xff]
    %v3027 = vld [vmem:[%s7 + $0x350] sm:$0xff]
    %v3028 = vld [vmem:[%s7 + $0x358] sm:$0xff]
    %v3029 = vld [vmem:[%s7 + $0x360] sm:$0xff]
    %v3030 = vld [vmem:[%s7 + $0x368] sm:$0xff]
    %v3031 = vld [vmem:[%s7 + $0x370] sm:$0xff]
    %v3032 = vld [vmem:[%s7 + $0x378] sm:$0xff]
    %v3033 = vld [vmem:[%s7 + $0x380] sm:$0xff]
    %v3034 = vld [vmem:[%s7 + $0x388] sm:$0xff]
    %v3035 = vld [vmem:[%s7 + $0x390] sm:$0xff]
    %v3036 = vld [vmem:[%s7 + $0x398] sm:$0xff]
    %v3037 = vld [vmem:[%s7 + $0x3a0] sm:$0xff]
    %v3038 = vld [vmem:[%s7 + $0x3a8] sm:$0xff]
    %v3039 = vld [vmem:[%s7 + $0x3b0] sm:$0xff]
    %v3040 = vld [vmem:[%s7 + $0x3b8] sm:$0xff]
    %v3041 = vld [vmem:[%s7 + $0x3c0] sm:$0xff]
    %v3042 = vld [vmem:[%s7 + $0x3c8] sm:$0xff]
    %v3043 = vld [vmem:[%s7 + $0x3d0] sm:$0xff]
    %v3044 = vld [vmem:[%s7 + $0x3d8] sm:$0xff]
    %v3045 = vld [vmem:[%s7 + $0x3e0] sm:$0xff]
    %v3046 = vld [vmem:[%s7 + $0x3e8] sm:$0xff]
    %v3047 = vld [vmem:[%s7 + $0x3f0] sm:$0xff]
    %v3048 = vld [vmem:[%s7 + $0x3f8] sm:$0xff]
    %v3049 = vld [vmem:[%s7 + $0x400] sm:$0xff]
    %v3050 = vld [vmem:[%s7 + $0x408] sm:$0xff]
    %v3051 = vld [vmem:[%s7 + $0x410] sm:$0xff]
    %v3052 = vld [vmem:[%s7 + $0x418] sm:$0xff]
    %v3053 = vld [vmem:[%s7 + $0x420] sm:$0xff]
    %v3054 = vld [vmem:[%s7 + $0x428] sm:$0xff]
    %v3055 = vld [vmem:[%s7 + $0x430] sm:$0xff]
    %v3056 = vld [vmem:[%s7 + $0x438] sm:$0xff]
    %v3057 = vld [vmem:[%s7 + $0x440] sm:$0xff]
    %v3058 = vld [vmem:[%s7 + $0x448] sm:$0xff]
    %v3059 = vld [vmem:[%s7 + $0x450] sm:$0xff]
    %v3060 = vld [vmem:[%s7 + $0x458] sm:$0xff]
    %v3061 = vld [vmem:[%s7 + $0x460] sm:$0xff]
    %v3062 = vld [vmem:[%s7 + $0x468] sm:$0xff]
    %v3063 = vld [vmem:[%s7 + $0x470] sm:$0xff]
    %v3064 = vld [vmem:[%s7 + $0x478] sm:$0xff]
    %v3065 = vld [vmem:[%s7 + $0x480] sm:$0xff]
    %v3066 = vld [vmem:[%s7 + $0x488] sm:$0xff]
    %v3067 = vld [vmem:[%s7 + $0x490] sm:$0xff]
    %v3068 = vld [vmem:[%s7 + $0x498] sm:$0xff]
    %v3069 = vld [vmem:[%s7 + $0x4a0] sm:$0xff]
    %v3070 = vld [vmem:[%s7 + $0x4a8] sm:$0xff]
    %v3071 = vld [vmem:[%s7 + $0x4b0] sm:$0xff]
    %v3072 = vld [vmem:[%s7 + $0x4b8] sm:$0xff]
    %v3073 = vld [vmem:[%s7 + $0x4c0] sm:$0xff]
    %v3074 = vld [vmem:[%s7 + $0x4c8] sm:$0xff]
    %v3075 = vld [vmem:[%s7 + $0x4d0] sm:$0xff]
    %v3076 = vld [vmem:[%s7 + $0x4d8] sm:$0xff]
    %v3077 = vld [vmem:[%s7 + $0x4e0] sm:$0xff]
    %v3078 = vld [vmem:[%s7 + $0x4e8] sm:$0xff]
    %v3079 = vld [vmem:[%s7 + $0x4f0] sm:$0xff]
    %v3080 = vld [vmem:[%s7 + $0x4f8] sm:$0xff]
    %v3081 = vld [vmem:[%s7 + $0x500] sm:$0xff]
    %v3082 = vld [vmem:[%s7 + $0x508] sm:$0xff]
    %v3083 = vld [vmem:[%s7 + $0x510] sm:$0xff]
    %v3084 = vld [vmem:[%s7 + $0x518] sm:$0xff]
    %v3085 = vld [vmem:[%s7 + $0x520] sm:$0xff]
    %v3086 = vld [vmem:[%s7 + $0x528] sm:$0xff]
    %v3087 = vld [vmem:[%s7 + $0x530] sm:$0xff]
    %v3088 = vld [vmem:[%s7 + $0x538] sm:$0xff]
    %v3089 = vld [vmem:[%s7 + $0x540] sm:$0xff]
    %v3090 = vld [vmem:[%s7 + $0x548] sm:$0xff]
    %v3091 = vld [vmem:[%s7 + $0x550] sm:$0xff]
    %v3092 = vld [vmem:[%s7 + $0x558] sm:$0xff]
    %v3093 = vld [vmem:[%s7 + $0x560] sm:$0xff]
    %v3094 = vld [vmem:[%s7 + $0x568] sm:$0xff]
    %v3095 = vld [vmem:[%s7 + $0x570] sm:$0xff]
    %v3096 = vld [vmem:[%s7 + $0x578] sm:$0xff]
    %v3097 = vld [vmem:[%s7 + $0x580] sm:$0xff]
    %v3098 = vld [vmem:[%s7 + $0x588] sm:$0xff]
    %v3099 = vld [vmem:[%s7 + $0x590] sm:$0xff]
    %v3100 = vld [vmem:[%s7 + $0x598] sm:$0xff]
    %v3101 = vld [vmem:[%s7 + $0x5a0] sm:$0xff]
    %v3102 = vld [vmem:[%s7 + $0x5a8] sm:$0xff]
    %v3103 = vld [vmem:[%s7 + $0x5b0] sm:$0xff]
    %v3104 = vld [vmem:[%s7 + $0x5b8] sm:$0xff]
    %v3105 = vld [vmem:[%s7 + $0x5c0] sm:$0xff]
    %v3106 = vld [vmem:[%s7 + $0x5c8] sm:$0xff]
    %v3107 = vld [vmem:[%s7 + $0x5d0] sm:$0xff]
    %v3108 = vld [vmem:[%s7 + $0x5d8] sm:$0xff]
    %v3109 = vld [vmem:[%s7 + $0x5e0] sm:$0xff]
    %v3110 = vld [vmem:[%s7 + $0x5e8] sm:$0xff]
    %v3111 = vld [vmem:[%s7 + $0x5f0] sm:$0xff]
    %v3112 = vld [vmem:[%s7 + $0x5f8] sm:$0xff]
    %v3113 = vld [vmem:[%s7 + $0x600] sm:$0xff]
    %v3114 = vld [vmem:[%s7 + $0x608] sm:$0xff]
    %v3115 = vld [vmem:[%s7 + $0x610] sm:$0xff]
    %v3116 = vld [vmem:[%s7 + $0x618] sm:$0xff]
    %v3117 = vld [vmem:[%s7 + $0x620] sm:$0xff]
    %v3118 = vld [vmem:[%s7 + $0x628] sm:$0xff]
    %v3119 = vld [vmem:[%s7 + $0x630] sm:$0xff]
    %v3120 = vld [vmem:[%s7 + $0x638] sm:$0xff]
    %v3121 = vld [vmem:[%s7 + $0x640] sm:$0xff]
    %v3122 = vld [vmem:[%s7 + $0x648] sm:$0xff]
    %v3123 = vld [vmem:[%s7 + $0x650] sm:$0xff]
    %v3124 = vld [vmem:[%s7 + $0x658] sm:$0xff]
    %v3125 = vld [vmem:[%s7 + $0x660] sm:$0xff]
    %v3126 = vld [vmem:[%s7 + $0x668] sm:$0xff]
    %v3127 = vld [vmem:[%s7 + $0x670] sm:$0xff]
    %v3128 = vld [vmem:[%s7 + $0x678] sm:$0xff]
    %v3129 = vld [vmem:[%s7 + $0x680] sm:$0xff]
    %v3130 = vld [vmem:[%s7 + $0x688] sm:$0xff]
    %v3131 = vld [vmem:[%s7 + $0x690] sm:$0xff]
    %v3132 = vld [vmem:[%s7 + $0x698] sm:$0xff]
    %v3133 = vld [vmem:[%s7 + $0x6a0] sm:$0xff]
    %v3134 = vld [vmem:[%s7 + $0x6a8] sm:$0xff]
    %v3135 = vld [vmem:[%s7 + $0x6b0] sm:$0xff]
    %v3136 = vld [vmem:[%s7 + $0x6b8] sm:$0xff]
    %v3137 = vld [vmem:[%s7 + $0x6c0] sm:$0xff]
    %v3138 = vld [vmem:[%s7 + $0x6c8] sm:$0xff]
    %v3139 = vld [vmem:[%s7 + $0x6d0] sm:$0xff]
    %v3140 = vld [vmem:[%s7 + $0x6d8] sm:$0xff]
    %v3141 = vld [vmem:[%s7 + $0x6e0] sm:$0xff]
    %v3142 = vld [vmem:[%s7 + $0x6e8] sm:$0xff]
    %v3143 = vld [vmem:[%s7 + $0x6f0] sm:$0xff]
    %v3144 = vld [vmem:[%s7 + $0x6f8] sm:$0xff]
    %v3145 = vld [vmem:[%s7 + $0x700] sm:$0xff]
    %v3146 = vld [vmem:[%s7 + $0x708] sm:$0xff]
    %v3147 = vld [vmem:[%s7 + $0x710] sm:$0xff]
    %v3148 = vld [vmem:[%s7 + $0x718] sm:$0xff]
    %v3149 = vld [vmem:[%s7 + $0x720] sm:$0xff]
    %v3150 = vld [vmem:[%s7 + $0x728] sm:$0xff]
    %v3151 = vld [vmem:[%s7 + $0x730] sm:$0xff]
    %v3152 = vld [vmem:[%s7 + $0x738] sm:$0xff]
    %v3153 = vld [vmem:[%s7 + $0x740] sm:$0xff]
    %v3154 = vld [vmem:[%s7 + $0x748] sm:$0xff]
    %v3155 = vld [vmem:[%s7 + $0x750] sm:$0xff]
    %v3156 = vld [vmem:[%s7 + $0x758] sm:$0xff]
    %v3157 = vld [vmem:[%s7 + $0x760] sm:$0xff]
    %v3158 = vld [vmem:[%s7 + $0x768] sm:$0xff]
    %v3159 = vld [vmem:[%s7 + $0x770] sm:$0xff]
    %v3160 = vld [vmem:[%s7 + $0x778] sm:$0xff]
    %v3161 = vld [vmem:[%s7 + $0x780] sm:$0xff]
    %v3162 = vld [vmem:[%s7 + $0x788] sm:$0xff]
    %v3163 = vld [vmem:[%s7 + $0x790] sm:$0xff]
    %v3164 = vld [vmem:[%s7 + $0x798] sm:$0xff]
    %v3165 = vld [vmem:[%s7 + $0x7a0] sm:$0xff]
    %v3166 = vld [vmem:[%s7 + $0x7a8] sm:$0xff]
    %v3167 = vld [vmem:[%s7 + $0x7b0] sm:$0xff]
    %v3168 = vld [vmem:[%s7 + $0x7b8] sm:$0xff]
    %v3169 = vld [vmem:[%s7 + $0x7c0] sm:$0xff]
    %v3170 = vld [vmem:[%s7 + $0x7c8] sm:$0xff]
    %v3171 = vld [vmem:[%s7 + $0x7d0] sm:$0xff]
    %v3172 = vld [vmem:[%s7 + $0x7d8] sm:$0xff]
    %v3173 = vld [vmem:[%s7 + $0x7e0] sm:$0xff]
    %v3174 = vld [vmem:[%s7 + $0x7e8] sm:$0xff]
    %v3175 = vld [vmem:[%s7 + $0x7f0] sm:$0xff]
    %v3176 = vld [vmem:[%s7 + $0x7f8] sm:$0xff]
    %v3177 = vld [vmem:[%s7 + $0x800] sm:$0xff]
    %v3178 = vld [vmem:[%s7 + $0x808] sm:$0xff]
    %v3179 = vld [vmem:[%s7 + $0x810] sm:$0xff]
    %v3180 = vld [vmem:[%s7 + $0x818] sm:$0xff]
    %v3181 = vld [vmem:[%s7 + $0x820] sm:$0xff]
    %v3182 = vld [vmem:[%s7 + $0x828] sm:$0xff]
    %v3183 = vld [vmem:[%s7 + $0x830] sm:$0xff]
    %v3184 = vld [vmem:[%s7 + $0x838] sm:$0xff]
    %v3185 = vld [vmem:[%s7 + $0x840] sm:$0xff]
    %v3186 = vld [vmem:[%s7 + $0x848] sm:$0xff]
    %v3187 = vld [vmem:[%s7 + $0x850] sm:$0xff]
    %v3188 = vld [vmem:[%s7 + $0x858] sm:$0xff]
    %v3189 = vld [vmem:[%s7 + $0x860] sm:$0xff]
    %v3190 = vld [vmem:[%s7 + $0x868] sm:$0xff]
    %v3191 = vld [vmem:[%s7 + $0x870] sm:$0xff]
    %v3192 = vld [vmem:[%s7 + $0x878] sm:$0xff]
    %v3193 = vld [vmem:[%s7 + $0x880] sm:$0xff]
    %v3194 = vld [vmem:[%s7 + $0x888] sm:$0xff]
    %v3195 = vld [vmem:[%s7 + $0x890] sm:$0xff]
    %v3196 = vld [vmem:[%s7 + $0x898] sm:$0xff]
    %v3197 = vld [vmem:[%s7 + $0x8a0] sm:$0xff]
    %v3198 = vld [vmem:[%s7 + $0x8a8] sm:$0xff]
    %v3199 = vld [vmem:[%s7 + $0x8b0] sm:$0xff]
    %v3200 = vld [vmem:[%s7 + $0x8b8] sm:$0xff]
    %v3201 = vld [vmem:[%s7 + $0x8c0] sm:$0xff]
    %v3202 = vld [vmem:[%s7 + $0x8c8] sm:$0xff]
    %v3203 = vld [vmem:[%s7 + $0x8d0] sm:$0xff]
    %v3204 = vld [vmem:[%s7 + $0x8d8] sm:$0xff]
    %v3205 = vld [vmem:[%s7 + $0x8e0] sm:$0xff]
    %v3206 = vld [vmem:[%s7 + $0x8e8] sm:$0xff]
    %v3207 = vld [vmem:[%s7 + $0x8f0] sm:$0xff]
    %v3208 = vld [vmem:[%s7 + $0x8f8] sm:$0xff]
    %v3209 = vld [vmem:[%s8] sm:$0x3]
    %v3211 = vlaneseq
    %v3212 = vshrl.u32 %v3211, 7
    %v3213 = vsub.s32 0, %v3212
    %v3214 = vrot.slane %v3209, %v3213
    %v3215 = vlaneseq
    %v3216 = vshrl.u32 %v3215, 7
    %v3217 = vsub.s32 1, %v3216
    %v3218 = vrot.slane %v3209, %v3217
    %v3224 = vcombine.high %v2918, %v2918
    %v3226 = vunpack.c.l.s4 1983009808
    %v3227 = vunpack.c.0.s8 %v3226
    %v3228 = vlaneseq
    %v3229 = vshrl.u32 %v3228, 7
    %v3230 = vsub.s32 %v3227, %v3229
    %v3231 = vrot.slane %v2918, %v3230
    %v3233 = vunpack.c.l.s4 1983009808
    %v3234 = vunpack.c.0.s8 %v3233
    %v3235 = vlaneseq
    %v3236 = vshrl.u32 %v3235, 7
    %v3237 = vsub.s32 %v3234, %v3236
    %v3238 = vrot.slane %v3224, %v3237
    %v3239 = vcombine.high %v3231, %v3231
    %v3240 = vcombine.high %v3238, %v3238
    %v3241 = vcombine.high %v2919, %v2919
    %v3243 = vunpack.c.l.s4 1983009808
    %v3244 = vunpack.c.0.s8 %v3243
    %v3245 = vlaneseq
    %v3246 = vshrl.u32 %v3245, 7
    %v3247 = vsub.s32 %v3244, %v3246
    %v3248 = vrot.slane %v2919, %v3247
    %v3250 = vunpack.c.l.s4 1983009808
    %v3251 = vunpack.c.0.s8 %v3250
    %v3252 = vlaneseq
    %v3253 = vshrl.u32 %v3252, 7
    %v3254 = vsub.s32 %v3251, %v3253
    %v3255 = vrot.slane %v3241, %v3254
    %v3256 = vcombine.high %v3248, %v3248
    %v3257 = vcombine.high %v3255, %v3255
    %v3259 = vunpack.c.l.s4 1983009808
    %v3260 = vunpack.c.0.s8 %v3259
    %v3261 = vlaneseq
    %v3262 = vshrl.u32 %v3261, 7
    %v3263 = vsub.s32 %v3260, %v3262
    %v3264 = vrot.slane %v2920, %v3263
    %3274 = vmatprep.subr.mxu0 %v2922
    %3275 = vmatpush1.msra.mxu0 %v2921
    %3276 = vmatprep.subr.mxu0 %v2924
    %3277 = vmatpush1.msra.mxu0 %v2923
    %3278 = vmatprep.subr.mxu0 %v2926
    %3279 = vmatpush1.msra.mxu0 %v2925
    %3280 = vmatprep.subr.mxu0 %v2928
    %3281 = vmatpush1.msra.mxu0 %v2927
    %3282 = vmatprep.subr.mxu0 %v2930
    %3283 = vmatpush1.msra.mxu0 %v2929
    %3284 = vmatprep.subr.mxu0 %v2932
    %3285 = vmatpush1.msra.mxu0 %v2931
    %3286 = vmatprep.subr.mxu0 %v2934
    %3287 = vmatpush1.msra.mxu0 %v2933
    %3288 = vmatprep.subr.mxu0 %v2936
    %3289 = vmatpush1.msra.mxu0 %v2935
    %3290 = vmatprep.subr.mxu0 %v2938
    %3291 = vmatpush1.msra.mxu0 %v2937
    %3292 = vmatprep.subr.mxu0 %v2940
    %3293 = vmatpush1.msra.mxu0 %v2939
    %3294 = vmatprep.subr.mxu0 %v2942
    %3295 = vmatpush1.msra.mxu0 %v2941
    %3296 = vmatprep.subr.mxu0 %v2944
    %3297 = vmatpush1.msra.mxu0 %v2943
    %3298 = vmatprep.subr.mxu0 %v2946
    %3299 = vmatpush1.msra.mxu0 %v2945
    %3300 = vmatprep.subr.mxu0 %v2948
    %3301 = vmatpush1.msra.mxu0 %v2947
    %3302 = vmatprep.subr.mxu0 %v2950
    %3303 = vmatpush1.msra.mxu0 %v2949
    %3304 = vmatprep.subr.mxu0 %v2952
    %3305 = vmatpush1.msra.mxu0 %v2951
    %3306 = vmatprep.subr.mxu0 %v2954
    %3307 = vmatpush1.msra.mxu0 %v2953
    %3308 = vmatprep.subr.mxu0 %v2956
    %3309 = vmatpush1.msra.mxu0 %v2955
    %3310 = vmatprep.subr.mxu0 %v2958
    %3311 = vmatpush1.msra.mxu0 %v2957
    %3312 = vmatprep.subr.mxu0 %v2960
    %3313 = vmatpush1.msra.mxu0 %v2959
    %3314 = vmatprep.subr.mxu0 %v2962
    %3315 = vmatpush1.msra.mxu0 %v2961
    %3316 = vmatprep.subr.mxu0 %v2964
    %3317 = vmatpush1.msra.mxu0 %v2963
    %3318 = vmatprep.subr.mxu0 %v2966
    %3319 = vmatpush1.msra.mxu0 %v2965
    %3320 = vmatprep.subr.mxu0 %v2968
    %3321 = vmatpush1.msra.mxu0 %v2967
    %3322 = vmatprep.subr.mxu0 %v2970
    %3323 = vmatpush1.msra.mxu0 %v2969
    %3324 = vmatprep.subr.mxu0 %v2972
    %3325 = vmatpush1.msra.mxu0 %v2971
    %3326 = vmatprep.subr.mxu0 %v2974
    %3327 = vmatpush1.msra.mxu0 %v2973
    %3328 = vmatprep.subr.mxu0 %v2976
    %3329 = vmatpush1.msra.mxu0 %v2975
    %3330 = vmatprep.subr.mxu0 %v2978
    %3331 = vmatpush1.msra.mxu0 %v2977
    %3332 = vmatprep.subr.mxu0 %v2980
    %3333 = vmatpush1.msra.mxu0 %v2979
    %3334 = vmatprep.subr.mxu0 %v2982
    %3335 = vmatpush1.msra.mxu0 %v2981
    %3336 = vmatprep.subr.mxu0 %v2984
    %3337 = vmatpush1.msra.mxu0 %v2983
    %3338 = vmatprep.mubr.f32.mxu0 %v3239
    %3339 = vmatmul.mubr.f32.gmra.mrb[0].mxu0 %v3231
    %v3340 = vpop.f32.mrb[0].mxu0
    %v3341 = vadd.f32 %v3214, %v3340
    %v3342 = vpop.f32.mrb[0].mxu0
    %v3343 = vadd.f32 %v3218, %v3342
    %3344 = vdwg.mxu0
    %3345 = vmatprep.subr.mxu0 %v2986
    %3346 = vmatpush1.msra.mxu0 %v2985
    %3347 = vmatprep.subr.mxu0 %v2988
    %3348 = vmatpush1.msra.mxu0 %v2987
    %3349 = vmatprep.subr.mxu0 %v2990
    %3350 = vmatpush1.msra.mxu0 %v2989
    %3351 = vmatprep.subr.mxu0 %v2992
    %3352 = vmatpush1.msra.mxu0 %v2991
    %3353 = vmatprep.subr.mxu0 %v2994
    %3354 = vmatpush1.msra.mxu0 %v2993
    %3355 = vmatprep.subr.mxu0 %v2996
    %3356 = vmatpush1.msra.mxu0 %v2995
    %3357 = vmatprep.subr.mxu0 %v2998
    %3358 = vmatpush1.msra.mxu0 %v2997
    %3359 = vmatprep.subr.mxu0 %v3000
    %3360 = vmatpush1.msra.mxu0 %v2999
    %3361 = vmatprep.subr.mxu0 %v3002
    %3362 = vmatpush1.msra.mxu0 %v3001
    %3363 = vmatprep.subr.mxu0 %v3004
    %3364 = vmatpush1.msra.mxu0 %v3003
    %3365 = vmatprep.subr.mxu0 %v3006
    %3366 = vmatpush1.msra.mxu0 %v3005
    %3367 = vmatprep.subr.mxu0 %v3008
    %3368 = vmatpush1.msra.mxu0 %v3007
    %3369 = vmatprep.subr.mxu0 %v3010
    %3370 = vmatpush1.msra.mxu0 %v3009
    %3371 = vmatprep.subr.mxu0 %v3012
    %3372 = vmatpush1.msra.mxu0 %v3011
    %3373 = vmatprep.subr.mxu0 %v3014
    %3374 = vmatpush1.msra.mxu0 %v3013
    %3375 = vmatprep.subr.mxu0 %v3016
    %3376 = vmatpush1.msra.mxu0 %v3015
    %3377 = vmatprep.subr.mxu0 %v3018
    %3378 = vmatpush1.msra.mxu0 %v3017
    %3379 = vmatprep.subr.mxu0 %v3020
    %3380 = vmatpush1.msra.mxu0 %v3019
    %3381 = vmatprep.subr.mxu0 %v3022
    %3382 = vmatpush1.msra.mxu0 %v3021
    %3383 = vmatprep.subr.mxu0 %v3024
    %3384 = vmatpush1.msra.mxu0 %v3023
    %3385 = vmatprep.subr.mxu0 %v3026
    %3386 = vmatpush1.msra.mxu0 %v3025
    %3387 = vmatprep.subr.mxu0 %v3028
    %3388 = vmatpush1.msra.mxu0 %v3027
    %3389 = vmatprep.subr.mxu0 %v3030
    %3390 = vmatpush1.msra.mxu0 %v3029
    %3391 = vmatprep.subr.mxu0 %v3032
    %3392 = vmatpush1.msra.mxu0 %v3031
    %3393 = vmatprep.subr.mxu0 %v3034
    %3394 = vmatpush1.msra.mxu0 %v3033
    %3395 = vmatprep.subr.mxu0 %v3036
    %3396 = vmatpush1.msra.mxu0 %v3035
    %3397 = vmatprep.subr.mxu0 %v3038
    %3398 = vmatpush1.msra.mxu0 %v3037
    %3399 = vmatprep.subr.mxu0 %v3040
    %3400 = vmatpush1.msra.mxu0 %v3039
    %3401 = vmatprep.subr.mxu0 %v3042
    %3402 = vmatpush1.msra.mxu0 %v3041
    %3403 = vmatprep.subr.mxu0 %v3044
    %3404 = vmatpush1.msra.mxu0 %v3043
    %3405 = vmatprep.subr.mxu0 %v3046
    %3406 = vmatpush1.msra.mxu0 %v3045
    %3407 = vmatprep.subr.mxu0 %v3048
    %3408 = vmatpush1.msra.mxu0 %v3047
    %3409 = vmatprep.mubr.f32.mxu0 %v3240
    %3410 = vmatmul.mubr.f32.gmra.mrb[0].mxu0 %v3238
    %v3411 = vpop.f32.mrb[0].mxu0
    %v3412 = vadd.f32 %v3341, %v3411
    %v3413 = vpop.f32.mrb[0].mxu0
    %v3414 = vadd.f32 %v3343, %v3413
    %3415 = vdwg.mxu0
    %3416 = vmatprep.subr.mxu0 %v3050
    %3417 = vmatpush1.msra.mxu0 %v3049
    %3418 = vmatprep.subr.mxu0 %v3052
    %3419 = vmatpush1.msra.mxu0 %v3051
    %3420 = vmatprep.subr.mxu0 %v3054
    %3421 = vmatpush1.msra.mxu0 %v3053
    %3422 = vmatprep.subr.mxu0 %v3056
    %3423 = vmatpush1.msra.mxu0 %v3055
    %3424 = vmatprep.subr.mxu0 %v3058
    %3425 = vmatpush1.msra.mxu0 %v3057
    %3426 = vmatprep.subr.mxu0 %v3060
    %3427 = vmatpush1.msra.mxu0 %v3059
    %3428 = vmatprep.subr.mxu0 %v3062
    %3429 = vmatpush1.msra.mxu0 %v3061
    %3430 = vmatprep.subr.mxu0 %v3064
    %3431 = vmatpush1.msra.mxu0 %v3063
    %3432 = vmatprep.subr.mxu0 %v3066
    %3433 = vmatpush1.msra.mxu0 %v3065
    %3434 = vmatprep.subr.mxu0 %v3068
    %3435 = vmatpush1.msra.mxu0 %v3067
    %3436 = vmatprep.subr.mxu0 %v3070
    %3437 = vmatpush1.msra.mxu0 %v3069
    %3438 = vmatprep.subr.mxu0 %v3072
    %3439 = vmatpush1.msra.mxu0 %v3071
    %3440 = vmatprep.subr.mxu0 %v3074
    %3441 = vmatpush1.msra.mxu0 %v3073
    %3442 = vmatprep.subr.mxu0 %v3076
    %3443 = vmatpush1.msra.mxu0 %v3075
    %3444 = vmatprep.subr.mxu0 %v3078
    %3445 = vmatpush1.msra.mxu0 %v3077
    %3446 = vmatprep.subr.mxu0 %v3080
    %3447 = vmatpush1.msra.mxu0 %v3079
    %3448 = vmatprep.subr.mxu0 %v3082
    %3449 = vmatpush1.msra.mxu0 %v3081
    %3450 = vmatprep.subr.mxu0 %v3084
    %3451 = vmatpush1.msra.mxu0 %v3083
    %3452 = vmatprep.subr.mxu0 %v3086
    %3453 = vmatpush1.msra.mxu0 %v3085
    %3454 = vmatprep.subr.mxu0 %v3088
    %3455 = vmatpush1.msra.mxu0 %v3087
    %3456 = vmatprep.subr.mxu0 %v3090
    %3457 = vmatpush1.msra.mxu0 %v3089
    %3458 = vmatprep.subr.mxu0 %v3092
    %3459 = vmatpush1.msra.mxu0 %v3091
    %3460 = vmatprep.subr.mxu0 %v3094
    %3461 = vmatpush1.msra.mxu0 %v3093
    %3462 = vmatprep.subr.mxu0 %v3096
    %3463 = vmatpush1.msra.mxu0 %v3095
    %3464 = vmatprep.subr.mxu0 %v3098
    %3465 = vmatpush1.msra.mxu0 %v3097
    %3466 = vmatprep.subr.mxu0 %v3100
    %3467 = vmatpush1.msra.mxu0 %v3099
    %3468 = vmatprep.subr.mxu0 %v3102
    %3469 = vmatpush1.msra.mxu0 %v3101
    %3470 = vmatprep.subr.mxu0 %v3104
    %3471 = vmatpush1.msra.mxu0 %v3103
    %3472 = vmatprep.subr.mxu0 %v3106
    %3473 = vmatpush1.msra.mxu0 %v3105
    %3474 = vmatprep.subr.mxu0 %v3108
    %3475 = vmatpush1.msra.mxu0 %v3107
    %3476 = vmatprep.subr.mxu0 %v3110
    %3477 = vmatpush1.msra.mxu0 %v3109
    %3478 = vmatprep.subr.mxu0 %v3112
    %3479 = vmatpush1.msra.mxu0 %v3111
    %3480 = vmatprep.mubr.f32.mxu0 %v3256
    %3481 = vmatmul.mubr.f32.gmra.mrb[0].mxu0 %v3248
    %v3482 = vpop.f32.mrb[0].mxu0
    %v3483 = vadd.f32 %v3412, %v3482
    %v3484 = vpop.f32.mrb[0].mxu0
    %v3485 = vadd.f32 %v3414, %v3484
    %3486 = vdwg.mxu0
    %3487 = vmatprep.subr.mxu0 %v3114
    %3488 = vmatpush1.msra.mxu0 %v3113
    %3489 = vmatprep.subr.mxu0 %v3116
    %3490 = vmatpush1.msra.mxu0 %v3115
    %3491 = vmatprep.subr.mxu0 %v3118
    %3492 = vmatpush1.msra.mxu0 %v3117
    %3493 = vmatprep.subr.mxu0 %v3120
    %3494 = vmatpush1.msra.mxu0 %v3119
    %3495 = vmatprep.subr.mxu0 %v3122
    %3496 = vmatpush1.msra.mxu0 %v3121
    %3497 = vmatprep.subr.mxu0 %v3124
    %3498 = vmatpush1.msra.mxu0 %v3123
    %3499 = vmatprep.subr.mxu0 %v3126
    %3500 = vmatpush1.msra.mxu0 %v3125
    %3501 = vmatprep.subr.mxu0 %v3128
    %3502 = vmatpush1.msra.mxu0 %v3127
    %3503 = vmatprep.subr.mxu0 %v3130
    %3504 = vmatpush1.msra.mxu0 %v3129
    %3505 = vmatprep.subr.mxu0 %v3132
    %3506 = vmatpush1.msra.mxu0 %v3131
    %3507 = vmatprep.subr.mxu0 %v3134
    %3508 = vmatpush1.msra.mxu0 %v3133
    %3509 = vmatprep.subr.mxu0 %v3136
    %3510 = vmatpush1.msra.mxu0 %v3135
    %3511 = vmatprep.subr.mxu0 %v3138
    %3512 = vmatpush1.msra.mxu0 %v3137
    %3513 = vmatprep.subr.mxu0 %v3140
    %3514 = vmatpush1.msra.mxu0 %v3139
    %3515 = vmatprep.subr.mxu0 %v3142
    %3516 = vmatpush1.msra.mxu0 %v3141
    %3517 = vmatprep.subr.mxu0 %v3144
    %3518 = vmatpush1.msra.mxu0 %v3143
    %3519 = vmatprep.subr.mxu0 %v3146
    %3520 = vmatpush1.msra.mxu0 %v3145
    %3521 = vmatprep.subr.mxu0 %v3148
    %3522 = vmatpush1.msra.mxu0 %v3147
    %3523 = vmatprep.subr.mxu0 %v3150
    %3524 = vmatpush1.msra.mxu0 %v3149
    %3525 = vmatprep.subr.mxu0 %v3152
    %3526 = vmatpush1.msra.mxu0 %v3151
    %3527 = vmatprep.subr.mxu0 %v3154
    %3528 = vmatpush1.msra.mxu0 %v3153
    %3529 = vmatprep.subr.mxu0 %v3156
    %3530 = vmatpush1.msra.mxu0 %v3155
    %3531 = vmatprep.subr.mxu0 %v3158
    %3532 = vmatpush1.msra.mxu0 %v3157
    %3533 = vmatprep.subr.mxu0 %v3160
    %3534 = vmatpush1.msra.mxu0 %v3159
    %3535 = vmatprep.subr.mxu0 %v3162
    %3536 = vmatpush1.msra.mxu0 %v3161
    %3537 = vmatprep.subr.mxu0 %v3164
    %3538 = vmatpush1.msra.mxu0 %v3163
    %3539 = vmatprep.subr.mxu0 %v3166
    %3540 = vmatpush1.msra.mxu0 %v3165
    %3541 = vmatprep.subr.mxu0 %v3168
    %3542 = vmatpush1.msra.mxu0 %v3167
    %3543 = vmatprep.subr.mxu0 %v3170
    %3544 = vmatpush1.msra.mxu0 %v3169
    %3545 = vmatprep.subr.mxu0 %v3172
    %3546 = vmatpush1.msra.mxu0 %v3171
    %3547 = vmatprep.subr.mxu0 %v3174
    %3548 = vmatpush1.msra.mxu0 %v3173
    %3549 = vmatprep.subr.mxu0 %v3176
    %3550 = vmatpush1.msra.mxu0 %v3175
    %3551 = vmatprep.mubr.f32.mxu0 %v3257
    %3552 = vmatmul.mubr.f32.gmra.mrb[0].mxu0 %v3255
    %v3553 = vpop.f32.mrb[0].mxu0
    %v3554 = vadd.f32 %v3483, %v3553
    %v3555 = vpop.f32.mrb[0].mxu0
    %v3556 = vadd.f32 %v3485, %v3555
    %3557 = vdwg.mxu0
    %3558 = vmatprep.subr.mxu0 %v3178
    %3559 = vmatpush1.msra.mxu0 %v3177
    %3560 = vmatprep.subr.mxu0 %v3180
    %3561 = vmatpush1.msra.mxu0 %v3179
    %3562 = vmatprep.subr.mxu0 %v3182
    %3563 = vmatpush1.msra.mxu0 %v3181
    %3564 = vmatprep.subr.mxu0 %v3184
    %3565 = vmatpush1.msra.mxu0 %v3183
    %3566 = vmatprep.subr.mxu0 %v3186
    %3567 = vmatpush1.msra.mxu0 %v3185
    %3568 = vmatprep.subr.mxu0 %v3188
    %3569 = vmatpush1.msra.mxu0 %v3187
    %3570 = vmatprep.subr.mxu0 %v3190
    %3571 = vmatpush1.msra.mxu0 %v3189
    %3572 = vmatprep.subr.mxu0 %v3192
    %3573 = vmatpush1.msra.mxu0 %v3191
    %3574 = vmatprep.subr.mxu0 %v3194
    %3575 = vmatpush1.msra.mxu0 %v3193
    %3576 = vmatprep.subr.mxu0 %v3196
    %3577 = vmatpush1.msra.mxu0 %v3195
    %3578 = vmatprep.subr.mxu0 %v3198
    %3579 = vmatpush1.msra.mxu0 %v3197
    %3580 = vmatprep.subr.mxu0 %v3200
    %3581 = vmatpush1.msra.mxu0 %v3199
    %3582 = vmatprep.subr.mxu0 %v3202
    %3583 = vmatpush1.msra.mxu0 %v3201
    %3584 = vmatprep.subr.mxu0 %v3204
    %3585 = vmatpush1.msra.mxu0 %v3203
    %3586 = vmatprep.subr.mxu0 %v3206
    %3587 = vmatpush1.msra.mxu0 %v3205
    %3588 = vmatprep.subr.mxu0 %v3208
    %3589 = vmatpush1.msra.mxu0 %v3207
    %3590 = vmatprep.subr.mxu0 0.0
    %3591 = vmatpush1.msra.mxu0 0.0
    %3592 = vmatprep.subr.mxu0 0.0
    %3593 = vmatpush1.msra.mxu0 0.0
    %3594 = vmatprep.subr.mxu0 0.0
    %3595 = vmatpush1.msra.mxu0 0.0
    %3596 = vmatprep.subr.mxu0 0.0
    %3597 = vmatpush1.msra.mxu0 0.0
    %3598 = vmatprep.subr.mxu0 0.0
    %3599 = vmatpush1.msra.mxu0 0.0
    %3600 = vmatprep.subr.mxu0 0.0
    %3601 = vmatpush1.msra.mxu0 0.0
    %3602 = vmatprep.subr.mxu0 0.0
    %3603 = vmatpush1.msra.mxu0 0.0
    %3604 = vmatprep.subr.mxu0 0.0
    %3605 = vmatpush1.msra.mxu0 0.0
    %3606 = vmatprep.subr.mxu0 0.0
    %3607 = vmatpush1.msra.mxu0 0.0
    %3608 = vmatprep.subr.mxu0 0.0
    %3609 = vmatpush1.msra.mxu0 0.0
    %3610 = vmatprep.subr.mxu0 0.0
    %3611 = vmatpush1.msra.mxu0 0.0
    %3612 = vmatprep.subr.mxu0 0.0
    %3613 = vmatpush1.msra.mxu0 0.0
    %3614 = vmatprep.subr.mxu0 0.0
    %3615 = vmatpush1.msra.mxu0 0.0
    %3616 = vmatprep.subr.mxu0 0.0
    %3617 = vmatpush1.msra.mxu0 0.0
    %3618 = vmatprep.subr.mxu0 0.0
    %3619 = vmatpush1.msra.mxu0 0.0
    %3620 = vmatprep.subr.mxu0 0.0
    %3621 = vmatpush1.msra.mxu0 0.0
    %3622 = vmatprep.mubr.f32.mxu0 0.0
    %3623 = vmatmul.mubr.f32.gmra.mrb[0].mxu0 %v3264
    %v3624 = vpop.f32.mrb[0].mxu0
    %v3625 = vadd.f32 %v3554, %v3624
    %v3626 = vpop.f32.mrb[0].mxu0
    %v3627 = vadd.f32 %v3556, %v3626
    %3628 = vdwg.mxu0
    %v3629 = vmax.f32 %v3625, 0.0
    %v3630 = vmax.f32 %v3627, 0.0
    %v3631 = vld [vmem:[%s9] sm:$0xff]
    %v3632 = vld [vmem:[%s9 + $0x8] sm:$0xff]
    %v3633 = vld [vmem:[%s9 + $0x10] sm:$0xff]
    %v3634 = vld [vmem:[%s9 + $0x18] sm:$0xff]
    %v3635 = vld [vmem:[%s9 + $0x20] sm:$0xff]
    %v3636 = vld [vmem:[%s9 + $0x28] sm:$0xff]
    %v3637 = vld [vmem:[%s9 + $0x30] sm:$0xff]
    %v3638 = vld [vmem:[%s9 + $0x38] sm:$0xff]
    %v3639 = vld [vmem:[%s9 + $0x40] sm:$0xff]
    %v3640 = vld [vmem:[%s9 + $0x48] sm:$0xff]
    %v3641 = vld [vmem:[%s9 + $0x50] sm:$0xff]
    %v3642 = vld [vmem:[%s9 + $0x58] sm:$0xff]
    %v3643 = vld [vmem:[%s9 + $0x60] sm:$0xff]
    %v3644 = vld [vmem:[%s9 + $0x68] sm:$0xff]
    %v3645 = vld [vmem:[%s9 + $0x70] sm:$0xff]
    %v3646 = vld [vmem:[%s9 + $0x78] sm:$0xff]
    %v3647 = vld [vmem:[%s9 + $0x80] sm:$0xff]
    %v3648 = vld [vmem:[%s9 + $0x88] sm:$0xff]
    %v3649 = vld [vmem:[%s9 + $0x90] sm:$0xff]
    %v3650 = vld [vmem:[%s9 + $0x98] sm:$0xff]
    %v3651 = vld [vmem:[%s9 + $0xa0] sm:$0xff]
    %v3652 = vld [vmem:[%s9 + $0xa8] sm:$0xff]
    %v3653 = vld [vmem:[%s9 + $0xb0] sm:$0xff]
    %v3654 = vld [vmem:[%s9 + $0xb8] sm:$0xff]
    %v3655 = vld [vmem:[%s9 + $0xc0] sm:$0xff]
    %v3656 = vld [vmem:[%s9 + $0xc8] sm:$0xff]
    %v3657 = vld [vmem:[%s9 + $0xd0] sm:$0xff]
    %v3658 = vld [vmem:[%s9 + $0xd8] sm:$0xff]
    %v3659 = vld [vmem:[%s9 + $0xe0] sm:$0xff]
    %v3660 = vld [vmem:[%s9 + $0xe8] sm:$0xff]
    %v3661 = vld [vmem:[%s9 + $0xf0] sm:$0xff]
    %v3662 = vld [vmem:[%s9 + $0xf8] sm:$0xff]
    %v3663 = vld [vmem:[%s10] sm:$0x1]
    %v3665 = vlaneseq
    %v3666 = vshrl.u32 %v3665, 7
    %v3667 = vsub.s32 0, %v3666
    %v3668 = vrot.slane %v3663, %v3667
    %3670 = vmatprep.subr.mxu0 0.0
    %3671 = vmatpush1.msra.mxu0 %v3631
    %3672 = vmatprep.subr.mxu0 0.0
    %3673 = vmatpush1.msra.mxu0 %v3632
    %3674 = vmatprep.subr.mxu0 0.0
    %3675 = vmatpush1.msra.mxu0 %v3633
    %3676 = vmatprep.subr.mxu0 0.0
    %3677 = vmatpush1.msra.mxu0 %v3634
    %3678 = vmatprep.subr.mxu0 0.0
    %3679 = vmatpush1.msra.mxu0 %v3635
    %3680 = vmatprep.subr.mxu0 0.0
    %3681 = vmatpush1.msra.mxu0 %v3636
    %3682 = vmatprep.subr.mxu0 0.0
    %3683 = vmatpush1.msra.mxu0 %v3637
    %3684 = vmatprep.subr.mxu0 0.0
    %3685 = vmatpush1.msra.mxu0 %v3638
    %3686 = vmatprep.subr.mxu0 0.0
    %3687 = vmatpush1.msra.mxu0 %v3639
    %3688 = vmatprep.subr.mxu0 0.0
    %3689 = vmatpush1.msra.mxu0 %v3640
    %3690 = vmatprep.subr.mxu0 0.0
    %3691 = vmatpush1.msra.mxu0 %v3641
    %3692 = vmatprep.subr.mxu0 0.0
    %3693 = vmatpush1.msra.mxu0 %v3642
    %3694 = vmatprep.subr.mxu0 0.0
    %3695 = vmatpush1.msra.mxu0 %v3643
    %3696 = vmatprep.subr.mxu0 0.0
    %3697 = vmatpush1.msra.mxu0 %v3644
    %3698 = vmatprep.subr.mxu0 0.0
    %3699 = vmatpush1.msra.mxu0 %v3645
    %3700 = vmatprep.subr.mxu0 0.0
    %3701 = vmatpush1.msra.mxu0 %v3646
    %3702 = vmatprep.subr.mxu0 0.0
    %3703 = vmatpush1.msra.mxu0 %v3647
    %3704 = vmatprep.subr.mxu0 0.0
    %3705 = vmatpush1.msra.mxu0 %v3648
    %3706 = vmatprep.subr.mxu0 0.0
    %3707 = vmatpush1.msra.mxu0 %v3649
    %3708 = vmatprep.subr.mxu0 0.0
    %3709 = vmatpush1.msra.mxu0 %v3650
    %3710 = vmatprep.subr.mxu0 0.0
    %3711 = vmatpush1.msra.mxu0 %v3651
    %3712 = vmatprep.subr.mxu0 0.0
    %3713 = vmatpush1.msra.mxu0 %v3652
    %3714 = vmatprep.subr.mxu0 0.0
    %3715 = vmatpush1.msra.mxu0 %v3653
    %3716 = vmatprep.subr.mxu0 0.0
    %3717 = vmatpush1.msra.mxu0 %v3654
    %3718 = vmatprep.subr.mxu0 0.0
    %3719 = vmatpush1.msra.mxu0 %v3655
    %3720 = vmatprep.subr.mxu0 0.0
    %3721 = vmatpush1.msra.mxu0 %v3656
    %3722 = vmatprep.subr.mxu0 0.0
    %3723 = vmatpush1.msra.mxu0 %v3657
    %3724 = vmatprep.subr.mxu0 0.0
    %3725 = vmatpush1.msra.mxu0 %v3658
    %3726 = vmatprep.subr.mxu0 0.0
    %3727 = vmatpush1.msra.mxu0 %v3659
    %3728 = vmatprep.subr.mxu0 0.0
    %3729 = vmatpush1.msra.mxu0 %v3660
    %3730 = vmatprep.subr.mxu0 0.0
    %3731 = vmatpush1.msra.mxu0 %v3661
    %3732 = vmatprep.subr.mxu0 0.0
    %3733 = vmatpush1.msra.mxu0 %v3662
    %3734 = vmatprep.mubr.f32.mxu0 %v3630
    %3735 = vmatmul.mubr.f32.gmra.mrb[0].mxu0 %v3629
    %v3736 = vpop.f32.mrb[0].mxu0
    %v3737 = vadd.f32 %v3668, %v3736
    %v3738 = vpop.f32.mrb[0].mxu0
    %3739 = vdwg.mxu0
    %v3740 = vmax.f32 %v3737, 0.0
    %v3741 = vld [vmem:[%s11] sm:$0xff]
    %v3742 = vld [vmem:[%s11 + $0x8] sm:$0xff]
    %v3743 = vld [vmem:[%s11 + $0x10] sm:$0xff]
    %v3744 = vld [vmem:[%s11 + $0x18] sm:$0xff]
    %v3745 = vld [vmem:[%s11 + $0x20] sm:$0xff]
    %v3746 = vld [vmem:[%s11 + $0x28] sm:$0xff]
    %v3747 = vld [vmem:[%s11 + $0x30] sm:$0xff]
    %v3748 = vld [vmem:[%s11 + $0x38] sm:$0xff]
    %v3749 = vld [vmem:[%s12] sm:$0x1]
    %v3751 = vlaneseq
    %v3752 = vshrl.u32 %v3751, 7
    %v3753 = vsub.s32 0, %v3752
    %v3754 = vrot.slane %v3749, %v3753
    %v3757 = vsel %vm114, %v3740, 0
    %3759 = vmatprep.subr.mxu0 0.0
    %3760 = vmatpush1.msra.mxu0 %v3741
    %3761 = vmatprep.subr.mxu0 0.0
    %3762 = vmatpush1.msra.mxu0 %v3742
    %3763 = vmatprep.subr.mxu0 0.0
    %3764 = vmatpush1.msra.mxu0 %v3743
    %3765 = vmatprep.subr.mxu0 0.0
    %3766 = vmatpush1.msra.mxu0 %v3744
    %3767 = vmatprep.subr.mxu0 0.0
    %3768 = vmatpush1.msra.mxu0 %v3745
    %3769 = vmatprep.subr.mxu0 0.0
    %3770 = vmatpush1.msra.mxu0 %v3746
    %3771 = vmatprep.subr.mxu0 0.0
    %3772 = vmatpush1.msra.mxu0 %v3747
    %3773 = vmatprep.subr.mxu0 0.0
    %3774 = vmatpush1.msra.mxu0 %v3748
    %3775 = vmatprep.subr.mxu0 0.0
    %3776 = vmatpush1.msra.mxu0 0.0
    %3777 = vmatprep.subr.mxu0 0.0
    %3778 = vmatpush1.msra.mxu0 0.0
    %3779 = vmatprep.subr.mxu0 0.0
    %3780 = vmatpush1.msra.mxu0 0.0
    %3781 = vmatprep.subr.mxu0 0.0
    %3782 = vmatpush1.msra.mxu0 0.0
    %3783 = vmatprep.subr.mxu0 0.0
    %3784 = vmatpush1.msra.mxu0 0.0
    %3785 = vmatprep.subr.mxu0 0.0
    %3786 = vmatpush1.msra.mxu0 0.0
    %3787 = vmatprep.subr.mxu0 0.0
    %3788 = vmatpush1.msra.mxu0 0.0
    %3789 = vmatprep.subr.mxu0 0.0
    %3790 = vmatpush1.msra.mxu0 0.0
    %3791 = vmatprep.subr.mxu0 0.0
    %3792 = vmatpush1.msra.mxu0 0.0
    %3793 = vmatprep.subr.mxu0 0.0
    %3794 = vmatpush1.msra.mxu0 0.0
    %3795 = vmatprep.subr.mxu0 0.0
    %3796 = vmatpush1.msra.mxu0 0.0
    %3797 = vmatprep.subr.mxu0 0.0
    %3798 = vmatpush1.msra.mxu0 0.0
    %3799 = vmatprep.subr.mxu0 0.0
    %3800 = vmatpush1.msra.mxu0 0.0
    %3801 = vmatprep.subr.mxu0 0.0
    %3802 = vmatpush1.msra.mxu0 0.0
    %3803 = vmatprep.subr.mxu0 0.0
    %3804 = vmatpush1.msra.mxu0 0.0
    %3805 = vmatprep.subr.mxu0 0.0
    %3806 = vmatpush1.msra.mxu0 0.0
    %3807 = vmatprep.subr.mxu0 0.0
    %3808 = vmatpush1.msra.mxu0 0.0
    %3809 = vmatprep.subr.mxu0 0.0
    %3810 = vmatpush1.msra.mxu0 0.0
    %3811 = vmatprep.subr.mxu0 0.0
    %3812 = vmatpush1.msra.mxu0 0.0
    %3813 = vmatprep.subr.mxu0 0.0
    %3814 = vmatpush1.msra.mxu0 0.0
    %3815 = vmatprep.subr.mxu0 0.0
    %3816 = vmatpush1.msra.mxu0 0.0
    %3817 = vmatprep.subr.mxu0 0.0
    %3818 = vmatpush1.msra.mxu0 0.0
    %3819 = vmatprep.subr.mxu0 0.0
    %3820 = vmatpush1.msra.mxu0 0.0
    %3821 = vmatprep.subr.mxu0 0.0
    %3822 = vmatpush1.msra.mxu0 0.0
    %3823 = vmatprep.mubr.f32.mxu0 0.0
    %3824 = vmatmul.mubr.f32.gmra.mrb[0].mxu0 %v3757
    %v3825 = vpop.f32.mrb[0].mxu0
    %v3826 = vadd.f32 %v3754, %v3825
    %v3827 = vpop.f32.mrb[0].mxu0
    %3828 = vdwg.mxu0
    %v3829 = vmax.f32 %v3826, 0.0
    %v3830 = vld [vmem:[%s13] sm:$0xff]
    %v3831 = vld [vmem:[%s13 + $0x8] sm:$0xff]
    %v3832 = vld [vmem:[%s13 + $0x10] sm:$0xff]
    %v3833 = vld [vmem:[%s13 + $0x18] sm:$0xff]
    %v3834 = vld [vmem:[%s14] sm:$0x1]
    %v3836 = vlaneseq
    %v3837 = vshrl.u32 %v3836, 7
    %v3838 = vsub.s32 0, %v3837
    %v3839 = vrot.slane %v3834, %v3838
    %vm3841 = vcmask 261120
    %v3843 = vsel %vm3841, %v3829, 0
    %3845 = vmatprep.subr.mxu0 0.0
    %3846 = vmatpush1.msra.mxu0 %v3830
    %3847 = vmatprep.subr.mxu0 0.0
    %3848 = vmatpush1.msra.mxu0 %v3831
    %3849 = vmatprep.subr.mxu0 0.0
    %3850 = vmatpush1.msra.mxu0 %v3832
    %3851 = vmatprep.subr.mxu0 0.0
    %3852 = vmatpush1.msra.mxu0 %v3833
    %3853 = vmatprep.subr.mxu0 0.0
    %3854 = vmatpush1.msra.mxu0 0.0
    %3855 = vmatprep.subr.mxu0 0.0
    %3856 = vmatpush1.msra.mxu0 0.0
    %3857 = vmatprep.subr.mxu0 0.0
    %3858 = vmatpush1.msra.mxu0 0.0
    %3859 = vmatprep.subr.mxu0 0.0
    %3860 = vmatpush1.msra.mxu0 0.0
    %3861 = vmatprep.subr.mxu0 0.0
    %3862 = vmatpush1.msra.mxu0 0.0
    %3863 = vmatprep.subr.mxu0 0.0
    %3864 = vmatpush1.msra.mxu0 0.0
    %3865 = vmatprep.subr.mxu0 0.0
    %3866 = vmatpush1.msra.mxu0 0.0
    %3867 = vmatprep.subr.mxu0 0.0
    %3868 = vmatpush1.msra.mxu0 0.0
    %3869 = vmatprep.subr.mxu0 0.0
    %3870 = vmatpush1.msra.mxu0 0.0
    %3871 = vmatprep.subr.mxu0 0.0
    %3872 = vmatpush1.msra.mxu0 0.0
    %3873 = vmatprep.subr.mxu0 0.0
    %3874 = vmatpush1.msra.mxu0 0.0
    %3875 = vmatprep.subr.mxu0 0.0
    %3876 = vmatpush1.msra.mxu0 0.0
    %3877 = vmatprep.subr.mxu0 0.0
    %3878 = vmatpush1.msra.mxu0 0.0
    %3879 = vmatprep.subr.mxu0 0.0
    %3880 = vmatpush1.msra.mxu0 0.0
    %3881 = vmatprep.subr.mxu0 0.0
    %3882 = vmatpush1.msra.mxu0 0.0
    %3883 = vmatprep.subr.mxu0 0.0
    %3884 = vmatpush1.msra.mxu0 0.0
    %3885 = vmatprep.subr.mxu0 0.0
    %3886 = vmatpush1.msra.mxu0 0.0
    %3887 = vmatprep.subr.mxu0 0.0
    %3888 = vmatpush1.msra.mxu0 0.0
    %3889 = vmatprep.subr.mxu0 0.0
    %3890 = vmatpush1.msra.mxu0 0.0
    %3891 = vmatprep.subr.mxu0 0.0
    %3892 = vmatpush1.msra.mxu0 0.0
    %3893 = vmatprep.subr.mxu0 0.0
    %3894 = vmatpush1.msra.mxu0 0.0
    %3895 = vmatprep.subr.mxu0 0.0
    %3896 = vmatpush1.msra.mxu0 0.0
    %3897 = vmatprep.subr.mxu0 0.0
    %3898 = vmatpush1.msra.mxu0 0.0
    %3899 = vmatprep.subr.mxu0 0.0
    %3900 = vmatpush1.msra.mxu0 0.0
    %3901 = vmatprep.subr.mxu0 0.0
    %3902 = vmatpush1.msra.mxu0 0.0
    %3903 = vmatprep.subr.mxu0 0.0
    %3904 = vmatpush1.msra.mxu0 0.0
    %3905 = vmatprep.subr.mxu0 0.0
    %3906 = vmatpush1.msra.mxu0 0.0
    %3907 = vmatprep.subr.mxu0 0.0
    %3908 = vmatpush1.msra.mxu0 0.0
    %3909 = vmatprep.mubr.f32.mxu0 0.0
    %3910 = vmatmul.mubr.f32.gmra.mrb[0].mxu0 %v3843
    %v3911 = vpop.f32.mrb[0].mxu0
    %v3912 = vadd.f32 %v3839, %v3911
    %v3913 = vpop.f32.mrb[0].mxu0
    %3914 = vdwg.mxu0
    %vm3915 = vcmask 9216
    %3916 = vst.msk [vmem:[#allocation8] sm:$0x3] %vm3915, %v3912
    // Predicated region
    $region62: #{vision_control_net_forward.1} parent=1 // pred_check
      _
    $region63: #{vision_control_net_forward.1} parent=1 // pred_check_branch
      %3918 = sbr.rel (0) target = $region65
    $region64: #{vision_control_net_forward.1} parent=1 // pred_region
      %s3920 = ssub.s32 32, 32
      %3921 = vsyncadd [#allocation9], %s3920
      %s3923 = sshll.u32 [#allocation8], 4
      %s3924 = int_to_ptr.vmem [resolvable:$true] %s3923
      %3926 = dma.vmem_to_hbm [thread:$0]  %s3924, 32, %s15, [#allocation9]
    $region65: #{vision_control_net_forward.1} parent=1 // pred_fallthru
      _
    // Predicated region
    $region66: #{vision_control_net_forward.1} parent=1 // pred_check
      _
    $region67: #{vision_control_net_forward.1} parent=1 // pred_check_branch
      %3928 = sbr.rel (0) target = $region69
    $region68: #{vision_control_net_forward.1} parent=1 // pred_region
      %3929 = dma.done [#allocation9], 32
    $region69: #{vision_control_net_forward.1} parent=1 // pred_fallthru
      _
    %3930 = vsyncpa [#allocation9], 1

</llo_original>
